<compile_context>
chip_gen: v5e
topology: v5e:2x2
jax: 0.10.0
libtpu: 0.0.40
codegen_flags: <defaults>
</compile_context>

<pallas_src>
import functools

import jax
import jax.numpy as jnp
from jax.experimental import pallas as pl
from jax.experimental.pallas import tpu as pltpu


# ----------------------------- helpers -------------------------------------

def _round_up(x, m):
    return ((x + m - 1) // m) * m


def _pick_tiles(n, tm_cap=512, tk_cap=2048):
    """Pick (n_pad, tm, tk) with tm | n_pad and tk | n_pad, all multiples of 128."""
    n128 = _round_up(n, 128)
    if n128 <= tk_cap:
        tk = n128
        tm = min(tm_cap, tk)
        if tk % tm:
            tm = 128          # 128 always divides a multiple of 128
        return n128, tm, tk
    n_pad = _round_up(n, tm_cap)
    tm = tm_cap
    cand = (tk_cap // tm) * tm
    while cand > tm:
        if n_pad % cand == 0:
            return n_pad, tm, cand
        cand -= tm
    return n_pad, tm, tm


def _vmem_limit_bytes():
    """Per-generation VMEM budget: physical capacity minus headroom."""
    try:
        cap = int(pltpu.get_tpu_info().vmem_capacity_bytes)
    except Exception:
        cap = 64 * 1024 * 1024          # conservative (v7x-sized) fallback
    # v7x: 64-16 = 48 MiB; v5e/v6e: 128-16 = 112 MiB.
    return max(32 * 1024 * 1024, cap - 16 * 1024 * 1024)


# ----------------------------- Pallas kernels -------------------------------

def _gcn_layer1_kernel(a_ref, xw_ref, b1_ref, h_ref, acc_ref):
    """H[i-tile] = relu( sum_k A[i,k] @ XW1[k-rows] + b1 ).

    a_ref  : (tm, tk)   bf16   streamed A_hat tile
    xw_ref : (tk, H)    bf16   streamed X@W1 k-slab
    b1_ref : (1, H)     f32    constant block
    h_ref  : (tm, H)    bf16   output row tile
    acc_ref: (tm, H)    f32    persistent accumulator over k
    """
    k = pl.program_id(1)

    @pl.when(k == 0)
    def _():
        acc_ref[...] = jnp.zeros_like(acc_ref)

    acc_ref[...] += jnp.dot(a_ref[...], xw_ref[...],
                            preferred_element_type=jnp.float32)

    @pl.when(k == pl.num_programs(1) - 1)
    def _():
        h_ref[...] = jnp.maximum(acc_ref[...] + b1_ref[...],
                                 0.0).astype(h_ref.dtype)


def _gcn_layer2_kernel(a_ref, hw2_ref, b2_ref, o_ref, acc_ref):
    """out[i-tile] = sum_k A[i,k] @ HW2[k-rows] + b2.

    a_ref  : (tm, tk)   bf16   streamed A_hat tile
    hw2_ref: (tk, 1)    bf16   streamed H@W2 k-slab
    b2_ref : (1,)       f32    SMEM scalar
    o_ref  : (tm, 1)    f32    output row tile
    acc_ref: (tm, 1)    f32    persistent accumulator over k
    """
    k = pl.program_id(1)

    @pl.when(k == 0)
    def _():
        acc_ref[...] = jnp.zeros_like(acc_ref)

    acc_ref[...] += jnp.dot(a_ref[...], hw2_ref[...],
                            preferred_element_type=jnp.float32)

    @pl.when(k == pl.num_programs(1) - 1)
    def _():
        o_ref[...] = (acc_ref[...] + b2_ref[0]).astype(o_ref.dtype)


# ------------------------------ driver --------------------------------------

def gcn_two_layer(a_hat, x, w1, b1, w2, b2, *, tm_cap=512, tk_cap=2048):
    """2-layer GCN forward on a dense normalized adjacency. Returns [N]."""
    n = x.shape[0]
    h_dim = w1.shape[1]
    n_pad, tm, tk = _pick_tiles(n, tm_cap, tk_cap)

    # Zero padding is inert: padded A rows/cols are zero, so padded H rows
    # (= relu(b1)) never reach real outputs, and padded output rows are sliced.
    if n_pad != n:
        a_hat = jnp.pad(a_hat, ((0, n_pad - n), (0, n_pad - n)))
        x = jnp.pad(x, ((0, n_pad - n), (0, 0)))

    a_bf = a_hat.astype(jnp.bfloat16)
    w1_bf = w1.astype(jnp.bfloat16)
    w2_bf = w2.astype(jnp.bfloat16)
    b1_2d = b1.reshape(1, h_dim).astype(jnp.float32)
    b2_1d = b2.reshape(1).astype(jnp.float32)

    # Hoisted tiny feature matmul (review): (n_pad, f_in) @ (f_in, h) in XLA.
    xw1 = jnp.dot(x.astype(jnp.bfloat16), w1_bf,
                  preferred_element_type=jnp.float32).astype(jnp.bfloat16)

    vmem_limit = _vmem_limit_bytes()
    grid = (n_pad // tm, n_pad // tk)

    # ---- layer 1: H = relu(A_hat @ XW1 + b1) ----
    h = pl.pallas_call(
        _gcn_layer1_kernel,
        out_shape=jax.ShapeDtypeStruct((n_pad, h_dim), jnp.bfloat16),
        grid_spec=pltpu.PrefetchScalarGridSpec(
            num_scalar_prefetch=0,
            grid=grid,                                    # (row tile, k tile)
            in_specs=[
                pl.BlockSpec((tm, tk), lambda i, k: (i, k)),       # A_hat
                pl.BlockSpec((tk, h_dim), lambda i, k: (k, 0)),    # X @ W1
                pl.BlockSpec((1, h_dim), lambda i, k: (0, 0)),     # b1
            ],
            out_specs=pl.BlockSpec((tm, h_dim), lambda i, k: (i, 0)),
            scratch_shapes=[pltpu.VMEM((tm, h_dim), jnp.float32)],
        ),
        compiler_params=pltpu.CompilerParams(
            dimension_semantics=("parallel", "arbitrary"),
            vmem_limit_bytes=vmem_limit,
        ),
    )(a_bf, xw1, b1_2d)

    # Hoisted tiny projection (review): (n_pad, h) @ (h, 1) in XLA.
    hw2 = jnp.dot(h, w2_bf,
                  preferred_element_type=jnp.float32).astype(jnp.bfloat16)

    # ---- layer 2: out = A_hat @ HW2 + b2 ----
    out = pl.pallas_call(
        _gcn_layer2_kernel,
        out_shape=jax.ShapeDtypeStruct((n_pad, 1), jnp.float32),
        grid_spec=pltpu.PrefetchScalarGridSpec(
            num_scalar_prefetch=0,
            grid=grid,
            in_specs=[
                pl.BlockSpec((tm, tk), lambda i, k: (i, k)),        # A_hat
                pl.BlockSpec((tk, 1), lambda i, k: (k, 0)),         # H @ W2
                pl.BlockSpec(memory_space=pltpu.MemorySpace.SMEM),  # b2
            ],
            out_specs=pl.BlockSpec((tm, 1), lambda i, k: (i, 0)),
            scratch_shapes=[pltpu.VMEM((tm, 1), jnp.float32)],
        ),
        compiler_params=pltpu.CompilerParams(
            dimension_semantics=("parallel", "arbitrary"),
            vmem_limit_bytes=vmem_limit,
        ),
    )(a_bf, hw2, b2_1d)

    return out[:n, 0]


# ------------------------------- glue / model --------------------------------

def build_norm_adj(edge_index, num_nodes):
    """Dense symmetric-normalized adjacency (PyG gcn_norm semantics):
    duplicate edges are summed, self-loops added only where missing."""
    src = edge_index[0]
    dst = edge_index[1]
    a = jnp.zeros((num_nodes, num_nodes), jnp.float32)
    a = a.at[dst, src].add(1.0)                       # sum duplicate messages
    diag = jnp.diagonal(a)
    a = a + jnp.diag(jnp.where(diag > 0, 0.0, 1.0))   # add_remaining_self_loops
    deg = jnp.sum(a, axis=1)
    d_inv_sqrt = 1.0 / jnp.sqrt(jnp.maximum(deg, 1e-12))
    return d_inv_sqrt[:, None] * a * d_inv_sqrt[None, :]


def init_params(key, input_dim, hidden_dim=128):
    """Glorot-style init matching GCNConv parameter shapes."""
    k1, k2 = jax.random.split(key)

    def glorot(k, fan_in, fan_out):
        limit = jnp.sqrt(6.0 / (fan_in + fan_out))
        return jax.random.uniform(k, (fan_in, fan_out), jnp.float32,
                                  minval=-limit, maxval=limit)

    return {
        "w1": glorot(k1, input_dim, hidden_dim),
        "b1": jnp.zeros((hidden_dim,), jnp.float32),
        "w2": glorot(k2, hidden_dim, 1),
        "b2": jnp.zeros((1,), jnp.float32),
    }


def gnn_model_forward(params, x, edge_index, *, tm_cap=512, tk_cap=2048):
    """Pallas implementation of GNNModel.forward(x, edge_index) -> [N]."""
    n = x.shape[0]
    a_hat = build_norm_adj(edge_index, n)
    return gcn_two_layer(a_hat, x, params["w1"], params["b1"],
                         params["w2"], params["b2"],
                         tm_cap=tm_cap, tk_cap=tk_cap)


def gnn_model_reference(params, x, edge_index):
    """Pure-JAX reference with the same bf16 operand quantization."""
    def q(t):  # bf16-quantize, compute in f32 (matches MXU bf16 x bf16 -> f32)
        return t.astype(jnp.bfloat16).astype(jnp.float32)

    n = x.shape[0]
    a = q(build_norm_adj(edge_index, n))
    xw = q(q(x) @ q(params["w1"]))
    h = q(jnp.maximum(a @ xw + params["b1"][None, :], 0.0))
    hw2 = q(h @ q(params["w2"]))
    out = a @ hw2 + params["b2"][None, :]
    return out[:, 0]


# --------------------------------- main --------------------------------------

if __name__ == "__main__":
    key = jax.random.PRNGKey(0)
    k_x, k_p, k_e = jax.random.split(key, 3)

    num_nodes = 1000     # pads to 1024; default tiling gives a 2x1 grid
    input_dim = 16
    hidden_dim = 128     # module default

    # Deterministic node features.
    x = jax.random.normal(k_x, (num_nodes, input_dim), jnp.float32)

    # Deterministic edge_index [2, 3N]: bidirectional ring + random chords.
    idx = jnp.arange(num_nodes, dtype=jnp.int32)
    nxt = (idx + 1) % num_nodes
    chord_src = jax.random.randint(k_e, (num_nodes,), 0, num_nodes,
                                   dtype=jnp.int32)
    chord_dst = (chord_src + num_nodes // 2) % num_nodes
    edge_index = jnp.stack(
        [jnp.concatenate([idx, nxt, chord_src]),
         jnp.concatenate([nxt, idx, chord_dst])], axis=0)

    params = init_params(k_p, input_dim, hidden_dim)
    ref = gnn_model_reference(params, x, edge_index)

    # 1) Default (large-tile) configuration.
    fwd = jax.jit(gnn_model_forward)
    out = jax.block_until_ready(fwd(params, x, edge_index))
    assert out.shape == (num_nodes,), out.shape
    err = float(jnp.max(jnp.abs(out - ref)))
    assert jnp.allclose(out, ref, atol=5e-3, rtol=5e-3), err

    # 2) Small tiles to exercise the multi-row-tile / multi-k-tile reduction path.
    fwd_small = jax.jit(functools.partial(gnn_model_forward,
                                          tm_cap=128, tk_cap=256))
    out_s = jax.block_until_ready(fwd_small(params, x, edge_index))
    err_s = float(jnp.max(jnp.abs(out_s - ref)))
    assert jnp.allclose(out_s, ref, atol=5e-3, rtol=5e-3), err_s

    print("KERNEL_OK")
</pallas_src>

<mosaic_0001>
module attributes {stable_mosaic.version = 11 : i64} {
  func.func @_gcn_layer1_kernel(%arg0: i32, %arg1: i32, %arg2: memref<512x1024xbf16, #tpu.memory_space<vmem>>, %arg3: memref<1024x128xbf16, #tpu.memory_space<vmem>>, %arg4: memref<1x128xf32, #tpu.memory_space<vmem>>, %arg5: memref<512x128xbf16, #tpu.memory_space<vmem>>, %arg6: memref<512x128xf32, #tpu.memory_space<vmem>>) attributes {dimension_semantics = [#tpu.dimension_semantics<parallel>, #tpu.dimension_semantics<arbitrary>], iteration_bounds = array<i64: 2, 1>, scalar_prefetch = 0 : i64, scratch_operands = 1 : i64, tpu.core_type = #tpu.core_type<tc>, window_params = [{transform_indices = @transform_0, window_bounds = array<i64: 512, 1024>}, {transform_indices = @transform_1, window_bounds = array<i64: 1024, 128>}, {pipeline_mode = #tpu.pipeline_mode<synchronous>, transform_indices = @transform_2, window_bounds = array<i64: 1, 128>}, {transform_indices = @transform_3, window_bounds = array<i64: 512, 128>}]} {
    %c0_i32 = arith.constant 0 : i32
    %0 = arith.cmpi eq, %arg1, %c0_i32 : i32
    %1 = arith.extui %0 : i1 to i32
    %c0_i32_0 = arith.constant 0 : i32
    %2 = arith.cmpi ne, %1, %c0_i32_0 : i32
    scf.if %2 {
      %cst_10 = arith.constant 0.000000e+00 : f32
      %12 = vector.broadcast %cst_10 : f32 to vector<512x128xf32>
      %c0_11 = arith.constant 0 : index
      %c0_12 = arith.constant 0 : index
      %13 = vector.load %arg6[%c0_11, %c0_12] : memref<512x128xf32, #tpu.memory_space<vmem>>, vector<512x128xf32>
      tpu.vector_store %arg6[%c0_11, %c0_12], %12 {strides = array<i32>} : memref<512x128xf32, #tpu.memory_space<vmem>>, vector<512x128xf32>,
    } else {
    }
    %c0 = arith.constant 0 : index
    %c0_1 = arith.constant 0 : index
    %3 = vector.load %arg6[%c0, %c0_1] : memref<512x128xf32, #tpu.memory_space<vmem>>, vector<512x128xf32>
    %c0_2 = arith.constant 0 : index
    %c0_3 = arith.constant 0 : index
    %4 = vector.load %arg2[%c0_2, %c0_3] : memref<512x1024xbf16, #tpu.memory_space<vmem>>, vector<512x1024xbf16>
    %c0_4 = arith.constant 0 : index
    %c0_5 = arith.constant 0 : index
    %5 = vector.load %arg3[%c0_4, %c0_5] : memref<1024x128xbf16, #tpu.memory_space<vmem>>, vector<1024x128xbf16>
    %cst = arith.constant dense<0.000000e+00> : vector<512x128xf32>
    %6 = tpu.matmul %4, %5, %cst {dimension_numbers = #tpu.dot_dimension_numbers<[1], [0], [0], [1], [0, 0, 1, 1], [], []>} : vector<512x1024xbf16>, vector<1024x128xbf16>, vector<512x128xf32> -> vector<512x128xf32>
    %7 = arith.addf %3, %6 : vector<512x128xf32>
    %c0_6 = arith.constant 0 : index
    %c0_7 = arith.constant 0 : index
    %8 = vector.load %arg6[%c0_6, %c0_7] : memref<512x128xf32, #tpu.memory_space<vmem>>, vector<512x128xf32>
    tpu.vector_store %arg6[%c0_6, %c0_7], %7 {strides = array<i32>} : memref<512x128xf32, #tpu.memory_space<vmem>>, vector<512x128xf32>,
    %c0_i32_8 = arith.constant 0 : i32
    %9 = arith.cmpi eq, %arg1, %c0_i32_8 : i32
    %10 = arith.extui %9 : i1 to i32
    %c0_i32_9 = arith.constant 0 : i32
    %11 = arith.cmpi ne, %10, %c0_i32_9 : i32
    scf.if %11 {
      %c0_10 = arith.constant 0 : index
      %c0_11 = arith.constant 0 : index
      %12 = vector.load %arg6[%c0_10, %c0_11] : memref<512x128xf32, #tpu.memory_space<vmem>>, vector<512x128xf32>
      %c0_12 = arith.constant 0 : index
      %c0_13 = arith.constant 0 : index
      %13 = vector.load %arg4[%c0_12, %c0_13] : memref<1x128xf32, #tpu.memory_space<vmem>>, vector<1x128xf32>
      %14 = vector.broadcast %13 : vector<1x128xf32> to vector<512x128xf32>
      %15 = arith.addf %12, %14 : vector<512x128xf32>
      %cst_14 = arith.constant 0.000000e+00 : f32
      %16 = vector.broadcast %cst_14 : f32 to vector<512x128xf32>
      %17 = arith.maximumf %15, %16 : vector<512x128xf32>
      %18 = arith.truncf %17 : vector<512x128xf32> to vector<512x128xbf16>
      %c0_15 = arith.constant 0 : index
      %c0_16 = arith.constant 0 : index
      %19 = vector.load %arg5[%c0_15, %c0_16] : memref<512x128xbf16, #tpu.memory_space<vmem>>, vector<512x128xbf16>
      tpu.vector_store %arg5[%c0_15, %c0_16], %18 {strides = array<i32>} : memref<512x128xbf16, #tpu.memory_space<vmem>>, vector<512x128xbf16>,
    } else {
    }
    return
  }
  func.func @transform_0(%arg0: i32, %arg1: i32) -> (i32, i32) {
    %c0_i32 = arith.constant 0 : i32
    return %arg0, %arg1 : i32, i32
  }
  func.func @transform_1(%arg0: i32, %arg1: i32) -> (i32, i32) {
    %c0_i32 = arith.constant 0 : i32
    %c0_i32_0 = arith.constant 0 : i32
    return %arg1, %c0_i32 : i32, i32
  }
  func.func @transform_2(%arg0: i32, %arg1: i32) -> (i32, i32) {
    %c0_i32 = arith.constant 0 : i32
    %c0_i32_0 = arith.constant 0 : i32
    %c0_i32_1 = arith.constant 0 : i32
    return %c0_i32, %c0_i32_0 : i32, i32
  }
  func.func @transform_3(%arg0: i32, %arg1: i32) -> (i32, i32) {
    %c0_i32 = arith.constant 0 : i32
    %c0_i32_0 = arith.constant 0 : i32
    return %arg0, %c0_i32 : i32, i32
  }
}

module attributes {stable_mosaic.version = 11 : i64} {
  func.func @_gcn_layer2_kernel(%arg0: i32, %arg1: i32, %arg2: memref<512x1024xbf16, #tpu.memory_space<vmem>>, %arg3: memref<1024x1xbf16, #tpu.memory_space<vmem>>, %arg4: memref<1xf32, #tpu.memory_space<smem>>, %arg5: memref<512x1xf32, #tpu.memory_space<vmem>>, %arg6: memref<512x1xf32, #tpu.memory_space<vmem>>) attributes {dimension_semantics = [#tpu.dimension_semantics<parallel>, #tpu.dimension_semantics<arbitrary>], iteration_bounds = array<i64: 2, 1>, scalar_prefetch = 0 : i64, scratch_operands = 1 : i64, tpu.core_type = #tpu.core_type<tc>, window_params = [{transform_indices = @transform_0, window_bounds = array<i64: 512, 1024>}, {transform_indices = @transform_1, window_bounds = array<i64: 1024, 1>}, {transform_indices = @transform_2, window_bounds = array<i64: 1>}, {transform_indices = @transform_3, window_bounds = array<i64: 512, 1>}]} {
    %c0_i32 = arith.constant 0 : i32
    %0 = arith.cmpi eq, %arg1, %c0_i32 : i32
    %1 = arith.extui %0 : i1 to i32
    %c0_i32_0 = arith.constant 0 : i32
    %2 = arith.cmpi ne, %1, %c0_i32_0 : i32
    scf.if %2 {
      %cst_10 = arith.constant 0.000000e+00 : f32
      %12 = vector.broadcast %cst_10 : f32 to vector<512x1xf32>
      %c0_11 = arith.constant 0 : index
      %c0_12 = arith.constant 0 : index
      %13 = vector.load %arg6[%c0_11, %c0_12] : memref<512x1xf32, #tpu.memory_space<vmem>>, vector<512x1xf32>
      tpu.vector_store %arg6[%c0_11, %c0_12], %12 {strides = array<i32>} : memref<512x1xf32, #tpu.memory_space<vmem>>, vector<512x1xf32>,
    } else {
    }
    %c0 = arith.constant 0 : index
    %c0_1 = arith.constant 0 : index
    %3 = vector.load %arg6[%c0, %c0_1] : memref<512x1xf32, #tpu.memory_space<vmem>>, vector<512x1xf32>
    %c0_2 = arith.constant 0 : index
    %c0_3 = arith.constant 0 : index
    %4 = vector.load %arg2[%c0_2, %c0_3] : memref<512x1024xbf16, #tpu.memory_space<vmem>>, vector<512x1024xbf16>
    %c0_4 = arith.constant 0 : index
    %c0_5 = arith.constant 0 : index
    %5 = vector.load %arg3[%c0_4, %c0_5] : memref<1024x1xbf16, #tpu.memory_space<vmem>>, vector<1024x1xbf16>
    %cst = arith.constant dense<0.000000e+00> : vector<512x1xf32>
    %6 = tpu.matmul %4, %5, %cst {dimension_numbers = #tpu.dot_dimension_numbers<[1], [0], [0], [1], [0, 0, 1, 1], [], []>} : vector<512x1024xbf16>, vector<1024x1xbf16>, vector<512x1xf32> -> vector<512x1xf32>
    %7 = arith.addf %3, %6 : vector<512x1xf32>
    %c0_6 = arith.constant 0 : index
    %c0_7 = arith.constant 0 : index
    %8 = vector.load %arg6[%c0_6, %c0_7] : memref<512x1xf32, #tpu.memory_space<vmem>>, vector<512x1xf32>
    tpu.vector_store %arg6[%c0_6, %c0_7], %7 {strides = array<i32>} : memref<512x1xf32, #tpu.memory_space<vmem>>, vector<512x1xf32>,
    %c0_i32_8 = arith.constant 0 : i32
    %9 = arith.cmpi eq, %arg1, %c0_i32_8 : i32
    %10 = arith.extui %9 : i1 to i32
    %c0_i32_9 = arith.constant 0 : i32
    %11 = arith.cmpi ne, %10, %c0_i32_9 : i32
    scf.if %11 {
      %c0_10 = arith.constant 0 : index
      %c0_11 = arith.constant 0 : index
      %12 = vector.load %arg6[%c0_10, %c0_11] : memref<512x1xf32, #tpu.memory_space<vmem>>, vector<512x1xf32>
      %c0_12 = arith.constant 0 : index
      %13 = memref.load %arg4[%c0_12] : memref<1xf32, #tpu.memory_space<smem>>
      %14 = vector.broadcast %13 : f32 to vector<512x1xf32>
      %15 = arith.addf %12, %14 : vector<512x1xf32>
      %c0_13 = arith.constant 0 : index
      %c0_14 = arith.constant 0 : index
      %16 = vector.load %arg5[%c0_13, %c0_14] : memref<512x1xf32, #tpu.memory_space<vmem>>, vector<512x1xf32>
      tpu.vector_store %arg5[%c0_13, %c0_14], %15 {strides = array<i32>} : memref<512x1xf32, #tpu.memory_space<vmem>>, vector<512x1xf32>,
    } else {
    }
    return
  }
  func.func @transform_0(%arg0: i32, %arg1: i32) -> (i32, i32) {
    %c0_i32 = arith.constant 0 : i32
    return %arg0, %arg1 : i32, i32
  }
  func.func @transform_1(%arg0: i32, %arg1: i32) -> (i32, i32) {
    %c0_i32 = arith.constant 0 : i32
    %c0_i32_0 = arith.constant 0 : i32
    return %arg1, %c0_i32 : i32, i32
  }
  func.func @transform_2(%arg0: i32, %arg1: i32) -> i32 {
    %c0_i32 = arith.constant 0 : i32
    %c0_i32_0 = arith.constant 0 : i32
    return %c0_i32 : i32
  }
  func.func @transform_3(%arg0: i32, %arg1: i32) -> (i32, i32) {
    %c0_i32 = arith.constant 0 : i32
    %c0_i32_0 = arith.constant 0 : i32
    return %arg0, %c0_i32 : i32, i32
  }
}

</mosaic_0001>

<llo_original>
// kernel: gnn_model_forward.2
$region0: #{gnn_model_forward.2}
  #allocation0 [shape = 'u32[]', space=smem, size = 0x4, offset = 0x4, fixed_abs, tag = 'smem constant byte address 0x4 - core index']
  #allocation1 [shape = 'u32[72,128]{1,0:T(1,128)}', space=vmem, size = 0x9000, scoped, tag = 'internal scratch']
  #allocation2 [shape = 'f32[512,128]{1,0:T(8,128)}', space=vmem, size = 0x40000, scoped, tag = 'scratch operand']
  %s0 = inlined_call_operand.vmem [shape: bf16[1024,1024], index: 0, kind: input, shape index: {}]
  %s1 = inlined_call_operand.vmem [shape: bf16[1024,128], index: 1, kind: input, shape index: {}]
  %s2 = inlined_call_operand.vmem [shape: f32[1,128], index: 2, kind: input, shape index: {}]
  %s3 = inlined_call_operand.vmem [shape: bf16[1024,128], index: 3, kind: output, shape index: {}]
  %s4 = sld [smem:[#allocation0]]
  $region53: #{gnn_model_forward.2} parent=0
    _
  %s6 = ssub.s32 1, %s4
  %s7 = scalar_select 0, %s6, %s4
  loop: start=0, step=1, limit=4
  $region2: #{gnn_model_forward.2} parent=0 // loop_pre_header
    _
  $region3: #{gnn_model_forward.2} parent=0 // loop_header
    %s9 = sphi 0, %s13
    %p10 = scmp.ge.s32.totalorder %s9, 4
    %s16 = sphi 0, %s28
    %s17 = sphi 0, %s24
    %s18 = sphi 0, %s16
    %s19 = sphi 0, %s17
    %s20 = sphi 0, %s18
    %s21 = sphi 0, %s19
    %s33 = sphi 0, %s35
    %s36 = sphi 0, %s33
    %s37 = sphi 0, %s36
    %s53 = sphi 0, %s37
    %s59 = sphi 0, %s61
    %s62 = sphi 0, %s59
    %s63 = sphi 0, %s62
    %s79 = sphi 0, %s63
    %s83 = sphi 0, %s83
    %s85 = sphi 0, %s83
    %s86 = sphi 0, %s85
    %s100 = sphi 0, %s86
    %s106 = sphi 0, %s108
    %s109 = sphi 0, %s106
    %s110 = sphi 0, %s109
    %s126 = sphi 0, %s110
  $region4: #{gnn_model_forward.2} parent=0 // loop_header_branch
    %12 = sbr.rel (%p10) target = $region8
  $region5: #{gnn_model_forward.2} parent=0 // loop_body
    %s14 = ssub.s32 %s9, 1
    %s15 = ssub.s32 %s9, 2
    %s22 = sadd.s32 1, %s17
    %p23 = scmp.ge.s32.totalorder %s22, 1
    %s24 = scalar_select %p23, 0, %s22
    %s25 = sadd.s32 1, %s16
    %s26 = scalar_select %p23, %s25, %s16
    %p27 = scmp.ge.s32.totalorder %s26, 2
    %s28 = scalar_select %p27, 0, %s26
    %s29 = ssub.s32 %s16, %s28
    %s30 = ssub.s32 %s17, %s24
    %s31 = sor.u32 %s29, %s30
    %p32 = scmp.eq.s32.totalorder %s31, 0
    %s34 = sadd.s32 %s33, 1
    %s35 = scalar_select %p32, %s33, %s34
    %p38 = pneg %p32
    %p39 = scmp.eq.s32.totalorder %s9, 1
    %p40 = por %p38, %p39
    %p41 = scmp.ne.s32.totalorder %s33, %s36
    %p42 = scmp.eq.s32.totalorder %s9, 0
    %p43 = por %p41, %p42
    %p44 = scmp.ne.s32.totalorder %s33, %s36
    %p45 = scmp.eq.s32.totalorder %s14, 1
    %p46 = por %p44, %p45
    %p47 = scmp.ne.s32.totalorder %s36, %s37
    %p48 = scmp.eq.s32.totalorder %s14, 0
    %p49 = por %p47, %p48
    %p50 = scmp.ne.s32.totalorder %s36, %s37
    %p51 = scmp.eq.s32.totalorder %s15, 1
    %p52 = por %p50, %p51
    %p54 = scmp.ne.s32.totalorder %s37, %s53
    %p55 = scmp.eq.s32.totalorder %s15, 0
    %p56 = por %p54, %p55
    %s57 = ssub.s32 %s17, %s24
    %p58 = scmp.eq.s32.totalorder %s57, 0
    %s60 = sadd.s32 %s59, 1
    %s61 = scalar_select %p58, %s59, %s60
    %p64 = pneg %p58
    %p65 = scmp.eq.s32.totalorder %s9, 1
    %p66 = por %p64, %p65
    %p67 = scmp.ne.s32.totalorder %s59, %s62
    %p68 = scmp.eq.s32.totalorder %s9, 0
    %p69 = por %p67, %p68
    %p70 = scmp.ne.s32.totalorder %s59, %s62
    %p71 = scmp.eq.s32.totalorder %s14, 1
    %p72 = por %p70, %p71
    %p73 = scmp.ne.s32.totalorder %s62, %s63
    %p74 = scmp.eq.s32.totalorder %s14, 0
    %p75 = por %p73, %p74
    %p76 = scmp.ne.s32.totalorder %s62, %s63
    %p77 = scmp.eq.s32.totalorder %s15, 1
    %p78 = por %p76, %p77
    %p80 = scmp.ne.s32.totalorder %s63, %s79
    %p81 = scmp.eq.s32.totalorder %s15, 0
    %p82 = por %p80, %p81
    %s84 = sadd.s32 %s83, 1
    %p87 = scmp.eq.s32.totalorder %s9, 1
    %p88 = scmp.ne.s32.totalorder %s83, %s85
    %p89 = scmp.eq.s32.totalorder %s9, 0
    %p90 = por %p88, %p89
    %p91 = scmp.ne.s32.totalorder %s83, %s85
    %p92 = scmp.eq.s32.totalorder %s14, 1
    %p93 = por %p91, %p92
    %p94 = scmp.ne.s32.totalorder %s85, %s86
    %p95 = scmp.eq.s32.totalorder %s14, 0
    %p96 = por %p94, %p95
    %p97 = scmp.ne.s32.totalorder %s85, %s86
    %p98 = scmp.eq.s32.totalorder %s15, 1
    %p99 = por %p97, %p98
    %p101 = scmp.ne.s32.totalorder %s86, %s100
    %p102 = scmp.eq.s32.totalorder %s15, 0
    %p103 = por %p101, %p102
    %s104 = ssub.s32 %s16, %s28
    %p105 = scmp.eq.s32.totalorder %s104, 0
    %s107 = sadd.s32 %s106, 1
    %s108 = scalar_select %p105, %s106, %s107
    %p111 = pneg %p105
    %p112 = scmp.eq.s32.totalorder %s9, 1
    %p113 = por %p111, %p112
    %p114 = scmp.ne.s32.totalorder %s106, %s109
    %p115 = scmp.eq.s32.totalorder %s9, 0
    %p116 = por %p114, %p115
    %p117 = scmp.ne.s32.totalorder %s106, %s109
    %p118 = scmp.eq.s32.totalorder %s14, 1
    %p119 = por %p117, %p118
    %p120 = scmp.ne.s32.totalorder %s109, %s110
    %p121 = scmp.eq.s32.totalorder %s14, 0
    %p122 = por %p120, %p121
    %p123 = scmp.ne.s32.totalorder %s109, %s110
    %p124 = scmp.eq.s32.totalorder %s15, 1
    %p125 = por %p123, %p124
    %p127 = scmp.ne.s32.totalorder %s110, %s126
    %p128 = scmp.eq.s32.totalorder %s15, 0
    %p129 = por %p127, %p128
    %p130 = scmp.le.s32.totalorder 1, %s9
    %p131 = scmp.lt.s32.totalorder %s9, 3
    %p132 = pnand %p130, %p131
    %p133 = pneg %p132
    // Predicated region
    $region9: #{gnn_model_forward.2} parent=5 // pred_check
      _
    $region10: #{gnn_model_forward.2} parent=5 // pred_check_branch
      %135 = sbr.rel (%p132) target = $region12
    $region11: #{gnn_model_forward.2} parent=5 // pred_region
      %s136 = ssub.s32 %s9, 1
      // Predicated region
      $region13: #{gnn_model_forward.2} parent=11 // pred_check
        %p137 = pneg %p75
      $region14: #{gnn_model_forward.2} parent=11 // pred_check_branch
        %139 = sbr.rel (%p137) target = $region16
      $region15: #{gnn_model_forward.2} parent=11 // pred_region
        %s140 = smul.u32 128, %s19
        %p141 = scmp.lt.s32.totalorder %s140, 127
        %s142 = scalar_select %p141, %s140, 127
        %s143 = smul.addr %s142, 4
        %s144 = scalar_lea.vmem %s1, %s143
        %s145 = smul.u32 128, %s19
      $region16: #{gnn_model_forward.2} parent=11 // pred_fallthru
        _
      // Predicated region
      $region17: #{gnn_model_forward.2} parent=11 // pred_check
        %p146 = pneg %p96
      $region18: #{gnn_model_forward.2} parent=11 // pred_check_branch
        %148 = sbr.rel (%p146) target = $region20
      $region19: #{gnn_model_forward.2} parent=11 // pred_region
        _
      $region20: #{gnn_model_forward.2} parent=11 // pred_fallthru
        _
    $region12: #{gnn_model_forward.2} parent=5 // pred_fallthru
      _
    %p149 = scmp.lt.s32.totalorder %s9, 2
    // Predicated region
    $region21: #{gnn_model_forward.2} parent=5 // pred_check
      %p150 = pneg %p149
    $region22: #{gnn_model_forward.2} parent=5 // pred_check_branch
      %152 = sbr.rel (%p150) target = $region24
    $region23: #{gnn_model_forward.2} parent=5 // pred_region
      // Predicated region
      $region25: #{gnn_model_forward.2} parent=23 // pred_check
        %p153 = pneg %p43
      $region26: #{gnn_model_forward.2} parent=23 // pred_check_branch
        %155 = sbr.rel (%p153) target = $region28
      $region27: #{gnn_model_forward.2} parent=23 // pred_region
        %s156 = smul.u32 64, %s16
        %s157 = smul.u32 8, %s17
        %p158 = scmp.lt.s32.totalorder %s156, 127
        %s159 = scalar_select %p158, %s156, 127
        %p160 = scmp.lt.s32.totalorder %s157, 7
        %s161 = scalar_select %p160, %s157, 7
        %s162 = smul.addr %s159, 8
        %s163 = sadd.s32 %s161, %s162
        %s164 = smul.addr %s163, 4
        %s165 = scalar_lea.vmem %s0, %s164
        %s166 = smul.u32 64, %s16
        %s167 = smul.u32 8, %s17
      $region28: #{gnn_model_forward.2} parent=23 // pred_fallthru
        _
    $region24: #{gnn_model_forward.2} parent=5 // pred_fallthru
      _
    %p168 = scmp.le.s32.totalorder 1, %s9
    %p169 = scmp.lt.s32.totalorder %s9, 3
    %p170 = pnand %p168, %p169
    %p171 = pneg %p170
    // Predicated region
    $region29: #{gnn_model_forward.2} parent=5 // pred_check
      _
    $region30: #{gnn_model_forward.2} parent=5 // pred_check_branch
      %173 = sbr.rel (%p170) target = $region32
    $region31: #{gnn_model_forward.2} parent=5 // pred_region
      %s174 = ssub.s32 %s9, 1
      %s175 = smul.u32 64, %s18
      %s176 = smul.u32 8, %s19
      %p177 = scmp.lt.s32.totalorder %s175, 127
      %s178 = scalar_select %p177, %s175, 127
      %p179 = scmp.lt.s32.totalorder %s176, 7
      %s180 = scalar_select %p179, %s176, 7
      %s181 = smul.addr %s178, 8
      %s182 = sadd.s32 %s180, %s181
      %s183 = smul.addr %s182, 4
      %s184 = scalar_lea.vmem %s0, %s183
      %p185 = pneg %p49
      %p186 = pneg %p46
      %s187 = smul.u32 128, %s19
      %p188 = scmp.lt.s32.totalorder %s187, 127
      %s189 = scalar_select %p188, %s187, 127
      %s190 = smul.addr %s189, 4
      %s191 = scalar_lea.vmem %s1, %s190
      %p192 = pneg %p75
      %p193 = pneg %p72
      %p194 = pneg %p96
      %p195 = pneg %p93
      %p196 = pneg %p122
      %p197 = pneg %p119
      %s198 = smul.u32 64, %s18
      %p199 = scmp.lt.s32.totalorder %s198, 127
      %s200 = scalar_select %p199, %s198, 127
      %s201 = smul.addr %s200, 4
      %s202 = scalar_lea.vmem %s3, %s201
      %s203 = smul.u32 64, %s18
      %s204 = smul.u32 8, %s19
      %p205 = scmp.lt.s32.totalorder %s203, 127
      %s206 = scalar_select %p205, %s203, 127
      %p207 = scmp.lt.s32.totalorder %s204, 7
      %s208 = scalar_select %p207, %s204, 7
      %s209 = smul.addr %s206, 8
      %s210 = sadd.s32 %s208, %s209
      %s211 = smul.addr %s210, 4
      %s212 = scalar_lea.vmem %s0, %s211
      %s213 = smul.u32 64, %s18
      %s214 = smul.u32 8, %s19
      %s215 = smul.u32 128, %s19
      %p216 = scmp.lt.s32.totalorder %s215, 127
      %s217 = scalar_select %p216, %s215, 127
      %s218 = smul.addr %s217, 4
      %s219 = scalar_lea.vmem %s1, %s218
      %s220 = smul.u32 128, %s19
      %s221 = smul.u32 64, %s18
      %p222 = scmp.lt.s32.totalorder %s221, 127
      %s223 = scalar_select %p222, %s221, 127
      %s224 = smul.addr %s223, 4
      %s225 = scalar_lea.vmem %s3, %s224
      %s226 = smul.u32 64, %s18
      %p227 = scmp.eq.s32.totalorder %s19, 0
      // Predicated region
      $region33: #{gnn_model_forward.2} parent=31 // pred_check
        %p228 = pneg %p227
      $region34: #{gnn_model_forward.2} parent=31 // pred_check_branch
        %230 = sbr.rel (%p228) target = $region36
      $region35: #{gnn_model_forward.2} parent=31 // pred_region
        %231 = vst [vmem:[#allocation2] sm:$0xff] 0.0
        %232 = vst [vmem:[#allocation2 + $0x8] sm:$0xff] 0.0
        %233 = vst [vmem:[#allocation2 + $0x10] sm:$0xff] 0.0
        %234 = vst [vmem:[#allocation2 + $0x18] sm:$0xff] 0.0
        %235 = vst [vmem:[#allocation2 + $0x20] sm:$0xff] 0.0
        %236 = vst [vmem:[#allocation2 + $0x28] sm:$0xff] 0.0
        %237 = vst [vmem:[#allocation2 + $0x30] sm:$0xff] 0.0
        %238 = vst [vmem:[#allocation2 + $0x38] sm:$0xff] 0.0
        %239 = vst [vmem:[#allocation2 + $0x40] sm:$0xff] 0.0
        %240 = vst [vmem:[#allocation2 + $0x48] sm:$0xff] 0.0
        %241 = vst [vmem:[#allocation2 + $0x50] sm:$0xff] 0.0
        %242 = vst [vmem:[#allocation2 + $0x58] sm:$0xff] 0.0
        %243 = vst [vmem:[#allocation2 + $0x60] sm:$0xff] 0.0
        %244 = vst [vmem:[#allocation2 + $0x68] sm:$0xff] 0.0
        %245 = vst [vmem:[#allocation2 + $0x70] sm:$0xff] 0.0
        %246 = vst [vmem:[#allocation2 + $0x78] sm:$0xff] 0.0
        %247 = vst [vmem:[#allocation2 + $0x80] sm:$0xff] 0.0
        %248 = vst [vmem:[#allocation2 + $0x88] sm:$0xff] 0.0
        %249 = vst [vmem:[#allocation2 + $0x90] sm:$0xff] 0.0
        %250 = vst [vmem:[#allocation2 + $0x98] sm:$0xff] 0.0
        %251 = vst [vmem:[#allocation2 + $0xa0] sm:$0xff] 0.0
        %252 = vst [vmem:[#allocation2 + $0xa8] sm:$0xff] 0.0
        %253 = vst [vmem:[#allocation2 + $0xb0] sm:$0xff] 0.0
        %254 = vst [vmem:[#allocation2 + $0xb8] sm:$0xff] 0.0
        %255 = vst [vmem:[#allocation2 + $0xc0] sm:$0xff] 0.0
        %256 = vst [vmem:[#allocation2 + $0xc8] sm:$0xff] 0.0
        %257 = vst [vmem:[#allocation2 + $0xd0] sm:$0xff] 0.0
        %258 = vst [vmem:[#allocation2 + $0xd8] sm:$0xff] 0.0
        %259 = vst [vmem:[#allocation2 + $0xe0] sm:$0xff] 0.0
        %260 = vst [vmem:[#allocation2 + $0xe8] sm:$0xff] 0.0
        %261 = vst [vmem:[#allocation2 + $0xf0] sm:$0xff] 0.0
        %262 = vst [vmem:[#allocation2 + $0xf8] sm:$0xff] 0.0
        %263 = vst [vmem:[#allocation2 + $0x100] sm:$0xff] 0.0
        %264 = vst [vmem:[#allocation2 + $0x108] sm:$0xff] 0.0
        %265 = vst [vmem:[#allocation2 + $0x110] sm:$0xff] 0.0
        %266 = vst [vmem:[#allocation2 + $0x118] sm:$0xff] 0.0
        %267 = vst [vmem:[#allocation2 + $0x120] sm:$0xff] 0.0
        %268 = vst [vmem:[#allocation2 + $0x128] sm:$0xff] 0.0
        %269 = vst [vmem:[#allocation2 + $0x130] sm:$0xff] 0.0
        %270 = vst [vmem:[#allocation2 + $0x138] sm:$0xff] 0.0
        %271 = vst [vmem:[#allocation2 + $0x140] sm:$0xff] 0.0
        %272 = vst [vmem:[#allocation2 + $0x148] sm:$0xff] 0.0
        %273 = vst [vmem:[#allocation2 + $0x150] sm:$0xff] 0.0
        %274 = vst [vmem:[#allocation2 + $0x158] sm:$0xff] 0.0
        %275 = vst [vmem:[#allocation2 + $0x160] sm:$0xff] 0.0
        %276 = vst [vmem:[#allocation2 + $0x168] sm:$0xff] 0.0
        %277 = vst [vmem:[#allocation2 + $0x170] sm:$0xff] 0.0
        %278 = vst [vmem:[#allocation2 + $0x178] sm:$0xff] 0.0
        %279 = vst [vmem:[#allocation2 + $0x180] sm:$0xff] 0.0
        %280 = vst [vmem:[#allocation2 + $0x188] sm:$0xff] 0.0
        %281 = vst [vmem:[#allocation2 + $0x190] sm:$0xff] 0.0
        %282 = vst [vmem:[#allocation2 + $0x198] sm:$0xff] 0.0
        %283 = vst [vmem:[#allocation2 + $0x1a0] sm:$0xff] 0.0
        %284 = vst [vmem:[#allocation2 + $0x1a8] sm:$0xff] 0.0
        %285 = vst [vmem:[#allocation2 + $0x1b0] sm:$0xff] 0.0
        %286 = vst [vmem:[#allocation2 + $0x1b8] sm:$0xff] 0.0
        %287 = vst [vmem:[#allocation2 + $0x1c0] sm:$0xff] 0.0
        %288 = vst [vmem:[#allocation2 + $0x1c8] sm:$0xff] 0.0
        %289 = vst [vmem:[#allocation2 + $0x1d0] sm:$0xff] 0.0
        %290 = vst [vmem:[#allocation2 + $0x1d8] sm:$0xff] 0.0
        %291 = vst [vmem:[#allocation2 + $0x1e0] sm:$0xff] 0.0
        %292 = vst [vmem:[#allocation2 + $0x1e8] sm:$0xff] 0.0
        %293 = vst [vmem:[#allocation2 + $0x1f0] sm:$0xff] 0.0
        %294 = vst [vmem:[#allocation2 + $0x1f8] sm:$0xff] 0.0
      $region36: #{gnn_model_forward.2} parent=31 // pred_fallthru
        _
      %v295 = vld [vmem:[#allocation2] sm:$0xff]
      %v296 = vld [vmem:[#allocation2 + $0x8] sm:$0xff]
      %v297 = vld [vmem:[#allocation2 + $0x10] sm:$0xff]
      %v298 = vld [vmem:[#allocation2 + $0x18] sm:$0xff]
      %v299 = vld [vmem:[#allocation2 + $0x20] sm:$0xff]
      %v300 = vld [vmem:[#allocation2 + $0x28] sm:$0xff]
      %v301 = vld [vmem:[#allocation2 + $0x30] sm:$0xff]
      %v302 = vld [vmem:[#allocation2 + $0x38] sm:$0xff]
      %v303 = vld [vmem:[#allocation2 + $0x40] sm:$0xff]
      %v304 = vld [vmem:[#allocation2 + $0x48] sm:$0xff]
      %v305 = vld [vmem:[#allocation2 + $0x50] sm:$0xff]
      %v306 = vld [vmem:[#allocation2 + $0x58] sm:$0xff]
      %v307 = vld [vmem:[#allocation2 + $0x60] sm:$0xff]
      %v308 = vld [vmem:[#allocation2 + $0x68] sm:$0xff]
      %v309 = vld [vmem:[#allocation2 + $0x70] sm:$0xff]
      %v310 = vld [vmem:[#allocation2 + $0x78] sm:$0xff]
      %v311 = vld [vmem:[#allocation2 + $0x80] sm:$0xff]
      %v312 = vld [vmem:[#allocation2 + $0x88] sm:$0xff]
      %v313 = vld [vmem:[#allocation2 + $0x90] sm:$0xff]
      %v314 = vld [vmem:[#allocation2 + $0x98] sm:$0xff]
      %v315 = vld [vmem:[#allocation2 + $0xa0] sm:$0xff]
      %v316 = vld [vmem:[#allocation2 + $0xa8] sm:$0xff]
      %v317 = vld [vmem:[#allocation2 + $0xb0] sm:$0xff]
      %v318 = vld [vmem:[#allocation2 + $0xb8] sm:$0xff]
      %v319 = vld [vmem:[#allocation2 + $0xc0] sm:$0xff]
      %v320 = vld [vmem:[#allocation2 + $0xc8] sm:$0xff]
      %v321 = vld [vmem:[#allocation2 + $0xd0] sm:$0xff]
      %v322 = vld [vmem:[#allocation2 + $0xd8] sm:$0xff]
      %v323 = vld [vmem:[#allocation2 + $0xe0] sm:$0xff]
      %v324 = vld [vmem:[#allocation2 + $0xe8] sm:$0xff]
      %v325 = vld [vmem:[#allocation2 + $0xf0] sm:$0xff]
      %v326 = vld [vmem:[#allocation2 + $0xf8] sm:$0xff]
      %v327 = vld [vmem:[#allocation2 + $0x100] sm:$0xff]
      %v328 = vld [vmem:[#allocation2 + $0x108] sm:$0xff]
      %v329 = vld [vmem:[#allocation2 + $0x110] sm:$0xff]
      %v330 = vld [vmem:[#allocation2 + $0x118] sm:$0xff]
      %v331 = vld [vmem:[#allocation2 + $0x120] sm:$0xff]
      %v332 = vld [vmem:[#allocation2 + $0x128] sm:$0xff]
      %v333 = vld [vmem:[#allocation2 + $0x130] sm:$0xff]
      %v334 = vld [vmem:[#allocation2 + $0x138] sm:$0xff]
      %v335 = vld [vmem:[#allocation2 + $0x140] sm:$0xff]
      %v336 = vld [vmem:[#allocation2 + $0x148] sm:$0xff]
      %v337 = vld [vmem:[#allocation2 + $0x150] sm:$0xff]
      %v338 = vld [vmem:[#allocation2 + $0x158] sm:$0xff]
      %v339 = vld [vmem:[#allocation2 + $0x160] sm:$0xff]
      %v340 = vld [vmem:[#allocation2 + $0x168] sm:$0xff]
      %v341 = vld [vmem:[#allocation2 + $0x170] sm:$0xff]
      %v342 = vld [vmem:[#allocation2 + $0x178] sm:$0xff]
      %v343 = vld [vmem:[#allocation2 + $0x180] sm:$0xff]
      %v344 = vld [vmem:[#allocation2 + $0x188] sm:$0xff]
      %v345 = vld [vmem:[#allocation2 + $0x190] sm:$0xff]
      %v346 = vld [vmem:[#allocation2 + $0x198] sm:$0xff]
      %v347 = vld [vmem:[#allocation2 + $0x1a0] sm:$0xff]
      %v348 = vld [vmem:[#allocation2 + $0x1a8] sm:$0xff]
      %v349 = vld [vmem:[#allocation2 + $0x1b0] sm:$0xff]
      %v350 = vld [vmem:[#allocation2 + $0x1b8] sm:$0xff]
      %v351 = vld [vmem:[#allocation2 + $0x1c0] sm:$0xff]
      %v352 = vld [vmem:[#allocation2 + $0x1c8] sm:$0xff]
      %v353 = vld [vmem:[#allocation2 + $0x1d0] sm:$0xff]
      %v354 = vld [vmem:[#allocation2 + $0x1d8] sm:$0xff]
      %v355 = vld [vmem:[#allocation2 + $0x1e0] sm:$0xff]
      %v356 = vld [vmem:[#allocation2 + $0x1e8] sm:$0xff]
      %v357 = vld [vmem:[#allocation2 + $0x1f0] sm:$0xff]
      %v358 = vld [vmem:[#allocation2 + $0x1f8] sm:$0xff]
      %v359 = vld [vmem:[%s212] sm:$0xff]
      %v360 = vld [vmem:[%s212 + $0x8] sm:$0xff]
      %v361 = vld [vmem:[%s212 + $0x10] sm:$0xff]
      %v362 = vld [vmem:[%s212 + $0x18] sm:$0xff]
      %v363 = vld [vmem:[%s212 + $0x20] sm:$0xff]
      %v364 = vld [vmem:[%s212 + $0x28] sm:$0xff]
      %v365 = vld [vmem:[%s212 + $0x30] sm:$0xff]
      %v366 = vld [vmem:[%s212 + $0x38] sm:$0xff]
      %v367 = vld [vmem:[%s212 + $0x40] sm:$0xff]
      %v368 = vld [vmem:[%s212 + $0x48] sm:$0xff]
      %v369 = vld [vmem:[%s212 + $0x50] sm:$0xff]
      %v370 = vld [vmem:[%s212 + $0x58] sm:$0xff]
      %v371 = vld [vmem:[%s212 + $0x60] sm:$0xff]
      %v372 = vld [vmem:[%s212 + $0x68] sm:$0xff]
      %v373 = vld [vmem:[%s212 + $0x70] sm:$0xff]
      %v374 = vld [vmem:[%s212 + $0x78] sm:$0xff]
      %v375 = vld [vmem:[%s212 + $0x80] sm:$0xff]
      %v376 = vld [vmem:[%s212 + $0x88] sm:$0xff]
      %v377 = vld [vmem:[%s212 + $0x90] sm:$0xff]
      %v378 = vld [vmem:[%s212 + $0x98] sm:$0xff]
      %v379 = vld [vmem:[%s212 + $0xa0] sm:$0xff]
      %v380 = vld [vmem:[%s212 + $0xa8] sm:$0xff]
      %v381 = vld [vmem:[%s212 + $0xb0] sm:$0xff]
      %v382 = vld [vmem:[%s212 + $0xb8] sm:$0xff]
      %v383 = vld [vmem:[%s212 + $0xc0] sm:$0xff]
      %v384 = vld [vmem:[%s212 + $0xc8] sm:$0xff]
      %v385 = vld [vmem:[%s212 + $0xd0] sm:$0xff]
      %v386 = vld [vmem:[%s212 + $0xd8] sm:$0xff]
      %v387 = vld [vmem:[%s212 + $0xe0] sm:$0xff]
      %v388 = vld [vmem:[%s212 + $0xe8] sm:$0xff]
      %v389 = vld [vmem:[%s212 + $0xf0] sm:$0xff]
      %v390 = vld [vmem:[%s212 + $0xf8] sm:$0xff]
      %v391 = vld [vmem:[%s212 + $0x100] sm:$0xff]
      %v392 = vld [vmem:[%s212 + $0x108] sm:$0xff]
      %v393 = vld [vmem:[%s212 + $0x110] sm:$0xff]
      %v394 = vld [vmem:[%s212 + $0x118] sm:$0xff]
      %v395 = vld [vmem:[%s212 + $0x120] sm:$0xff]
      %v396 = vld [vmem:[%s212 + $0x128] sm:$0xff]
      %v397 = vld [vmem:[%s212 + $0x130] sm:$0xff]
      %v398 = vld [vmem:[%s212 + $0x138] sm:$0xff]
      %v399 = vld [vmem:[%s212 + $0x140] sm:$0xff]
      %v400 = vld [vmem:[%s212 + $0x148] sm:$0xff]
      %v401 = vld [vmem:[%s212 + $0x150] sm:$0xff]
      %v402 = vld [vmem:[%s212 + $0x158] sm:$0xff]
      %v403 = vld [vmem:[%s212 + $0x160] sm:$0xff]
      %v404 = vld [vmem:[%s212 + $0x168] sm:$0xff]
      %v405 = vld [vmem:[%s212 + $0x170] sm:$0xff]
      %v406 = vld [vmem:[%s212 + $0x178] sm:$0xff]
      %v407 = vld [vmem:[%s212 + $0x180] sm:$0xff]
      %v408 = vld [vmem:[%s212 + $0x188] sm:$0xff]
      %v409 = vld [vmem:[%s212 + $0x190] sm:$0xff]
      %v410 = vld [vmem:[%s212 + $0x198] sm:$0xff]
      %v411 = vld [vmem:[%s212 + $0x1a0] sm:$0xff]
      %v412 = vld [vmem:[%s212 + $0x1a8] sm:$0xff]
      %v413 = vld [vmem:[%s212 + $0x1b0] sm:$0xff]
      %v414 = vld [vmem:[%s212 + $0x1b8] sm:$0xff]
      %v415 = vld [vmem:[%s212 + $0x1c0] sm:$0xff]
      %v416 = vld [vmem:[%s212 + $0x1c8] sm:$0xff]
      %v417 = vld [vmem:[%s212 + $0x1d0] sm:$0xff]
      %v418 = vld [vmem:[%s212 + $0x1d8] sm:$0xff]
      %v419 = vld [vmem:[%s212 + $0x1e0] sm:$0xff]
      %v420 = vld [vmem:[%s212 + $0x1e8] sm:$0xff]
      %v421 = vld [vmem:[%s212 + $0x1f0] sm:$0xff]
      %v422 = vld [vmem:[%s212 + $0x1f8] sm:$0xff]
      %v423 = vld [vmem:[%s212 + $0x200] sm:$0xff]
      %v424 = vld [vmem:[%s212 + $0x208] sm:$0xff]
      %v425 = vld [vmem:[%s212 + $0x210] sm:$0xff]
      %v426 = vld [vmem:[%s212 + $0x218] sm:$0xff]
      %v427 = vld [vmem:[%s212 + $0x220] sm:$0xff]
      %v428 = vld [vmem:[%s212 + $0x228] sm:$0xff]
      %v429 = vld [vmem:[%s212 + $0x230] sm:$0xff]
      %v430 = vld [vmem:[%s212 + $0x238] sm:$0xff]
      %v431 = vld [vmem:[%s212 + $0x240] sm:$0xff]
      %v432 = vld [vmem:[%s212 + $0x248] sm:$0xff]
      %v433 = vld [vmem:[%s212 + $0x250] sm:$0xff]
      %v434 = vld [vmem:[%s212 + $0x258] sm:$0xff]
      %v435 = vld [vmem:[%s212 + $0x260] sm:$0xff]
      %v436 = vld [vmem:[%s212 + $0x268] sm:$0xff]
      %v437 = vld [vmem:[%s212 + $0x270] sm:$0xff]
      %v438 = vld [vmem:[%s212 + $0x278] sm:$0xff]
      %v439 = vld [vmem:[%s212 + $0x280] sm:$0xff]
      %v440 = vld [vmem:[%s212 + $0x288] sm:$0xff]
      %v441 = vld [vmem:[%s212 + $0x290] sm:$0xff]
      %v442 = vld [vmem:[%s212 + $0x298] sm:$0xff]
      %v443 = vld [vmem:[%s212 + $0x2a0] sm:$0xff]
      %v444 = vld [vmem:[%s212 + $0x2a8] sm:$0xff]
      %v445 = vld [vmem:[%s212 + $0x2b0] sm:$0xff]
      %v446 = vld [vmem:[%s212 + $0x2b8] sm:$0xff]
      %v447 = vld [vmem:[%s212 + $0x2c0] sm:$0xff]
      %v448 = vld [vmem:[%s212 + $0x2c8] sm:$0xff]
      %v449 = vld [vmem:[%s212 + $0x2d0] sm:$0xff]
      %v450 = vld [vmem:[%s212 + $0x2d8] sm:$0xff]
      %v451 = vld [vmem:[%s212 + $0x2e0] sm:$0xff]
      %v452 = vld [vmem:[%s212 + $0x2e8] sm:$0xff]
      %v453 = vld [vmem:[%s212 + $0x2f0] sm:$0xff]
      %v454 = vld [vmem:[%s212 + $0x2f8] sm:$0xff]
      %v455 = vld [vmem:[%s212 + $0x300] sm:$0xff]
      %v456 = vld [vmem:[%s212 + $0x308] sm:$0xff]
      %v457 = vld [vmem:[%s212 + $0x310] sm:$0xff]
      %v458 = vld [vmem:[%s212 + $0x318] sm:$0xff]
      %v459 = vld [vmem:[%s212 + $0x320] sm:$0xff]
      %v460 = vld [vmem:[%s212 + $0x328] sm:$0xff]
      %v461 = vld [vmem:[%s212 + $0x330] sm:$0xff]
      %v462 = vld [vmem:[%s212 + $0x338] sm:$0xff]
      %v463 = vld [vmem:[%s212 + $0x340] sm:$0xff]
      %v464 = vld [vmem:[%s212 + $0x348] sm:$0xff]
      %v465 = vld [vmem:[%s212 + $0x350] sm:$0xff]
      %v466 = vld [vmem:[%s212 + $0x358] sm:$0xff]
      %v467 = vld [vmem:[%s212 + $0x360] sm:$0xff]
      %v468 = vld [vmem:[%s212 + $0x368] sm:$0xff]
      %v469 = vld [vmem:[%s212 + $0x370] sm:$0xff]
      %v470 = vld [vmem:[%s212 + $0x378] sm:$0xff]
      %v471 = vld [vmem:[%s212 + $0x380] sm:$0xff]
      %v472 = vld [vmem:[%s212 + $0x388] sm:$0xff]
      %v473 = vld [vmem:[%s212 + $0x390] sm:$0xff]
      %v474 = vld [vmem:[%s212 + $0x398] sm:$0xff]
      %v475 = vld [vmem:[%s212 + $0x3a0] sm:$0xff]
      %v476 = vld [vmem:[%s212 + $0x3a8] sm:$0xff]
      %v477 = vld [vmem:[%s212 + $0x3b0] sm:$0xff]
      %v478 = vld [vmem:[%s212 + $0x3b8] sm:$0xff]
      %v479 = vld [vmem:[%s212 + $0x3c0] sm:$0xff]
      %v480 = vld [vmem:[%s212 + $0x3c8] sm:$0xff]
      %v481 = vld [vmem:[%s212 + $0x3d0] sm:$0xff]
      %v482 = vld [vmem:[%s212 + $0x3d8] sm:$0xff]
      %v483 = vld [vmem:[%s212 + $0x3e0] sm:$0xff]
      %v484 = vld [vmem:[%s212 + $0x3e8] sm:$0xff]
      %v485 = vld [vmem:[%s212 + $0x3f0] sm:$0xff]
      %v486 = vld [vmem:[%s212 + $0x3f8] sm:$0xff]
      %v487 = vld [vmem:[%s212 + $0x400] sm:$0xff]
      %v488 = vld [vmem:[%s212 + $0x408] sm:$0xff]
      %v489 = vld [vmem:[%s212 + $0x410] sm:$0xff]
      %v490 = vld [vmem:[%s212 + $0x418] sm:$0xff]
      %v491 = vld [vmem:[%s212 + $0x420] sm:$0xff]
      %v492 = vld [vmem:[%s212 + $0x428] sm:$0xff]
      %v493 = vld [vmem:[%s212 + $0x430] sm:$0xff]
      %v494 = vld [vmem:[%s212 + $0x438] sm:$0xff]
      %v495 = vld [vmem:[%s212 + $0x440] sm:$0xff]
      %v496 = vld [vmem:[%s212 + $0x448] sm:$0xff]
      %v497 = vld [vmem:[%s212 + $0x450] sm:$0xff]
      %v498 = vld [vmem:[%s212 + $0x458] sm:$0xff]
      %v499 = vld [vmem:[%s212 + $0x460] sm:$0xff]
      %v500 = vld [vmem:[%s212 + $0x468] sm:$0xff]
      %v501 = vld [vmem:[%s212 + $0x470] sm:$0xff]
      %v502 = vld [vmem:[%s212 + $0x478] sm:$0xff]
      %v503 = vld [vmem:[%s212 + $0x480] sm:$0xff]
      %v504 = vld [vmem:[%s212 + $0x488] sm:$0xff]
      %v505 = vld [vmem:[%s212 + $0x490] sm:$0xff]
      %v506 = vld [vmem:[%s212 + $0x498] sm:$0xff]
      %v507 = vld [vmem:[%s212 + $0x4a0] sm:$0xff]
      %v508 = vld [vmem:[%s212 + $0x4a8] sm:$0xff]
      %v509 = vld [vmem:[%s212 + $0x4b0] sm:$0xff]
      %v510 = vld [vmem:[%s212 + $0x4b8] sm:$0xff]
      %v511 = vld [vmem:[%s212 + $0x4c0] sm:$0xff]
      %v512 = vld [vmem:[%s212 + $0x4c8] sm:$0xff]
      %v513 = vld [vmem:[%s212 + $0x4d0] sm:$0xff]
      %v514 = vld [vmem:[%s212 + $0x4d8] sm:$0xff]
      %v515 = vld [vmem:[%s212 + $0x4e0] sm:$0xff]
      %v516 = vld [vmem:[%s212 + $0x4e8] sm:$0xff]
      %v517 = vld [vmem:[%s212 + $0x4f0] sm:$0xff]
      %v518 = vld [vmem:[%s212 + $0x4f8] sm:$0xff]
      %v519 = vld [vmem:[%s212 + $0x500] sm:$0xff]
      %v520 = vld [vmem:[%s212 + $0x508] sm:$0xff]
      %v521 = vld [vmem:[%s212 + $0x510] sm:$0xff]
      %v522 = vld [vmem:[%s212 + $0x518] sm:$0xff]
      %v523 = vld [vmem:[%s212 + $0x520] sm:$0xff]
      %v524 = vld [vmem:[%s212 + $0x528] sm:$0xff]
      %v525 = vld [vmem:[%s212 + $0x530] sm:$0xff]
      %v526 = vld [vmem:[%s212 + $0x538] sm:$0xff]
      %v527 = vld [vmem:[%s212 + $0x540] sm:$0xff]
      %v528 = vld [vmem:[%s212 + $0x548] sm:$0xff]
      %v529 = vld [vmem:[%s212 + $0x550] sm:$0xff]
      %v530 = vld [vmem:[%s212 + $0x558] sm:$0xff]
      %v531 = vld [vmem:[%s212 + $0x560] sm:$0xff]
      %v532 = vld [vmem:[%s212 + $0x568] sm:$0xff]
      %v533 = vld [vmem:[%s212 + $0x570] sm:$0xff]
      %v534 = vld [vmem:[%s212 + $0x578] sm:$0xff]
      %v535 = vld [vmem:[%s212 + $0x580] sm:$0xff]
      %v536 = vld [vmem:[%s212 + $0x588] sm:$0xff]
      %v537 = vld [vmem:[%s212 + $0x590] sm:$0xff]
      %v538 = vld [vmem:[%s212 + $0x598] sm:$0xff]
      %v539 = vld [vmem:[%s212 + $0x5a0] sm:$0xff]
      %v540 = vld [vmem:[%s212 + $0x5a8] sm:$0xff]
      %v541 = vld [vmem:[%s212 + $0x5b0] sm:$0xff]
      %v542 = vld [vmem:[%s212 + $0x5b8] sm:$0xff]
      %v543 = vld [vmem:[%s212 + $0x5c0] sm:$0xff]
      %v544 = vld [vmem:[%s212 + $0x5c8] sm:$0xff]
      %v545 = vld [vmem:[%s212 + $0x5d0] sm:$0xff]
      %v546 = vld [vmem:[%s212 + $0x5d8] sm:$0xff]
      %v547 = vld [vmem:[%s212 + $0x5e0] sm:$0xff]
      %v548 = vld [vmem:[%s212 + $0x5e8] sm:$0xff]
      %v549 = vld [vmem:[%s212 + $0x5f0] sm:$0xff]
      %v550 = vld [vmem:[%s212 + $0x5f8] sm:$0xff]
      %v551 = vld [vmem:[%s212 + $0x600] sm:$0xff]
      %v552 = vld [vmem:[%s212 + $0x608] sm:$0xff]
      %v553 = vld [vmem:[%s212 + $0x610] sm:$0xff]
      %v554 = vld [vmem:[%s212 + $0x618] sm:$0xff]
      %v555 = vld [vmem:[%s212 + $0x620] sm:$0xff]
      %v556 = vld [vmem:[%s212 + $0x628] sm:$0xff]
      %v557 = vld [vmem:[%s212 + $0x630] sm:$0xff]
      %v558 = vld [vmem:[%s212 + $0x638] sm:$0xff]
      %v559 = vld [vmem:[%s212 + $0x640] sm:$0xff]
      %v560 = vld [vmem:[%s212 + $0x648] sm:$0xff]
      %v561 = vld [vmem:[%s212 + $0x650] sm:$0xff]
      %v562 = vld [vmem:[%s212 + $0x658] sm:$0xff]
      %v563 = vld [vmem:[%s212 + $0x660] sm:$0xff]
      %v564 = vld [vmem:[%s212 + $0x668] sm:$0xff]
      %v565 = vld [vmem:[%s212 + $0x670] sm:$0xff]
      %v566 = vld [vmem:[%s212 + $0x678] sm:$0xff]
      %v567 = vld [vmem:[%s212 + $0x680] sm:$0xff]
      %v568 = vld [vmem:[%s212 + $0x688] sm:$0xff]
      %v569 = vld [vmem:[%s212 + $0x690] sm:$0xff]
      %v570 = vld [vmem:[%s212 + $0x698] sm:$0xff]
      %v571 = vld [vmem:[%s212 + $0x6a0] sm:$0xff]
      %v572 = vld [vmem:[%s212 + $0x6a8] sm:$0xff]
      %v573 = vld [vmem:[%s212 + $0x6b0] sm:$0xff]
      %v574 = vld [vmem:[%s212 + $0x6b8] sm:$0xff]
      %v575 = vld [vmem:[%s212 + $0x6c0] sm:$0xff]
      %v576 = vld [vmem:[%s212 + $0x6c8] sm:$0xff]
      %v577 = vld [vmem:[%s212 + $0x6d0] sm:$0xff]
      %v578 = vld [vmem:[%s212 + $0x6d8] sm:$0xff]
      %v579 = vld [vmem:[%s212 + $0x6e0] sm:$0xff]
      %v580 = vld [vmem:[%s212 + $0x6e8] sm:$0xff]
      %v581 = vld [vmem:[%s212 + $0x6f0] sm:$0xff]
      %v582 = vld [vmem:[%s212 + $0x6f8] sm:$0xff]
      %v583 = vld [vmem:[%s212 + $0x700] sm:$0xff]
      %v584 = vld [vmem:[%s212 + $0x708] sm:$0xff]
      %v585 = vld [vmem:[%s212 + $0x710] sm:$0xff]
      %v586 = vld [vmem:[%s212 + $0x718] sm:$0xff]
      %v587 = vld [vmem:[%s212 + $0x720] sm:$0xff]
      %v588 = vld [vmem:[%s212 + $0x728] sm:$0xff]
      %v589 = vld [vmem:[%s212 + $0x730] sm:$0xff]
      %v590 = vld [vmem:[%s212 + $0x738] sm:$0xff]
      %v591 = vld [vmem:[%s212 + $0x740] sm:$0xff]
      %v592 = vld [vmem:[%s212 + $0x748] sm:$0xff]
      %v593 = vld [vmem:[%s212 + $0x750] sm:$0xff]
      %v594 = vld [vmem:[%s212 + $0x758] sm:$0xff]
      %v595 = vld [vmem:[%s212 + $0x760] sm:$0xff]
      %v596 = vld [vmem:[%s212 + $0x768] sm:$0xff]
      %v597 = vld [vmem:[%s212 + $0x770] sm:$0xff]
      %v598 = vld [vmem:[%s212 + $0x778] sm:$0xff]
      %v599 = vld [vmem:[%s212 + $0x780] sm:$0xff]
      %v600 = vld [vmem:[%s212 + $0x788] sm:$0xff]
      %v601 = vld [vmem:[%s212 + $0x790] sm:$0xff]
      %v602 = vld [vmem:[%s212 + $0x798] sm:$0xff]
      %v603 = vld [vmem:[%s212 + $0x7a0] sm:$0xff]
      %v604 = vld [vmem:[%s212 + $0x7a8] sm:$0xff]
      %v605 = vld [vmem:[%s212 + $0x7b0] sm:$0xff]
      %v606 = vld [vmem:[%s212 + $0x7b8] sm:$0xff]
      %v607 = vld [vmem:[%s212 + $0x7c0] sm:$0xff]
      %v608 = vld [vmem:[%s212 + $0x7c8] sm:$0xff]
      %v609 = vld [vmem:[%s212 + $0x7d0] sm:$0xff]
      %v610 = vld [vmem:[%s212 + $0x7d8] sm:$0xff]
      %v611 = vld [vmem:[%s212 + $0x7e0] sm:$0xff]
      %v612 = vld [vmem:[%s212 + $0x7e8] sm:$0xff]
      %v613 = vld [vmem:[%s212 + $0x7f0] sm:$0xff]
      %v614 = vld [vmem:[%s212 + $0x7f8] sm:$0xff]
      %v615 = vld [vmem:[%s219] sm:$0xf]
      %v616 = vld [vmem:[%s219 + $0x4] sm:$0xf]
      %v617 = vld [vmem:[%s219 + $0x8] sm:$0xf]
      %v618 = vld [vmem:[%s219 + $0xc] sm:$0xf]
      %v619 = vld [vmem:[%s219 + $0x10] sm:$0xf]
      %v620 = vld [vmem:[%s219 + $0x14] sm:$0xf]
      %v621 = vld [vmem:[%s219 + $0x18] sm:$0xf]
      %v622 = vld [vmem:[%s219 + $0x1c] sm:$0xf]
      %v623 = vld [vmem:[%s219 + $0x20] sm:$0xf]
      %v624 = vld [vmem:[%s219 + $0x24] sm:$0xf]
      %v625 = vld [vmem:[%s219 + $0x28] sm:$0xf]
      %v626 = vld [vmem:[%s219 + $0x2c] sm:$0xf]
      %v627 = vld [vmem:[%s219 + $0x30] sm:$0xf]
      %v628 = vld [vmem:[%s219 + $0x34] sm:$0xf]
      %v629 = vld [vmem:[%s219 + $0x38] sm:$0xf]
      %v630 = vld [vmem:[%s219 + $0x3c] sm:$0xf]
      %v631 = vld [vmem:[%s219 + $0x40] sm:$0xf]
      %v632 = vld [vmem:[%s219 + $0x44] sm:$0xf]
      %v633 = vld [vmem:[%s219 + $0x48] sm:$0xf]
      %v634 = vld [vmem:[%s219 + $0x4c] sm:$0xf]
      %v635 = vld [vmem:[%s219 + $0x50] sm:$0xf]
      %v636 = vld [vmem:[%s219 + $0x54] sm:$0xf]
      %v637 = vld [vmem:[%s219 + $0x58] sm:$0xf]
      %v638 = vld [vmem:[%s219 + $0x5c] sm:$0xf]
      %v639 = vld [vmem:[%s219 + $0x60] sm:$0xf]
      %v640 = vld [vmem:[%s219 + $0x64] sm:$0xf]
      %v641 = vld [vmem:[%s219 + $0x68] sm:$0xf]
      %v642 = vld [vmem:[%s219 + $0x6c] sm:$0xf]
      %v643 = vld [vmem:[%s219 + $0x70] sm:$0xf]
      %v644 = vld [vmem:[%s219 + $0x74] sm:$0xf]
      %v645 = vld [vmem:[%s219 + $0x78] sm:$0xf]
      %v646 = vld [vmem:[%s219 + $0x7c] sm:$0xf]
      %v647 = vld [vmem:[%s219 + $0x80] sm:$0xf]
      %v648 = vld [vmem:[%s219 + $0x84] sm:$0xf]
      %v649 = vld [vmem:[%s219 + $0x88] sm:$0xf]
      %v650 = vld [vmem:[%s219 + $0x8c] sm:$0xf]
      %v651 = vld [vmem:[%s219 + $0x90] sm:$0xf]
      %v652 = vld [vmem:[%s219 + $0x94] sm:$0xf]
      %v653 = vld [vmem:[%s219 + $0x98] sm:$0xf]
      %v654 = vld [vmem:[%s219 + $0x9c] sm:$0xf]
      %v655 = vld [vmem:[%s219 + $0xa0] sm:$0xf]
      %v656 = vld [vmem:[%s219 + $0xa4] sm:$0xf]
      %v657 = vld [vmem:[%s219 + $0xa8] sm:$0xf]
      %v658 = vld [vmem:[%s219 + $0xac] sm:$0xf]
      %v659 = vld [vmem:[%s219 + $0xb0] sm:$0xf]
      %v660 = vld [vmem:[%s219 + $0xb4] sm:$0xf]
      %v661 = vld [vmem:[%s219 + $0xb8] sm:$0xf]
      %v662 = vld [vmem:[%s219 + $0xbc] sm:$0xf]
      %v663 = vld [vmem:[%s219 + $0xc0] sm:$0xf]
      %v664 = vld [vmem:[%s219 + $0xc4] sm:$0xf]
      %v665 = vld [vmem:[%s219 + $0xc8] sm:$0xf]
      %v666 = vld [vmem:[%s219 + $0xcc] sm:$0xf]
      %v667 = vld [vmem:[%s219 + $0xd0] sm:$0xf]
      %v668 = vld [vmem:[%s219 + $0xd4] sm:$0xf]
      %v669 = vld [vmem:[%s219 + $0xd8] sm:$0xf]
      %v670 = vld [vmem:[%s219 + $0xdc] sm:$0xf]
      %v671 = vld [vmem:[%s219 + $0xe0] sm:$0xf]
      %v672 = vld [vmem:[%s219 + $0xe4] sm:$0xf]
      %v673 = vld [vmem:[%s219 + $0xe8] sm:$0xf]
      %v674 = vld [vmem:[%s219 + $0xec] sm:$0xf]
      %v675 = vld [vmem:[%s219 + $0xf0] sm:$0xf]
      %v676 = vld [vmem:[%s219 + $0xf4] sm:$0xf]
      %v677 = vld [vmem:[%s219 + $0xf8] sm:$0xf]
      %v678 = vld [vmem:[%s219 + $0xfc] sm:$0xf]
      %v679 = vld [vmem:[%s219 + $0x100] sm:$0xf]
      %v680 = vld [vmem:[%s219 + $0x104] sm:$0xf]
      %v681 = vld [vmem:[%s219 + $0x108] sm:$0xf]
      %v682 = vld [vmem:[%s219 + $0x10c] sm:$0xf]
      %v683 = vld [vmem:[%s219 + $0x110] sm:$0xf]
      %v684 = vld [vmem:[%s219 + $0x114] sm:$0xf]
      %v685 = vld [vmem:[%s219 + $0x118] sm:$0xf]
      %v686 = vld [vmem:[%s219 + $0x11c] sm:$0xf]
      %v687 = vld [vmem:[%s219 + $0x120] sm:$0xf]
      %v688 = vld [vmem:[%s219 + $0x124] sm:$0xf]
      %v689 = vld [vmem:[%s219 + $0x128] sm:$0xf]
      %v690 = vld [vmem:[%s219 + $0x12c] sm:$0xf]
      %v691 = vld [vmem:[%s219 + $0x130] sm:$0xf]
      %v692 = vld [vmem:[%s219 + $0x134] sm:$0xf]
      %v693 = vld [vmem:[%s219 + $0x138] sm:$0xf]
      %v694 = vld [vmem:[%s219 + $0x13c] sm:$0xf]
      %v695 = vld [vmem:[%s219 + $0x140] sm:$0xf]
      %v696 = vld [vmem:[%s219 + $0x144] sm:$0xf]
      %v697 = vld [vmem:[%s219 + $0x148] sm:$0xf]
      %v698 = vld [vmem:[%s219 + $0x14c] sm:$0xf]
      %v699 = vld [vmem:[%s219 + $0x150] sm:$0xf]
      %v700 = vld [vmem:[%s219 + $0x154] sm:$0xf]
      %v701 = vld [vmem:[%s219 + $0x158] sm:$0xf]
      %v702 = vld [vmem:[%s219 + $0x15c] sm:$0xf]
      %v703 = vld [vmem:[%s219 + $0x160] sm:$0xf]
      %v704 = vld [vmem:[%s219 + $0x164] sm:$0xf]
      %v705 = vld [vmem:[%s219 + $0x168] sm:$0xf]
      %v706 = vld [vmem:[%s219 + $0x16c] sm:$0xf]
      %v707 = vld [vmem:[%s219 + $0x170] sm:$0xf]
      %v708 = vld [vmem:[%s219 + $0x174] sm:$0xf]
      %v709 = vld [vmem:[%s219 + $0x178] sm:$0xf]
      %v710 = vld [vmem:[%s219 + $0x17c] sm:$0xf]
      %v711 = vld [vmem:[%s219 + $0x180] sm:$0xf]
      %v712 = vld [vmem:[%s219 + $0x184] sm:$0xf]
      %v713 = vld [vmem:[%s219 + $0x188] sm:$0xf]
      %v714 = vld [vmem:[%s219 + $0x18c] sm:$0xf]
      %v715 = vld [vmem:[%s219 + $0x190] sm:$0xf]
      %v716 = vld [vmem:[%s219 + $0x194] sm:$0xf]
      %v717 = vld [vmem:[%s219 + $0x198] sm:$0xf]
      %v718 = vld [vmem:[%s219 + $0x19c] sm:$0xf]
      %v719 = vld [vmem:[%s219 + $0x1a0] sm:$0xf]
      %v720 = vld [vmem:[%s219 + $0x1a4] sm:$0xf]
      %v721 = vld [vmem:[%s219 + $0x1a8] sm:$0xf]
      %v722 = vld [vmem:[%s219 + $0x1ac] sm:$0xf]
      %v723 = vld [vmem:[%s219 + $0x1b0] sm:$0xf]
      %v724 = vld [vmem:[%s219 + $0x1b4] sm:$0xf]
      %v725 = vld [vmem:[%s219 + $0x1b8] sm:$0xf]
      %v726 = vld [vmem:[%s219 + $0x1bc] sm:$0xf]
      %v727 = vld [vmem:[%s219 + $0x1c0] sm:$0xf]
      %v728 = vld [vmem:[%s219 + $0x1c4] sm:$0xf]
      %v729 = vld [vmem:[%s219 + $0x1c8] sm:$0xf]
      %v730 = vld [vmem:[%s219 + $0x1cc] sm:$0xf]
      %v731 = vld [vmem:[%s219 + $0x1d0] sm:$0xf]
      %v732 = vld [vmem:[%s219 + $0x1d4] sm:$0xf]
      %v733 = vld [vmem:[%s219 + $0x1d8] sm:$0xf]
      %v734 = vld [vmem:[%s219 + $0x1dc] sm:$0xf]
      %v735 = vld [vmem:[%s219 + $0x1e0] sm:$0xf]
      %v736 = vld [vmem:[%s219 + $0x1e4] sm:$0xf]
      %v737 = vld [vmem:[%s219 + $0x1e8] sm:$0xf]
      %v738 = vld [vmem:[%s219 + $0x1ec] sm:$0xf]
      %v739 = vld [vmem:[%s219 + $0x1f0] sm:$0xf]
      %v740 = vld [vmem:[%s219 + $0x1f4] sm:$0xf]
      %v741 = vld [vmem:[%s219 + $0x1f8] sm:$0xf]
      %v742 = vld [vmem:[%s219 + $0x1fc] sm:$0xf]
      %v999 = vunpack.c.l.b16 %v359
      %v1000 = vunpack.c.h.b16 %v359
      %v1001 = vunpack.c.l.b16 %v360
      %v1002 = vunpack.c.h.b16 %v360
      %v1003 = vunpack.c.l.b16 %v361
      %v1004 = vunpack.c.h.b16 %v361
      %v1005 = vunpack.c.l.b16 %v362
      %v1006 = vunpack.c.h.b16 %v362
      %v1007 = vunpack.c.l.b16 %v363
      %v1008 = vunpack.c.h.b16 %v363
      %v1009 = vunpack.c.l.b16 %v364
      %v1010 = vunpack.c.h.b16 %v364
      %v1011 = vunpack.c.l.b16 %v365
      %v1012 = vunpack.c.h.b16 %v365
      %v1013 = vunpack.c.l.b16 %v366
      %v1014 = vunpack.c.h.b16 %v366
      %v1015 = vunpack.c.l.b16 %v367
      %v1016 = vunpack.c.h.b16 %v367
      %v1017 = vunpack.c.l.b16 %v368
      %v1018 = vunpack.c.h.b16 %v368
      %v1019 = vunpack.c.l.b16 %v369
      %v1020 = vunpack.c.h.b16 %v369
      %v1021 = vunpack.c.l.b16 %v370
      %v1022 = vunpack.c.h.b16 %v370
      %v1023 = vunpack.c.l.b16 %v371
      %v1024 = vunpack.c.h.b16 %v371
      %v1025 = vunpack.c.l.b16 %v372
      %v1026 = vunpack.c.h.b16 %v372
      %v1027 = vunpack.c.l.b16 %v373
      %v1028 = vunpack.c.h.b16 %v373
      %v1029 = vunpack.c.l.b16 %v374
      %v1030 = vunpack.c.h.b16 %v374
      %v1031 = vunpack.c.l.b16 %v375
      %v1032 = vunpack.c.h.b16 %v375
      %v1033 = vunpack.c.l.b16 %v376
      %v1034 = vunpack.c.h.b16 %v376
      %v1035 = vunpack.c.l.b16 %v377
      %v1036 = vunpack.c.h.b16 %v377
      %v1037 = vunpack.c.l.b16 %v378
      %v1038 = vunpack.c.h.b16 %v378
      %v1039 = vunpack.c.l.b16 %v379
      %v1040 = vunpack.c.h.b16 %v379
      %v1041 = vunpack.c.l.b16 %v380
      %v1042 = vunpack.c.h.b16 %v380
      %v1043 = vunpack.c.l.b16 %v381
      %v1044 = vunpack.c.h.b16 %v381
      %v1045 = vunpack.c.l.b16 %v382
      %v1046 = vunpack.c.h.b16 %v382
      %v1047 = vunpack.c.l.b16 %v383
      %v1048 = vunpack.c.h.b16 %v383
      %v1049 = vunpack.c.l.b16 %v384
      %v1050 = vunpack.c.h.b16 %v384
      %v1051 = vunpack.c.l.b16 %v385
      %v1052 = vunpack.c.h.b16 %v385
      %v1053 = vunpack.c.l.b16 %v386
      %v1054 = vunpack.c.h.b16 %v386
      %v1055 = vunpack.c.l.b16 %v387
      %v1056 = vunpack.c.h.b16 %v387
      %v1057 = vunpack.c.l.b16 %v388
      %v1058 = vunpack.c.h.b16 %v388
      %v1059 = vunpack.c.l.b16 %v389
      %v1060 = vunpack.c.h.b16 %v389
      %v1061 = vunpack.c.l.b16 %v390
      %v1062 = vunpack.c.h.b16 %v390
      %v1063 = vunpack.c.l.b16 %v391
      %v1064 = vunpack.c.h.b16 %v391
      %v1065 = vunpack.c.l.b16 %v392
      %v1066 = vunpack.c.h.b16 %v392
      %v1067 = vunpack.c.l.b16 %v393
      %v1068 = vunpack.c.h.b16 %v393
      %v1069 = vunpack.c.l.b16 %v394
      %v1070 = vunpack.c.h.b16 %v394
      %v1071 = vunpack.c.l.b16 %v395
      %v1072 = vunpack.c.h.b16 %v395
      %v1073 = vunpack.c.l.b16 %v396
      %v1074 = vunpack.c.h.b16 %v396
      %v1075 = vunpack.c.l.b16 %v397
      %v1076 = vunpack.c.h.b16 %v397
      %v1077 = vunpack.c.l.b16 %v398
      %v1078 = vunpack.c.h.b16 %v398
      %v1079 = vunpack.c.l.b16 %v399
      %v1080 = vunpack.c.h.b16 %v399
      %v1081 = vunpack.c.l.b16 %v400
      %v1082 = vunpack.c.h.b16 %v400
      %v1083 = vunpack.c.l.b16 %v401
      %v1084 = vunpack.c.h.b16 %v401
      %v1085 = vunpack.c.l.b16 %v402
      %v1086 = vunpack.c.h.b16 %v402
      %v1087 = vunpack.c.l.b16 %v403
      %v1088 = vunpack.c.h.b16 %v403
      %v1089 = vunpack.c.l.b16 %v404
      %v1090 = vunpack.c.h.b16 %v404
      %v1091 = vunpack.c.l.b16 %v405
      %v1092 = vunpack.c.h.b16 %v405
      %v1093 = vunpack.c.l.b16 %v406
      %v1094 = vunpack.c.h.b16 %v406
      %v1095 = vunpack.c.l.b16 %v407
      %v1096 = vunpack.c.h.b16 %v407
      %v1097 = vunpack.c.l.b16 %v408
      %v1098 = vunpack.c.h.b16 %v408
      %v1099 = vunpack.c.l.b16 %v409
      %v1100 = vunpack.c.h.b16 %v409
      %v1101 = vunpack.c.l.b16 %v410
      %v1102 = vunpack.c.h.b16 %v410
      %v1103 = vunpack.c.l.b16 %v411
      %v1104 = vunpack.c.h.b16 %v411
      %v1105 = vunpack.c.l.b16 %v412
      %v1106 = vunpack.c.h.b16 %v412
      %v1107 = vunpack.c.l.b16 %v413
      %v1108 = vunpack.c.h.b16 %v413
      %v1109 = vunpack.c.l.b16 %v414
      %v1110 = vunpack.c.h.b16 %v414
      %v1111 = vunpack.c.l.b16 %v415
      %v1112 = vunpack.c.h.b16 %v415
      %v1113 = vunpack.c.l.b16 %v416
      %v1114 = vunpack.c.h.b16 %v416
      %v1115 = vunpack.c.l.b16 %v417
      %v1116 = vunpack.c.h.b16 %v417
      %v1117 = vunpack.c.l.b16 %v418
      %v1118 = vunpack.c.h.b16 %v418
      %v1119 = vunpack.c.l.b16 %v419
      %v1120 = vunpack.c.h.b16 %v419
      %v1121 = vunpack.c.l.b16 %v420
      %v1122 = vunpack.c.h.b16 %v420
      %v1123 = vunpack.c.l.b16 %v421
      %v1124 = vunpack.c.h.b16 %v421
      %v1125 = vunpack.c.l.b16 %v422
      %v1126 = vunpack.c.h.b16 %v422
      %v1127 = vunpack.c.l.b16 %v423
      %v1128 = vunpack.c.h.b16 %v423
      %v1129 = vunpack.c.l.b16 %v424
      %v1130 = vunpack.c.h.b16 %v424
      %v1131 = vunpack.c.l.b16 %v425
      %v1132 = vunpack.c.h.b16 %v425
      %v1133 = vunpack.c.l.b16 %v426
      %v1134 = vunpack.c.h.b16 %v426
      %v1135 = vunpack.c.l.b16 %v427
      %v1136 = vunpack.c.h.b16 %v427
      %v1137 = vunpack.c.l.b16 %v428
      %v1138 = vunpack.c.h.b16 %v428
      %v1139 = vunpack.c.l.b16 %v429
      %v1140 = vunpack.c.h.b16 %v429
      %v1141 = vunpack.c.l.b16 %v430
      %v1142 = vunpack.c.h.b16 %v430
      %v1143 = vunpack.c.l.b16 %v431
      %v1144 = vunpack.c.h.b16 %v431
      %v1145 = vunpack.c.l.b16 %v432
      %v1146 = vunpack.c.h.b16 %v432
      %v1147 = vunpack.c.l.b16 %v433
      %v1148 = vunpack.c.h.b16 %v433
      %v1149 = vunpack.c.l.b16 %v434
      %v1150 = vunpack.c.h.b16 %v434
      %v1151 = vunpack.c.l.b16 %v435
      %v1152 = vunpack.c.h.b16 %v435
      %v1153 = vunpack.c.l.b16 %v436
      %v1154 = vunpack.c.h.b16 %v436
      %v1155 = vunpack.c.l.b16 %v437
      %v1156 = vunpack.c.h.b16 %v437
      %v1157 = vunpack.c.l.b16 %v438
      %v1158 = vunpack.c.h.b16 %v438
      %v1159 = vunpack.c.l.b16 %v439
      %v1160 = vunpack.c.h.b16 %v439
      %v1161 = vunpack.c.l.b16 %v440
      %v1162 = vunpack.c.h.b16 %v440
      %v1163 = vunpack.c.l.b16 %v441
      %v1164 = vunpack.c.h.b16 %v441
      %v1165 = vunpack.c.l.b16 %v442
      %v1166 = vunpack.c.h.b16 %v442
      %v1167 = vunpack.c.l.b16 %v443
      %v1168 = vunpack.c.h.b16 %v443
      %v1169 = vunpack.c.l.b16 %v444
      %v1170 = vunpack.c.h.b16 %v444
      %v1171 = vunpack.c.l.b16 %v445
      %v1172 = vunpack.c.h.b16 %v445
      %v1173 = vunpack.c.l.b16 %v446
      %v1174 = vunpack.c.h.b16 %v446
      %v1175 = vunpack.c.l.b16 %v447
      %v1176 = vunpack.c.h.b16 %v447
      %v1177 = vunpack.c.l.b16 %v448
      %v1178 = vunpack.c.h.b16 %v448
      %v1179 = vunpack.c.l.b16 %v449
      %v1180 = vunpack.c.h.b16 %v449
      %v1181 = vunpack.c.l.b16 %v450
      %v1182 = vunpack.c.h.b16 %v450
      %v1183 = vunpack.c.l.b16 %v451
      %v1184 = vunpack.c.h.b16 %v451
      %v1185 = vunpack.c.l.b16 %v452
      %v1186 = vunpack.c.h.b16 %v452
      %v1187 = vunpack.c.l.b16 %v453
      %v1188 = vunpack.c.h.b16 %v453
      %v1189 = vunpack.c.l.b16 %v454
      %v1190 = vunpack.c.h.b16 %v454
      %v1191 = vunpack.c.l.b16 %v455
      %v1192 = vunpack.c.h.b16 %v455
      %v1193 = vunpack.c.l.b16 %v456
      %v1194 = vunpack.c.h.b16 %v456
      %v1195 = vunpack.c.l.b16 %v457
      %v1196 = vunpack.c.h.b16 %v457
      %v1197 = vunpack.c.l.b16 %v458
      %v1198 = vunpack.c.h.b16 %v458
      %v1199 = vunpack.c.l.b16 %v459
      %v1200 = vunpack.c.h.b16 %v459
      %v1201 = vunpack.c.l.b16 %v460
      %v1202 = vunpack.c.h.b16 %v460
      %v1203 = vunpack.c.l.b16 %v461
      %v1204 = vunpack.c.h.b16 %v461
      %v1205 = vunpack.c.l.b16 %v462
      %v1206 = vunpack.c.h.b16 %v462
      %v1207 = vunpack.c.l.b16 %v463
      %v1208 = vunpack.c.h.b16 %v463
      %v1209 = vunpack.c.l.b16 %v464
      %v1210 = vunpack.c.h.b16 %v464
      %v1211 = vunpack.c.l.b16 %v465
      %v1212 = vunpack.c.h.b16 %v465
      %v1213 = vunpack.c.l.b16 %v466
      %v1214 = vunpack.c.h.b16 %v466
      %v1215 = vunpack.c.l.b16 %v467
      %v1216 = vunpack.c.h.b16 %v467
      %v1217 = vunpack.c.l.b16 %v468
      %v1218 = vunpack.c.h.b16 %v468
      %v1219 = vunpack.c.l.b16 %v469
      %v1220 = vunpack.c.h.b16 %v469
      %v1221 = vunpack.c.l.b16 %v470
      %v1222 = vunpack.c.h.b16 %v470
      %v1223 = vunpack.c.l.b16 %v471
      %v1224 = vunpack.c.h.b16 %v471
      %v1225 = vunpack.c.l.b16 %v472
      %v1226 = vunpack.c.h.b16 %v472
      %v1227 = vunpack.c.l.b16 %v473
      %v1228 = vunpack.c.h.b16 %v473
      %v1229 = vunpack.c.l.b16 %v474
      %v1230 = vunpack.c.h.b16 %v474
      %v1231 = vunpack.c.l.b16 %v475
      %v1232 = vunpack.c.h.b16 %v475
      %v1233 = vunpack.c.l.b16 %v476
      %v1234 = vunpack.c.h.b16 %v476
      %v1235 = vunpack.c.l.b16 %v477
      %v1236 = vunpack.c.h.b16 %v477
      %v1237 = vunpack.c.l.b16 %v478
      %v1238 = vunpack.c.h.b16 %v478
      %v1239 = vunpack.c.l.b16 %v479
      %v1240 = vunpack.c.h.b16 %v479
      %v1241 = vunpack.c.l.b16 %v480
      %v1242 = vunpack.c.h.b16 %v480
      %v1243 = vunpack.c.l.b16 %v481
      %v1244 = vunpack.c.h.b16 %v481
      %v1245 = vunpack.c.l.b16 %v482
      %v1246 = vunpack.c.h.b16 %v482
      %v1247 = vunpack.c.l.b16 %v483
      %v1248 = vunpack.c.h.b16 %v483
      %v1249 = vunpack.c.l.b16 %v484
      %v1250 = vunpack.c.h.b16 %v484
      %v1251 = vunpack.c.l.b16 %v485
      %v1252 = vunpack.c.h.b16 %v485
      %v1253 = vunpack.c.l.b16 %v486
      %v1254 = vunpack.c.h.b16 %v486
      %v1255 = vunpack.c.l.b16 %v487
      %v1256 = vunpack.c.h.b16 %v487
      %v1257 = vunpack.c.l.b16 %v488
      %v1258 = vunpack.c.h.b16 %v488
      %v1259 = vunpack.c.l.b16 %v489
      %v1260 = vunpack.c.h.b16 %v489
      %v1261 = vunpack.c.l.b16 %v490
      %v1262 = vunpack.c.h.b16 %v490
      %v1263 = vunpack.c.l.b16 %v491
      %v1264 = vunpack.c.h.b16 %v491
      %v1265 = vunpack.c.l.b16 %v492
      %v1266 = vunpack.c.h.b16 %v492
      %v1267 = vunpack.c.l.b16 %v493
      %v1268 = vunpack.c.h.b16 %v493
      %v1269 = vunpack.c.l.b16 %v494
      %v1270 = vunpack.c.h.b16 %v494
      %v1271 = vunpack.c.l.b16 %v495
      %v1272 = vunpack.c.h.b16 %v495
      %v1273 = vunpack.c.l.b16 %v496
      %v1274 = vunpack.c.h.b16 %v496
      %v1275 = vunpack.c.l.b16 %v497
      %v1276 = vunpack.c.h.b16 %v497
      %v1277 = vunpack.c.l.b16 %v498
      %v1278 = vunpack.c.h.b16 %v498
      %v1279 = vunpack.c.l.b16 %v499
      %v1280 = vunpack.c.h.b16 %v499
      %v1281 = vunpack.c.l.b16 %v500
      %v1282 = vunpack.c.h.b16 %v500
      %v1283 = vunpack.c.l.b16 %v501
      %v1284 = vunpack.c.h.b16 %v501
      %v1285 = vunpack.c.l.b16 %v502
      %v1286 = vunpack.c.h.b16 %v502
      %v1287 = vunpack.c.l.b16 %v503
      %v1288 = vunpack.c.h.b16 %v503
      %v1289 = vunpack.c.l.b16 %v504
      %v1290 = vunpack.c.h.b16 %v504
      %v1291 = vunpack.c.l.b16 %v505
      %v1292 = vunpack.c.h.b16 %v505
      %v1293 = vunpack.c.l.b16 %v506
      %v1294 = vunpack.c.h.b16 %v506
      %v1295 = vunpack.c.l.b16 %v507
      %v1296 = vunpack.c.h.b16 %v507
      %v1297 = vunpack.c.l.b16 %v508
      %v1298 = vunpack.c.h.b16 %v508
      %v1299 = vunpack.c.l.b16 %v509
      %v1300 = vunpack.c.h.b16 %v509
      %v1301 = vunpack.c.l.b16 %v510
      %v1302 = vunpack.c.h.b16 %v510
      %v1303 = vunpack.c.l.b16 %v511
      %v1304 = vunpack.c.h.b16 %v511
      %v1305 = vunpack.c.l.b16 %v512
      %v1306 = vunpack.c.h.b16 %v512
      %v1307 = vunpack.c.l.b16 %v513
      %v1308 = vunpack.c.h.b16 %v513
      %v1309 = vunpack.c.l.b16 %v514
      %v1310 = vunpack.c.h.b16 %v514
      %v1311 = vunpack.c.l.b16 %v515
      %v1312 = vunpack.c.h.b16 %v515
      %v1313 = vunpack.c.l.b16 %v516
      %v1314 = vunpack.c.h.b16 %v516
      %v1315 = vunpack.c.l.b16 %v517
      %v1316 = vunpack.c.h.b16 %v517
      %v1317 = vunpack.c.l.b16 %v518
      %v1318 = vunpack.c.h.b16 %v518
      %v1319 = vunpack.c.l.b16 %v519
      %v1320 = vunpack.c.h.b16 %v519
      %v1321 = vunpack.c.l.b16 %v520
      %v1322 = vunpack.c.h.b16 %v520
      %v1323 = vunpack.c.l.b16 %v521
      %v1324 = vunpack.c.h.b16 %v521
      %v1325 = vunpack.c.l.b16 %v522
      %v1326 = vunpack.c.h.b16 %v522
      %v1327 = vunpack.c.l.b16 %v523
      %v1328 = vunpack.c.h.b16 %v523
      %v1329 = vunpack.c.l.b16 %v524
      %v1330 = vunpack.c.h.b16 %v524
      %v1331 = vunpack.c.l.b16 %v525
      %v1332 = vunpack.c.h.b16 %v525
      %v1333 = vunpack.c.l.b16 %v526
      %v1334 = vunpack.c.h.b16 %v526
      %v1335 = vunpack.c.l.b16 %v527
      %v1336 = vunpack.c.h.b16 %v527
      %v1337 = vunpack.c.l.b16 %v528
      %v1338 = vunpack.c.h.b16 %v528
      %v1339 = vunpack.c.l.b16 %v529
      %v1340 = vunpack.c.h.b16 %v529
      %v1341 = vunpack.c.l.b16 %v530
      %v1342 = vunpack.c.h.b16 %v530
      %v1343 = vunpack.c.l.b16 %v531
      %v1344 = vunpack.c.h.b16 %v531
      %v1345 = vunpack.c.l.b16 %v532
      %v1346 = vunpack.c.h.b16 %v532
      %v1347 = vunpack.c.l.b16 %v533
      %v1348 = vunpack.c.h.b16 %v533
      %v1349 = vunpack.c.l.b16 %v534
      %v1350 = vunpack.c.h.b16 %v534
      %v1351 = vunpack.c.l.b16 %v535
      %v1352 = vunpack.c.h.b16 %v535
      %v1353 = vunpack.c.l.b16 %v536
      %v1354 = vunpack.c.h.b16 %v536
      %v1355 = vunpack.c.l.b16 %v537
      %v1356 = vunpack.c.h.b16 %v537
      %v1357 = vunpack.c.l.b16 %v538
      %v1358 = vunpack.c.h.b16 %v538
      %v1359 = vunpack.c.l.b16 %v539
      %v1360 = vunpack.c.h.b16 %v539
      %v1361 = vunpack.c.l.b16 %v540
      %v1362 = vunpack.c.h.b16 %v540
      %v1363 = vunpack.c.l.b16 %v541
      %v1364 = vunpack.c.h.b16 %v541
      %v1365 = vunpack.c.l.b16 %v542
      %v1366 = vunpack.c.h.b16 %v542
      %v1367 = vunpack.c.l.b16 %v543
      %v1368 = vunpack.c.h.b16 %v543
      %v1369 = vunpack.c.l.b16 %v544
      %v1370 = vunpack.c.h.b16 %v544
      %v1371 = vunpack.c.l.b16 %v545
      %v1372 = vunpack.c.h.b16 %v545
      %v1373 = vunpack.c.l.b16 %v546
      %v1374 = vunpack.c.h.b16 %v546
      %v1375 = vunpack.c.l.b16 %v547
      %v1376 = vunpack.c.h.b16 %v547
      %v1377 = vunpack.c.l.b16 %v548
      %v1378 = vunpack.c.h.b16 %v548
      %v1379 = vunpack.c.l.b16 %v549
      %v1380 = vunpack.c.h.b16 %v549
      %v1381 = vunpack.c.l.b16 %v550
      %v1382 = vunpack.c.h.b16 %v550
      %v1383 = vunpack.c.l.b16 %v551
      %v1384 = vunpack.c.h.b16 %v551
      %v1385 = vunpack.c.l.b16 %v552
      %v1386 = vunpack.c.h.b16 %v552
      %v1387 = vunpack.c.l.b16 %v553
      %v1388 = vunpack.c.h.b16 %v553
      %v1389 = vunpack.c.l.b16 %v554
      %v1390 = vunpack.c.h.b16 %v554
      %v1391 = vunpack.c.l.b16 %v555
      %v1392 = vunpack.c.h.b16 %v555
      %v1393 = vunpack.c.l.b16 %v556
      %v1394 = vunpack.c.h.b16 %v556
      %v1395 = vunpack.c.l.b16 %v557
      %v1396 = vunpack.c.h.b16 %v557
      %v1397 = vunpack.c.l.b16 %v558
      %v1398 = vunpack.c.h.b16 %v558
      %v1399 = vunpack.c.l.b16 %v559
      %v1400 = vunpack.c.h.b16 %v559
      %v1401 = vunpack.c.l.b16 %v560
      %v1402 = vunpack.c.h.b16 %v560
      %v1403 = vunpack.c.l.b16 %v561
      %v1404 = vunpack.c.h.b16 %v561
      %v1405 = vunpack.c.l.b16 %v562
      %v1406 = vunpack.c.h.b16 %v562
      %v1407 = vunpack.c.l.b16 %v563
      %v1408 = vunpack.c.h.b16 %v563
      %v1409 = vunpack.c.l.b16 %v564
      %v1410 = vunpack.c.h.b16 %v564
      %v1411 = vunpack.c.l.b16 %v565
      %v1412 = vunpack.c.h.b16 %v565
      %v1413 = vunpack.c.l.b16 %v566
      %v1414 = vunpack.c.h.b16 %v566
      %v1415 = vunpack.c.l.b16 %v567
      %v1416 = vunpack.c.h.b16 %v567
      %v1417 = vunpack.c.l.b16 %v568
      %v1418 = vunpack.c.h.b16 %v568
      %v1419 = vunpack.c.l.b16 %v569
      %v1420 = vunpack.c.h.b16 %v569
      %v1421 = vunpack.c.l.b16 %v570
      %v1422 = vunpack.c.h.b16 %v570
      %v1423 = vunpack.c.l.b16 %v571
      %v1424 = vunpack.c.h.b16 %v571
      %v1425 = vunpack.c.l.b16 %v572
      %v1426 = vunpack.c.h.b16 %v572
      %v1427 = vunpack.c.l.b16 %v573
      %v1428 = vunpack.c.h.b16 %v573
      %v1429 = vunpack.c.l.b16 %v574
      %v1430 = vunpack.c.h.b16 %v574
      %v1431 = vunpack.c.l.b16 %v575
      %v1432 = vunpack.c.h.b16 %v575
      %v1433 = vunpack.c.l.b16 %v576
      %v1434 = vunpack.c.h.b16 %v576
      %v1435 = vunpack.c.l.b16 %v577
      %v1436 = vunpack.c.h.b16 %v577
      %v1437 = vunpack.c.l.b16 %v578
      %v1438 = vunpack.c.h.b16 %v578
      %v1439 = vunpack.c.l.b16 %v579
      %v1440 = vunpack.c.h.b16 %v579
      %v1441 = vunpack.c.l.b16 %v580
      %v1442 = vunpack.c.h.b16 %v580
      %v1443 = vunpack.c.l.b16 %v581
      %v1444 = vunpack.c.h.b16 %v581
      %v1445 = vunpack.c.l.b16 %v582
      %v1446 = vunpack.c.h.b16 %v582
      %v1447 = vunpack.c.l.b16 %v583
      %v1448 = vunpack.c.h.b16 %v583
      %v1449 = vunpack.c.l.b16 %v584
      %v1450 = vunpack.c.h.b16 %v584
      %v1451 = vunpack.c.l.b16 %v585
      %v1452 = vunpack.c.h.b16 %v585
      %v1453 = vunpack.c.l.b16 %v586
      %v1454 = vunpack.c.h.b16 %v586
      %v1455 = vunpack.c.l.b16 %v587
      %v1456 = vunpack.c.h.b16 %v587
      %v1457 = vunpack.c.l.b16 %v588
      %v1458 = vunpack.c.h.b16 %v588
      %v1459 = vunpack.c.l.b16 %v589
      %v1460 = vunpack.c.h.b16 %v589
      %v1461 = vunpack.c.l.b16 %v590
      %v1462 = vunpack.c.h.b16 %v590
      %v1463 = vunpack.c.l.b16 %v591
      %v1464 = vunpack.c.h.b16 %v591
      %v1465 = vunpack.c.l.b16 %v592
      %v1466 = vunpack.c.h.b16 %v592
      %v1467 = vunpack.c.l.b16 %v593
      %v1468 = vunpack.c.h.b16 %v593
      %v1469 = vunpack.c.l.b16 %v594
      %v1470 = vunpack.c.h.b16 %v594
      %v1471 = vunpack.c.l.b16 %v595
      %v1472 = vunpack.c.h.b16 %v595
      %v1473 = vunpack.c.l.b16 %v596
      %v1474 = vunpack.c.h.b16 %v596
      %v1475 = vunpack.c.l.b16 %v597
      %v1476 = vunpack.c.h.b16 %v597
      %v1477 = vunpack.c.l.b16 %v598
      %v1478 = vunpack.c.h.b16 %v598
      %v1479 = vunpack.c.l.b16 %v599
      %v1480 = vunpack.c.h.b16 %v599
      %v1481 = vunpack.c.l.b16 %v600
      %v1482 = vunpack.c.h.b16 %v600
      %v1483 = vunpack.c.l.b16 %v601
      %v1484 = vunpack.c.h.b16 %v601
      %v1485 = vunpack.c.l.b16 %v602
      %v1486 = vunpack.c.h.b16 %v602
      %v1487 = vunpack.c.l.b16 %v603
      %v1488 = vunpack.c.h.b16 %v603
      %v1489 = vunpack.c.l.b16 %v604
      %v1490 = vunpack.c.h.b16 %v604
      %v1491 = vunpack.c.l.b16 %v605
      %v1492 = vunpack.c.h.b16 %v605
      %v1493 = vunpack.c.l.b16 %v606
      %v1494 = vunpack.c.h.b16 %v606
      %v1495 = vunpack.c.l.b16 %v607
      %v1496 = vunpack.c.h.b16 %v607
      %v1497 = vunpack.c.l.b16 %v608
      %v1498 = vunpack.c.h.b16 %v608
      %v1499 = vunpack.c.l.b16 %v609
      %v1500 = vunpack.c.h.b16 %v609
      %v1501 = vunpack.c.l.b16 %v610
      %v1502 = vunpack.c.h.b16 %v610
      %v1503 = vunpack.c.l.b16 %v611
      %v1504 = vunpack.c.h.b16 %v611
      %v1505 = vunpack.c.l.b16 %v612
      %v1506 = vunpack.c.h.b16 %v612
      %v1507 = vunpack.c.l.b16 %v613
      %v1508 = vunpack.c.h.b16 %v613
      %v1509 = vunpack.c.l.b16 %v614
      %v1510 = vunpack.c.h.b16 %v614
      %v1511 = vpack.c.b16 %v1007, %v999
      %v1512 = vpack.c.b16 %v1008, %v1000
      %v1513 = vpack.c.b16 %v1009, %v1001
      %v1514 = vpack.c.b16 %v1010, %v1002
      %v1515 = vpack.c.b16 %v1011, %v1003
      %v1516 = vpack.c.b16 %v1012, %v1004
      %v1517 = vpack.c.b16 %v1013, %v1005
      %v1518 = vpack.c.b16 %v1014, %v1006
      %v1519 = vpack.c.b16 %v1023, %v1015
      %v1520 = vpack.c.b16 %v1024, %v1016
      %v1521 = vpack.c.b16 %v1025, %v1017
      %v1522 = vpack.c.b16 %v1026, %v1018
      %v1523 = vpack.c.b16 %v1027, %v1019
      %v1524 = vpack.c.b16 %v1028, %v1020
      %v1525 = vpack.c.b16 %v1029, %v1021
      %v1526 = vpack.c.b16 %v1030, %v1022
      %v1527 = vpack.c.b16 %v1039, %v1031
      %v1528 = vpack.c.b16 %v1040, %v1032
      %v1529 = vpack.c.b16 %v1041, %v1033
      %v1530 = vpack.c.b16 %v1042, %v1034
      %v1531 = vpack.c.b16 %v1043, %v1035
      %v1532 = vpack.c.b16 %v1044, %v1036
      %v1533 = vpack.c.b16 %v1045, %v1037
      %v1534 = vpack.c.b16 %v1046, %v1038
      %v1535 = vpack.c.b16 %v1055, %v1047
      %v1536 = vpack.c.b16 %v1056, %v1048
      %v1537 = vpack.c.b16 %v1057, %v1049
      %v1538 = vpack.c.b16 %v1058, %v1050
      %v1539 = vpack.c.b16 %v1059, %v1051
      %v1540 = vpack.c.b16 %v1060, %v1052
      %v1541 = vpack.c.b16 %v1061, %v1053
      %v1542 = vpack.c.b16 %v1062, %v1054
      %v1543 = vpack.c.b16 %v1071, %v1063
      %v1544 = vpack.c.b16 %v1072, %v1064
      %v1545 = vpack.c.b16 %v1073, %v1065
      %v1546 = vpack.c.b16 %v1074, %v1066
      %v1547 = vpack.c.b16 %v1075, %v1067
      %v1548 = vpack.c.b16 %v1076, %v1068
      %v1549 = vpack.c.b16 %v1077, %v1069
      %v1550 = vpack.c.b16 %v1078, %v1070
      %v1551 = vpack.c.b16 %v1087, %v1079
      %v1552 = vpack.c.b16 %v1088, %v1080
      %v1553 = vpack.c.b16 %v1089, %v1081
      %v1554 = vpack.c.b16 %v1090, %v1082
      %v1555 = vpack.c.b16 %v1091, %v1083
      %v1556 = vpack.c.b16 %v1092, %v1084
      %v1557 = vpack.c.b16 %v1093, %v1085
      %v1558 = vpack.c.b16 %v1094, %v1086
      %v1559 = vpack.c.b16 %v1103, %v1095
      %v1560 = vpack.c.b16 %v1104, %v1096
      %v1561 = vpack.c.b16 %v1105, %v1097
      %v1562 = vpack.c.b16 %v1106, %v1098
      %v1563 = vpack.c.b16 %v1107, %v1099
      %v1564 = vpack.c.b16 %v1108, %v1100
      %v1565 = vpack.c.b16 %v1109, %v1101
      %v1566 = vpack.c.b16 %v1110, %v1102
      %v1567 = vpack.c.b16 %v1119, %v1111
      %v1568 = vpack.c.b16 %v1120, %v1112
      %v1569 = vpack.c.b16 %v1121, %v1113
      %v1570 = vpack.c.b16 %v1122, %v1114
      %v1571 = vpack.c.b16 %v1123, %v1115
      %v1572 = vpack.c.b16 %v1124, %v1116
      %v1573 = vpack.c.b16 %v1125, %v1117
      %v1574 = vpack.c.b16 %v1126, %v1118
      %v1575 = vpack.c.b16 %v1135, %v1127
      %v1576 = vpack.c.b16 %v1136, %v1128
      %v1577 = vpack.c.b16 %v1137, %v1129
      %v1578 = vpack.c.b16 %v1138, %v1130
      %v1579 = vpack.c.b16 %v1139, %v1131
      %v1580 = vpack.c.b16 %v1140, %v1132
      %v1581 = vpack.c.b16 %v1141, %v1133
      %v1582 = vpack.c.b16 %v1142, %v1134
      %v1583 = vpack.c.b16 %v1151, %v1143
      %v1584 = vpack.c.b16 %v1152, %v1144
      %v1585 = vpack.c.b16 %v1153, %v1145
      %v1586 = vpack.c.b16 %v1154, %v1146
      %v1587 = vpack.c.b16 %v1155, %v1147
      %v1588 = vpack.c.b16 %v1156, %v1148
      %v1589 = vpack.c.b16 %v1157, %v1149
      %v1590 = vpack.c.b16 %v1158, %v1150
      %v1591 = vpack.c.b16 %v1167, %v1159
      %v1592 = vpack.c.b16 %v1168, %v1160
      %v1593 = vpack.c.b16 %v1169, %v1161
      %v1594 = vpack.c.b16 %v1170, %v1162
      %v1595 = vpack.c.b16 %v1171, %v1163
      %v1596 = vpack.c.b16 %v1172, %v1164
      %v1597 = vpack.c.b16 %v1173, %v1165
      %v1598 = vpack.c.b16 %v1174, %v1166
      %v1599 = vpack.c.b16 %v1183, %v1175
      %v1600 = vpack.c.b16 %v1184, %v1176
      %v1601 = vpack.c.b16 %v1185, %v1177
      %v1602 = vpack.c.b16 %v1186, %v1178
      %v1603 = vpack.c.b16 %v1187, %v1179
      %v1604 = vpack.c.b16 %v1188, %v1180
      %v1605 = vpack.c.b16 %v1189, %v1181
      %v1606 = vpack.c.b16 %v1190, %v1182
      %v1607 = vpack.c.b16 %v1199, %v1191
      %v1608 = vpack.c.b16 %v1200, %v1192
      %v1609 = vpack.c.b16 %v1201, %v1193
      %v1610 = vpack.c.b16 %v1202, %v1194
      %v1611 = vpack.c.b16 %v1203, %v1195
      %v1612 = vpack.c.b16 %v1204, %v1196
      %v1613 = vpack.c.b16 %v1205, %v1197
      %v1614 = vpack.c.b16 %v1206, %v1198
      %v1615 = vpack.c.b16 %v1215, %v1207
      %v1616 = vpack.c.b16 %v1216, %v1208
      %v1617 = vpack.c.b16 %v1217, %v1209
      %v1618 = vpack.c.b16 %v1218, %v1210
      %v1619 = vpack.c.b16 %v1219, %v1211
      %v1620 = vpack.c.b16 %v1220, %v1212
      %v1621 = vpack.c.b16 %v1221, %v1213
      %v1622 = vpack.c.b16 %v1222, %v1214
      %v1623 = vpack.c.b16 %v1231, %v1223
      %v1624 = vpack.c.b16 %v1232, %v1224
      %v1625 = vpack.c.b16 %v1233, %v1225
      %v1626 = vpack.c.b16 %v1234, %v1226
      %v1627 = vpack.c.b16 %v1235, %v1227
      %v1628 = vpack.c.b16 %v1236, %v1228
      %v1629 = vpack.c.b16 %v1237, %v1229
      %v1630 = vpack.c.b16 %v1238, %v1230
      %v1631 = vpack.c.b16 %v1247, %v1239
      %v1632 = vpack.c.b16 %v1248, %v1240
      %v1633 = vpack.c.b16 %v1249, %v1241
      %v1634 = vpack.c.b16 %v1250, %v1242
      %v1635 = vpack.c.b16 %v1251, %v1243
      %v1636 = vpack.c.b16 %v1252, %v1244
      %v1637 = vpack.c.b16 %v1253, %v1245
      %v1638 = vpack.c.b16 %v1254, %v1246
      %v1639 = vpack.c.b16 %v1263, %v1255
      %v1640 = vpack.c.b16 %v1264, %v1256
      %v1641 = vpack.c.b16 %v1265, %v1257
      %v1642 = vpack.c.b16 %v1266, %v1258
      %v1643 = vpack.c.b16 %v1267, %v1259
      %v1644 = vpack.c.b16 %v1268, %v1260
      %v1645 = vpack.c.b16 %v1269, %v1261
      %v1646 = vpack.c.b16 %v1270, %v1262
      %v1647 = vpack.c.b16 %v1279, %v1271
      %v1648 = vpack.c.b16 %v1280, %v1272
      %v1649 = vpack.c.b16 %v1281, %v1273
      %v1650 = vpack.c.b16 %v1282, %v1274
      %v1651 = vpack.c.b16 %v1283, %v1275
      %v1652 = vpack.c.b16 %v1284, %v1276
      %v1653 = vpack.c.b16 %v1285, %v1277
      %v1654 = vpack.c.b16 %v1286, %v1278
      %v1655 = vpack.c.b16 %v1295, %v1287
      %v1656 = vpack.c.b16 %v1296, %v1288
      %v1657 = vpack.c.b16 %v1297, %v1289
      %v1658 = vpack.c.b16 %v1298, %v1290
      %v1659 = vpack.c.b16 %v1299, %v1291
      %v1660 = vpack.c.b16 %v1300, %v1292
      %v1661 = vpack.c.b16 %v1301, %v1293
      %v1662 = vpack.c.b16 %v1302, %v1294
      %v1663 = vpack.c.b16 %v1311, %v1303
      %v1664 = vpack.c.b16 %v1312, %v1304
      %v1665 = vpack.c.b16 %v1313, %v1305
      %v1666 = vpack.c.b16 %v1314, %v1306
      %v1667 = vpack.c.b16 %v1315, %v1307
      %v1668 = vpack.c.b16 %v1316, %v1308
      %v1669 = vpack.c.b16 %v1317, %v1309
      %v1670 = vpack.c.b16 %v1318, %v1310
      %v1671 = vpack.c.b16 %v1327, %v1319
      %v1672 = vpack.c.b16 %v1328, %v1320
      %v1673 = vpack.c.b16 %v1329, %v1321
      %v1674 = vpack.c.b16 %v1330, %v1322
      %v1675 = vpack.c.b16 %v1331, %v1323
      %v1676 = vpack.c.b16 %v1332, %v1324
      %v1677 = vpack.c.b16 %v1333, %v1325
      %v1678 = vpack.c.b16 %v1334, %v1326
      %v1679 = vpack.c.b16 %v1343, %v1335
      %v1680 = vpack.c.b16 %v1344, %v1336
      %v1681 = vpack.c.b16 %v1345, %v1337
      %v1682 = vpack.c.b16 %v1346, %v1338
      %v1683 = vpack.c.b16 %v1347, %v1339
      %v1684 = vpack.c.b16 %v1348, %v1340
      %v1685 = vpack.c.b16 %v1349, %v1341
      %v1686 = vpack.c.b16 %v1350, %v1342
      %v1687 = vpack.c.b16 %v1359, %v1351
      %v1688 = vpack.c.b16 %v1360, %v1352
      %v1689 = vpack.c.b16 %v1361, %v1353
      %v1690 = vpack.c.b16 %v1362, %v1354
      %v1691 = vpack.c.b16 %v1363, %v1355
      %v1692 = vpack.c.b16 %v1364, %v1356
      %v1693 = vpack.c.b16 %v1365, %v1357
      %v1694 = vpack.c.b16 %v1366, %v1358
      %v1695 = vpack.c.b16 %v1375, %v1367
      %v1696 = vpack.c.b16 %v1376, %v1368
      %v1697 = vpack.c.b16 %v1377, %v1369
      %v1698 = vpack.c.b16 %v1378, %v1370
      %v1699 = vpack.c.b16 %v1379, %v1371
      %v1700 = vpack.c.b16 %v1380, %v1372
      %v1701 = vpack.c.b16 %v1381, %v1373
      %v1702 = vpack.c.b16 %v1382, %v1374
      %v1703 = vpack.c.b16 %v1391, %v1383
      %v1704 = vpack.c.b16 %v1392, %v1384
      %v1705 = vpack.c.b16 %v1393, %v1385
      %v1706 = vpack.c.b16 %v1394, %v1386
      %v1707 = vpack.c.b16 %v1395, %v1387
      %v1708 = vpack.c.b16 %v1396, %v1388
      %v1709 = vpack.c.b16 %v1397, %v1389
      %v1710 = vpack.c.b16 %v1398, %v1390
      %v1711 = vpack.c.b16 %v1407, %v1399
      %v1712 = vpack.c.b16 %v1408, %v1400
      %v1713 = vpack.c.b16 %v1409, %v1401
      %v1714 = vpack.c.b16 %v1410, %v1402
      %v1715 = vpack.c.b16 %v1411, %v1403
      %v1716 = vpack.c.b16 %v1412, %v1404
      %v1717 = vpack.c.b16 %v1413, %v1405
      %v1718 = vpack.c.b16 %v1414, %v1406
      %v1719 = vpack.c.b16 %v1423, %v1415
      %v1720 = vpack.c.b16 %v1424, %v1416
      %v1721 = vpack.c.b16 %v1425, %v1417
      %v1722 = vpack.c.b16 %v1426, %v1418
      %v1723 = vpack.c.b16 %v1427, %v1419
      %v1724 = vpack.c.b16 %v1428, %v1420
      %v1725 = vpack.c.b16 %v1429, %v1421
      %v1726 = vpack.c.b16 %v1430, %v1422
      %v1727 = vpack.c.b16 %v1439, %v1431
      %v1728 = vpack.c.b16 %v1440, %v1432
      %v1729 = vpack.c.b16 %v1441, %v1433
      %v1730 = vpack.c.b16 %v1442, %v1434
      %v1731 = vpack.c.b16 %v1443, %v1435
      %v1732 = vpack.c.b16 %v1444, %v1436
      %v1733 = vpack.c.b16 %v1445, %v1437
      %v1734 = vpack.c.b16 %v1446, %v1438
      %v1735 = vpack.c.b16 %v1455, %v1447
      %v1736 = vpack.c.b16 %v1456, %v1448
      %v1737 = vpack.c.b16 %v1457, %v1449
      %v1738 = vpack.c.b16 %v1458, %v1450
      %v1739 = vpack.c.b16 %v1459, %v1451
      %v1740 = vpack.c.b16 %v1460, %v1452
      %v1741 = vpack.c.b16 %v1461, %v1453
      %v1742 = vpack.c.b16 %v1462, %v1454
      %v1743 = vpack.c.b16 %v1471, %v1463
      %v1744 = vpack.c.b16 %v1472, %v1464
      %v1745 = vpack.c.b16 %v1473, %v1465
      %v1746 = vpack.c.b16 %v1474, %v1466
      %v1747 = vpack.c.b16 %v1475, %v1467
      %v1748 = vpack.c.b16 %v1476, %v1468
      %v1749 = vpack.c.b16 %v1477, %v1469
      %v1750 = vpack.c.b16 %v1478, %v1470
      %v1751 = vpack.c.b16 %v1487, %v1479
      %v1752 = vpack.c.b16 %v1488, %v1480
      %v1753 = vpack.c.b16 %v1489, %v1481
      %v1754 = vpack.c.b16 %v1490, %v1482
      %v1755 = vpack.c.b16 %v1491, %v1483
      %v1756 = vpack.c.b16 %v1492, %v1484
      %v1757 = vpack.c.b16 %v1493, %v1485
      %v1758 = vpack.c.b16 %v1494, %v1486
      %v1759 = vpack.c.b16 %v1503, %v1495
      %v1760 = vpack.c.b16 %v1504, %v1496
      %v1761 = vpack.c.b16 %v1505, %v1497
      %v1762 = vpack.c.b16 %v1506, %v1498
      %v1763 = vpack.c.b16 %v1507, %v1499
      %v1764 = vpack.c.b16 %v1508, %v1500
      %v1765 = vpack.c.b16 %v1509, %v1501
      %v1766 = vpack.c.b16 %v1510, %v1502
      %v2151 = vunpack.c.l.b16 %v615
      %v2152 = vunpack.c.l.b16 %v616
      %v2153 = vunpack.c.l.b16 %v617
      %v2154 = vunpack.c.l.b16 %v618
      %v2155 = vunpack.c.l.b16 %v619
      %v2156 = vunpack.c.l.b16 %v620
      %v2157 = vunpack.c.l.b16 %v621
      %v2158 = vunpack.c.l.b16 %v622
      %v2159 = vunpack.c.l.b16 %v623
      %v2160 = vunpack.c.l.b16 %v624
      %v2161 = vunpack.c.l.b16 %v625
      %v2162 = vunpack.c.l.b16 %v626
      %v2163 = vunpack.c.l.b16 %v627
      %v2164 = vunpack.c.l.b16 %v628
      %v2165 = vunpack.c.l.b16 %v629
      %v2166 = vunpack.c.l.b16 %v630
      %v2167 = vunpack.c.l.b16 %v631
      %v2168 = vunpack.c.l.b16 %v632
      %v2169 = vunpack.c.l.b16 %v633
      %v2170 = vunpack.c.l.b16 %v634
      %v2171 = vunpack.c.l.b16 %v635
      %v2172 = vunpack.c.l.b16 %v636
      %v2173 = vunpack.c.l.b16 %v637
      %v2174 = vunpack.c.l.b16 %v638
      %v2175 = vunpack.c.l.b16 %v639
      %v2176 = vunpack.c.l.b16 %v640
      %v2177 = vunpack.c.l.b16 %v641
      %v2178 = vunpack.c.l.b16 %v642
      %v2179 = vunpack.c.l.b16 %v643
      %v2180 = vunpack.c.l.b16 %v644
      %v2181 = vunpack.c.l.b16 %v645
      %v2182 = vunpack.c.l.b16 %v646
      %v2183 = vunpack.c.l.b16 %v647
      %v2184 = vunpack.c.l.b16 %v648
      %v2185 = vunpack.c.l.b16 %v649
      %v2186 = vunpack.c.l.b16 %v650
      %v2187 = vunpack.c.l.b16 %v651
      %v2188 = vunpack.c.l.b16 %v652
      %v2189 = vunpack.c.l.b16 %v653
      %v2190 = vunpack.c.l.b16 %v654
      %v2191 = vunpack.c.l.b16 %v655
      %v2192 = vunpack.c.l.b16 %v656
      %v2193 = vunpack.c.l.b16 %v657
      %v2194 = vunpack.c.l.b16 %v658
      %v2195 = vunpack.c.l.b16 %v659
      %v2196 = vunpack.c.l.b16 %v660
      %v2197 = vunpack.c.l.b16 %v661
      %v2198 = vunpack.c.l.b16 %v662
      %v2199 = vunpack.c.l.b16 %v663
      %v2200 = vunpack.c.l.b16 %v664
      %v2201 = vunpack.c.l.b16 %v665
      %v2202 = vunpack.c.l.b16 %v666
      %v2203 = vunpack.c.l.b16 %v667
      %v2204 = vunpack.c.l.b16 %v668
      %v2205 = vunpack.c.l.b16 %v669
      %v2206 = vunpack.c.l.b16 %v670
      %v2207 = vunpack.c.l.b16 %v671
      %v2208 = vunpack.c.l.b16 %v672
      %v2209 = vunpack.c.l.b16 %v673
      %v2210 = vunpack.c.l.b16 %v674
      %v2211 = vunpack.c.l.b16 %v675
      %v2212 = vunpack.c.l.b16 %v676
      %v2213 = vunpack.c.l.b16 %v677
      %v2214 = vunpack.c.l.b16 %v678
      %v2215 = vunpack.c.l.b16 %v679
      %v2216 = vunpack.c.l.b16 %v680
      %v2217 = vunpack.c.l.b16 %v681
      %v2218 = vunpack.c.l.b16 %v682
      %v2219 = vunpack.c.l.b16 %v683
      %v2220 = vunpack.c.l.b16 %v684
      %v2221 = vunpack.c.l.b16 %v685
      %v2222 = vunpack.c.l.b16 %v686
      %v2223 = vunpack.c.l.b16 %v687
      %v2224 = vunpack.c.l.b16 %v688
      %v2225 = vunpack.c.l.b16 %v689
      %v2226 = vunpack.c.l.b16 %v690
      %v2227 = vunpack.c.l.b16 %v691
      %v2228 = vunpack.c.l.b16 %v692
      %v2229 = vunpack.c.l.b16 %v693
      %v2230 = vunpack.c.l.b16 %v694
      %v2231 = vunpack.c.l.b16 %v695
      %v2232 = vunpack.c.l.b16 %v696
      %v2233 = vunpack.c.l.b16 %v697
      %v2234 = vunpack.c.l.b16 %v698
      %v2235 = vunpack.c.l.b16 %v699
      %v2236 = vunpack.c.l.b16 %v700
      %v2237 = vunpack.c.l.b16 %v701
      %v2238 = vunpack.c.l.b16 %v702
      %v2239 = vunpack.c.l.b16 %v703
      %v2240 = vunpack.c.l.b16 %v704
      %v2241 = vunpack.c.l.b16 %v705
      %v2242 = vunpack.c.l.b16 %v706
      %v2243 = vunpack.c.l.b16 %v707
      %v2244 = vunpack.c.l.b16 %v708
      %v2245 = vunpack.c.l.b16 %v709
      %v2246 = vunpack.c.l.b16 %v710
      %v2247 = vunpack.c.l.b16 %v711
      %v2248 = vunpack.c.l.b16 %v712
      %v2249 = vunpack.c.l.b16 %v713
      %v2250 = vunpack.c.l.b16 %v714
      %v2251 = vunpack.c.l.b16 %v715
      %v2252 = vunpack.c.l.b16 %v716
      %v2253 = vunpack.c.l.b16 %v717
      %v2254 = vunpack.c.l.b16 %v718
      %v2255 = vunpack.c.l.b16 %v719
      %v2256 = vunpack.c.l.b16 %v720
      %v2257 = vunpack.c.l.b16 %v721
      %v2258 = vunpack.c.l.b16 %v722
      %v2259 = vunpack.c.l.b16 %v723
      %v2260 = vunpack.c.l.b16 %v724
      %v2261 = vunpack.c.l.b16 %v725
      %v2262 = vunpack.c.l.b16 %v726
      %v2263 = vunpack.c.l.b16 %v727
      %v2264 = vunpack.c.l.b16 %v728
      %v2265 = vunpack.c.l.b16 %v729
      %v2266 = vunpack.c.l.b16 %v730
      %v2267 = vunpack.c.l.b16 %v731
      %v2268 = vunpack.c.l.b16 %v732
      %v2269 = vunpack.c.l.b16 %v733
      %v2270 = vunpack.c.l.b16 %v734
      %v2271 = vunpack.c.l.b16 %v735
      %v2272 = vunpack.c.l.b16 %v736
      %v2273 = vunpack.c.l.b16 %v737
      %v2274 = vunpack.c.l.b16 %v738
      %v2275 = vunpack.c.l.b16 %v739
      %v2276 = vunpack.c.l.b16 %v740
      %v2277 = vunpack.c.l.b16 %v741
      %v2278 = vunpack.c.l.b16 %v742
      %v2279 = vpack.c.b16 %v2152, %v2151
      %v2280 = vpack.c.b16 %v2154, %v2153
      %v2281 = vpack.c.b16 %v2156, %v2155
      %v2282 = vpack.c.b16 %v2158, %v2157
      %v2283 = vpack.c.b16 %v2160, %v2159
      %v2284 = vpack.c.b16 %v2162, %v2161
      %v2285 = vpack.c.b16 %v2164, %v2163
      %v2286 = vpack.c.b16 %v2166, %v2165
      %v2287 = vpack.c.b16 %v2168, %v2167
      %v2288 = vpack.c.b16 %v2170, %v2169
      %v2289 = vpack.c.b16 %v2172, %v2171
      %v2290 = vpack.c.b16 %v2174, %v2173
      %v2291 = vpack.c.b16 %v2176, %v2175
      %v2292 = vpack.c.b16 %v2178, %v2177
      %v2293 = vpack.c.b16 %v2180, %v2179
      %v2294 = vpack.c.b16 %v2182, %v2181
      %v2295 = vpack.c.b16 %v2184, %v2183
      %v2296 = vpack.c.b16 %v2186, %v2185
      %v2297 = vpack.c.b16 %v2188, %v2187
      %v2298 = vpack.c.b16 %v2190, %v2189
      %v2299 = vpack.c.b16 %v2192, %v2191
      %v2300 = vpack.c.b16 %v2194, %v2193
      %v2301 = vpack.c.b16 %v2196, %v2195
      %v2302 = vpack.c.b16 %v2198, %v2197
      %v2303 = vpack.c.b16 %v2200, %v2199
      %v2304 = vpack.c.b16 %v2202, %v2201
      %v2305 = vpack.c.b16 %v2204, %v2203
      %v2306 = vpack.c.b16 %v2206, %v2205
      %v2307 = vpack.c.b16 %v2208, %v2207
      %v2308 = vpack.c.b16 %v2210, %v2209
      %v2309 = vpack.c.b16 %v2212, %v2211
      %v2310 = vpack.c.b16 %v2214, %v2213
      %v2311 = vpack.c.b16 %v2216, %v2215
      %v2312 = vpack.c.b16 %v2218, %v2217
      %v2313 = vpack.c.b16 %v2220, %v2219
      %v2314 = vpack.c.b16 %v2222, %v2221
      %v2315 = vpack.c.b16 %v2224, %v2223
      %v2316 = vpack.c.b16 %v2226, %v2225
      %v2317 = vpack.c.b16 %v2228, %v2227
      %v2318 = vpack.c.b16 %v2230, %v2229
      %v2319 = vpack.c.b16 %v2232, %v2231
      %v2320 = vpack.c.b16 %v2234, %v2233
      %v2321 = vpack.c.b16 %v2236, %v2235
      %v2322 = vpack.c.b16 %v2238, %v2237
      %v2323 = vpack.c.b16 %v2240, %v2239
      %v2324 = vpack.c.b16 %v2242, %v2241
      %v2325 = vpack.c.b16 %v2244, %v2243
      %v2326 = vpack.c.b16 %v2246, %v2245
      %v2327 = vpack.c.b16 %v2248, %v2247
      %v2328 = vpack.c.b16 %v2250, %v2249
      %v2329 = vpack.c.b16 %v2252, %v2251
      %v2330 = vpack.c.b16 %v2254, %v2253
      %v2331 = vpack.c.b16 %v2256, %v2255
      %v2332 = vpack.c.b16 %v2258, %v2257
      %v2333 = vpack.c.b16 %v2260, %v2259
      %v2334 = vpack.c.b16 %v2262, %v2261
      %v2335 = vpack.c.b16 %v2264, %v2263
      %v2336 = vpack.c.b16 %v2266, %v2265
      %v2337 = vpack.c.b16 %v2268, %v2267
      %v2338 = vpack.c.b16 %v2270, %v2269
      %v2339 = vpack.c.b16 %v2272, %v2271
      %v2340 = vpack.c.b16 %v2274, %v2273
      %v2341 = vpack.c.b16 %v2276, %v2275
      %v2342 = vpack.c.b16 %v2278, %v2277
      %2407 = vmatpush.bf16.msra.mxu0 %v2286
      %2408 = vmatpush.bf16.msra.mxu0 %v2285
      %2409 = vmatpush.bf16.msra.mxu0 %v2284
      %2410 = vmatpush.bf16.msra.mxu0 %v2283
      %2411 = vmatpush.bf16.msra.mxu0 %v2282
      %2412 = vmatpush.bf16.msra.mxu0 %v2281
      %2413 = vmatpush.bf16.msra.mxu0 %v2280
      %2414 = vmatpush.bf16.msra.mxu0 %v2279
      %2415 = vmatmul.bf16.gmra.mxu0 %v1511
      %v2416 = vpop.f32.mrf.mxu0
      %v2417 = vadd.f32 0.0, %v2416
      %v2418 = vpop.f32.mrf.mxu0
      %v2419 = vadd.f32 0.0, %v2418
      %2420 = vmatmul.bf16.gmra.mxu0 %v1519
      %v2421 = vpop.f32.mrf.mxu0
      %v2422 = vadd.f32 0.0, %v2421
      %v2423 = vpop.f32.mrf.mxu0
      %v2424 = vadd.f32 0.0, %v2423
      %2425 = vmatmul.bf16.gmra.mxu0 %v1527
      %v2426 = vpop.f32.mrf.mxu0
      %v2427 = vadd.f32 0.0, %v2426
      %v2428 = vpop.f32.mrf.mxu0
      %v2429 = vadd.f32 0.0, %v2428
      %2430 = vmatmul.bf16.gmra.mxu0 %v1535
      %v2431 = vpop.f32.mrf.mxu0
      %v2432 = vadd.f32 0.0, %v2431
      %v2433 = vpop.f32.mrf.mxu0
      %v2434 = vadd.f32 0.0, %v2433
      %2435 = vmatmul.bf16.gmra.mxu0 %v1543
      %v2436 = vpop.f32.mrf.mxu0
      %v2437 = vadd.f32 0.0, %v2436
      %v2438 = vpop.f32.mrf.mxu0
      %v2439 = vadd.f32 0.0, %v2438
      %2440 = vmatmul.bf16.gmra.mxu0 %v1551
      %v2441 = vpop.f32.mrf.mxu0
      %v2442 = vadd.f32 0.0, %v2441
      %v2443 = vpop.f32.mrf.mxu0
      %v2444 = vadd.f32 0.0, %v2443
      %2445 = vmatmul.bf16.gmra.mxu0 %v1559
      %v2446 = vpop.f32.mrf.mxu0
      %v2447 = vadd.f32 0.0, %v2446
      %v2448 = vpop.f32.mrf.mxu0
      %v2449 = vadd.f32 0.0, %v2448
      %2450 = vmatmul.bf16.gmra.mxu0 %v1567
      %v2451 = vpop.f32.mrf.mxu0
      %v2452 = vadd.f32 0.0, %v2451
      %v2453 = vpop.f32.mrf.mxu0
      %v2454 = vadd.f32 0.0, %v2453
      %2455 = vmatmul.bf16.gmra.mxu0 %v1575
      %v2456 = vpop.f32.mrf.mxu0
      %v2457 = vadd.f32 0.0, %v2456
      %v2458 = vpop.f32.mrf.mxu0
      %v2459 = vadd.f32 0.0, %v2458
      %2460 = vmatmul.bf16.gmra.mxu0 %v1583
      %v2461 = vpop.f32.mrf.mxu0
      %v2462 = vadd.f32 0.0, %v2461
      %v2463 = vpop.f32.mrf.mxu0
      %v2464 = vadd.f32 0.0, %v2463
      %2465 = vmatmul.bf16.gmra.mxu0 %v1591
      %v2466 = vpop.f32.mrf.mxu0
      %v2467 = vadd.f32 0.0, %v2466
      %v2468 = vpop.f32.mrf.mxu0
      %v2469 = vadd.f32 0.0, %v2468
      %2470 = vmatmul.bf16.gmra.mxu0 %v1599
      %v2471 = vpop.f32.mrf.mxu0
      %v2472 = vadd.f32 0.0, %v2471
      %v2473 = vpop.f32.mrf.mxu0
      %v2474 = vadd.f32 0.0, %v2473
      %2475 = vmatmul.bf16.gmra.mxu0 %v1607
      %v2476 = vpop.f32.mrf.mxu0
      %v2477 = vadd.f32 0.0, %v2476
      %v2478 = vpop.f32.mrf.mxu0
      %v2479 = vadd.f32 0.0, %v2478
      %2480 = vmatmul.bf16.gmra.mxu0 %v1615
      %v2481 = vpop.f32.mrf.mxu0
      %v2482 = vadd.f32 0.0, %v2481
      %v2483 = vpop.f32.mrf.mxu0
      %v2484 = vadd.f32 0.0, %v2483
      %2485 = vmatmul.bf16.gmra.mxu0 %v1623
      %v2486 = vpop.f32.mrf.mxu0
      %v2487 = vadd.f32 0.0, %v2486
      %v2488 = vpop.f32.mrf.mxu0
      %v2489 = vadd.f32 0.0, %v2488
      %2490 = vmatmul.bf16.gmra.mxu0 %v1631
      %v2491 = vpop.f32.mrf.mxu0
      %v2492 = vadd.f32 0.0, %v2491
      %v2493 = vpop.f32.mrf.mxu0
      %v2494 = vadd.f32 0.0, %v2493
      %2495 = vmatmul.bf16.gmra.mxu0 %v1639
      %v2496 = vpop.f32.mrf.mxu0
      %v2497 = vadd.f32 0.0, %v2496
      %v2498 = vpop.f32.mrf.mxu0
      %v2499 = vadd.f32 0.0, %v2498
      %2500 = vmatmul.bf16.gmra.mxu0 %v1647
      %v2501 = vpop.f32.mrf.mxu0
      %v2502 = vadd.f32 0.0, %v2501
      %v2503 = vpop.f32.mrf.mxu0
      %v2504 = vadd.f32 0.0, %v2503
      %2505 = vmatmul.bf16.gmra.mxu0 %v1655
      %v2506 = vpop.f32.mrf.mxu0
      %v2507 = vadd.f32 0.0, %v2506
      %v2508 = vpop.f32.mrf.mxu0
      %v2509 = vadd.f32 0.0, %v2508
      %2510 = vmatmul.bf16.gmra.mxu0 %v1663
      %v2511 = vpop.f32.mrf.mxu0
      %v2512 = vadd.f32 0.0, %v2511
      %v2513 = vpop.f32.mrf.mxu0
      %v2514 = vadd.f32 0.0, %v2513
      %2515 = vmatmul.bf16.gmra.mxu0 %v1671
      %v2516 = vpop.f32.mrf.mxu0
      %v2517 = vadd.f32 0.0, %v2516
      %v2518 = vpop.f32.mrf.mxu0
      %v2519 = vadd.f32 0.0, %v2518
      %2520 = vmatmul.bf16.gmra.mxu0 %v1679
      %v2521 = vpop.f32.mrf.mxu0
      %v2522 = vadd.f32 0.0, %v2521
      %v2523 = vpop.f32.mrf.mxu0
      %v2524 = vadd.f32 0.0, %v2523
      %2525 = vmatmul.bf16.gmra.mxu0 %v1687
      %v2526 = vpop.f32.mrf.mxu0
      %v2527 = vadd.f32 0.0, %v2526
      %v2528 = vpop.f32.mrf.mxu0
      %v2529 = vadd.f32 0.0, %v2528
      %2530 = vmatmul.bf16.gmra.mxu0 %v1695
      %v2531 = vpop.f32.mrf.mxu0
      %v2532 = vadd.f32 0.0, %v2531
      %v2533 = vpop.f32.mrf.mxu0
      %v2534 = vadd.f32 0.0, %v2533
      %2535 = vmatmul.bf16.gmra.mxu0 %v1703
      %v2536 = vpop.f32.mrf.mxu0
      %v2537 = vadd.f32 0.0, %v2536
      %v2538 = vpop.f32.mrf.mxu0
      %v2539 = vadd.f32 0.0, %v2538
      %2540 = vmatmul.bf16.gmra.mxu0 %v1711
      %v2541 = vpop.f32.mrf.mxu0
      %v2542 = vadd.f32 0.0, %v2541
      %v2543 = vpop.f32.mrf.mxu0
      %v2544 = vadd.f32 0.0, %v2543
      %2545 = vmatmul.bf16.gmra.mxu0 %v1719
      %v2546 = vpop.f32.mrf.mxu0
      %v2547 = vadd.f32 0.0, %v2546
      %v2548 = vpop.f32.mrf.mxu0
      %v2549 = vadd.f32 0.0, %v2548
      %2550 = vmatmul.bf16.gmra.mxu0 %v1727
      %v2551 = vpop.f32.mrf.mxu0
      %v2552 = vadd.f32 0.0, %v2551
      %v2553 = vpop.f32.mrf.mxu0
      %v2554 = vadd.f32 0.0, %v2553
      %2555 = vmatmul.bf16.gmra.mxu0 %v1735
      %v2556 = vpop.f32.mrf.mxu0
      %v2557 = vadd.f32 0.0, %v2556
      %v2558 = vpop.f32.mrf.mxu0
      %v2559 = vadd.f32 0.0, %v2558
      %2560 = vmatmul.bf16.gmra.mxu0 %v1743
      %v2561 = vpop.f32.mrf.mxu0
      %v2562 = vadd.f32 0.0, %v2561
      %v2563 = vpop.f32.mrf.mxu0
      %v2564 = vadd.f32 0.0, %v2563
      %2565 = vmatmul.bf16.gmra.mxu0 %v1751
      %v2566 = vpop.f32.mrf.mxu0
      %v2567 = vadd.f32 0.0, %v2566
      %v2568 = vpop.f32.mrf.mxu0
      %v2569 = vadd.f32 0.0, %v2568
      %2570 = vmatmul.bf16.gmra.mxu0 %v1759
      %v2571 = vpop.f32.mrf.mxu0
      %v2572 = vadd.f32 0.0, %v2571
      %v2573 = vpop.f32.mrf.mxu0
      %v2574 = vadd.f32 0.0, %v2573
      %2575 = vdwg.mxu0
      %2576 = vmatpush.bf16.msra.mxu0 %v2294
      %2577 = vmatpush.bf16.msra.mxu0 %v2293
      %2578 = vmatpush.bf16.msra.mxu0 %v2292
      %2579 = vmatpush.bf16.msra.mxu0 %v2291
      %2580 = vmatpush.bf16.msra.mxu0 %v2290
      %2581 = vmatpush.bf16.msra.mxu0 %v2289
      %2582 = vmatpush.bf16.msra.mxu0 %v2288
      %2583 = vmatpush.bf16.msra.mxu0 %v2287
      %2584 = vmatmul.bf16.gmra.mxu0 %v1512
      %v2585 = vpop.f32.mrf.mxu0
      %v2586 = vadd.f32 %v2417, %v2585
      %v2587 = vpop.f32.mrf.mxu0
      %v2588 = vadd.f32 %v2419, %v2587
      %2589 = vmatmul.bf16.gmra.mxu0 %v1520
      %v2590 = vpop.f32.mrf.mxu0
      %v2591 = vadd.f32 %v2422, %v2590
      %v2592 = vpop.f32.mrf.mxu0
      %v2593 = vadd.f32 %v2424, %v2592
      %2594 = vmatmul.bf16.gmra.mxu0 %v1528
      %v2595 = vpop.f32.mrf.mxu0
      %v2596 = vadd.f32 %v2427, %v2595
      %v2597 = vpop.f32.mrf.mxu0
      %v2598 = vadd.f32 %v2429, %v2597
      %2599 = vmatmul.bf16.gmra.mxu0 %v1536
      %v2600 = vpop.f32.mrf.mxu0
      %v2601 = vadd.f32 %v2432, %v2600
      %v2602 = vpop.f32.mrf.mxu0
      %v2603 = vadd.f32 %v2434, %v2602
      %2604 = vmatmul.bf16.gmra.mxu0 %v1544
      %v2605 = vpop.f32.mrf.mxu0
      %v2606 = vadd.f32 %v2437, %v2605
      %v2607 = vpop.f32.mrf.mxu0
      %v2608 = vadd.f32 %v2439, %v2607
      %2609 = vmatmul.bf16.gmra.mxu0 %v1552
      %v2610 = vpop.f32.mrf.mxu0
      %v2611 = vadd.f32 %v2442, %v2610
      %v2612 = vpop.f32.mrf.mxu0
      %v2613 = vadd.f32 %v2444, %v2612
      %2614 = vmatmul.bf16.gmra.mxu0 %v1560
      %v2615 = vpop.f32.mrf.mxu0
      %v2616 = vadd.f32 %v2447, %v2615
      %v2617 = vpop.f32.mrf.mxu0
      %v2618 = vadd.f32 %v2449, %v2617
      %2619 = vmatmul.bf16.gmra.mxu0 %v1568
      %v2620 = vpop.f32.mrf.mxu0
      %v2621 = vadd.f32 %v2452, %v2620
      %v2622 = vpop.f32.mrf.mxu0
      %v2623 = vadd.f32 %v2454, %v2622
      %2624 = vmatmul.bf16.gmra.mxu0 %v1576
      %v2625 = vpop.f32.mrf.mxu0
      %v2626 = vadd.f32 %v2457, %v2625
      %v2627 = vpop.f32.mrf.mxu0
      %v2628 = vadd.f32 %v2459, %v2627
      %2629 = vmatmul.bf16.gmra.mxu0 %v1584
      %v2630 = vpop.f32.mrf.mxu0
      %v2631 = vadd.f32 %v2462, %v2630
      %v2632 = vpop.f32.mrf.mxu0
      %v2633 = vadd.f32 %v2464, %v2632
      %2634 = vmatmul.bf16.gmra.mxu0 %v1592
      %v2635 = vpop.f32.mrf.mxu0
      %v2636 = vadd.f32 %v2467, %v2635
      %v2637 = vpop.f32.mrf.mxu0
      %v2638 = vadd.f32 %v2469, %v2637
      %2639 = vmatmul.bf16.gmra.mxu0 %v1600
      %v2640 = vpop.f32.mrf.mxu0
      %v2641 = vadd.f32 %v2472, %v2640
      %v2642 = vpop.f32.mrf.mxu0
      %v2643 = vadd.f32 %v2474, %v2642
      %2644 = vmatmul.bf16.gmra.mxu0 %v1608
      %v2645 = vpop.f32.mrf.mxu0
      %v2646 = vadd.f32 %v2477, %v2645
      %v2647 = vpop.f32.mrf.mxu0
      %v2648 = vadd.f32 %v2479, %v2647
      %2649 = vmatmul.bf16.gmra.mxu0 %v1616
      %v2650 = vpop.f32.mrf.mxu0
      %v2651 = vadd.f32 %v2482, %v2650
      %v2652 = vpop.f32.mrf.mxu0
      %v2653 = vadd.f32 %v2484, %v2652
      %2654 = vmatmul.bf16.gmra.mxu0 %v1624
      %v2655 = vpop.f32.mrf.mxu0
      %v2656 = vadd.f32 %v2487, %v2655
      %v2657 = vpop.f32.mrf.mxu0
      %v2658 = vadd.f32 %v2489, %v2657
      %2659 = vmatmul.bf16.gmra.mxu0 %v1632
      %v2660 = vpop.f32.mrf.mxu0
      %v2661 = vadd.f32 %v2492, %v2660
      %v2662 = vpop.f32.mrf.mxu0
      %v2663 = vadd.f32 %v2494, %v2662
      %2664 = vmatmul.bf16.gmra.mxu0 %v1640
      %v2665 = vpop.f32.mrf.mxu0
      %v2666 = vadd.f32 %v2497, %v2665
      %v2667 = vpop.f32.mrf.mxu0
      %v2668 = vadd.f32 %v2499, %v2667
      %2669 = vmatmul.bf16.gmra.mxu0 %v1648
      %v2670 = vpop.f32.mrf.mxu0
      %v2671 = vadd.f32 %v2502, %v2670
      %v2672 = vpop.f32.mrf.mxu0
      %v2673 = vadd.f32 %v2504, %v2672
      %2674 = vmatmul.bf16.gmra.mxu0 %v1656
      %v2675 = vpop.f32.mrf.mxu0
      %v2676 = vadd.f32 %v2507, %v2675
      %v2677 = vpop.f32.mrf.mxu0
      %v2678 = vadd.f32 %v2509, %v2677
      %2679 = vmatmul.bf16.gmra.mxu0 %v1664
      %v2680 = vpop.f32.mrf.mxu0
      %v2681 = vadd.f32 %v2512, %v2680
      %v2682 = vpop.f32.mrf.mxu0
      %v2683 = vadd.f32 %v2514, %v2682
      %2684 = vmatmul.bf16.gmra.mxu0 %v1672
      %v2685 = vpop.f32.mrf.mxu0
      %v2686 = vadd.f32 %v2517, %v2685
      %v2687 = vpop.f32.mrf.mxu0
      %v2688 = vadd.f32 %v2519, %v2687
      %2689 = vmatmul.bf16.gmra.mxu0 %v1680
      %v2690 = vpop.f32.mrf.mxu0
      %v2691 = vadd.f32 %v2522, %v2690
      %v2692 = vpop.f32.mrf.mxu0
      %v2693 = vadd.f32 %v2524, %v2692
      %2694 = vmatmul.bf16.gmra.mxu0 %v1688
      %v2695 = vpop.f32.mrf.mxu0
      %v2696 = vadd.f32 %v2527, %v2695
      %v2697 = vpop.f32.mrf.mxu0
      %v2698 = vadd.f32 %v2529, %v2697
      %2699 = vmatmul.bf16.gmra.mxu0 %v1696
      %v2700 = vpop.f32.mrf.mxu0
      %v2701 = vadd.f32 %v2532, %v2700
      %v2702 = vpop.f32.mrf.mxu0
      %v2703 = vadd.f32 %v2534, %v2702
      %2704 = vmatmul.bf16.gmra.mxu0 %v1704
      %v2705 = vpop.f32.mrf.mxu0
      %v2706 = vadd.f32 %v2537, %v2705
      %v2707 = vpop.f32.mrf.mxu0
      %v2708 = vadd.f32 %v2539, %v2707
      %2709 = vmatmul.bf16.gmra.mxu0 %v1712
      %v2710 = vpop.f32.mrf.mxu0
      %v2711 = vadd.f32 %v2542, %v2710
      %v2712 = vpop.f32.mrf.mxu0
      %v2713 = vadd.f32 %v2544, %v2712
      %2714 = vmatmul.bf16.gmra.mxu0 %v1720
      %v2715 = vpop.f32.mrf.mxu0
      %v2716 = vadd.f32 %v2547, %v2715
      %v2717 = vpop.f32.mrf.mxu0
      %v2718 = vadd.f32 %v2549, %v2717
      %2719 = vmatmul.bf16.gmra.mxu0 %v1728
      %v2720 = vpop.f32.mrf.mxu0
      %v2721 = vadd.f32 %v2552, %v2720
      %v2722 = vpop.f32.mrf.mxu0
      %v2723 = vadd.f32 %v2554, %v2722
      %2724 = vmatmul.bf16.gmra.mxu0 %v1736
      %v2725 = vpop.f32.mrf.mxu0
      %v2726 = vadd.f32 %v2557, %v2725
      %v2727 = vpop.f32.mrf.mxu0
      %v2728 = vadd.f32 %v2559, %v2727
      %2729 = vmatmul.bf16.gmra.mxu0 %v1744
      %v2730 = vpop.f32.mrf.mxu0
      %v2731 = vadd.f32 %v2562, %v2730
      %v2732 = vpop.f32.mrf.mxu0
      %v2733 = vadd.f32 %v2564, %v2732
      %2734 = vmatmul.bf16.gmra.mxu0 %v1752
      %v2735 = vpop.f32.mrf.mxu0
      %v2736 = vadd.f32 %v2567, %v2735
      %v2737 = vpop.f32.mrf.mxu0
      %v2738 = vadd.f32 %v2569, %v2737
      %2739 = vmatmul.bf16.gmra.mxu0 %v1760
      %v2740 = vpop.f32.mrf.mxu0
      %v2741 = vadd.f32 %v2572, %v2740
      %v2742 = vpop.f32.mrf.mxu0
      %v2743 = vadd.f32 %v2574, %v2742
      %2744 = vdwg.mxu0
      %2745 = vmatpush.bf16.msra.mxu0 %v2302
      %2746 = vmatpush.bf16.msra.mxu0 %v2301
      %2747 = vmatpush.bf16.msra.mxu0 %v2300
      %2748 = vmatpush.bf16.msra.mxu0 %v2299
      %2749 = vmatpush.bf16.msra.mxu0 %v2298
      %2750 = vmatpush.bf16.msra.mxu0 %v2297
      %2751 = vmatpush.bf16.msra.mxu0 %v2296
      %2752 = vmatpush.bf16.msra.mxu0 %v2295
      %2753 = vmatmul.bf16.gmra.mxu0 %v1513
      %v2754 = vpop.f32.mrf.mxu0
      %v2755 = vadd.f32 %v2586, %v2754
      %v2756 = vpop.f32.mrf.mxu0
      %v2757 = vadd.f32 %v2588, %v2756
      %2758 = vmatmul.bf16.gmra.mxu0 %v1521
      %v2759 = vpop.f32.mrf.mxu0
      %v2760 = vadd.f32 %v2591, %v2759
      %v2761 = vpop.f32.mrf.mxu0
      %v2762 = vadd.f32 %v2593, %v2761
      %2763 = vmatmul.bf16.gmra.mxu0 %v1529
      %v2764 = vpop.f32.mrf.mxu0
      %v2765 = vadd.f32 %v2596, %v2764
      %v2766 = vpop.f32.mrf.mxu0
      %v2767 = vadd.f32 %v2598, %v2766
      %2768 = vmatmul.bf16.gmra.mxu0 %v1537
      %v2769 = vpop.f32.mrf.mxu0
      %v2770 = vadd.f32 %v2601, %v2769
      %v2771 = vpop.f32.mrf.mxu0
      %v2772 = vadd.f32 %v2603, %v2771
      %2773 = vmatmul.bf16.gmra.mxu0 %v1545
      %v2774 = vpop.f32.mrf.mxu0
      %v2775 = vadd.f32 %v2606, %v2774
      %v2776 = vpop.f32.mrf.mxu0
      %v2777 = vadd.f32 %v2608, %v2776
      %2778 = vmatmul.bf16.gmra.mxu0 %v1553
      %v2779 = vpop.f32.mrf.mxu0
      %v2780 = vadd.f32 %v2611, %v2779
      %v2781 = vpop.f32.mrf.mxu0
      %v2782 = vadd.f32 %v2613, %v2781
      %2783 = vmatmul.bf16.gmra.mxu0 %v1561
      %v2784 = vpop.f32.mrf.mxu0
      %v2785 = vadd.f32 %v2616, %v2784
      %v2786 = vpop.f32.mrf.mxu0
      %v2787 = vadd.f32 %v2618, %v2786
      %2788 = vmatmul.bf16.gmra.mxu0 %v1569
      %v2789 = vpop.f32.mrf.mxu0
      %v2790 = vadd.f32 %v2621, %v2789
      %v2791 = vpop.f32.mrf.mxu0
      %v2792 = vadd.f32 %v2623, %v2791
      %2793 = vmatmul.bf16.gmra.mxu0 %v1577
      %v2794 = vpop.f32.mrf.mxu0
      %v2795 = vadd.f32 %v2626, %v2794
      %v2796 = vpop.f32.mrf.mxu0
      %v2797 = vadd.f32 %v2628, %v2796
      %2798 = vmatmul.bf16.gmra.mxu0 %v1585
      %v2799 = vpop.f32.mrf.mxu0
      %v2800 = vadd.f32 %v2631, %v2799
      %v2801 = vpop.f32.mrf.mxu0
      %v2802 = vadd.f32 %v2633, %v2801
      %2803 = vmatmul.bf16.gmra.mxu0 %v1593
      %v2804 = vpop.f32.mrf.mxu0
      %v2805 = vadd.f32 %v2636, %v2804
      %v2806 = vpop.f32.mrf.mxu0
      %v2807 = vadd.f32 %v2638, %v2806
      %2808 = vmatmul.bf16.gmra.mxu0 %v1601
      %v2809 = vpop.f32.mrf.mxu0
      %v2810 = vadd.f32 %v2641, %v2809
      %v2811 = vpop.f32.mrf.mxu0
      %v2812 = vadd.f32 %v2643, %v2811
      %2813 = vmatmul.bf16.gmra.mxu0 %v1609
      %v2814 = vpop.f32.mrf.mxu0
      %v2815 = vadd.f32 %v2646, %v2814
      %v2816 = vpop.f32.mrf.mxu0
      %v2817 = vadd.f32 %v2648, %v2816
      %2818 = vmatmul.bf16.gmra.mxu0 %v1617
      %v2819 = vpop.f32.mrf.mxu0
      %v2820 = vadd.f32 %v2651, %v2819
      %v2821 = vpop.f32.mrf.mxu0
      %v2822 = vadd.f32 %v2653, %v2821
      %2823 = vmatmul.bf16.gmra.mxu0 %v1625
      %v2824 = vpop.f32.mrf.mxu0
      %v2825 = vadd.f32 %v2656, %v2824
      %v2826 = vpop.f32.mrf.mxu0
      %v2827 = vadd.f32 %v2658, %v2826
      %2828 = vmatmul.bf16.gmra.mxu0 %v1633
      %v2829 = vpop.f32.mrf.mxu0
      %v2830 = vadd.f32 %v2661, %v2829
      %v2831 = vpop.f32.mrf.mxu0
      %v2832 = vadd.f32 %v2663, %v2831
      %2833 = vmatmul.bf16.gmra.mxu0 %v1641
      %v2834 = vpop.f32.mrf.mxu0
      %v2835 = vadd.f32 %v2666, %v2834
      %v2836 = vpop.f32.mrf.mxu0
      %v2837 = vadd.f32 %v2668, %v2836
      %2838 = vmatmul.bf16.gmra.mxu0 %v1649
      %v2839 = vpop.f32.mrf.mxu0
      %v2840 = vadd.f32 %v2671, %v2839
      %v2841 = vpop.f32.mrf.mxu0
      %v2842 = vadd.f32 %v2673, %v2841
      %2843 = vmatmul.bf16.gmra.mxu0 %v1657
      %v2844 = vpop.f32.mrf.mxu0
      %v2845 = vadd.f32 %v2676, %v2844
      %v2846 = vpop.f32.mrf.mxu0
      %v2847 = vadd.f32 %v2678, %v2846
      %2848 = vmatmul.bf16.gmra.mxu0 %v1665
      %v2849 = vpop.f32.mrf.mxu0
      %v2850 = vadd.f32 %v2681, %v2849
      %v2851 = vpop.f32.mrf.mxu0
      %v2852 = vadd.f32 %v2683, %v2851
      %2853 = vmatmul.bf16.gmra.mxu0 %v1673
      %v2854 = vpop.f32.mrf.mxu0
      %v2855 = vadd.f32 %v2686, %v2854
      %v2856 = vpop.f32.mrf.mxu0
      %v2857 = vadd.f32 %v2688, %v2856
      %2858 = vmatmul.bf16.gmra.mxu0 %v1681
      %v2859 = vpop.f32.mrf.mxu0
      %v2860 = vadd.f32 %v2691, %v2859
      %v2861 = vpop.f32.mrf.mxu0
      %v2862 = vadd.f32 %v2693, %v2861
      %2863 = vmatmul.bf16.gmra.mxu0 %v1689
      %v2864 = vpop.f32.mrf.mxu0
      %v2865 = vadd.f32 %v2696, %v2864
      %v2866 = vpop.f32.mrf.mxu0
      %v2867 = vadd.f32 %v2698, %v2866
      %2868 = vmatmul.bf16.gmra.mxu0 %v1697
      %v2869 = vpop.f32.mrf.mxu0
      %v2870 = vadd.f32 %v2701, %v2869
      %v2871 = vpop.f32.mrf.mxu0
      %v2872 = vadd.f32 %v2703, %v2871
      %2873 = vmatmul.bf16.gmra.mxu0 %v1705
      %v2874 = vpop.f32.mrf.mxu0
      %v2875 = vadd.f32 %v2706, %v2874
      %v2876 = vpop.f32.mrf.mxu0
      %v2877 = vadd.f32 %v2708, %v2876
      %2878 = vmatmul.bf16.gmra.mxu0 %v1713
      %v2879 = vpop.f32.mrf.mxu0
      %v2880 = vadd.f32 %v2711, %v2879
      %v2881 = vpop.f32.mrf.mxu0
      %v2882 = vadd.f32 %v2713, %v2881
      %2883 = vmatmul.bf16.gmra.mxu0 %v1721
      %v2884 = vpop.f32.mrf.mxu0
      %v2885 = vadd.f32 %v2716, %v2884
      %v2886 = vpop.f32.mrf.mxu0
      %v2887 = vadd.f32 %v2718, %v2886
      %2888 = vmatmul.bf16.gmra.mxu0 %v1729
      %v2889 = vpop.f32.mrf.mxu0
      %v2890 = vadd.f32 %v2721, %v2889
      %v2891 = vpop.f32.mrf.mxu0
      %v2892 = vadd.f32 %v2723, %v2891
      %2893 = vmatmul.bf16.gmra.mxu0 %v1737
      %v2894 = vpop.f32.mrf.mxu0
      %v2895 = vadd.f32 %v2726, %v2894
      %v2896 = vpop.f32.mrf.mxu0
      %v2897 = vadd.f32 %v2728, %v2896
      %2898 = vmatmul.bf16.gmra.mxu0 %v1745
      %v2899 = vpop.f32.mrf.mxu0
      %v2900 = vadd.f32 %v2731, %v2899
      %v2901 = vpop.f32.mrf.mxu0
      %v2902 = vadd.f32 %v2733, %v2901
      %2903 = vmatmul.bf16.gmra.mxu0 %v1753
      %v2904 = vpop.f32.mrf.mxu0
      %v2905 = vadd.f32 %v2736, %v2904
      %v2906 = vpop.f32.mrf.mxu0
      %v2907 = vadd.f32 %v2738, %v2906
      %2908 = vmatmul.bf16.gmra.mxu0 %v1761
      %v2909 = vpop.f32.mrf.mxu0
      %v2910 = vadd.f32 %v2741, %v2909
      %v2911 = vpop.f32.mrf.mxu0
      %v2912 = vadd.f32 %v2743, %v2911
      %2913 = vdwg.mxu0
      %2914 = vmatpush.bf16.msra.mxu0 %v2310
      %2915 = vmatpush.bf16.msra.mxu0 %v2309
      %2916 = vmatpush.bf16.msra.mxu0 %v2308
      %2917 = vmatpush.bf16.msra.mxu0 %v2307
      %2918 = vmatpush.bf16.msra.mxu0 %v2306
      %2919 = vmatpush.bf16.msra.mxu0 %v2305
      %2920 = vmatpush.bf16.msra.mxu0 %v2304
      %2921 = vmatpush.bf16.msra.mxu0 %v2303
      %2922 = vmatmul.bf16.gmra.mxu0 %v1514
      %v2923 = vpop.f32.mrf.mxu0
      %v2924 = vadd.f32 %v2755, %v2923
      %v2925 = vpop.f32.mrf.mxu0
      %v2926 = vadd.f32 %v2757, %v2925
      %2927 = vmatmul.bf16.gmra.mxu0 %v1522
      %v2928 = vpop.f32.mrf.mxu0
      %v2929 = vadd.f32 %v2760, %v2928
      %v2930 = vpop.f32.mrf.mxu0
      %v2931 = vadd.f32 %v2762, %v2930
      %2932 = vmatmul.bf16.gmra.mxu0 %v1530
      %v2933 = vpop.f32.mrf.mxu0
      %v2934 = vadd.f32 %v2765, %v2933
      %v2935 = vpop.f32.mrf.mxu0
      %v2936 = vadd.f32 %v2767, %v2935
      %2937 = vmatmul.bf16.gmra.mxu0 %v1538
      %v2938 = vpop.f32.mrf.mxu0
      %v2939 = vadd.f32 %v2770, %v2938
      %v2940 = vpop.f32.mrf.mxu0
      %v2941 = vadd.f32 %v2772, %v2940
      %2942 = vmatmul.bf16.gmra.mxu0 %v1546
      %v2943 = vpop.f32.mrf.mxu0
      %v2944 = vadd.f32 %v2775, %v2943
      %v2945 = vpop.f32.mrf.mxu0
      %v2946 = vadd.f32 %v2777, %v2945
      %2947 = vmatmul.bf16.gmra.mxu0 %v1554
      %v2948 = vpop.f32.mrf.mxu0
      %v2949 = vadd.f32 %v2780, %v2948
      %v2950 = vpop.f32.mrf.mxu0
      %v2951 = vadd.f32 %v2782, %v2950
      %2952 = vmatmul.bf16.gmra.mxu0 %v1562
      %v2953 = vpop.f32.mrf.mxu0
      %v2954 = vadd.f32 %v2785, %v2953
      %v2955 = vpop.f32.mrf.mxu0
      %v2956 = vadd.f32 %v2787, %v2955
      %2957 = vmatmul.bf16.gmra.mxu0 %v1570
      %v2958 = vpop.f32.mrf.mxu0
      %v2959 = vadd.f32 %v2790, %v2958
      %v2960 = vpop.f32.mrf.mxu0
      %v2961 = vadd.f32 %v2792, %v2960
      %2962 = vmatmul.bf16.gmra.mxu0 %v1578
      %v2963 = vpop.f32.mrf.mxu0
      %v2964 = vadd.f32 %v2795, %v2963
      %v2965 = vpop.f32.mrf.mxu0
      %v2966 = vadd.f32 %v2797, %v2965
      %2967 = vmatmul.bf16.gmra.mxu0 %v1586
      %v2968 = vpop.f32.mrf.mxu0
      %v2969 = vadd.f32 %v2800, %v2968
      %v2970 = vpop.f32.mrf.mxu0
      %v2971 = vadd.f32 %v2802, %v2970
      %2972 = vmatmul.bf16.gmra.mxu0 %v1594
      %v2973 = vpop.f32.mrf.mxu0
      %v2974 = vadd.f32 %v2805, %v2973
      %v2975 = vpop.f32.mrf.mxu0
      %v2976 = vadd.f32 %v2807, %v2975
      %2977 = vmatmul.bf16.gmra.mxu0 %v1602
      %v2978 = vpop.f32.mrf.mxu0
      %v2979 = vadd.f32 %v2810, %v2978
      %v2980 = vpop.f32.mrf.mxu0
      %v2981 = vadd.f32 %v2812, %v2980
      %2982 = vmatmul.bf16.gmra.mxu0 %v1610
      %v2983 = vpop.f32.mrf.mxu0
      %v2984 = vadd.f32 %v2815, %v2983
      %v2985 = vpop.f32.mrf.mxu0
      %v2986 = vadd.f32 %v2817, %v2985
      %2987 = vmatmul.bf16.gmra.mxu0 %v1618
      %v2988 = vpop.f32.mrf.mxu0
      %v2989 = vadd.f32 %v2820, %v2988
      %v2990 = vpop.f32.mrf.mxu0
      %v2991 = vadd.f32 %v2822, %v2990
      %2992 = vmatmul.bf16.gmra.mxu0 %v1626
      %v2993 = vpop.f32.mrf.mxu0
      %v2994 = vadd.f32 %v2825, %v2993
      %v2995 = vpop.f32.mrf.mxu0
      %v2996 = vadd.f32 %v2827, %v2995
      %2997 = vmatmul.bf16.gmra.mxu0 %v1634
      %v2998 = vpop.f32.mrf.mxu0
      %v2999 = vadd.f32 %v2830, %v2998
      %v3000 = vpop.f32.mrf.mxu0
      %v3001 = vadd.f32 %v2832, %v3000
      %3002 = vmatmul.bf16.gmra.mxu0 %v1642
      %v3003 = vpop.f32.mrf.mxu0
      %v3004 = vadd.f32 %v2835, %v3003
      %v3005 = vpop.f32.mrf.mxu0
      %v3006 = vadd.f32 %v2837, %v3005
      %3007 = vmatmul.bf16.gmra.mxu0 %v1650
      %v3008 = vpop.f32.mrf.mxu0
      %v3009 = vadd.f32 %v2840, %v3008
      %v3010 = vpop.f32.mrf.mxu0
      %v3011 = vadd.f32 %v2842, %v3010
      %3012 = vmatmul.bf16.gmra.mxu0 %v1658
      %v3013 = vpop.f32.mrf.mxu0
      %v3014 = vadd.f32 %v2845, %v3013
      %v3015 = vpop.f32.mrf.mxu0
      %v3016 = vadd.f32 %v2847, %v3015
      %3017 = vmatmul.bf16.gmra.mxu0 %v1666
      %v3018 = vpop.f32.mrf.mxu0
      %v3019 = vadd.f32 %v2850, %v3018
      %v3020 = vpop.f32.mrf.mxu0
      %v3021 = vadd.f32 %v2852, %v3020
      %3022 = vmatmul.bf16.gmra.mxu0 %v1674
      %v3023 = vpop.f32.mrf.mxu0
      %v3024 = vadd.f32 %v2855, %v3023
      %v3025 = vpop.f32.mrf.mxu0
      %v3026 = vadd.f32 %v2857, %v3025
      %3027 = vmatmul.bf16.gmra.mxu0 %v1682
      %v3028 = vpop.f32.mrf.mxu0
      %v3029 = vadd.f32 %v2860, %v3028
      %v3030 = vpop.f32.mrf.mxu0
      %v3031 = vadd.f32 %v2862, %v3030
      %3032 = vmatmul.bf16.gmra.mxu0 %v1690
      %v3033 = vpop.f32.mrf.mxu0
      %v3034 = vadd.f32 %v2865, %v3033
      %v3035 = vpop.f32.mrf.mxu0
      %v3036 = vadd.f32 %v2867, %v3035
      %3037 = vmatmul.bf16.gmra.mxu0 %v1698
      %v3038 = vpop.f32.mrf.mxu0
      %v3039 = vadd.f32 %v2870, %v3038
      %v3040 = vpop.f32.mrf.mxu0
      %v3041 = vadd.f32 %v2872, %v3040
      %3042 = vmatmul.bf16.gmra.mxu0 %v1706
      %v3043 = vpop.f32.mrf.mxu0
      %v3044 = vadd.f32 %v2875, %v3043
      %v3045 = vpop.f32.mrf.mxu0
      %v3046 = vadd.f32 %v2877, %v3045
      %3047 = vmatmul.bf16.gmra.mxu0 %v1714
      %v3048 = vpop.f32.mrf.mxu0
      %v3049 = vadd.f32 %v2880, %v3048
      %v3050 = vpop.f32.mrf.mxu0
      %v3051 = vadd.f32 %v2882, %v3050
      %3052 = vmatmul.bf16.gmra.mxu0 %v1722
      %v3053 = vpop.f32.mrf.mxu0
      %v3054 = vadd.f32 %v2885, %v3053
      %v3055 = vpop.f32.mrf.mxu0
      %v3056 = vadd.f32 %v2887, %v3055
      %3057 = vmatmul.bf16.gmra.mxu0 %v1730
      %v3058 = vpop.f32.mrf.mxu0
      %v3059 = vadd.f32 %v2890, %v3058
      %v3060 = vpop.f32.mrf.mxu0
      %v3061 = vadd.f32 %v2892, %v3060
      %3062 = vmatmul.bf16.gmra.mxu0 %v1738
      %v3063 = vpop.f32.mrf.mxu0
      %v3064 = vadd.f32 %v2895, %v3063
      %v3065 = vpop.f32.mrf.mxu0
      %v3066 = vadd.f32 %v2897, %v3065
      %3067 = vmatmul.bf16.gmra.mxu0 %v1746
      %v3068 = vpop.f32.mrf.mxu0
      %v3069 = vadd.f32 %v2900, %v3068
      %v3070 = vpop.f32.mrf.mxu0
      %v3071 = vadd.f32 %v2902, %v3070
      %3072 = vmatmul.bf16.gmra.mxu0 %v1754
      %v3073 = vpop.f32.mrf.mxu0
      %v3074 = vadd.f32 %v2905, %v3073
      %v3075 = vpop.f32.mrf.mxu0
      %v3076 = vadd.f32 %v2907, %v3075
      %3077 = vmatmul.bf16.gmra.mxu0 %v1762
      %v3078 = vpop.f32.mrf.mxu0
      %v3079 = vadd.f32 %v2910, %v3078
      %v3080 = vpop.f32.mrf.mxu0
      %v3081 = vadd.f32 %v2912, %v3080
      %3082 = vdwg.mxu0
      %3083 = vmatpush.bf16.msra.mxu0 %v2318
      %3084 = vmatpush.bf16.msra.mxu0 %v2317
      %3085 = vmatpush.bf16.msra.mxu0 %v2316
      %3086 = vmatpush.bf16.msra.mxu0 %v2315
      %3087 = vmatpush.bf16.msra.mxu0 %v2314
      %3088 = vmatpush.bf16.msra.mxu0 %v2313
      %3089 = vmatpush.bf16.msra.mxu0 %v2312
      %3090 = vmatpush.bf16.msra.mxu0 %v2311
      %3091 = vmatmul.bf16.gmra.mxu0 %v1515
      %v3092 = vpop.f32.mrf.mxu0
      %v3093 = vadd.f32 %v2924, %v3092
      %v3094 = vpop.f32.mrf.mxu0
      %v3095 = vadd.f32 %v2926, %v3094
      %3096 = vmatmul.bf16.gmra.mxu0 %v1523
      %v3097 = vpop.f32.mrf.mxu0
      %v3098 = vadd.f32 %v2929, %v3097
      %v3099 = vpop.f32.mrf.mxu0
      %v3100 = vadd.f32 %v2931, %v3099
      %3101 = vmatmul.bf16.gmra.mxu0 %v1531
      %v3102 = vpop.f32.mrf.mxu0
      %v3103 = vadd.f32 %v2934, %v3102
      %v3104 = vpop.f32.mrf.mxu0
      %v3105 = vadd.f32 %v2936, %v3104
      %3106 = vmatmul.bf16.gmra.mxu0 %v1539
      %v3107 = vpop.f32.mrf.mxu0
      %v3108 = vadd.f32 %v2939, %v3107
      %v3109 = vpop.f32.mrf.mxu0
      %v3110 = vadd.f32 %v2941, %v3109
      %3111 = vmatmul.bf16.gmra.mxu0 %v1547
      %v3112 = vpop.f32.mrf.mxu0
      %v3113 = vadd.f32 %v2944, %v3112
      %v3114 = vpop.f32.mrf.mxu0
      %v3115 = vadd.f32 %v2946, %v3114
      %3116 = vmatmul.bf16.gmra.mxu0 %v1555
      %v3117 = vpop.f32.mrf.mxu0
      %v3118 = vadd.f32 %v2949, %v3117
      %v3119 = vpop.f32.mrf.mxu0
      %v3120 = vadd.f32 %v2951, %v3119
      %3121 = vmatmul.bf16.gmra.mxu0 %v1563
      %v3122 = vpop.f32.mrf.mxu0
      %v3123 = vadd.f32 %v2954, %v3122
      %v3124 = vpop.f32.mrf.mxu0
      %v3125 = vadd.f32 %v2956, %v3124
      %3126 = vmatmul.bf16.gmra.mxu0 %v1571
      %v3127 = vpop.f32.mrf.mxu0
      %v3128 = vadd.f32 %v2959, %v3127
      %v3129 = vpop.f32.mrf.mxu0
      %v3130 = vadd.f32 %v2961, %v3129
      %3131 = vmatmul.bf16.gmra.mxu0 %v1579
      %v3132 = vpop.f32.mrf.mxu0
      %v3133 = vadd.f32 %v2964, %v3132
      %v3134 = vpop.f32.mrf.mxu0
      %v3135 = vadd.f32 %v2966, %v3134
      %3136 = vmatmul.bf16.gmra.mxu0 %v1587
      %v3137 = vpop.f32.mrf.mxu0
      %v3138 = vadd.f32 %v2969, %v3137
      %v3139 = vpop.f32.mrf.mxu0
      %v3140 = vadd.f32 %v2971, %v3139
      %3141 = vmatmul.bf16.gmra.mxu0 %v1595
      %v3142 = vpop.f32.mrf.mxu0
      %v3143 = vadd.f32 %v2974, %v3142
      %v3144 = vpop.f32.mrf.mxu0
      %v3145 = vadd.f32 %v2976, %v3144
      %3146 = vmatmul.bf16.gmra.mxu0 %v1603
      %v3147 = vpop.f32.mrf.mxu0
      %v3148 = vadd.f32 %v2979, %v3147
      %v3149 = vpop.f32.mrf.mxu0
      %v3150 = vadd.f32 %v2981, %v3149
      %3151 = vmatmul.bf16.gmra.mxu0 %v1611
      %v3152 = vpop.f32.mrf.mxu0
      %v3153 = vadd.f32 %v2984, %v3152
      %v3154 = vpop.f32.mrf.mxu0
      %v3155 = vadd.f32 %v2986, %v3154
      %3156 = vmatmul.bf16.gmra.mxu0 %v1619
      %v3157 = vpop.f32.mrf.mxu0
      %v3158 = vadd.f32 %v2989, %v3157
      %v3159 = vpop.f32.mrf.mxu0
      %v3160 = vadd.f32 %v2991, %v3159
      %3161 = vmatmul.bf16.gmra.mxu0 %v1627
      %v3162 = vpop.f32.mrf.mxu0
      %v3163 = vadd.f32 %v2994, %v3162
      %v3164 = vpop.f32.mrf.mxu0
      %v3165 = vadd.f32 %v2996, %v3164
      %3166 = vmatmul.bf16.gmra.mxu0 %v1635
      %v3167 = vpop.f32.mrf.mxu0
      %v3168 = vadd.f32 %v2999, %v3167
      %v3169 = vpop.f32.mrf.mxu0
      %v3170 = vadd.f32 %v3001, %v3169
      %3171 = vmatmul.bf16.gmra.mxu0 %v1643
      %v3172 = vpop.f32.mrf.mxu0
      %v3173 = vadd.f32 %v3004, %v3172
      %v3174 = vpop.f32.mrf.mxu0
      %v3175 = vadd.f32 %v3006, %v3174
      %3176 = vmatmul.bf16.gmra.mxu0 %v1651
      %v3177 = vpop.f32.mrf.mxu0
      %v3178 = vadd.f32 %v3009, %v3177
      %v3179 = vpop.f32.mrf.mxu0
      %v3180 = vadd.f32 %v3011, %v3179
      %3181 = vmatmul.bf16.gmra.mxu0 %v1659
      %v3182 = vpop.f32.mrf.mxu0
      %v3183 = vadd.f32 %v3014, %v3182
      %v3184 = vpop.f32.mrf.mxu0
      %v3185 = vadd.f32 %v3016, %v3184
      %3186 = vmatmul.bf16.gmra.mxu0 %v1667
      %v3187 = vpop.f32.mrf.mxu0
      %v3188 = vadd.f32 %v3019, %v3187
      %v3189 = vpop.f32.mrf.mxu0
      %v3190 = vadd.f32 %v3021, %v3189
      %3191 = vmatmul.bf16.gmra.mxu0 %v1675
      %v3192 = vpop.f32.mrf.mxu0
      %v3193 = vadd.f32 %v3024, %v3192
      %v3194 = vpop.f32.mrf.mxu0
      %v3195 = vadd.f32 %v3026, %v3194
      %3196 = vmatmul.bf16.gmra.mxu0 %v1683
      %v3197 = vpop.f32.mrf.mxu0
      %v3198 = vadd.f32 %v3029, %v3197
      %v3199 = vpop.f32.mrf.mxu0
      %v3200 = vadd.f32 %v3031, %v3199
      %3201 = vmatmul.bf16.gmra.mxu0 %v1691
      %v3202 = vpop.f32.mrf.mxu0
      %v3203 = vadd.f32 %v3034, %v3202
      %v3204 = vpop.f32.mrf.mxu0
      %v3205 = vadd.f32 %v3036, %v3204
      %3206 = vmatmul.bf16.gmra.mxu0 %v1699
      %v3207 = vpop.f32.mrf.mxu0
      %v3208 = vadd.f32 %v3039, %v3207
      %v3209 = vpop.f32.mrf.mxu0
      %v3210 = vadd.f32 %v3041, %v3209
      %3211 = vmatmul.bf16.gmra.mxu0 %v1707
      %v3212 = vpop.f32.mrf.mxu0
      %v3213 = vadd.f32 %v3044, %v3212
      %v3214 = vpop.f32.mrf.mxu0
      %v3215 = vadd.f32 %v3046, %v3214
      %3216 = vmatmul.bf16.gmra.mxu0 %v1715
      %v3217 = vpop.f32.mrf.mxu0
      %v3218 = vadd.f32 %v3049, %v3217
      %v3219 = vpop.f32.mrf.mxu0
      %v3220 = vadd.f32 %v3051, %v3219
      %3221 = vmatmul.bf16.gmra.mxu0 %v1723
      %v3222 = vpop.f32.mrf.mxu0
      %v3223 = vadd.f32 %v3054, %v3222
      %v3224 = vpop.f32.mrf.mxu0
      %v3225 = vadd.f32 %v3056, %v3224
      %3226 = vmatmul.bf16.gmra.mxu0 %v1731
      %v3227 = vpop.f32.mrf.mxu0
      %v3228 = vadd.f32 %v3059, %v3227
      %v3229 = vpop.f32.mrf.mxu0
      %v3230 = vadd.f32 %v3061, %v3229
      %3231 = vmatmul.bf16.gmra.mxu0 %v1739
      %v3232 = vpop.f32.mrf.mxu0
      %v3233 = vadd.f32 %v3064, %v3232
      %v3234 = vpop.f32.mrf.mxu0
      %v3235 = vadd.f32 %v3066, %v3234
      %3236 = vmatmul.bf16.gmra.mxu0 %v1747
      %v3237 = vpop.f32.mrf.mxu0
      %v3238 = vadd.f32 %v3069, %v3237
      %v3239 = vpop.f32.mrf.mxu0
      %v3240 = vadd.f32 %v3071, %v3239
      %3241 = vmatmul.bf16.gmra.mxu0 %v1755
      %v3242 = vpop.f32.mrf.mxu0
      %v3243 = vadd.f32 %v3074, %v3242
      %v3244 = vpop.f32.mrf.mxu0
      %v3245 = vadd.f32 %v3076, %v3244
      %3246 = vmatmul.bf16.gmra.mxu0 %v1763
      %v3247 = vpop.f32.mrf.mxu0
      %v3248 = vadd.f32 %v3079, %v3247
      %v3249 = vpop.f32.mrf.mxu0
      %v3250 = vadd.f32 %v3081, %v3249
      %3251 = vdwg.mxu0
      %3252 = vmatpush.bf16.msra.mxu0 %v2326
      %3253 = vmatpush.bf16.msra.mxu0 %v2325
      %3254 = vmatpush.bf16.msra.mxu0 %v2324
      %3255 = vmatpush.bf16.msra.mxu0 %v2323
      %3256 = vmatpush.bf16.msra.mxu0 %v2322
      %3257 = vmatpush.bf16.msra.mxu0 %v2321
      %3258 = vmatpush.bf16.msra.mxu0 %v2320
      %3259 = vmatpush.bf16.msra.mxu0 %v2319
      %3260 = vmatmul.bf16.gmra.mxu0 %v1516
      %v3261 = vpop.f32.mrf.mxu0
      %v3262 = vadd.f32 %v3093, %v3261
      %v3263 = vpop.f32.mrf.mxu0
      %v3264 = vadd.f32 %v3095, %v3263
      %3265 = vmatmul.bf16.gmra.mxu0 %v1524
      %v3266 = vpop.f32.mrf.mxu0
      %v3267 = vadd.f32 %v3098, %v3266
      %v3268 = vpop.f32.mrf.mxu0
      %v3269 = vadd.f32 %v3100, %v3268
      %3270 = vmatmul.bf16.gmra.mxu0 %v1532
      %v3271 = vpop.f32.mrf.mxu0
      %v3272 = vadd.f32 %v3103, %v3271
      %v3273 = vpop.f32.mrf.mxu0
      %v3274 = vadd.f32 %v3105, %v3273
      %3275 = vmatmul.bf16.gmra.mxu0 %v1540
      %v3276 = vpop.f32.mrf.mxu0
      %v3277 = vadd.f32 %v3108, %v3276
      %v3278 = vpop.f32.mrf.mxu0
      %v3279 = vadd.f32 %v3110, %v3278
      %3280 = vmatmul.bf16.gmra.mxu0 %v1548
      %v3281 = vpop.f32.mrf.mxu0
      %v3282 = vadd.f32 %v3113, %v3281
      %v3283 = vpop.f32.mrf.mxu0
      %v3284 = vadd.f32 %v3115, %v3283
      %3285 = vmatmul.bf16.gmra.mxu0 %v1556
      %v3286 = vpop.f32.mrf.mxu0
      %v3287 = vadd.f32 %v3118, %v3286
      %v3288 = vpop.f32.mrf.mxu0
      %v3289 = vadd.f32 %v3120, %v3288
      %3290 = vmatmul.bf16.gmra.mxu0 %v1564
      %v3291 = vpop.f32.mrf.mxu0
      %v3292 = vadd.f32 %v3123, %v3291
      %v3293 = vpop.f32.mrf.mxu0
      %v3294 = vadd.f32 %v3125, %v3293
      %3295 = vmatmul.bf16.gmra.mxu0 %v1572
      %v3296 = vpop.f32.mrf.mxu0
      %v3297 = vadd.f32 %v3128, %v3296
      %v3298 = vpop.f32.mrf.mxu0
      %v3299 = vadd.f32 %v3130, %v3298
      %3300 = vmatmul.bf16.gmra.mxu0 %v1580
      %v3301 = vpop.f32.mrf.mxu0
      %v3302 = vadd.f32 %v3133, %v3301
      %v3303 = vpop.f32.mrf.mxu0
      %v3304 = vadd.f32 %v3135, %v3303
      %3305 = vmatmul.bf16.gmra.mxu0 %v1588
      %v3306 = vpop.f32.mrf.mxu0
      %v3307 = vadd.f32 %v3138, %v3306
      %v3308 = vpop.f32.mrf.mxu0
      %v3309 = vadd.f32 %v3140, %v3308
      %3310 = vmatmul.bf16.gmra.mxu0 %v1596
      %v3311 = vpop.f32.mrf.mxu0
      %v3312 = vadd.f32 %v3143, %v3311
      %v3313 = vpop.f32.mrf.mxu0
      %v3314 = vadd.f32 %v3145, %v3313
      %3315 = vmatmul.bf16.gmra.mxu0 %v1604
      %v3316 = vpop.f32.mrf.mxu0
      %v3317 = vadd.f32 %v3148, %v3316
      %v3318 = vpop.f32.mrf.mxu0
      %v3319 = vadd.f32 %v3150, %v3318
      %3320 = vmatmul.bf16.gmra.mxu0 %v1612
      %v3321 = vpop.f32.mrf.mxu0
      %v3322 = vadd.f32 %v3153, %v3321
      %v3323 = vpop.f32.mrf.mxu0
      %v3324 = vadd.f32 %v3155, %v3323
      %3325 = vmatmul.bf16.gmra.mxu0 %v1620
      %v3326 = vpop.f32.mrf.mxu0
      %v3327 = vadd.f32 %v3158, %v3326
      %v3328 = vpop.f32.mrf.mxu0
      %v3329 = vadd.f32 %v3160, %v3328
      %3330 = vmatmul.bf16.gmra.mxu0 %v1628
      %v3331 = vpop.f32.mrf.mxu0
      %v3332 = vadd.f32 %v3163, %v3331
      %v3333 = vpop.f32.mrf.mxu0
      %v3334 = vadd.f32 %v3165, %v3333
      %3335 = vmatmul.bf16.gmra.mxu0 %v1636
      %v3336 = vpop.f32.mrf.mxu0
      %v3337 = vadd.f32 %v3168, %v3336
      %v3338 = vpop.f32.mrf.mxu0
      %v3339 = vadd.f32 %v3170, %v3338
      %3340 = vmatmul.bf16.gmra.mxu0 %v1644
      %v3341 = vpop.f32.mrf.mxu0
      %v3342 = vadd.f32 %v3173, %v3341
      %v3343 = vpop.f32.mrf.mxu0
      %v3344 = vadd.f32 %v3175, %v3343
      %3345 = vmatmul.bf16.gmra.mxu0 %v1652
      %v3346 = vpop.f32.mrf.mxu0
      %v3347 = vadd.f32 %v3178, %v3346
      %v3348 = vpop.f32.mrf.mxu0
      %v3349 = vadd.f32 %v3180, %v3348
      %3350 = vmatmul.bf16.gmra.mxu0 %v1660
      %v3351 = vpop.f32.mrf.mxu0
      %v3352 = vadd.f32 %v3183, %v3351
      %v3353 = vpop.f32.mrf.mxu0
      %v3354 = vadd.f32 %v3185, %v3353
      %3355 = vmatmul.bf16.gmra.mxu0 %v1668
      %v3356 = vpop.f32.mrf.mxu0
      %v3357 = vadd.f32 %v3188, %v3356
      %v3358 = vpop.f32.mrf.mxu0
      %v3359 = vadd.f32 %v3190, %v3358
      %3360 = vmatmul.bf16.gmra.mxu0 %v1676
      %v3361 = vpop.f32.mrf.mxu0
      %v3362 = vadd.f32 %v3193, %v3361
      %v3363 = vpop.f32.mrf.mxu0
      %v3364 = vadd.f32 %v3195, %v3363
      %3365 = vmatmul.bf16.gmra.mxu0 %v1684
      %v3366 = vpop.f32.mrf.mxu0
      %v3367 = vadd.f32 %v3198, %v3366
      %v3368 = vpop.f32.mrf.mxu0
      %v3369 = vadd.f32 %v3200, %v3368
      %3370 = vmatmul.bf16.gmra.mxu0 %v1692
      %v3371 = vpop.f32.mrf.mxu0
      %v3372 = vadd.f32 %v3203, %v3371
      %v3373 = vpop.f32.mrf.mxu0
      %v3374 = vadd.f32 %v3205, %v3373
      %3375 = vmatmul.bf16.gmra.mxu0 %v1700
      %v3376 = vpop.f32.mrf.mxu0
      %v3377 = vadd.f32 %v3208, %v3376
      %v3378 = vpop.f32.mrf.mxu0
      %v3379 = vadd.f32 %v3210, %v3378
      %3380 = vmatmul.bf16.gmra.mxu0 %v1708
      %v3381 = vpop.f32.mrf.mxu0
      %v3382 = vadd.f32 %v3213, %v3381
      %v3383 = vpop.f32.mrf.mxu0
      %v3384 = vadd.f32 %v3215, %v3383
      %3385 = vmatmul.bf16.gmra.mxu0 %v1716
      %v3386 = vpop.f32.mrf.mxu0
      %v3387 = vadd.f32 %v3218, %v3386
      %v3388 = vpop.f32.mrf.mxu0
      %v3389 = vadd.f32 %v3220, %v3388
      %3390 = vmatmul.bf16.gmra.mxu0 %v1724
      %v3391 = vpop.f32.mrf.mxu0
      %v3392 = vadd.f32 %v3223, %v3391
      %v3393 = vpop.f32.mrf.mxu0
      %v3394 = vadd.f32 %v3225, %v3393
      %3395 = vmatmul.bf16.gmra.mxu0 %v1732
      %v3396 = vpop.f32.mrf.mxu0
      %v3397 = vadd.f32 %v3228, %v3396
      %v3398 = vpop.f32.mrf.mxu0
      %v3399 = vadd.f32 %v3230, %v3398
      %3400 = vmatmul.bf16.gmra.mxu0 %v1740
      %v3401 = vpop.f32.mrf.mxu0
      %v3402 = vadd.f32 %v3233, %v3401
      %v3403 = vpop.f32.mrf.mxu0
      %v3404 = vadd.f32 %v3235, %v3403
      %3405 = vmatmul.bf16.gmra.mxu0 %v1748
      %v3406 = vpop.f32.mrf.mxu0
      %v3407 = vadd.f32 %v3238, %v3406
      %v3408 = vpop.f32.mrf.mxu0
      %v3409 = vadd.f32 %v3240, %v3408
      %3410 = vmatmul.bf16.gmra.mxu0 %v1756
      %v3411 = vpop.f32.mrf.mxu0
      %v3412 = vadd.f32 %v3243, %v3411
      %v3413 = vpop.f32.mrf.mxu0
      %v3414 = vadd.f32 %v3245, %v3413
      %3415 = vmatmul.bf16.gmra.mxu0 %v1764
      %v3416 = vpop.f32.mrf.mxu0
      %v3417 = vadd.f32 %v3248, %v3416
      %v3418 = vpop.f32.mrf.mxu0
      %v3419 = vadd.f32 %v3250, %v3418
      %3420 = vdwg.mxu0
      %3421 = vmatpush.bf16.msra.mxu0 %v2334
      %3422 = vmatpush.bf16.msra.mxu0 %v2333
      %3423 = vmatpush.bf16.msra.mxu0 %v2332
      %3424 = vmatpush.bf16.msra.mxu0 %v2331
      %3425 = vmatpush.bf16.msra.mxu0 %v2330
      %3426 = vmatpush.bf16.msra.mxu0 %v2329
      %3427 = vmatpush.bf16.msra.mxu0 %v2328
      %3428 = vmatpush.bf16.msra.mxu0 %v2327
      %3429 = vmatmul.bf16.gmra.mxu0 %v1517
      %v3430 = vpop.f32.mrf.mxu0
      %v3431 = vadd.f32 %v3262, %v3430
      %v3432 = vpop.f32.mrf.mxu0
      %v3433 = vadd.f32 %v3264, %v3432
      %3434 = vmatmul.bf16.gmra.mxu0 %v1525
      %v3435 = vpop.f32.mrf.mxu0
      %v3436 = vadd.f32 %v3267, %v3435
      %v3437 = vpop.f32.mrf.mxu0
      %v3438 = vadd.f32 %v3269, %v3437
      %3439 = vmatmul.bf16.gmra.mxu0 %v1533
      %v3440 = vpop.f32.mrf.mxu0
      %v3441 = vadd.f32 %v3272, %v3440
      %v3442 = vpop.f32.mrf.mxu0
      %v3443 = vadd.f32 %v3274, %v3442
      %3444 = vmatmul.bf16.gmra.mxu0 %v1541
      %v3445 = vpop.f32.mrf.mxu0
      %v3446 = vadd.f32 %v3277, %v3445
      %v3447 = vpop.f32.mrf.mxu0
      %v3448 = vadd.f32 %v3279, %v3447
      %3449 = vmatmul.bf16.gmra.mxu0 %v1549
      %v3450 = vpop.f32.mrf.mxu0
      %v3451 = vadd.f32 %v3282, %v3450
      %v3452 = vpop.f32.mrf.mxu0
      %v3453 = vadd.f32 %v3284, %v3452
      %3454 = vmatmul.bf16.gmra.mxu0 %v1557
      %v3455 = vpop.f32.mrf.mxu0
      %v3456 = vadd.f32 %v3287, %v3455
      %v3457 = vpop.f32.mrf.mxu0
      %v3458 = vadd.f32 %v3289, %v3457
      %3459 = vmatmul.bf16.gmra.mxu0 %v1565
      %v3460 = vpop.f32.mrf.mxu0
      %v3461 = vadd.f32 %v3292, %v3460
      %v3462 = vpop.f32.mrf.mxu0
      %v3463 = vadd.f32 %v3294, %v3462
      %3464 = vmatmul.bf16.gmra.mxu0 %v1573
      %v3465 = vpop.f32.mrf.mxu0
      %v3466 = vadd.f32 %v3297, %v3465
      %v3467 = vpop.f32.mrf.mxu0
      %v3468 = vadd.f32 %v3299, %v3467
      %3469 = vmatmul.bf16.gmra.mxu0 %v1581
      %v3470 = vpop.f32.mrf.mxu0
      %v3471 = vadd.f32 %v3302, %v3470
      %v3472 = vpop.f32.mrf.mxu0
      %v3473 = vadd.f32 %v3304, %v3472
      %3474 = vmatmul.bf16.gmra.mxu0 %v1589
      %v3475 = vpop.f32.mrf.mxu0
      %v3476 = vadd.f32 %v3307, %v3475
      %v3477 = vpop.f32.mrf.mxu0
      %v3478 = vadd.f32 %v3309, %v3477
      %3479 = vmatmul.bf16.gmra.mxu0 %v1597
      %v3480 = vpop.f32.mrf.mxu0
      %v3481 = vadd.f32 %v3312, %v3480
      %v3482 = vpop.f32.mrf.mxu0
      %v3483 = vadd.f32 %v3314, %v3482
      %3484 = vmatmul.bf16.gmra.mxu0 %v1605
      %v3485 = vpop.f32.mrf.mxu0
      %v3486 = vadd.f32 %v3317, %v3485
      %v3487 = vpop.f32.mrf.mxu0
      %v3488 = vadd.f32 %v3319, %v3487
      %3489 = vmatmul.bf16.gmra.mxu0 %v1613
      %v3490 = vpop.f32.mrf.mxu0
      %v3491 = vadd.f32 %v3322, %v3490
      %v3492 = vpop.f32.mrf.mxu0
      %v3493 = vadd.f32 %v3324, %v3492
      %3494 = vmatmul.bf16.gmra.mxu0 %v1621
      %v3495 = vpop.f32.mrf.mxu0
      %v3496 = vadd.f32 %v3327, %v3495
      %v3497 = vpop.f32.mrf.mxu0
      %v3498 = vadd.f32 %v3329, %v3497
      %3499 = vmatmul.bf16.gmra.mxu0 %v1629
      %v3500 = vpop.f32.mrf.mxu0
      %v3501 = vadd.f32 %v3332, %v3500
      %v3502 = vpop.f32.mrf.mxu0
      %v3503 = vadd.f32 %v3334, %v3502
      %3504 = vmatmul.bf16.gmra.mxu0 %v1637
      %v3505 = vpop.f32.mrf.mxu0
      %v3506 = vadd.f32 %v3337, %v3505
      %v3507 = vpop.f32.mrf.mxu0
      %v3508 = vadd.f32 %v3339, %v3507
      %3509 = vmatmul.bf16.gmra.mxu0 %v1645
      %v3510 = vpop.f32.mrf.mxu0
      %v3511 = vadd.f32 %v3342, %v3510
      %v3512 = vpop.f32.mrf.mxu0
      %v3513 = vadd.f32 %v3344, %v3512
      %3514 = vmatmul.bf16.gmra.mxu0 %v1653
      %v3515 = vpop.f32.mrf.mxu0
      %v3516 = vadd.f32 %v3347, %v3515
      %v3517 = vpop.f32.mrf.mxu0
      %v3518 = vadd.f32 %v3349, %v3517
      %3519 = vmatmul.bf16.gmra.mxu0 %v1661
      %v3520 = vpop.f32.mrf.mxu0
      %v3521 = vadd.f32 %v3352, %v3520
      %v3522 = vpop.f32.mrf.mxu0
      %v3523 = vadd.f32 %v3354, %v3522
      %3524 = vmatmul.bf16.gmra.mxu0 %v1669
      %v3525 = vpop.f32.mrf.mxu0
      %v3526 = vadd.f32 %v3357, %v3525
      %v3527 = vpop.f32.mrf.mxu0
      %v3528 = vadd.f32 %v3359, %v3527
      %3529 = vmatmul.bf16.gmra.mxu0 %v1677
      %v3530 = vpop.f32.mrf.mxu0
      %v3531 = vadd.f32 %v3362, %v3530
      %v3532 = vpop.f32.mrf.mxu0
      %v3533 = vadd.f32 %v3364, %v3532
      %3534 = vmatmul.bf16.gmra.mxu0 %v1685
      %v3535 = vpop.f32.mrf.mxu0
      %v3536 = vadd.f32 %v3367, %v3535
      %v3537 = vpop.f32.mrf.mxu0
      %v3538 = vadd.f32 %v3369, %v3537
      %3539 = vmatmul.bf16.gmra.mxu0 %v1693
      %v3540 = vpop.f32.mrf.mxu0
      %v3541 = vadd.f32 %v3372, %v3540
      %v3542 = vpop.f32.mrf.mxu0
      %v3543 = vadd.f32 %v3374, %v3542
      %3544 = vmatmul.bf16.gmra.mxu0 %v1701
      %v3545 = vpop.f32.mrf.mxu0
      %v3546 = vadd.f32 %v3377, %v3545
      %v3547 = vpop.f32.mrf.mxu0
      %v3548 = vadd.f32 %v3379, %v3547
      %3549 = vmatmul.bf16.gmra.mxu0 %v1709
      %v3550 = vpop.f32.mrf.mxu0
      %v3551 = vadd.f32 %v3382, %v3550
      %v3552 = vpop.f32.mrf.mxu0
      %v3553 = vadd.f32 %v3384, %v3552
      %3554 = vmatmul.bf16.gmra.mxu0 %v1717
      %v3555 = vpop.f32.mrf.mxu0
      %v3556 = vadd.f32 %v3387, %v3555
      %v3557 = vpop.f32.mrf.mxu0
      %v3558 = vadd.f32 %v3389, %v3557
      %3559 = vmatmul.bf16.gmra.mxu0 %v1725
      %v3560 = vpop.f32.mrf.mxu0
      %v3561 = vadd.f32 %v3392, %v3560
      %v3562 = vpop.f32.mrf.mxu0
      %v3563 = vadd.f32 %v3394, %v3562
      %3564 = vmatmul.bf16.gmra.mxu0 %v1733
      %v3565 = vpop.f32.mrf.mxu0
      %v3566 = vadd.f32 %v3397, %v3565
      %v3567 = vpop.f32.mrf.mxu0
      %v3568 = vadd.f32 %v3399, %v3567
      %3569 = vmatmul.bf16.gmra.mxu0 %v1741
      %v3570 = vpop.f32.mrf.mxu0
      %v3571 = vadd.f32 %v3402, %v3570
      %v3572 = vpop.f32.mrf.mxu0
      %v3573 = vadd.f32 %v3404, %v3572
      %3574 = vmatmul.bf16.gmra.mxu0 %v1749
      %v3575 = vpop.f32.mrf.mxu0
      %v3576 = vadd.f32 %v3407, %v3575
      %v3577 = vpop.f32.mrf.mxu0
      %v3578 = vadd.f32 %v3409, %v3577
      %3579 = vmatmul.bf16.gmra.mxu0 %v1757
      %v3580 = vpop.f32.mrf.mxu0
      %v3581 = vadd.f32 %v3412, %v3580
      %v3582 = vpop.f32.mrf.mxu0
      %v3583 = vadd.f32 %v3414, %v3582
      %3584 = vmatmul.bf16.gmra.mxu0 %v1765
      %v3585 = vpop.f32.mrf.mxu0
      %v3586 = vadd.f32 %v3417, %v3585
      %v3587 = vpop.f32.mrf.mxu0
      %v3588 = vadd.f32 %v3419, %v3587
      %3589 = vdwg.mxu0
      %3590 = vmatpush.bf16.msra.mxu0 %v2342
      %3591 = vmatpush.bf16.msra.mxu0 %v2341
      %3592 = vmatpush.bf16.msra.mxu0 %v2340
      %3593 = vmatpush.bf16.msra.mxu0 %v2339
      %3594 = vmatpush.bf16.msra.mxu0 %v2338
      %3595 = vmatpush.bf16.msra.mxu0 %v2337
      %3596 = vmatpush.bf16.msra.mxu0 %v2336
      %3597 = vmatpush.bf16.msra.mxu0 %v2335
      %3598 = vmatmul.bf16.gmra.mxu0 %v1518
      %v3599 = vpop.f32.mrf.mxu0
      %v3600 = vadd.f32 %v3431, %v3599
      %v3601 = vpop.f32.mrf.mxu0
      %v3602 = vadd.f32 %v3433, %v3601
      %3603 = vmatmul.bf16.gmra.mxu0 %v1526
      %v3604 = vpop.f32.mrf.mxu0
      %v3605 = vadd.f32 %v3436, %v3604
      %v3606 = vpop.f32.mrf.mxu0
      %v3607 = vadd.f32 %v3438, %v3606
      %3608 = vmatmul.bf16.gmra.mxu0 %v1534
      %v3609 = vpop.f32.mrf.mxu0
      %v3610 = vadd.f32 %v3441, %v3609
      %v3611 = vpop.f32.mrf.mxu0
      %v3612 = vadd.f32 %v3443, %v3611
      %3613 = vmatmul.bf16.gmra.mxu0 %v1542
      %v3614 = vpop.f32.mrf.mxu0
      %v3615 = vadd.f32 %v3446, %v3614
      %v3616 = vpop.f32.mrf.mxu0
      %v3617 = vadd.f32 %v3448, %v3616
      %3618 = vmatmul.bf16.gmra.mxu0 %v1550
      %v3619 = vpop.f32.mrf.mxu0
      %v3620 = vadd.f32 %v3451, %v3619
      %v3621 = vpop.f32.mrf.mxu0
      %v3622 = vadd.f32 %v3453, %v3621
      %3623 = vmatmul.bf16.gmra.mxu0 %v1558
      %v3624 = vpop.f32.mrf.mxu0
      %v3625 = vadd.f32 %v3456, %v3624
      %v3626 = vpop.f32.mrf.mxu0
      %v3627 = vadd.f32 %v3458, %v3626
      %3628 = vmatmul.bf16.gmra.mxu0 %v1566
      %v3629 = vpop.f32.mrf.mxu0
      %v3630 = vadd.f32 %v3461, %v3629
      %v3631 = vpop.f32.mrf.mxu0
      %v3632 = vadd.f32 %v3463, %v3631
      %3633 = vmatmul.bf16.gmra.mxu0 %v1574
      %v3634 = vpop.f32.mrf.mxu0
      %v3635 = vadd.f32 %v3466, %v3634
      %v3636 = vpop.f32.mrf.mxu0
      %v3637 = vadd.f32 %v3468, %v3636
      %3638 = vmatmul.bf16.gmra.mxu0 %v1582
      %v3639 = vpop.f32.mrf.mxu0
      %v3640 = vadd.f32 %v3471, %v3639
      %v3641 = vpop.f32.mrf.mxu0
      %v3642 = vadd.f32 %v3473, %v3641
      %3643 = vmatmul.bf16.gmra.mxu0 %v1590
      %v3644 = vpop.f32.mrf.mxu0
      %v3645 = vadd.f32 %v3476, %v3644
      %v3646 = vpop.f32.mrf.mxu0
      %v3647 = vadd.f32 %v3478, %v3646
      %3648 = vmatmul.bf16.gmra.mxu0 %v1598
      %v3649 = vpop.f32.mrf.mxu0
      %v3650 = vadd.f32 %v3481, %v3649
      %v3651 = vpop.f32.mrf.mxu0
      %v3652 = vadd.f32 %v3483, %v3651
      %3653 = vmatmul.bf16.gmra.mxu0 %v1606
      %v3654 = vpop.f32.mrf.mxu0
      %v3655 = vadd.f32 %v3486, %v3654
      %v3656 = vpop.f32.mrf.mxu0
      %v3657 = vadd.f32 %v3488, %v3656
      %3658 = vmatmul.bf16.gmra.mxu0 %v1614
      %v3659 = vpop.f32.mrf.mxu0
      %v3660 = vadd.f32 %v3491, %v3659
      %v3661 = vpop.f32.mrf.mxu0
      %v3662 = vadd.f32 %v3493, %v3661
      %3663 = vmatmul.bf16.gmra.mxu0 %v1622
      %v3664 = vpop.f32.mrf.mxu0
      %v3665 = vadd.f32 %v3496, %v3664
      %v3666 = vpop.f32.mrf.mxu0
      %v3667 = vadd.f32 %v3498, %v3666
      %3668 = vmatmul.bf16.gmra.mxu0 %v1630
      %v3669 = vpop.f32.mrf.mxu0
      %v3670 = vadd.f32 %v3501, %v3669
      %v3671 = vpop.f32.mrf.mxu0
      %v3672 = vadd.f32 %v3503, %v3671
      %3673 = vmatmul.bf16.gmra.mxu0 %v1638
      %v3674 = vpop.f32.mrf.mxu0
      %v3675 = vadd.f32 %v3506, %v3674
      %v3676 = vpop.f32.mrf.mxu0
      %v3677 = vadd.f32 %v3508, %v3676
      %3678 = vmatmul.bf16.gmra.mxu0 %v1646
      %v3679 = vpop.f32.mrf.mxu0
      %v3680 = vadd.f32 %v3511, %v3679
      %v3681 = vpop.f32.mrf.mxu0
      %v3682 = vadd.f32 %v3513, %v3681
      %3683 = vmatmul.bf16.gmra.mxu0 %v1654
      %v3684 = vpop.f32.mrf.mxu0
      %v3685 = vadd.f32 %v3516, %v3684
      %v3686 = vpop.f32.mrf.mxu0
      %v3687 = vadd.f32 %v3518, %v3686
      %3688 = vmatmul.bf16.gmra.mxu0 %v1662
      %v3689 = vpop.f32.mrf.mxu0
      %v3690 = vadd.f32 %v3521, %v3689
      %v3691 = vpop.f32.mrf.mxu0
      %v3692 = vadd.f32 %v3523, %v3691
      %3693 = vmatmul.bf16.gmra.mxu0 %v1670
      %v3694 = vpop.f32.mrf.mxu0
      %v3695 = vadd.f32 %v3526, %v3694
      %v3696 = vpop.f32.mrf.mxu0
      %v3697 = vadd.f32 %v3528, %v3696
      %3698 = vmatmul.bf16.gmra.mxu0 %v1678
      %v3699 = vpop.f32.mrf.mxu0
      %v3700 = vadd.f32 %v3531, %v3699
      %v3701 = vpop.f32.mrf.mxu0
      %v3702 = vadd.f32 %v3533, %v3701
      %3703 = vmatmul.bf16.gmra.mxu0 %v1686
      %v3704 = vpop.f32.mrf.mxu0
      %v3705 = vadd.f32 %v3536, %v3704
      %v3706 = vpop.f32.mrf.mxu0
      %v3707 = vadd.f32 %v3538, %v3706
      %3708 = vmatmul.bf16.gmra.mxu0 %v1694
      %v3709 = vpop.f32.mrf.mxu0
      %v3710 = vadd.f32 %v3541, %v3709
      %v3711 = vpop.f32.mrf.mxu0
      %v3712 = vadd.f32 %v3543, %v3711
      %3713 = vmatmul.bf16.gmra.mxu0 %v1702
      %v3714 = vpop.f32.mrf.mxu0
      %v3715 = vadd.f32 %v3546, %v3714
      %v3716 = vpop.f32.mrf.mxu0
      %v3717 = vadd.f32 %v3548, %v3716
      %3718 = vmatmul.bf16.gmra.mxu0 %v1710
      %v3719 = vpop.f32.mrf.mxu0
      %v3720 = vadd.f32 %v3551, %v3719
      %v3721 = vpop.f32.mrf.mxu0
      %v3722 = vadd.f32 %v3553, %v3721
      %3723 = vmatmul.bf16.gmra.mxu0 %v1718
      %v3724 = vpop.f32.mrf.mxu0
      %v3725 = vadd.f32 %v3556, %v3724
      %v3726 = vpop.f32.mrf.mxu0
      %v3727 = vadd.f32 %v3558, %v3726
      %3728 = vmatmul.bf16.gmra.mxu0 %v1726
      %v3729 = vpop.f32.mrf.mxu0
      %v3730 = vadd.f32 %v3561, %v3729
      %v3731 = vpop.f32.mrf.mxu0
      %v3732 = vadd.f32 %v3563, %v3731
      %3733 = vmatmul.bf16.gmra.mxu0 %v1734
      %v3734 = vpop.f32.mrf.mxu0
      %v3735 = vadd.f32 %v3566, %v3734
      %v3736 = vpop.f32.mrf.mxu0
      %v3737 = vadd.f32 %v3568, %v3736
      %3738 = vmatmul.bf16.gmra.mxu0 %v1742
      %v3739 = vpop.f32.mrf.mxu0
      %v3740 = vadd.f32 %v3571, %v3739
      %v3741 = vpop.f32.mrf.mxu0
      %v3742 = vadd.f32 %v3573, %v3741
      %3743 = vmatmul.bf16.gmra.mxu0 %v1750
      %v3744 = vpop.f32.mrf.mxu0
      %v3745 = vadd.f32 %v3576, %v3744
      %v3746 = vpop.f32.mrf.mxu0
      %v3747 = vadd.f32 %v3578, %v3746
      %3748 = vmatmul.bf16.gmra.mxu0 %v1758
      %v3749 = vpop.f32.mrf.mxu0
      %v3750 = vadd.f32 %v3581, %v3749
      %v3751 = vpop.f32.mrf.mxu0
      %v3752 = vadd.f32 %v3583, %v3751
      %3753 = vmatmul.bf16.gmra.mxu0 %v1766
      %v3754 = vpop.f32.mrf.mxu0
      %v3755 = vadd.f32 %v3586, %v3754
      %v3756 = vpop.f32.mrf.mxu0
      %v3757 = vadd.f32 %v3588, %v3756
      %3758 = vdwg.mxu0
      %v3759 = vadd.f32 %v295, %v3600
      %v3760 = vadd.f32 %v296, %v3602
      %v3761 = vadd.f32 %v297, %v3605
      %v3762 = vadd.f32 %v298, %v3607
      %v3763 = vadd.f32 %v299, %v3610
      %v3764 = vadd.f32 %v300, %v3612
      %v3765 = vadd.f32 %v301, %v3615
      %v3766 = vadd.f32 %v302, %v3617
      %v3767 = vadd.f32 %v303, %v3620
      %v3768 = vadd.f32 %v304, %v3622
      %v3769 = vadd.f32 %v305, %v3625
      %v3770 = vadd.f32 %v306, %v3627
      %v3771 = vadd.f32 %v307, %v3630
      %v3772 = vadd.f32 %v308, %v3632
      %v3773 = vadd.f32 %v309, %v3635
      %v3774 = vadd.f32 %v310, %v3637
      %v3775 = vadd.f32 %v311, %v3640
      %v3776 = vadd.f32 %v312, %v3642
      %v3777 = vadd.f32 %v313, %v3645
      %v3778 = vadd.f32 %v314, %v3647
      %v3779 = vadd.f32 %v315, %v3650
      %v3780 = vadd.f32 %v316, %v3652
      %v3781 = vadd.f32 %v317, %v3655
      %v3782 = vadd.f32 %v318, %v3657
      %v3783 = vadd.f32 %v319, %v3660
      %v3784 = vadd.f32 %v320, %v3662
      %v3785 = vadd.f32 %v321, %v3665
      %v3786 = vadd.f32 %v322, %v3667
      %v3787 = vadd.f32 %v323, %v3670
      %v3788 = vadd.f32 %v324, %v3672
      %v3789 = vadd.f32 %v325, %v3675
      %v3790 = vadd.f32 %v326, %v3677
      %v3791 = vadd.f32 %v327, %v3680
      %v3792 = vadd.f32 %v328, %v3682
      %v3793 = vadd.f32 %v329, %v3685
      %v3794 = vadd.f32 %v330, %v3687
      %v3795 = vadd.f32 %v331, %v3690
      %v3796 = vadd.f32 %v332, %v3692
      %v3797 = vadd.f32 %v333, %v3695
      %v3798 = vadd.f32 %v334, %v3697
      %v3799 = vadd.f32 %v335, %v3700
      %v3800 = vadd.f32 %v336, %v3702
      %v3801 = vadd.f32 %v337, %v3705
      %v3802 = vadd.f32 %v338, %v3707
      %v3803 = vadd.f32 %v339, %v3710
      %v3804 = vadd.f32 %v340, %v3712
      %v3805 = vadd.f32 %v341, %v3715
      %v3806 = vadd.f32 %v342, %v3717
      %v3807 = vadd.f32 %v343, %v3720
      %v3808 = vadd.f32 %v344, %v3722
      %v3809 = vadd.f32 %v345, %v3725
      %v3810 = vadd.f32 %v346, %v3727
      %v3811 = vadd.f32 %v347, %v3730
      %v3812 = vadd.f32 %v348, %v3732
      %v3813 = vadd.f32 %v349, %v3735
      %v3814 = vadd.f32 %v350, %v3737
      %v3815 = vadd.f32 %v351, %v3740
      %v3816 = vadd.f32 %v352, %v3742
      %v3817 = vadd.f32 %v353, %v3745
      %v3818 = vadd.f32 %v354, %v3747
      %v3819 = vadd.f32 %v355, %v3750
      %v3820 = vadd.f32 %v356, %v3752
      %v3821 = vadd.f32 %v357, %v3755
      %v3822 = vadd.f32 %v358, %v3757
      %3823 = vst [vmem:[#allocation2] sm:$0xff] %v3759
      %3824 = vst [vmem:[#allocation2 + $0x8] sm:$0xff] %v3760
      %3825 = vst [vmem:[#allocation2 + $0x10] sm:$0xff] %v3761
      %3826 = vst [vmem:[#allocation2 + $0x18] sm:$0xff] %v3762
      %3827 = vst [vmem:[#allocation2 + $0x20] sm:$0xff] %v3763
      %3828 = vst [vmem:[#allocation2 + $0x28] sm:$0xff] %v3764
      %3829 = vst [vmem:[#allocation2 + $0x30] sm:$0xff] %v3765
      %3830 = vst [vmem:[#allocation2 + $0x38] sm:$0xff] %v3766
      %3831 = vst [vmem:[#allocation2 + $0x40] sm:$0xff] %v3767
      %3832 = vst [vmem:[#allocation2 + $0x48] sm:$0xff] %v3768
      %3833 = vst [vmem:[#allocation2 + $0x50] sm:$0xff] %v3769
      %3834 = vst [vmem:[#allocation2 + $0x58] sm:$0xff] %v3770
      %3835 = vst [vmem:[#allocation2 + $0x60] sm:$0xff] %v3771
      %3836 = vst [vmem:[#allocation2 + $0x68] sm:$0xff] %v3772
      %3837 = vst [vmem:[#allocation2 + $0x70] sm:$0xff] %v3773
      %3838 = vst [vmem:[#allocation2 + $0x78] sm:$0xff] %v3774
      %3839 = vst [vmem:[#allocation2 + $0x80] sm:$0xff] %v3775
      %3840 = vst [vmem:[#allocation2 + $0x88] sm:$0xff] %v3776
      %3841 = vst [vmem:[#allocation2 + $0x90] sm:$0xff] %v3777
      %3842 = vst [vmem:[#allocation2 + $0x98] sm:$0xff] %v3778
      %3843 = vst [vmem:[#allocation2 + $0xa0] sm:$0xff] %v3779
      %3844 = vst [vmem:[#allocation2 + $0xa8] sm:$0xff] %v3780
      %3845 = vst [vmem:[#allocation2 + $0xb0] sm:$0xff] %v3781
      %3846 = vst [vmem:[#allocation2 + $0xb8] sm:$0xff] %v3782
      %3847 = vst [vmem:[#allocation2 + $0xc0] sm:$0xff] %v3783
      %3848 = vst [vmem:[#allocation2 + $0xc8] sm:$0xff] %v3784
      %3849 = vst [vmem:[#allocation2 + $0xd0] sm:$0xff] %v3785
      %3850 = vst [vmem:[#allocation2 + $0xd8] sm:$0xff] %v3786
      %3851 = vst [vmem:[#allocation2 + $0xe0] sm:$0xff] %v3787
      %3852 = vst [vmem:[#allocation2 + $0xe8] sm:$0xff] %v3788
      %3853 = vst [vmem:[#allocation2 + $0xf0] sm:$0xff] %v3789
      %3854 = vst [vmem:[#allocation2 + $0xf8] sm:$0xff] %v3790
      %3855 = vst [vmem:[#allocation2 + $0x100] sm:$0xff] %v3791
      %3856 = vst [vmem:[#allocation2 + $0x108] sm:$0xff] %v3792
      %3857 = vst [vmem:[#allocation2 + $0x110] sm:$0xff] %v3793
      %3858 = vst [vmem:[#allocation2 + $0x118] sm:$0xff] %v3794
      %3859 = vst [vmem:[#allocation2 + $0x120] sm:$0xff] %v3795
      %3860 = vst [vmem:[#allocation2 + $0x128] sm:$0xff] %v3796
      %3861 = vst [vmem:[#allocation2 + $0x130] sm:$0xff] %v3797
      %3862 = vst [vmem:[#allocation2 + $0x138] sm:$0xff] %v3798
      %3863 = vst [vmem:[#allocation2 + $0x140] sm:$0xff] %v3799
      %3864 = vst [vmem:[#allocation2 + $0x148] sm:$0xff] %v3800
      %3865 = vst [vmem:[#allocation2 + $0x150] sm:$0xff] %v3801
      %3866 = vst [vmem:[#allocation2 + $0x158] sm:$0xff] %v3802
      %3867 = vst [vmem:[#allocation2 + $0x160] sm:$0xff] %v3803
      %3868 = vst [vmem:[#allocation2 + $0x168] sm:$0xff] %v3804
      %3869 = vst [vmem:[#allocation2 + $0x170] sm:$0xff] %v3805
      %3870 = vst [vmem:[#allocation2 + $0x178] sm:$0xff] %v3806
      %3871 = vst [vmem:[#allocation2 + $0x180] sm:$0xff] %v3807
      %3872 = vst [vmem:[#allocation2 + $0x188] sm:$0xff] %v3808
      %3873 = vst [vmem:[#allocation2 + $0x190] sm:$0xff] %v3809
      %3874 = vst [vmem:[#allocation2 + $0x198] sm:$0xff] %v3810
      %3875 = vst [vmem:[#allocation2 + $0x1a0] sm:$0xff] %v3811
      %3876 = vst [vmem:[#allocation2 + $0x1a8] sm:$0xff] %v3812
      %3877 = vst [vmem:[#allocation2 + $0x1b0] sm:$0xff] %v3813
      %3878 = vst [vmem:[#allocation2 + $0x1b8] sm:$0xff] %v3814
      %3879 = vst [vmem:[#allocation2 + $0x1c0] sm:$0xff] %v3815
      %3880 = vst [vmem:[#allocation2 + $0x1c8] sm:$0xff] %v3816
      %3881 = vst [vmem:[#allocation2 + $0x1d0] sm:$0xff] %v3817
      %3882 = vst [vmem:[#allocation2 + $0x1d8] sm:$0xff] %v3818
      %3883 = vst [vmem:[#allocation2 + $0x1e0] sm:$0xff] %v3819
      %3884 = vst [vmem:[#allocation2 + $0x1e8] sm:$0xff] %v3820
      %3885 = vst [vmem:[#allocation2 + $0x1f0] sm:$0xff] %v3821
      %3886 = vst [vmem:[#allocation2 + $0x1f8] sm:$0xff] %v3822
      // Predicated region
      $region37: #{gnn_model_forward.2} parent=31 // pred_check
        %p3887 = pneg %p227
      $region38: #{gnn_model_forward.2} parent=31 // pred_check_branch
        %3889 = sbr.rel (%p3887) target = $region40
      $region39: #{gnn_model_forward.2} parent=31 // pred_region
        %v3890 = vld [vmem:[#allocation2] sm:$0xff]
        %v3891 = vld [vmem:[#allocation2 + $0x8] sm:$0xff]
        %v3892 = vld [vmem:[#allocation2 + $0x10] sm:$0xff]
        %v3893 = vld [vmem:[#allocation2 + $0x18] sm:$0xff]
        %v3894 = vld [vmem:[#allocation2 + $0x20] sm:$0xff]
        %v3895 = vld [vmem:[#allocation2 + $0x28] sm:$0xff]
        %v3896 = vld [vmem:[#allocation2 + $0x30] sm:$0xff]
        %v3897 = vld [vmem:[#allocation2 + $0x38] sm:$0xff]
        %v3898 = vld [vmem:[#allocation2 + $0x40] sm:$0xff]
        %v3899 = vld [vmem:[#allocation2 + $0x48] sm:$0xff]
        %v3900 = vld [vmem:[#allocation2 + $0x50] sm:$0xff]
        %v3901 = vld [vmem:[#allocation2 + $0x58] sm:$0xff]
        %v3902 = vld [vmem:[#allocation2 + $0x60] sm:$0xff]
        %v3903 = vld [vmem:[#allocation2 + $0x68] sm:$0xff]
        %v3904 = vld [vmem:[#allocation2 + $0x70] sm:$0xff]
        %v3905 = vld [vmem:[#allocation2 + $0x78] sm:$0xff]
        %v3906 = vld [vmem:[#allocation2 + $0x80] sm:$0xff]
        %v3907 = vld [vmem:[#allocation2 + $0x88] sm:$0xff]
        %v3908 = vld [vmem:[#allocation2 + $0x90] sm:$0xff]
        %v3909 = vld [vmem:[#allocation2 + $0x98] sm:$0xff]
        %v3910 = vld [vmem:[#allocation2 + $0xa0] sm:$0xff]
        %v3911 = vld [vmem:[#allocation2 + $0xa8] sm:$0xff]
        %v3912 = vld [vmem:[#allocation2 + $0xb0] sm:$0xff]
        %v3913 = vld [vmem:[#allocation2 + $0xb8] sm:$0xff]
        %v3914 = vld [vmem:[#allocation2 + $0xc0] sm:$0xff]
        %v3915 = vld [vmem:[#allocation2 + $0xc8] sm:$0xff]
        %v3916 = vld [vmem:[#allocation2 + $0xd0] sm:$0xff]
        %v3917 = vld [vmem:[#allocation2 + $0xd8] sm:$0xff]
        %v3918 = vld [vmem:[#allocation2 + $0xe0] sm:$0xff]
        %v3919 = vld [vmem:[#allocation2 + $0xe8] sm:$0xff]
        %v3920 = vld [vmem:[#allocation2 + $0xf0] sm:$0xff]
        %v3921 = vld [vmem:[#allocation2 + $0xf8] sm:$0xff]
        %v3922 = vld [vmem:[#allocation2 + $0x100] sm:$0xff]
        %v3923 = vld [vmem:[#allocation2 + $0x108] sm:$0xff]
        %v3924 = vld [vmem:[#allocation2 + $0x110] sm:$0xff]
        %v3925 = vld [vmem:[#allocation2 + $0x118] sm:$0xff]
        %v3926 = vld [vmem:[#allocation2 + $0x120] sm:$0xff]
        %v3927 = vld [vmem:[#allocation2 + $0x128] sm:$0xff]
        %v3928 = vld [vmem:[#allocation2 + $0x130] sm:$0xff]
        %v3929 = vld [vmem:[#allocation2 + $0x138] sm:$0xff]
        %v3930 = vld [vmem:[#allocation2 + $0x140] sm:$0xff]
        %v3931 = vld [vmem:[#allocation2 + $0x148] sm:$0xff]
        %v3932 = vld [vmem:[#allocation2 + $0x150] sm:$0xff]
        %v3933 = vld [vmem:[#allocation2 + $0x158] sm:$0xff]
        %v3934 = vld [vmem:[#allocation2 + $0x160] sm:$0xff]
        %v3935 = vld [vmem:[#allocation2 + $0x168] sm:$0xff]
        %v3936 = vld [vmem:[#allocation2 + $0x170] sm:$0xff]
        %v3937 = vld [vmem:[#allocation2 + $0x178] sm:$0xff]
        %v3938 = vld [vmem:[#allocation2 + $0x180] sm:$0xff]
        %v3939 = vld [vmem:[#allocation2 + $0x188] sm:$0xff]
        %v3940 = vld [vmem:[#allocation2 + $0x190] sm:$0xff]
        %v3941 = vld [vmem:[#allocation2 + $0x198] sm:$0xff]
        %v3942 = vld [vmem:[#allocation2 + $0x1a0] sm:$0xff]
        %v3943 = vld [vmem:[#allocation2 + $0x1a8] sm:$0xff]
        %v3944 = vld [vmem:[#allocation2 + $0x1b0] sm:$0xff]
        %v3945 = vld [vmem:[#allocation2 + $0x1b8] sm:$0xff]
        %v3946 = vld [vmem:[#allocation2 + $0x1c0] sm:$0xff]
        %v3947 = vld [vmem:[#allocation2 + $0x1c8] sm:$0xff]
        %v3948 = vld [vmem:[#allocation2 + $0x1d0] sm:$0xff]
        %v3949 = vld [vmem:[#allocation2 + $0x1d8] sm:$0xff]
        %v3950 = vld [vmem:[#allocation2 + $0x1e0] sm:$0xff]
        %v3951 = vld [vmem:[#allocation2 + $0x1e8] sm:$0xff]
        %v3952 = vld [vmem:[#allocation2 + $0x1f0] sm:$0xff]
        %v3953 = vld [vmem:[#allocation2 + $0x1f8] sm:$0xff]
        %v3954 = vld [vmem:[%s2] sm:$0x1]
        %v3956 = vperm.slane %v3954, 0
        %v3958 = vadd.f32 %v3890, %v3956
        %v3959 = vadd.f32 %v3891, %v3956
        %v3960 = vadd.f32 %v3892, %v3956
        %v3961 = vadd.f32 %v3893, %v3956
        %v3962 = vadd.f32 %v3894, %v3956
        %v3963 = vadd.f32 %v3895, %v3956
        %v3964 = vadd.f32 %v3896, %v3956
        %v3965 = vadd.f32 %v3897, %v3956
        %v3966 = vadd.f32 %v3898, %v3956
        %v3967 = vadd.f32 %v3899, %v3956
        %v3968 = vadd.f32 %v3900, %v3956
        %v3969 = vadd.f32 %v3901, %v3956
        %v3970 = vadd.f32 %v3902, %v3956
        %v3971 = vadd.f32 %v3903, %v3956
        %v3972 = vadd.f32 %v3904, %v3956
        %v3973 = vadd.f32 %v3905, %v3956
        %v3974 = vadd.f32 %v3906, %v3956
        %v3975 = vadd.f32 %v3907, %v3956
        %v3976 = vadd.f32 %v3908, %v3956
        %v3977 = vadd.f32 %v3909, %v3956
        %v3978 = vadd.f32 %v3910, %v3956
        %v3979 = vadd.f32 %v3911, %v3956
        %v3980 = vadd.f32 %v3912, %v3956
        %v3981 = vadd.f32 %v3913, %v3956
        %v3982 = vadd.f32 %v3914, %v3956
        %v3983 = vadd.f32 %v3915, %v3956
        %v3984 = vadd.f32 %v3916, %v3956
        %v3985 = vadd.f32 %v3917, %v3956
        %v3986 = vadd.f32 %v3918, %v3956
        %v3987 = vadd.f32 %v3919, %v3956
        %v3988 = vadd.f32 %v3920, %v3956
        %v3989 = vadd.f32 %v3921, %v3956
        %v3990 = vadd.f32 %v3922, %v3956
        %v3991 = vadd.f32 %v3923, %v3956
        %v3992 = vadd.f32 %v3924, %v3956
        %v3993 = vadd.f32 %v3925, %v3956
        %v3994 = vadd.f32 %v3926, %v3956
        %v3995 = vadd.f32 %v3927, %v3956
        %v3996 = vadd.f32 %v3928, %v3956
        %v3997 = vadd.f32 %v3929, %v3956
        %v3998 = vadd.f32 %v3930, %v3956
        %v3999 = vadd.f32 %v3931, %v3956
        %v4000 = vadd.f32 %v3932, %v3956
        %v4001 = vadd.f32 %v3933, %v3956
        %v4002 = vadd.f32 %v3934, %v3956
        %v4003 = vadd.f32 %v3935, %v3956
        %v4004 = vadd.f32 %v3936, %v3956
        %v4005 = vadd.f32 %v3937, %v3956
        %v4006 = vadd.f32 %v3938, %v3956
        %v4007 = vadd.f32 %v3939, %v3956
        %v4008 = vadd.f32 %v3940, %v3956
        %v4009 = vadd.f32 %v3941, %v3956
        %v4010 = vadd.f32 %v3942, %v3956
        %v4011 = vadd.f32 %v3943, %v3956
        %v4012 = vadd.f32 %v3944, %v3956
        %v4013 = vadd.f32 %v3945, %v3956
        %v4014 = vadd.f32 %v3946, %v3956
        %v4015 = vadd.f32 %v3947, %v3956
        %v4016 = vadd.f32 %v3948, %v3956
        %v4017 = vadd.f32 %v3949, %v3956
        %v4018 = vadd.f32 %v3950, %v3956
        %v4019 = vadd.f32 %v3951, %v3956
        %v4020 = vadd.f32 %v3952, %v3956
        %v4021 = vadd.f32 %v3953, %v3956
        %v4022 = vmax.f32 %v3958, 0.0
        %v4023 = vmax.f32 %v3959, 0.0
        %v4024 = vmax.f32 %v3960, 0.0
        %v4025 = vmax.f32 %v3961, 0.0
        %v4026 = vmax.f32 %v3962, 0.0
        %v4027 = vmax.f32 %v3963, 0.0
        %v4028 = vmax.f32 %v3964, 0.0
        %v4029 = vmax.f32 %v3965, 0.0
        %v4030 = vmax.f32 %v3966, 0.0
        %v4031 = vmax.f32 %v3967, 0.0
        %v4032 = vmax.f32 %v3968, 0.0
        %v4033 = vmax.f32 %v3969, 0.0
        %v4034 = vmax.f32 %v3970, 0.0
        %v4035 = vmax.f32 %v3971, 0.0
        %v4036 = vmax.f32 %v3972, 0.0
        %v4037 = vmax.f32 %v3973, 0.0
        %v4038 = vmax.f32 %v3974, 0.0
        %v4039 = vmax.f32 %v3975, 0.0
        %v4040 = vmax.f32 %v3976, 0.0
        %v4041 = vmax.f32 %v3977, 0.0
        %v4042 = vmax.f32 %v3978, 0.0
        %v4043 = vmax.f32 %v3979, 0.0
        %v4044 = vmax.f32 %v3980, 0.0
        %v4045 = vmax.f32 %v3981, 0.0
        %v4046 = vmax.f32 %v3982, 0.0
        %v4047 = vmax.f32 %v3983, 0.0
        %v4048 = vmax.f32 %v3984, 0.0
        %v4049 = vmax.f32 %v3985, 0.0
        %v4050 = vmax.f32 %v3986, 0.0
        %v4051 = vmax.f32 %v3987, 0.0
        %v4052 = vmax.f32 %v3988, 0.0
        %v4053 = vmax.f32 %v3989, 0.0
        %v4054 = vmax.f32 %v3990, 0.0
        %v4055 = vmax.f32 %v3991, 0.0
        %v4056 = vmax.f32 %v3992, 0.0
        %v4057 = vmax.f32 %v3993, 0.0
        %v4058 = vmax.f32 %v3994, 0.0
        %v4059 = vmax.f32 %v3995, 0.0
        %v4060 = vmax.f32 %v3996, 0.0
        %v4061 = vmax.f32 %v3997, 0.0
        %v4062 = vmax.f32 %v3998, 0.0
        %v4063 = vmax.f32 %v3999, 0.0
        %v4064 = vmax.f32 %v4000, 0.0
        %v4065 = vmax.f32 %v4001, 0.0
        %v4066 = vmax.f32 %v4002, 0.0
        %v4067 = vmax.f32 %v4003, 0.0
        %v4068 = vmax.f32 %v4004, 0.0
        %v4069 = vmax.f32 %v4005, 0.0
        %v4070 = vmax.f32 %v4006, 0.0
        %v4071 = vmax.f32 %v4007, 0.0
        %v4072 = vmax.f32 %v4008, 0.0
        %v4073 = vmax.f32 %v4009, 0.0
        %v4074 = vmax.f32 %v4010, 0.0
        %v4075 = vmax.f32 %v4011, 0.0
        %v4076 = vmax.f32 %v4012, 0.0
        %v4077 = vmax.f32 %v4013, 0.0
        %v4078 = vmax.f32 %v4014, 0.0
        %v4079 = vmax.f32 %v4015, 0.0
        %v4080 = vmax.f32 %v4016, 0.0
        %v4081 = vmax.f32 %v4017, 0.0
        %v4082 = vmax.f32 %v4018, 0.0
        %v4083 = vmax.f32 %v4019, 0.0
        %v4084 = vmax.f32 %v4020, 0.0
        %v4085 = vmax.f32 %v4021, 0.0
        %v4086 = vpack.c.bf16 %v4022, %v4022
        %v4087 = vpack.c.bf16 %v4023, %v4023
        %v4088 = vpack.c.bf16 %v4024, %v4024
        %v4089 = vpack.c.bf16 %v4025, %v4025
        %v4090 = vpack.c.bf16 %v4026, %v4026
        %v4091 = vpack.c.bf16 %v4027, %v4027
        %v4092 = vpack.c.bf16 %v4028, %v4028
        %v4093 = vpack.c.bf16 %v4029, %v4029
        %v4094 = vpack.c.bf16 %v4030, %v4030
        %v4095 = vpack.c.bf16 %v4031, %v4031
        %v4096 = vpack.c.bf16 %v4032, %v4032
        %v4097 = vpack.c.bf16 %v4033, %v4033
        %v4098 = vpack.c.bf16 %v4034, %v4034
        %v4099 = vpack.c.bf16 %v4035, %v4035
        %v4100 = vpack.c.bf16 %v4036, %v4036
        %v4101 = vpack.c.bf16 %v4037, %v4037
        %v4102 = vpack.c.bf16 %v4038, %v4038
        %v4103 = vpack.c.bf16 %v4039, %v4039
        %v4104 = vpack.c.bf16 %v4040, %v4040
        %v4105 = vpack.c.bf16 %v4041, %v4041
        %v4106 = vpack.c.bf16 %v4042, %v4042
        %v4107 = vpack.c.bf16 %v4043, %v4043
        %v4108 = vpack.c.bf16 %v4044, %v4044
        %v4109 = vpack.c.bf16 %v4045, %v4045
        %v4110 = vpack.c.bf16 %v4046, %v4046
        %v4111 = vpack.c.bf16 %v4047, %v4047
        %v4112 = vpack.c.bf16 %v4048, %v4048
        %v4113 = vpack.c.bf16 %v4049, %v4049
        %v4114 = vpack.c.bf16 %v4050, %v4050
        %v4115 = vpack.c.bf16 %v4051, %v4051
        %v4116 = vpack.c.bf16 %v4052, %v4052
        %v4117 = vpack.c.bf16 %v4053, %v4053
        %v4118 = vpack.c.bf16 %v4054, %v4054
        %v4119 = vpack.c.bf16 %v4055, %v4055
        %v4120 = vpack.c.bf16 %v4056, %v4056
        %v4121 = vpack.c.bf16 %v4057, %v4057
        %v4122 = vpack.c.bf16 %v4058, %v4058
        %v4123 = vpack.c.bf16 %v4059, %v4059
        %v4124 = vpack.c.bf16 %v4060, %v4060
        %v4125 = vpack.c.bf16 %v4061, %v4061
        %v4126 = vpack.c.bf16 %v4062, %v4062
        %v4127 = vpack.c.bf16 %v4063, %v4063
        %v4128 = vpack.c.bf16 %v4064, %v4064
        %v4129 = vpack.c.bf16 %v4065, %v4065
        %v4130 = vpack.c.bf16 %v4066, %v4066
        %v4131 = vpack.c.bf16 %v4067, %v4067
        %v4132 = vpack.c.bf16 %v4068, %v4068
        %v4133 = vpack.c.bf16 %v4069, %v4069
        %v4134 = vpack.c.bf16 %v4070, %v4070
        %v4135 = vpack.c.bf16 %v4071, %v4071
        %v4136 = vpack.c.bf16 %v4072, %v4072
        %v4137 = vpack.c.bf16 %v4073, %v4073
        %v4138 = vpack.c.bf16 %v4074, %v4074
        %v4139 = vpack.c.bf16 %v4075, %v4075
        %v4140 = vpack.c.bf16 %v4076, %v4076
        %v4141 = vpack.c.bf16 %v4077, %v4077
        %v4142 = vpack.c.bf16 %v4078, %v4078
        %v4143 = vpack.c.bf16 %v4079, %v4079
        %v4144 = vpack.c.bf16 %v4080, %v4080
        %v4145 = vpack.c.bf16 %v4081, %v4081
        %v4146 = vpack.c.bf16 %v4082, %v4082
        %v4147 = vpack.c.bf16 %v4083, %v4083
        %v4148 = vpack.c.bf16 %v4084, %v4084
        %v4149 = vpack.c.bf16 %v4085, %v4085
        %4150 = vst [vmem:[%s225] sm:$0xf] %v4086
        %4151 = vst [vmem:[%s225 + $0x4] sm:$0xf] %v4087
        %4152 = vst [vmem:[%s225 + $0x8] sm:$0xf] %v4088
        %4153 = vst [vmem:[%s225 + $0xc] sm:$0xf] %v4089
        %4154 = vst [vmem:[%s225 + $0x10] sm:$0xf] %v4090
        %4155 = vst [vmem:[%s225 + $0x14] sm:$0xf] %v4091
        %4156 = vst [vmem:[%s225 + $0x18] sm:$0xf] %v4092
        %4157 = vst [vmem:[%s225 + $0x1c] sm:$0xf] %v4093
        %4158 = vst [vmem:[%s225 + $0x20] sm:$0xf] %v4094
        %4159 = vst [vmem:[%s225 + $0x24] sm:$0xf] %v4095
        %4160 = vst [vmem:[%s225 + $0x28] sm:$0xf] %v4096
        %4161 = vst [vmem:[%s225 + $0x2c] sm:$0xf] %v4097
        %4162 = vst [vmem:[%s225 + $0x30] sm:$0xf] %v4098
        %4163 = vst [vmem:[%s225 + $0x34] sm:$0xf] %v4099
        %4164 = vst [vmem:[%s225 + $0x38] sm:$0xf] %v4100
        %4165 = vst [vmem:[%s225 + $0x3c] sm:$0xf] %v4101
        %4166 = vst [vmem:[%s225 + $0x40] sm:$0xf] %v4102
        %4167 = vst [vmem:[%s225 + $0x44] sm:$0xf] %v4103
        %4168 = vst [vmem:[%s225 + $0x48] sm:$0xf] %v4104
        %4169 = vst [vmem:[%s225 + $0x4c] sm:$0xf] %v4105
        %4170 = vst [vmem:[%s225 + $0x50] sm:$0xf] %v4106
        %4171 = vst [vmem:[%s225 + $0x54] sm:$0xf] %v4107
        %4172 = vst [vmem:[%s225 + $0x58] sm:$0xf] %v4108
        %4173 = vst [vmem:[%s225 + $0x5c] sm:$0xf] %v4109
        %4174 = vst [vmem:[%s225 + $0x60] sm:$0xf] %v4110
        %4175 = vst [vmem:[%s225 + $0x64] sm:$0xf] %v4111
        %4176 = vst [vmem:[%s225 + $0x68] sm:$0xf] %v4112
        %4177 = vst [vmem:[%s225 + $0x6c] sm:$0xf] %v4113
        %4178 = vst [vmem:[%s225 + $0x70] sm:$0xf] %v4114
        %4179 = vst [vmem:[%s225 + $0x74] sm:$0xf] %v4115
        %4180 = vst [vmem:[%s225 + $0x78] sm:$0xf] %v4116
        %4181 = vst [vmem:[%s225 + $0x7c] sm:$0xf] %v4117
        %4182 = vst [vmem:[%s225 + $0x80] sm:$0xf] %v4118
        %4183 = vst [vmem:[%s225 + $0x84] sm:$0xf] %v4119
        %4184 = vst [vmem:[%s225 + $0x88] sm:$0xf] %v4120
        %4185 = vst [vmem:[%s225 + $0x8c] sm:$0xf] %v4121
        %4186 = vst [vmem:[%s225 + $0x90] sm:$0xf] %v4122
        %4187 = vst [vmem:[%s225 + $0x94] sm:$0xf] %v4123
        %4188 = vst [vmem:[%s225 + $0x98] sm:$0xf] %v4124
        %4189 = vst [vmem:[%s225 + $0x9c] sm:$0xf] %v4125
        %4190 = vst [vmem:[%s225 + $0xa0] sm:$0xf] %v4126
        %4191 = vst [vmem:[%s225 + $0xa4] sm:$0xf] %v4127
        %4192 = vst [vmem:[%s225 + $0xa8] sm:$0xf] %v4128
        %4193 = vst [vmem:[%s225 + $0xac] sm:$0xf] %v4129
        %4194 = vst [vmem:[%s225 + $0xb0] sm:$0xf] %v4130
        %4195 = vst [vmem:[%s225 + $0xb4] sm:$0xf] %v4131
        %4196 = vst [vmem:[%s225 + $0xb8] sm:$0xf] %v4132
        %4197 = vst [vmem:[%s225 + $0xbc] sm:$0xf] %v4133
        %4198 = vst [vmem:[%s225 + $0xc0] sm:$0xf] %v4134
        %4199 = vst [vmem:[%s225 + $0xc4] sm:$0xf] %v4135
        %4200 = vst [vmem:[%s225 + $0xc8] sm:$0xf] %v4136
        %4201 = vst [vmem:[%s225 + $0xcc] sm:$0xf] %v4137
        %4202 = vst [vmem:[%s225 + $0xd0] sm:$0xf] %v4138
        %4203 = vst [vmem:[%s225 + $0xd4] sm:$0xf] %v4139
        %4204 = vst [vmem:[%s225 + $0xd8] sm:$0xf] %v4140
        %4205 = vst [vmem:[%s225 + $0xdc] sm:$0xf] %v4141
        %4206 = vst [vmem:[%s225 + $0xe0] sm:$0xf] %v4142
        %4207 = vst [vmem:[%s225 + $0xe4] sm:$0xf] %v4143
        %4208 = vst [vmem:[%s225 + $0xe8] sm:$0xf] %v4144
        %4209 = vst [vmem:[%s225 + $0xec] sm:$0xf] %v4145
        %4210 = vst [vmem:[%s225 + $0xf0] sm:$0xf] %v4146
        %4211 = vst [vmem:[%s225 + $0xf4] sm:$0xf] %v4147
        %4212 = vst [vmem:[%s225 + $0xf8] sm:$0xf] %v4148
        %4213 = vst [vmem:[%s225 + $0xfc] sm:$0xf] %v4149
      $region40: #{gnn_model_forward.2} parent=31 // pred_fallthru
        _
      %s4214 = smul.u32 64, %s18
      %p4215 = scmp.lt.s32.totalorder %s4214, 127
      %s4216 = scalar_select %p4215, %s4214, 127
      %s4217 = smul.addr %s4216, 4
      %s4218 = scalar_lea.vmem %s3, %s4217
      // Predicated region
      $region41: #{gnn_model_forward.2} parent=31 // pred_check
        %p4219 = pneg %p119
      $region42: #{gnn_model_forward.2} parent=31 // pred_check_branch
        %4221 = sbr.rel (%p4219) target = $region44
      $region43: #{gnn_model_forward.2} parent=31 // pred_region
        %s4222 = smul.u32 64, %s18
      $region44: #{gnn_model_forward.2} parent=31 // pred_fallthru
        _
    $region32: #{gnn_model_forward.2} parent=5 // pred_fallthru
      _
    %p4223 = scmp.le.s32.totalorder 2, %s9
    // Predicated region
    $region45: #{gnn_model_forward.2} parent=5 // pred_check
      %p4224 = pneg %p4223
    $region46: #{gnn_model_forward.2} parent=5 // pred_check_branch
      %4226 = sbr.rel (%p4224) target = $region48
    $region47: #{gnn_model_forward.2} parent=5 // pred_region
      %s4227 = ssub.s32 %s9, 2
      // Predicated region
      $region49: #{gnn_model_forward.2} parent=47 // pred_check
        %p4228 = pneg %p125
      $region50: #{gnn_model_forward.2} parent=47 // pred_check_branch
        %4230 = sbr.rel (%p4228) target = $region52
      $region51: #{gnn_model_forward.2} parent=47 // pred_region
        %s4231 = smul.u32 64, %s20
        %p4232 = scmp.lt.s32.totalorder %s4231, 127
        %s4233 = scalar_select %p4232, %s4231, 127
        %s4234 = smul.addr %s4233, 4
        %s4235 = scalar_lea.vmem %s3, %s4234
      $region52: #{gnn_model_forward.2} parent=47 // pred_fallthru
        _
    $region48: #{gnn_model_forward.2} parent=5 // pred_fallthru
      _
  $region6: #{gnn_model_forward.2} parent=0 // loop_footer
    %s13 = sadd.s32 1, %s9
  $region7: #{gnn_model_forward.2} parent=0 // loop_footer_branch
    %8 = sbr.rel target = $region3
  $region8: #{gnn_model_forward.2} parent=0 // loop_exit
    _

// kernel: gnn_model_forward.3
$region0: #{gnn_model_forward.3}
  #allocation0 [shape = 'u32[]', space=smem, size = 0x4, offset = 0x4, fixed_abs, tag = 'smem constant byte address 0x4 - core index']
  #allocation1 [shape = 'u32[72,128]{1,0:T(1,128)}', space=vmem, size = 0x9000, scoped, tag = 'internal scratch']
  #allocation2 [shape = 'f32[512,1]{1,0:T(8,128)}', space=vmem, size = 0x40000, scoped, tag = 'scratch operand']
  #allocation3 [shape = 'f32[1]{0:T(128)S(6)}', space=smem, size = 0x200, scoped, tag = 'scoped memory for gnn_model_forward.3']
  %s0 = inlined_call_operand.vmem [shape: bf16[1024,1024], index: 0, kind: input, shape index: {}]
  %s1 = inlined_call_operand.vmem [shape: bf16[1024,1], index: 1, kind: input, shape index: {}]
  %s2 = inlined_call_operand.<no memory space> [shape: f32[1], index: 2, kind: input, shape index: {}]
  %s3 = inlined_call_operand.vmem [shape: f32[1024,1], index: 3, kind: output, shape index: {}]
  %s4 = sld [smem:[#allocation0]]
  $region53: #{gnn_model_forward.3} parent=0
    _
  %s6 = ssub.s32 1, %s4
  %s7 = scalar_select 0, %s6, %s4
  %8 = sst [smem:[#allocation3]] %s2
  loop: start=0, step=1, limit=4
  $region2: #{gnn_model_forward.3} parent=0 // loop_pre_header
    _
  $region3: #{gnn_model_forward.3} parent=0 // loop_header
    %s10 = sphi 0, %s14
    %p11 = scmp.ge.s32.totalorder %s10, 4
    %s17 = sphi 0, %s29
    %s18 = sphi 0, %s25
    %s19 = sphi 0, %s17
    %s20 = sphi 0, %s18
    %s21 = sphi 0, %s19
    %s22 = sphi 0, %s20
    %s34 = sphi 0, %s36
    %s37 = sphi 0, %s34
    %s38 = sphi 0, %s37
    %s54 = sphi 0, %s38
    %s60 = sphi 0, %s62
    %s63 = sphi 0, %s60
    %s64 = sphi 0, %s63
    %s80 = sphi 0, %s64
    %s84 = sphi 0, %s84
    %s86 = sphi 0, %s84
    %s87 = sphi 0, %s86
    %s101 = sphi 0, %s87
    %s107 = sphi 0, %s109
    %s110 = sphi 0, %s107
    %s111 = sphi 0, %s110
    %s127 = sphi 0, %s111
  $region4: #{gnn_model_forward.3} parent=0 // loop_header_branch
    %13 = sbr.rel (%p11) target = $region8
  $region5: #{gnn_model_forward.3} parent=0 // loop_body
    %s15 = ssub.s32 %s10, 1
    %s16 = ssub.s32 %s10, 2
    %s23 = sadd.s32 1, %s18
    %p24 = scmp.ge.s32.totalorder %s23, 1
    %s25 = scalar_select %p24, 0, %s23
    %s26 = sadd.s32 1, %s17
    %s27 = scalar_select %p24, %s26, %s17
    %p28 = scmp.ge.s32.totalorder %s27, 2
    %s29 = scalar_select %p28, 0, %s27
    %s30 = ssub.s32 %s17, %s29
    %s31 = ssub.s32 %s18, %s25
    %s32 = sor.u32 %s30, %s31
    %p33 = scmp.eq.s32.totalorder %s32, 0
    %s35 = sadd.s32 %s34, 1
    %s36 = scalar_select %p33, %s34, %s35
    %p39 = pneg %p33
    %p40 = scmp.eq.s32.totalorder %s10, 1
    %p41 = por %p39, %p40
    %p42 = scmp.ne.s32.totalorder %s34, %s37
    %p43 = scmp.eq.s32.totalorder %s10, 0
    %p44 = por %p42, %p43
    %p45 = scmp.ne.s32.totalorder %s34, %s37
    %p46 = scmp.eq.s32.totalorder %s15, 1
    %p47 = por %p45, %p46
    %p48 = scmp.ne.s32.totalorder %s37, %s38
    %p49 = scmp.eq.s32.totalorder %s15, 0
    %p50 = por %p48, %p49
    %p51 = scmp.ne.s32.totalorder %s37, %s38
    %p52 = scmp.eq.s32.totalorder %s16, 1
    %p53 = por %p51, %p52
    %p55 = scmp.ne.s32.totalorder %s38, %s54
    %p56 = scmp.eq.s32.totalorder %s16, 0
    %p57 = por %p55, %p56
    %s58 = ssub.s32 %s18, %s25
    %p59 = scmp.eq.s32.totalorder %s58, 0
    %s61 = sadd.s32 %s60, 1
    %s62 = scalar_select %p59, %s60, %s61
    %p65 = pneg %p59
    %p66 = scmp.eq.s32.totalorder %s10, 1
    %p67 = por %p65, %p66
    %p68 = scmp.ne.s32.totalorder %s60, %s63
    %p69 = scmp.eq.s32.totalorder %s10, 0
    %p70 = por %p68, %p69
    %p71 = scmp.ne.s32.totalorder %s60, %s63
    %p72 = scmp.eq.s32.totalorder %s15, 1
    %p73 = por %p71, %p72
    %p74 = scmp.ne.s32.totalorder %s63, %s64
    %p75 = scmp.eq.s32.totalorder %s15, 0
    %p76 = por %p74, %p75
    %p77 = scmp.ne.s32.totalorder %s63, %s64
    %p78 = scmp.eq.s32.totalorder %s16, 1
    %p79 = por %p77, %p78
    %p81 = scmp.ne.s32.totalorder %s64, %s80
    %p82 = scmp.eq.s32.totalorder %s16, 0
    %p83 = por %p81, %p82
    %s85 = sadd.s32 %s84, 1
    %p88 = scmp.eq.s32.totalorder %s10, 1
    %p89 = scmp.ne.s32.totalorder %s84, %s86
    %p90 = scmp.eq.s32.totalorder %s10, 0
    %p91 = por %p89, %p90
    %p92 = scmp.ne.s32.totalorder %s84, %s86
    %p93 = scmp.eq.s32.totalorder %s15, 1
    %p94 = por %p92, %p93
    %p95 = scmp.ne.s32.totalorder %s86, %s87
    %p96 = scmp.eq.s32.totalorder %s15, 0
    %p97 = por %p95, %p96
    %p98 = scmp.ne.s32.totalorder %s86, %s87
    %p99 = scmp.eq.s32.totalorder %s16, 1
    %p100 = por %p98, %p99
    %p102 = scmp.ne.s32.totalorder %s87, %s101
    %p103 = scmp.eq.s32.totalorder %s16, 0
    %p104 = por %p102, %p103
    %s105 = ssub.s32 %s17, %s29
    %p106 = scmp.eq.s32.totalorder %s105, 0
    %s108 = sadd.s32 %s107, 1
    %s109 = scalar_select %p106, %s107, %s108
    %p112 = pneg %p106
    %p113 = scmp.eq.s32.totalorder %s10, 1
    %p114 = por %p112, %p113
    %p115 = scmp.ne.s32.totalorder %s107, %s110
    %p116 = scmp.eq.s32.totalorder %s10, 0
    %p117 = por %p115, %p116
    %p118 = scmp.ne.s32.totalorder %s107, %s110
    %p119 = scmp.eq.s32.totalorder %s15, 1
    %p120 = por %p118, %p119
    %p121 = scmp.ne.s32.totalorder %s110, %s111
    %p122 = scmp.eq.s32.totalorder %s15, 0
    %p123 = por %p121, %p122
    %p124 = scmp.ne.s32.totalorder %s110, %s111
    %p125 = scmp.eq.s32.totalorder %s16, 1
    %p126 = por %p124, %p125
    %p128 = scmp.ne.s32.totalorder %s111, %s127
    %p129 = scmp.eq.s32.totalorder %s16, 0
    %p130 = por %p128, %p129
    %p131 = scmp.le.s32.totalorder 1, %s10
    %p132 = scmp.lt.s32.totalorder %s10, 3
    %p133 = pnand %p131, %p132
    %p134 = pneg %p133
    // Predicated region
    $region9: #{gnn_model_forward.3} parent=5 // pred_check
      _
    $region10: #{gnn_model_forward.3} parent=5 // pred_check_branch
      %136 = sbr.rel (%p133) target = $region12
    $region11: #{gnn_model_forward.3} parent=5 // pred_region
      %s137 = ssub.s32 %s10, 1
      // Predicated region
      $region13: #{gnn_model_forward.3} parent=11 // pred_check
        %p138 = pneg %p76
      $region14: #{gnn_model_forward.3} parent=11 // pred_check_branch
        %140 = sbr.rel (%p138) target = $region16
      $region15: #{gnn_model_forward.3} parent=11 // pred_region
        %s141 = smul.u32 128, %s20
        %p142 = scmp.lt.s32.totalorder %s141, 127
        %s143 = scalar_select %p142, %s141, 127
        %s144 = smul.addr %s143, 4
        %s145 = scalar_lea.vmem %s1, %s144
        %s146 = smul.u32 128, %s20
      $region16: #{gnn_model_forward.3} parent=11 // pred_fallthru
        _
      // Predicated region
      $region17: #{gnn_model_forward.3} parent=11 // pred_check
        %p147 = pneg %p97
      $region18: #{gnn_model_forward.3} parent=11 // pred_check_branch
        %149 = sbr.rel (%p147) target = $region20
      $region19: #{gnn_model_forward.3} parent=11 // pred_region
        _
      $region20: #{gnn_model_forward.3} parent=11 // pred_fallthru
        _
    $region12: #{gnn_model_forward.3} parent=5 // pred_fallthru
      _
    %p150 = scmp.lt.s32.totalorder %s10, 2
    // Predicated region
    $region21: #{gnn_model_forward.3} parent=5 // pred_check
      %p151 = pneg %p150
    $region22: #{gnn_model_forward.3} parent=5 // pred_check_branch
      %153 = sbr.rel (%p151) target = $region24
    $region23: #{gnn_model_forward.3} parent=5 // pred_region
      // Predicated region
      $region25: #{gnn_model_forward.3} parent=23 // pred_check
        %p154 = pneg %p44
      $region26: #{gnn_model_forward.3} parent=23 // pred_check_branch
        %156 = sbr.rel (%p154) target = $region28
      $region27: #{gnn_model_forward.3} parent=23 // pred_region
        %s157 = smul.u32 64, %s17
        %s158 = smul.u32 8, %s18
        %p159 = scmp.lt.s32.totalorder %s157, 127
        %s160 = scalar_select %p159, %s157, 127
        %p161 = scmp.lt.s32.totalorder %s158, 7
        %s162 = scalar_select %p161, %s158, 7
        %s163 = smul.addr %s160, 8
        %s164 = sadd.s32 %s162, %s163
        %s165 = smul.addr %s164, 4
        %s166 = scalar_lea.vmem %s0, %s165
        %s167 = smul.u32 64, %s17
        %s168 = smul.u32 8, %s18
      $region28: #{gnn_model_forward.3} parent=23 // pred_fallthru
        _
    $region24: #{gnn_model_forward.3} parent=5 // pred_fallthru
      _
    %p169 = scmp.le.s32.totalorder 1, %s10
    %p170 = scmp.lt.s32.totalorder %s10, 3
    %p171 = pnand %p169, %p170
    %p172 = pneg %p171
    // Predicated region
    $region29: #{gnn_model_forward.3} parent=5 // pred_check
      _
    $region30: #{gnn_model_forward.3} parent=5 // pred_check_branch
      %174 = sbr.rel (%p171) target = $region32
    $region31: #{gnn_model_forward.3} parent=5 // pred_region
      %s175 = ssub.s32 %s10, 1
      %s176 = smul.u32 64, %s19
      %s177 = smul.u32 8, %s20
      %p178 = scmp.lt.s32.totalorder %s176, 127
      %s179 = scalar_select %p178, %s176, 127
      %p180 = scmp.lt.s32.totalorder %s177, 7
      %s181 = scalar_select %p180, %s177, 7
      %s182 = smul.addr %s179, 8
      %s183 = sadd.s32 %s181, %s182
      %s184 = smul.addr %s183, 4
      %s185 = scalar_lea.vmem %s0, %s184
      %p186 = pneg %p50
      %p187 = pneg %p47
      %s188 = smul.u32 128, %s20
      %p189 = scmp.lt.s32.totalorder %s188, 127
      %s190 = scalar_select %p189, %s188, 127
      %s191 = smul.addr %s190, 4
      %s192 = scalar_lea.vmem %s1, %s191
      %p193 = pneg %p76
      %p194 = pneg %p73
      %p195 = pneg %p97
      %p196 = pneg %p94
      %p197 = pneg %p123
      %p198 = pneg %p120
      %s199 = smul.u32 64, %s19
      %p200 = scmp.lt.s32.totalorder %s199, 127
      %s201 = scalar_select %p200, %s199, 127
      %s202 = smul.addr %s201, 8
      %s203 = scalar_lea.vmem %s3, %s202
      %s204 = smul.u32 64, %s19
      %s205 = smul.u32 8, %s20
      %p206 = scmp.lt.s32.totalorder %s204, 127
      %s207 = scalar_select %p206, %s204, 127
      %p208 = scmp.lt.s32.totalorder %s205, 7
      %s209 = scalar_select %p208, %s205, 7
      %s210 = smul.addr %s207, 8
      %s211 = sadd.s32 %s209, %s210
      %s212 = smul.addr %s211, 4
      %s213 = scalar_lea.vmem %s0, %s212
      %s214 = smul.u32 64, %s19
      %s215 = smul.u32 8, %s20
      %s216 = smul.u32 128, %s20
      %p217 = scmp.lt.s32.totalorder %s216, 127
      %s218 = scalar_select %p217, %s216, 127
      %s219 = smul.addr %s218, 4
      %s220 = scalar_lea.vmem %s1, %s219
      %s221 = smul.u32 128, %s20
      %s222 = smul.u32 64, %s19
      %p223 = scmp.lt.s32.totalorder %s222, 127
      %s224 = scalar_select %p223, %s222, 127
      %s225 = smul.addr %s224, 8
      %s226 = scalar_lea.vmem %s3, %s225
      %s227 = smul.u32 64, %s19
      %p228 = scmp.eq.s32.totalorder %s20, 0
      // Predicated region
      $region33: #{gnn_model_forward.3} parent=31 // pred_check
        %p229 = pneg %p228
      $region34: #{gnn_model_forward.3} parent=31 // pred_check_branch
        %231 = sbr.rel (%p229) target = $region36
      $region35: #{gnn_model_forward.3} parent=31 // pred_region
        %vm232 = vcmask 7168
        %233 = vst.msk [vmem:[#allocation2] sm:$0xff] %vm232, 0.0
        %234 = vst.msk [vmem:[#allocation2 + $0x8] sm:$0xff] %vm232, 0.0
        %235 = vst.msk [vmem:[#allocation2 + $0x10] sm:$0xff] %vm232, 0.0
        %236 = vst.msk [vmem:[#allocation2 + $0x18] sm:$0xff] %vm232, 0.0
        %237 = vst.msk [vmem:[#allocation2 + $0x20] sm:$0xff] %vm232, 0.0
        %238 = vst.msk [vmem:[#allocation2 + $0x28] sm:$0xff] %vm232, 0.0
        %239 = vst.msk [vmem:[#allocation2 + $0x30] sm:$0xff] %vm232, 0.0
        %240 = vst.msk [vmem:[#allocation2 + $0x38] sm:$0xff] %vm232, 0.0
        %241 = vst.msk [vmem:[#allocation2 + $0x40] sm:$0xff] %vm232, 0.0
        %242 = vst.msk [vmem:[#allocation2 + $0x48] sm:$0xff] %vm232, 0.0
        %243 = vst.msk [vmem:[#allocation2 + $0x50] sm:$0xff] %vm232, 0.0
        %244 = vst.msk [vmem:[#allocation2 + $0x58] sm:$0xff] %vm232, 0.0
        %245 = vst.msk [vmem:[#allocation2 + $0x60] sm:$0xff] %vm232, 0.0
        %246 = vst.msk [vmem:[#allocation2 + $0x68] sm:$0xff] %vm232, 0.0
        %247 = vst.msk [vmem:[#allocation2 + $0x70] sm:$0xff] %vm232, 0.0
        %248 = vst.msk [vmem:[#allocation2 + $0x78] sm:$0xff] %vm232, 0.0
        %249 = vst.msk [vmem:[#allocation2 + $0x80] sm:$0xff] %vm232, 0.0
        %250 = vst.msk [vmem:[#allocation2 + $0x88] sm:$0xff] %vm232, 0.0
        %251 = vst.msk [vmem:[#allocation2 + $0x90] sm:$0xff] %vm232, 0.0
        %252 = vst.msk [vmem:[#allocation2 + $0x98] sm:$0xff] %vm232, 0.0
        %253 = vst.msk [vmem:[#allocation2 + $0xa0] sm:$0xff] %vm232, 0.0
        %254 = vst.msk [vmem:[#allocation2 + $0xa8] sm:$0xff] %vm232, 0.0
        %255 = vst.msk [vmem:[#allocation2 + $0xb0] sm:$0xff] %vm232, 0.0
        %256 = vst.msk [vmem:[#allocation2 + $0xb8] sm:$0xff] %vm232, 0.0
        %257 = vst.msk [vmem:[#allocation2 + $0xc0] sm:$0xff] %vm232, 0.0
        %258 = vst.msk [vmem:[#allocation2 + $0xc8] sm:$0xff] %vm232, 0.0
        %259 = vst.msk [vmem:[#allocation2 + $0xd0] sm:$0xff] %vm232, 0.0
        %260 = vst.msk [vmem:[#allocation2 + $0xd8] sm:$0xff] %vm232, 0.0
        %261 = vst.msk [vmem:[#allocation2 + $0xe0] sm:$0xff] %vm232, 0.0
        %262 = vst.msk [vmem:[#allocation2 + $0xe8] sm:$0xff] %vm232, 0.0
        %263 = vst.msk [vmem:[#allocation2 + $0xf0] sm:$0xff] %vm232, 0.0
        %264 = vst.msk [vmem:[#allocation2 + $0xf8] sm:$0xff] %vm232, 0.0
        %265 = vst.msk [vmem:[#allocation2 + $0x100] sm:$0xff] %vm232, 0.0
        %266 = vst.msk [vmem:[#allocation2 + $0x108] sm:$0xff] %vm232, 0.0
        %267 = vst.msk [vmem:[#allocation2 + $0x110] sm:$0xff] %vm232, 0.0
        %268 = vst.msk [vmem:[#allocation2 + $0x118] sm:$0xff] %vm232, 0.0
        %269 = vst.msk [vmem:[#allocation2 + $0x120] sm:$0xff] %vm232, 0.0
        %270 = vst.msk [vmem:[#allocation2 + $0x128] sm:$0xff] %vm232, 0.0
        %271 = vst.msk [vmem:[#allocation2 + $0x130] sm:$0xff] %vm232, 0.0
        %272 = vst.msk [vmem:[#allocation2 + $0x138] sm:$0xff] %vm232, 0.0
        %273 = vst.msk [vmem:[#allocation2 + $0x140] sm:$0xff] %vm232, 0.0
        %274 = vst.msk [vmem:[#allocation2 + $0x148] sm:$0xff] %vm232, 0.0
        %275 = vst.msk [vmem:[#allocation2 + $0x150] sm:$0xff] %vm232, 0.0
        %276 = vst.msk [vmem:[#allocation2 + $0x158] sm:$0xff] %vm232, 0.0
        %277 = vst.msk [vmem:[#allocation2 + $0x160] sm:$0xff] %vm232, 0.0
        %278 = vst.msk [vmem:[#allocation2 + $0x168] sm:$0xff] %vm232, 0.0
        %279 = vst.msk [vmem:[#allocation2 + $0x170] sm:$0xff] %vm232, 0.0
        %280 = vst.msk [vmem:[#allocation2 + $0x178] sm:$0xff] %vm232, 0.0
        %281 = vst.msk [vmem:[#allocation2 + $0x180] sm:$0xff] %vm232, 0.0
        %282 = vst.msk [vmem:[#allocation2 + $0x188] sm:$0xff] %vm232, 0.0
        %283 = vst.msk [vmem:[#allocation2 + $0x190] sm:$0xff] %vm232, 0.0
        %284 = vst.msk [vmem:[#allocation2 + $0x198] sm:$0xff] %vm232, 0.0
        %285 = vst.msk [vmem:[#allocation2 + $0x1a0] sm:$0xff] %vm232, 0.0
        %286 = vst.msk [vmem:[#allocation2 + $0x1a8] sm:$0xff] %vm232, 0.0
        %287 = vst.msk [vmem:[#allocation2 + $0x1b0] sm:$0xff] %vm232, 0.0
        %288 = vst.msk [vmem:[#allocation2 + $0x1b8] sm:$0xff] %vm232, 0.0
        %289 = vst.msk [vmem:[#allocation2 + $0x1c0] sm:$0xff] %vm232, 0.0
        %290 = vst.msk [vmem:[#allocation2 + $0x1c8] sm:$0xff] %vm232, 0.0
        %291 = vst.msk [vmem:[#allocation2 + $0x1d0] sm:$0xff] %vm232, 0.0
        %292 = vst.msk [vmem:[#allocation2 + $0x1d8] sm:$0xff] %vm232, 0.0
        %293 = vst.msk [vmem:[#allocation2 + $0x1e0] sm:$0xff] %vm232, 0.0
        %294 = vst.msk [vmem:[#allocation2 + $0x1e8] sm:$0xff] %vm232, 0.0
        %295 = vst.msk [vmem:[#allocation2 + $0x1f0] sm:$0xff] %vm232, 0.0
        %296 = vst.msk [vmem:[#allocation2 + $0x1f8] sm:$0xff] %vm232, 0.0
      $region36: #{gnn_model_forward.3} parent=31 // pred_fallthru
        _
      %v297 = vld [vmem:[#allocation2] sm:$0xff]
      %v298 = vld [vmem:[#allocation2 + $0x8] sm:$0xff]
      %v299 = vld [vmem:[#allocation2 + $0x10] sm:$0xff]
      %v300 = vld [vmem:[#allocation2 + $0x18] sm:$0xff]
      %v301 = vld [vmem:[#allocation2 + $0x20] sm:$0xff]
      %v302 = vld [vmem:[#allocation2 + $0x28] sm:$0xff]
      %v303 = vld [vmem:[#allocation2 + $0x30] sm:$0xff]
      %v304 = vld [vmem:[#allocation2 + $0x38] sm:$0xff]
      %v305 = vld [vmem:[#allocation2 + $0x40] sm:$0xff]
      %v306 = vld [vmem:[#allocation2 + $0x48] sm:$0xff]
      %v307 = vld [vmem:[#allocation2 + $0x50] sm:$0xff]
      %v308 = vld [vmem:[#allocation2 + $0x58] sm:$0xff]
      %v309 = vld [vmem:[#allocation2 + $0x60] sm:$0xff]
      %v310 = vld [vmem:[#allocation2 + $0x68] sm:$0xff]
      %v311 = vld [vmem:[#allocation2 + $0x70] sm:$0xff]
      %v312 = vld [vmem:[#allocation2 + $0x78] sm:$0xff]
      %v313 = vld [vmem:[#allocation2 + $0x80] sm:$0xff]
      %v314 = vld [vmem:[#allocation2 + $0x88] sm:$0xff]
      %v315 = vld [vmem:[#allocation2 + $0x90] sm:$0xff]
      %v316 = vld [vmem:[#allocation2 + $0x98] sm:$0xff]
      %v317 = vld [vmem:[#allocation2 + $0xa0] sm:$0xff]
      %v318 = vld [vmem:[#allocation2 + $0xa8] sm:$0xff]
      %v319 = vld [vmem:[#allocation2 + $0xb0] sm:$0xff]
      %v320 = vld [vmem:[#allocation2 + $0xb8] sm:$0xff]
      %v321 = vld [vmem:[#allocation2 + $0xc0] sm:$0xff]
      %v322 = vld [vmem:[#allocation2 + $0xc8] sm:$0xff]
      %v323 = vld [vmem:[#allocation2 + $0xd0] sm:$0xff]
      %v324 = vld [vmem:[#allocation2 + $0xd8] sm:$0xff]
      %v325 = vld [vmem:[#allocation2 + $0xe0] sm:$0xff]
      %v326 = vld [vmem:[#allocation2 + $0xe8] sm:$0xff]
      %v327 = vld [vmem:[#allocation2 + $0xf0] sm:$0xff]
      %v328 = vld [vmem:[#allocation2 + $0xf8] sm:$0xff]
      %v329 = vld [vmem:[#allocation2 + $0x100] sm:$0xff]
      %v330 = vld [vmem:[#allocation2 + $0x108] sm:$0xff]
      %v331 = vld [vmem:[#allocation2 + $0x110] sm:$0xff]
      %v332 = vld [vmem:[#allocation2 + $0x118] sm:$0xff]
      %v333 = vld [vmem:[#allocation2 + $0x120] sm:$0xff]
      %v334 = vld [vmem:[#allocation2 + $0x128] sm:$0xff]
      %v335 = vld [vmem:[#allocation2 + $0x130] sm:$0xff]
      %v336 = vld [vmem:[#allocation2 + $0x138] sm:$0xff]
      %v337 = vld [vmem:[#allocation2 + $0x140] sm:$0xff]
      %v338 = vld [vmem:[#allocation2 + $0x148] sm:$0xff]
      %v339 = vld [vmem:[#allocation2 + $0x150] sm:$0xff]
      %v340 = vld [vmem:[#allocation2 + $0x158] sm:$0xff]
      %v341 = vld [vmem:[#allocation2 + $0x160] sm:$0xff]
      %v342 = vld [vmem:[#allocation2 + $0x168] sm:$0xff]
      %v343 = vld [vmem:[#allocation2 + $0x170] sm:$0xff]
      %v344 = vld [vmem:[#allocation2 + $0x178] sm:$0xff]
      %v345 = vld [vmem:[#allocation2 + $0x180] sm:$0xff]
      %v346 = vld [vmem:[#allocation2 + $0x188] sm:$0xff]
      %v347 = vld [vmem:[#allocation2 + $0x190] sm:$0xff]
      %v348 = vld [vmem:[#allocation2 + $0x198] sm:$0xff]
      %v349 = vld [vmem:[#allocation2 + $0x1a0] sm:$0xff]
      %v350 = vld [vmem:[#allocation2 + $0x1a8] sm:$0xff]
      %v351 = vld [vmem:[#allocation2 + $0x1b0] sm:$0xff]
      %v352 = vld [vmem:[#allocation2 + $0x1b8] sm:$0xff]
      %v353 = vld [vmem:[#allocation2 + $0x1c0] sm:$0xff]
      %v354 = vld [vmem:[#allocation2 + $0x1c8] sm:$0xff]
      %v355 = vld [vmem:[#allocation2 + $0x1d0] sm:$0xff]
      %v356 = vld [vmem:[#allocation2 + $0x1d8] sm:$0xff]
      %v357 = vld [vmem:[#allocation2 + $0x1e0] sm:$0xff]
      %v358 = vld [vmem:[#allocation2 + $0x1e8] sm:$0xff]
      %v359 = vld [vmem:[#allocation2 + $0x1f0] sm:$0xff]
      %v360 = vld [vmem:[#allocation2 + $0x1f8] sm:$0xff]
      %v361 = vld [vmem:[%s213] sm:$0xff]
      %v362 = vld [vmem:[%s213 + $0x8] sm:$0xff]
      %v363 = vld [vmem:[%s213 + $0x10] sm:$0xff]
      %v364 = vld [vmem:[%s213 + $0x18] sm:$0xff]
      %v365 = vld [vmem:[%s213 + $0x20] sm:$0xff]
      %v366 = vld [vmem:[%s213 + $0x28] sm:$0xff]
      %v367 = vld [vmem:[%s213 + $0x30] sm:$0xff]
      %v368 = vld [vmem:[%s213 + $0x38] sm:$0xff]
      %v369 = vld [vmem:[%s213 + $0x40] sm:$0xff]
      %v370 = vld [vmem:[%s213 + $0x48] sm:$0xff]
      %v371 = vld [vmem:[%s213 + $0x50] sm:$0xff]
      %v372 = vld [vmem:[%s213 + $0x58] sm:$0xff]
      %v373 = vld [vmem:[%s213 + $0x60] sm:$0xff]
      %v374 = vld [vmem:[%s213 + $0x68] sm:$0xff]
      %v375 = vld [vmem:[%s213 + $0x70] sm:$0xff]
      %v376 = vld [vmem:[%s213 + $0x78] sm:$0xff]
      %v377 = vld [vmem:[%s213 + $0x80] sm:$0xff]
      %v378 = vld [vmem:[%s213 + $0x88] sm:$0xff]
      %v379 = vld [vmem:[%s213 + $0x90] sm:$0xff]
      %v380 = vld [vmem:[%s213 + $0x98] sm:$0xff]
      %v381 = vld [vmem:[%s213 + $0xa0] sm:$0xff]
      %v382 = vld [vmem:[%s213 + $0xa8] sm:$0xff]
      %v383 = vld [vmem:[%s213 + $0xb0] sm:$0xff]
      %v384 = vld [vmem:[%s213 + $0xb8] sm:$0xff]
      %v385 = vld [vmem:[%s213 + $0xc0] sm:$0xff]
      %v386 = vld [vmem:[%s213 + $0xc8] sm:$0xff]
      %v387 = vld [vmem:[%s213 + $0xd0] sm:$0xff]
      %v388 = vld [vmem:[%s213 + $0xd8] sm:$0xff]
      %v389 = vld [vmem:[%s213 + $0xe0] sm:$0xff]
      %v390 = vld [vmem:[%s213 + $0xe8] sm:$0xff]
      %v391 = vld [vmem:[%s213 + $0xf0] sm:$0xff]
      %v392 = vld [vmem:[%s213 + $0xf8] sm:$0xff]
      %v393 = vld [vmem:[%s213 + $0x100] sm:$0xff]
      %v394 = vld [vmem:[%s213 + $0x108] sm:$0xff]
      %v395 = vld [vmem:[%s213 + $0x110] sm:$0xff]
      %v396 = vld [vmem:[%s213 + $0x118] sm:$0xff]
      %v397 = vld [vmem:[%s213 + $0x120] sm:$0xff]
      %v398 = vld [vmem:[%s213 + $0x128] sm:$0xff]
      %v399 = vld [vmem:[%s213 + $0x130] sm:$0xff]
      %v400 = vld [vmem:[%s213 + $0x138] sm:$0xff]
      %v401 = vld [vmem:[%s213 + $0x140] sm:$0xff]
      %v402 = vld [vmem:[%s213 + $0x148] sm:$0xff]
      %v403 = vld [vmem:[%s213 + $0x150] sm:$0xff]
      %v404 = vld [vmem:[%s213 + $0x158] sm:$0xff]
      %v405 = vld [vmem:[%s213 + $0x160] sm:$0xff]
      %v406 = vld [vmem:[%s213 + $0x168] sm:$0xff]
      %v407 = vld [vmem:[%s213 + $0x170] sm:$0xff]
      %v408 = vld [vmem:[%s213 + $0x178] sm:$0xff]
      %v409 = vld [vmem:[%s213 + $0x180] sm:$0xff]
      %v410 = vld [vmem:[%s213 + $0x188] sm:$0xff]
      %v411 = vld [vmem:[%s213 + $0x190] sm:$0xff]
      %v412 = vld [vmem:[%s213 + $0x198] sm:$0xff]
      %v413 = vld [vmem:[%s213 + $0x1a0] sm:$0xff]
      %v414 = vld [vmem:[%s213 + $0x1a8] sm:$0xff]
      %v415 = vld [vmem:[%s213 + $0x1b0] sm:$0xff]
      %v416 = vld [vmem:[%s213 + $0x1b8] sm:$0xff]
      %v417 = vld [vmem:[%s213 + $0x1c0] sm:$0xff]
      %v418 = vld [vmem:[%s213 + $0x1c8] sm:$0xff]
      %v419 = vld [vmem:[%s213 + $0x1d0] sm:$0xff]
      %v420 = vld [vmem:[%s213 + $0x1d8] sm:$0xff]
      %v421 = vld [vmem:[%s213 + $0x1e0] sm:$0xff]
      %v422 = vld [vmem:[%s213 + $0x1e8] sm:$0xff]
      %v423 = vld [vmem:[%s213 + $0x1f0] sm:$0xff]
      %v424 = vld [vmem:[%s213 + $0x1f8] sm:$0xff]
      %v425 = vld [vmem:[%s213 + $0x200] sm:$0xff]
      %v426 = vld [vmem:[%s213 + $0x208] sm:$0xff]
      %v427 = vld [vmem:[%s213 + $0x210] sm:$0xff]
      %v428 = vld [vmem:[%s213 + $0x218] sm:$0xff]
      %v429 = vld [vmem:[%s213 + $0x220] sm:$0xff]
      %v430 = vld [vmem:[%s213 + $0x228] sm:$0xff]
      %v431 = vld [vmem:[%s213 + $0x230] sm:$0xff]
      %v432 = vld [vmem:[%s213 + $0x238] sm:$0xff]
      %v433 = vld [vmem:[%s213 + $0x240] sm:$0xff]
      %v434 = vld [vmem:[%s213 + $0x248] sm:$0xff]
      %v435 = vld [vmem:[%s213 + $0x250] sm:$0xff]
      %v436 = vld [vmem:[%s213 + $0x258] sm:$0xff]
      %v437 = vld [vmem:[%s213 + $0x260] sm:$0xff]
      %v438 = vld [vmem:[%s213 + $0x268] sm:$0xff]
      %v439 = vld [vmem:[%s213 + $0x270] sm:$0xff]
      %v440 = vld [vmem:[%s213 + $0x278] sm:$0xff]
      %v441 = vld [vmem:[%s213 + $0x280] sm:$0xff]
      %v442 = vld [vmem:[%s213 + $0x288] sm:$0xff]
      %v443 = vld [vmem:[%s213 + $0x290] sm:$0xff]
      %v444 = vld [vmem:[%s213 + $0x298] sm:$0xff]
      %v445 = vld [vmem:[%s213 + $0x2a0] sm:$0xff]
      %v446 = vld [vmem:[%s213 + $0x2a8] sm:$0xff]
      %v447 = vld [vmem:[%s213 + $0x2b0] sm:$0xff]
      %v448 = vld [vmem:[%s213 + $0x2b8] sm:$0xff]
      %v449 = vld [vmem:[%s213 + $0x2c0] sm:$0xff]
      %v450 = vld [vmem:[%s213 + $0x2c8] sm:$0xff]
      %v451 = vld [vmem:[%s213 + $0x2d0] sm:$0xff]
      %v452 = vld [vmem:[%s213 + $0x2d8] sm:$0xff]
      %v453 = vld [vmem:[%s213 + $0x2e0] sm:$0xff]
      %v454 = vld [vmem:[%s213 + $0x2e8] sm:$0xff]
      %v455 = vld [vmem:[%s213 + $0x2f0] sm:$0xff]
      %v456 = vld [vmem:[%s213 + $0x2f8] sm:$0xff]
      %v457 = vld [vmem:[%s213 + $0x300] sm:$0xff]
      %v458 = vld [vmem:[%s213 + $0x308] sm:$0xff]
      %v459 = vld [vmem:[%s213 + $0x310] sm:$0xff]
      %v460 = vld [vmem:[%s213 + $0x318] sm:$0xff]
      %v461 = vld [vmem:[%s213 + $0x320] sm:$0xff]
      %v462 = vld [vmem:[%s213 + $0x328] sm:$0xff]
      %v463 = vld [vmem:[%s213 + $0x330] sm:$0xff]
      %v464 = vld [vmem:[%s213 + $0x338] sm:$0xff]
      %v465 = vld [vmem:[%s213 + $0x340] sm:$0xff]
      %v466 = vld [vmem:[%s213 + $0x348] sm:$0xff]
      %v467 = vld [vmem:[%s213 + $0x350] sm:$0xff]
      %v468 = vld [vmem:[%s213 + $0x358] sm:$0xff]
      %v469 = vld [vmem:[%s213 + $0x360] sm:$0xff]
      %v470 = vld [vmem:[%s213 + $0x368] sm:$0xff]
      %v471 = vld [vmem:[%s213 + $0x370] sm:$0xff]
      %v472 = vld [vmem:[%s213 + $0x378] sm:$0xff]
      %v473 = vld [vmem:[%s213 + $0x380] sm:$0xff]
      %v474 = vld [vmem:[%s213 + $0x388] sm:$0xff]
      %v475 = vld [vmem:[%s213 + $0x390] sm:$0xff]
      %v476 = vld [vmem:[%s213 + $0x398] sm:$0xff]
      %v477 = vld [vmem:[%s213 + $0x3a0] sm:$0xff]
      %v478 = vld [vmem:[%s213 + $0x3a8] sm:$0xff]
      %v479 = vld [vmem:[%s213 + $0x3b0] sm:$0xff]
      %v480 = vld [vmem:[%s213 + $0x3b8] sm:$0xff]
      %v481 = vld [vmem:[%s213 + $0x3c0] sm:$0xff]
      %v482 = vld [vmem:[%s213 + $0x3c8] sm:$0xff]
      %v483 = vld [vmem:[%s213 + $0x3d0] sm:$0xff]
      %v484 = vld [vmem:[%s213 + $0x3d8] sm:$0xff]
      %v485 = vld [vmem:[%s213 + $0x3e0] sm:$0xff]
      %v486 = vld [vmem:[%s213 + $0x3e8] sm:$0xff]
      %v487 = vld [vmem:[%s213 + $0x3f0] sm:$0xff]
      %v488 = vld [vmem:[%s213 + $0x3f8] sm:$0xff]
      %v489 = vld [vmem:[%s213 + $0x400] sm:$0xff]
      %v490 = vld [vmem:[%s213 + $0x408] sm:$0xff]
      %v491 = vld [vmem:[%s213 + $0x410] sm:$0xff]
      %v492 = vld [vmem:[%s213 + $0x418] sm:$0xff]
      %v493 = vld [vmem:[%s213 + $0x420] sm:$0xff]
      %v494 = vld [vmem:[%s213 + $0x428] sm:$0xff]
      %v495 = vld [vmem:[%s213 + $0x430] sm:$0xff]
      %v496 = vld [vmem:[%s213 + $0x438] sm:$0xff]
      %v497 = vld [vmem:[%s213 + $0x440] sm:$0xff]
      %v498 = vld [vmem:[%s213 + $0x448] sm:$0xff]
      %v499 = vld [vmem:[%s213 + $0x450] sm:$0xff]
      %v500 = vld [vmem:[%s213 + $0x458] sm:$0xff]
      %v501 = vld [vmem:[%s213 + $0x460] sm:$0xff]
      %v502 = vld [vmem:[%s213 + $0x468] sm:$0xff]
      %v503 = vld [vmem:[%s213 + $0x470] sm:$0xff]
      %v504 = vld [vmem:[%s213 + $0x478] sm:$0xff]
      %v505 = vld [vmem:[%s213 + $0x480] sm:$0xff]
      %v506 = vld [vmem:[%s213 + $0x488] sm:$0xff]
      %v507 = vld [vmem:[%s213 + $0x490] sm:$0xff]
      %v508 = vld [vmem:[%s213 + $0x498] sm:$0xff]
      %v509 = vld [vmem:[%s213 + $0x4a0] sm:$0xff]
      %v510 = vld [vmem:[%s213 + $0x4a8] sm:$0xff]
      %v511 = vld [vmem:[%s213 + $0x4b0] sm:$0xff]
      %v512 = vld [vmem:[%s213 + $0x4b8] sm:$0xff]
      %v513 = vld [vmem:[%s213 + $0x4c0] sm:$0xff]
      %v514 = vld [vmem:[%s213 + $0x4c8] sm:$0xff]
      %v515 = vld [vmem:[%s213 + $0x4d0] sm:$0xff]
      %v516 = vld [vmem:[%s213 + $0x4d8] sm:$0xff]
      %v517 = vld [vmem:[%s213 + $0x4e0] sm:$0xff]
      %v518 = vld [vmem:[%s213 + $0x4e8] sm:$0xff]
      %v519 = vld [vmem:[%s213 + $0x4f0] sm:$0xff]
      %v520 = vld [vmem:[%s213 + $0x4f8] sm:$0xff]
      %v521 = vld [vmem:[%s213 + $0x500] sm:$0xff]
      %v522 = vld [vmem:[%s213 + $0x508] sm:$0xff]
      %v523 = vld [vmem:[%s213 + $0x510] sm:$0xff]
      %v524 = vld [vmem:[%s213 + $0x518] sm:$0xff]
      %v525 = vld [vmem:[%s213 + $0x520] sm:$0xff]
      %v526 = vld [vmem:[%s213 + $0x528] sm:$0xff]
      %v527 = vld [vmem:[%s213 + $0x530] sm:$0xff]
      %v528 = vld [vmem:[%s213 + $0x538] sm:$0xff]
      %v529 = vld [vmem:[%s213 + $0x540] sm:$0xff]
      %v530 = vld [vmem:[%s213 + $0x548] sm:$0xff]
      %v531 = vld [vmem:[%s213 + $0x550] sm:$0xff]
      %v532 = vld [vmem:[%s213 + $0x558] sm:$0xff]
      %v533 = vld [vmem:[%s213 + $0x560] sm:$0xff]
      %v534 = vld [vmem:[%s213 + $0x568] sm:$0xff]
      %v535 = vld [vmem:[%s213 + $0x570] sm:$0xff]
      %v536 = vld [vmem:[%s213 + $0x578] sm:$0xff]
      %v537 = vld [vmem:[%s213 + $0x580] sm:$0xff]
      %v538 = vld [vmem:[%s213 + $0x588] sm:$0xff]
      %v539 = vld [vmem:[%s213 + $0x590] sm:$0xff]
      %v540 = vld [vmem:[%s213 + $0x598] sm:$0xff]
      %v541 = vld [vmem:[%s213 + $0x5a0] sm:$0xff]
      %v542 = vld [vmem:[%s213 + $0x5a8] sm:$0xff]
      %v543 = vld [vmem:[%s213 + $0x5b0] sm:$0xff]
      %v544 = vld [vmem:[%s213 + $0x5b8] sm:$0xff]
      %v545 = vld [vmem:[%s213 + $0x5c0] sm:$0xff]
      %v546 = vld [vmem:[%s213 + $0x5c8] sm:$0xff]
      %v547 = vld [vmem:[%s213 + $0x5d0] sm:$0xff]
      %v548 = vld [vmem:[%s213 + $0x5d8] sm:$0xff]
      %v549 = vld [vmem:[%s213 + $0x5e0] sm:$0xff]
      %v550 = vld [vmem:[%s213 + $0x5e8] sm:$0xff]
      %v551 = vld [vmem:[%s213 + $0x5f0] sm:$0xff]
      %v552 = vld [vmem:[%s213 + $0x5f8] sm:$0xff]
      %v553 = vld [vmem:[%s213 + $0x600] sm:$0xff]
      %v554 = vld [vmem:[%s213 + $0x608] sm:$0xff]
      %v555 = vld [vmem:[%s213 + $0x610] sm:$0xff]
      %v556 = vld [vmem:[%s213 + $0x618] sm:$0xff]
      %v557 = vld [vmem:[%s213 + $0x620] sm:$0xff]
      %v558 = vld [vmem:[%s213 + $0x628] sm:$0xff]
      %v559 = vld [vmem:[%s213 + $0x630] sm:$0xff]
      %v560 = vld [vmem:[%s213 + $0x638] sm:$0xff]
      %v561 = vld [vmem:[%s213 + $0x640] sm:$0xff]
      %v562 = vld [vmem:[%s213 + $0x648] sm:$0xff]
      %v563 = vld [vmem:[%s213 + $0x650] sm:$0xff]
      %v564 = vld [vmem:[%s213 + $0x658] sm:$0xff]
      %v565 = vld [vmem:[%s213 + $0x660] sm:$0xff]
      %v566 = vld [vmem:[%s213 + $0x668] sm:$0xff]
      %v567 = vld [vmem:[%s213 + $0x670] sm:$0xff]
      %v568 = vld [vmem:[%s213 + $0x678] sm:$0xff]
      %v569 = vld [vmem:[%s213 + $0x680] sm:$0xff]
      %v570 = vld [vmem:[%s213 + $0x688] sm:$0xff]
      %v571 = vld [vmem:[%s213 + $0x690] sm:$0xff]
      %v572 = vld [vmem:[%s213 + $0x698] sm:$0xff]
      %v573 = vld [vmem:[%s213 + $0x6a0] sm:$0xff]
      %v574 = vld [vmem:[%s213 + $0x6a8] sm:$0xff]
      %v575 = vld [vmem:[%s213 + $0x6b0] sm:$0xff]
      %v576 = vld [vmem:[%s213 + $0x6b8] sm:$0xff]
      %v577 = vld [vmem:[%s213 + $0x6c0] sm:$0xff]
      %v578 = vld [vmem:[%s213 + $0x6c8] sm:$0xff]
      %v579 = vld [vmem:[%s213 + $0x6d0] sm:$0xff]
      %v580 = vld [vmem:[%s213 + $0x6d8] sm:$0xff]
      %v581 = vld [vmem:[%s213 + $0x6e0] sm:$0xff]
      %v582 = vld [vmem:[%s213 + $0x6e8] sm:$0xff]
      %v583 = vld [vmem:[%s213 + $0x6f0] sm:$0xff]
      %v584 = vld [vmem:[%s213 + $0x6f8] sm:$0xff]
      %v585 = vld [vmem:[%s213 + $0x700] sm:$0xff]
      %v586 = vld [vmem:[%s213 + $0x708] sm:$0xff]
      %v587 = vld [vmem:[%s213 + $0x710] sm:$0xff]
      %v588 = vld [vmem:[%s213 + $0x718] sm:$0xff]
      %v589 = vld [vmem:[%s213 + $0x720] sm:$0xff]
      %v590 = vld [vmem:[%s213 + $0x728] sm:$0xff]
      %v591 = vld [vmem:[%s213 + $0x730] sm:$0xff]
      %v592 = vld [vmem:[%s213 + $0x738] sm:$0xff]
      %v593 = vld [vmem:[%s213 + $0x740] sm:$0xff]
      %v594 = vld [vmem:[%s213 + $0x748] sm:$0xff]
      %v595 = vld [vmem:[%s213 + $0x750] sm:$0xff]
      %v596 = vld [vmem:[%s213 + $0x758] sm:$0xff]
      %v597 = vld [vmem:[%s213 + $0x760] sm:$0xff]
      %v598 = vld [vmem:[%s213 + $0x768] sm:$0xff]
      %v599 = vld [vmem:[%s213 + $0x770] sm:$0xff]
      %v600 = vld [vmem:[%s213 + $0x778] sm:$0xff]
      %v601 = vld [vmem:[%s213 + $0x780] sm:$0xff]
      %v602 = vld [vmem:[%s213 + $0x788] sm:$0xff]
      %v603 = vld [vmem:[%s213 + $0x790] sm:$0xff]
      %v604 = vld [vmem:[%s213 + $0x798] sm:$0xff]
      %v605 = vld [vmem:[%s213 + $0x7a0] sm:$0xff]
      %v606 = vld [vmem:[%s213 + $0x7a8] sm:$0xff]
      %v607 = vld [vmem:[%s213 + $0x7b0] sm:$0xff]
      %v608 = vld [vmem:[%s213 + $0x7b8] sm:$0xff]
      %v609 = vld [vmem:[%s213 + $0x7c0] sm:$0xff]
      %v610 = vld [vmem:[%s213 + $0x7c8] sm:$0xff]
      %v611 = vld [vmem:[%s213 + $0x7d0] sm:$0xff]
      %v612 = vld [vmem:[%s213 + $0x7d8] sm:$0xff]
      %v613 = vld [vmem:[%s213 + $0x7e0] sm:$0xff]
      %v614 = vld [vmem:[%s213 + $0x7e8] sm:$0xff]
      %v615 = vld [vmem:[%s213 + $0x7f0] sm:$0xff]
      %v616 = vld [vmem:[%s213 + $0x7f8] sm:$0xff]
      %v617 = vld [vmem:[%s220] sm:$0xf]
      %v618 = vld [vmem:[%s220 + $0x4] sm:$0xf]
      %v619 = vld [vmem:[%s220 + $0x8] sm:$0xf]
      %v620 = vld [vmem:[%s220 + $0xc] sm:$0xf]
      %v621 = vld [vmem:[%s220 + $0x10] sm:$0xf]
      %v622 = vld [vmem:[%s220 + $0x14] sm:$0xf]
      %v623 = vld [vmem:[%s220 + $0x18] sm:$0xf]
      %v624 = vld [vmem:[%s220 + $0x1c] sm:$0xf]
      %v625 = vld [vmem:[%s220 + $0x20] sm:$0xf]
      %v626 = vld [vmem:[%s220 + $0x24] sm:$0xf]
      %v627 = vld [vmem:[%s220 + $0x28] sm:$0xf]
      %v628 = vld [vmem:[%s220 + $0x2c] sm:$0xf]
      %v629 = vld [vmem:[%s220 + $0x30] sm:$0xf]
      %v630 = vld [vmem:[%s220 + $0x34] sm:$0xf]
      %v631 = vld [vmem:[%s220 + $0x38] sm:$0xf]
      %v632 = vld [vmem:[%s220 + $0x3c] sm:$0xf]
      %v633 = vld [vmem:[%s220 + $0x40] sm:$0xf]
      %v634 = vld [vmem:[%s220 + $0x44] sm:$0xf]
      %v635 = vld [vmem:[%s220 + $0x48] sm:$0xf]
      %v636 = vld [vmem:[%s220 + $0x4c] sm:$0xf]
      %v637 = vld [vmem:[%s220 + $0x50] sm:$0xf]
      %v638 = vld [vmem:[%s220 + $0x54] sm:$0xf]
      %v639 = vld [vmem:[%s220 + $0x58] sm:$0xf]
      %v640 = vld [vmem:[%s220 + $0x5c] sm:$0xf]
      %v641 = vld [vmem:[%s220 + $0x60] sm:$0xf]
      %v642 = vld [vmem:[%s220 + $0x64] sm:$0xf]
      %v643 = vld [vmem:[%s220 + $0x68] sm:$0xf]
      %v644 = vld [vmem:[%s220 + $0x6c] sm:$0xf]
      %v645 = vld [vmem:[%s220 + $0x70] sm:$0xf]
      %v646 = vld [vmem:[%s220 + $0x74] sm:$0xf]
      %v647 = vld [vmem:[%s220 + $0x78] sm:$0xf]
      %v648 = vld [vmem:[%s220 + $0x7c] sm:$0xf]
      %v649 = vld [vmem:[%s220 + $0x80] sm:$0xf]
      %v650 = vld [vmem:[%s220 + $0x84] sm:$0xf]
      %v651 = vld [vmem:[%s220 + $0x88] sm:$0xf]
      %v652 = vld [vmem:[%s220 + $0x8c] sm:$0xf]
      %v653 = vld [vmem:[%s220 + $0x90] sm:$0xf]
      %v654 = vld [vmem:[%s220 + $0x94] sm:$0xf]
      %v655 = vld [vmem:[%s220 + $0x98] sm:$0xf]
      %v656 = vld [vmem:[%s220 + $0x9c] sm:$0xf]
      %v657 = vld [vmem:[%s220 + $0xa0] sm:$0xf]
      %v658 = vld [vmem:[%s220 + $0xa4] sm:$0xf]
      %v659 = vld [vmem:[%s220 + $0xa8] sm:$0xf]
      %v660 = vld [vmem:[%s220 + $0xac] sm:$0xf]
      %v661 = vld [vmem:[%s220 + $0xb0] sm:$0xf]
      %v662 = vld [vmem:[%s220 + $0xb4] sm:$0xf]
      %v663 = vld [vmem:[%s220 + $0xb8] sm:$0xf]
      %v664 = vld [vmem:[%s220 + $0xbc] sm:$0xf]
      %v665 = vld [vmem:[%s220 + $0xc0] sm:$0xf]
      %v666 = vld [vmem:[%s220 + $0xc4] sm:$0xf]
      %v667 = vld [vmem:[%s220 + $0xc8] sm:$0xf]
      %v668 = vld [vmem:[%s220 + $0xcc] sm:$0xf]
      %v669 = vld [vmem:[%s220 + $0xd0] sm:$0xf]
      %v670 = vld [vmem:[%s220 + $0xd4] sm:$0xf]
      %v671 = vld [vmem:[%s220 + $0xd8] sm:$0xf]
      %v672 = vld [vmem:[%s220 + $0xdc] sm:$0xf]
      %v673 = vld [vmem:[%s220 + $0xe0] sm:$0xf]
      %v674 = vld [vmem:[%s220 + $0xe4] sm:$0xf]
      %v675 = vld [vmem:[%s220 + $0xe8] sm:$0xf]
      %v676 = vld [vmem:[%s220 + $0xec] sm:$0xf]
      %v677 = vld [vmem:[%s220 + $0xf0] sm:$0xf]
      %v678 = vld [vmem:[%s220 + $0xf4] sm:$0xf]
      %v679 = vld [vmem:[%s220 + $0xf8] sm:$0xf]
      %v680 = vld [vmem:[%s220 + $0xfc] sm:$0xf]
      %v681 = vld [vmem:[%s220 + $0x100] sm:$0xf]
      %v682 = vld [vmem:[%s220 + $0x104] sm:$0xf]
      %v683 = vld [vmem:[%s220 + $0x108] sm:$0xf]
      %v684 = vld [vmem:[%s220 + $0x10c] sm:$0xf]
      %v685 = vld [vmem:[%s220 + $0x110] sm:$0xf]
      %v686 = vld [vmem:[%s220 + $0x114] sm:$0xf]
      %v687 = vld [vmem:[%s220 + $0x118] sm:$0xf]
      %v688 = vld [vmem:[%s220 + $0x11c] sm:$0xf]
      %v689 = vld [vmem:[%s220 + $0x120] sm:$0xf]
      %v690 = vld [vmem:[%s220 + $0x124] sm:$0xf]
      %v691 = vld [vmem:[%s220 + $0x128] sm:$0xf]
      %v692 = vld [vmem:[%s220 + $0x12c] sm:$0xf]
      %v693 = vld [vmem:[%s220 + $0x130] sm:$0xf]
      %v694 = vld [vmem:[%s220 + $0x134] sm:$0xf]
      %v695 = vld [vmem:[%s220 + $0x138] sm:$0xf]
      %v696 = vld [vmem:[%s220 + $0x13c] sm:$0xf]
      %v697 = vld [vmem:[%s220 + $0x140] sm:$0xf]
      %v698 = vld [vmem:[%s220 + $0x144] sm:$0xf]
      %v699 = vld [vmem:[%s220 + $0x148] sm:$0xf]
      %v700 = vld [vmem:[%s220 + $0x14c] sm:$0xf]
      %v701 = vld [vmem:[%s220 + $0x150] sm:$0xf]
      %v702 = vld [vmem:[%s220 + $0x154] sm:$0xf]
      %v703 = vld [vmem:[%s220 + $0x158] sm:$0xf]
      %v704 = vld [vmem:[%s220 + $0x15c] sm:$0xf]
      %v705 = vld [vmem:[%s220 + $0x160] sm:$0xf]
      %v706 = vld [vmem:[%s220 + $0x164] sm:$0xf]
      %v707 = vld [vmem:[%s220 + $0x168] sm:$0xf]
      %v708 = vld [vmem:[%s220 + $0x16c] sm:$0xf]
      %v709 = vld [vmem:[%s220 + $0x170] sm:$0xf]
      %v710 = vld [vmem:[%s220 + $0x174] sm:$0xf]
      %v711 = vld [vmem:[%s220 + $0x178] sm:$0xf]
      %v712 = vld [vmem:[%s220 + $0x17c] sm:$0xf]
      %v713 = vld [vmem:[%s220 + $0x180] sm:$0xf]
      %v714 = vld [vmem:[%s220 + $0x184] sm:$0xf]
      %v715 = vld [vmem:[%s220 + $0x188] sm:$0xf]
      %v716 = vld [vmem:[%s220 + $0x18c] sm:$0xf]
      %v717 = vld [vmem:[%s220 + $0x190] sm:$0xf]
      %v718 = vld [vmem:[%s220 + $0x194] sm:$0xf]
      %v719 = vld [vmem:[%s220 + $0x198] sm:$0xf]
      %v720 = vld [vmem:[%s220 + $0x19c] sm:$0xf]
      %v721 = vld [vmem:[%s220 + $0x1a0] sm:$0xf]
      %v722 = vld [vmem:[%s220 + $0x1a4] sm:$0xf]
      %v723 = vld [vmem:[%s220 + $0x1a8] sm:$0xf]
      %v724 = vld [vmem:[%s220 + $0x1ac] sm:$0xf]
      %v725 = vld [vmem:[%s220 + $0x1b0] sm:$0xf]
      %v726 = vld [vmem:[%s220 + $0x1b4] sm:$0xf]
      %v727 = vld [vmem:[%s220 + $0x1b8] sm:$0xf]
      %v728 = vld [vmem:[%s220 + $0x1bc] sm:$0xf]
      %v729 = vld [vmem:[%s220 + $0x1c0] sm:$0xf]
      %v730 = vld [vmem:[%s220 + $0x1c4] sm:$0xf]
      %v731 = vld [vmem:[%s220 + $0x1c8] sm:$0xf]
      %v732 = vld [vmem:[%s220 + $0x1cc] sm:$0xf]
      %v733 = vld [vmem:[%s220 + $0x1d0] sm:$0xf]
      %v734 = vld [vmem:[%s220 + $0x1d4] sm:$0xf]
      %v735 = vld [vmem:[%s220 + $0x1d8] sm:$0xf]
      %v736 = vld [vmem:[%s220 + $0x1dc] sm:$0xf]
      %v737 = vld [vmem:[%s220 + $0x1e0] sm:$0xf]
      %v738 = vld [vmem:[%s220 + $0x1e4] sm:$0xf]
      %v739 = vld [vmem:[%s220 + $0x1e8] sm:$0xf]
      %v740 = vld [vmem:[%s220 + $0x1ec] sm:$0xf]
      %v741 = vld [vmem:[%s220 + $0x1f0] sm:$0xf]
      %v742 = vld [vmem:[%s220 + $0x1f4] sm:$0xf]
      %v743 = vld [vmem:[%s220 + $0x1f8] sm:$0xf]
      %v744 = vld [vmem:[%s220 + $0x1fc] sm:$0xf]
      %v1001 = vunpack.c.l.b16 %v361
      %v1002 = vunpack.c.h.b16 %v361
      %v1003 = vunpack.c.l.b16 %v362
      %v1004 = vunpack.c.h.b16 %v362
      %v1005 = vunpack.c.l.b16 %v363
      %v1006 = vunpack.c.h.b16 %v363
      %v1007 = vunpack.c.l.b16 %v364
      %v1008 = vunpack.c.h.b16 %v364
      %v1009 = vunpack.c.l.b16 %v365
      %v1010 = vunpack.c.h.b16 %v365
      %v1011 = vunpack.c.l.b16 %v366
      %v1012 = vunpack.c.h.b16 %v366
      %v1013 = vunpack.c.l.b16 %v367
      %v1014 = vunpack.c.h.b16 %v367
      %v1015 = vunpack.c.l.b16 %v368
      %v1016 = vunpack.c.h.b16 %v368
      %v1017 = vunpack.c.l.b16 %v369
      %v1018 = vunpack.c.h.b16 %v369
      %v1019 = vunpack.c.l.b16 %v370
      %v1020 = vunpack.c.h.b16 %v370
      %v1021 = vunpack.c.l.b16 %v371
      %v1022 = vunpack.c.h.b16 %v371
      %v1023 = vunpack.c.l.b16 %v372
      %v1024 = vunpack.c.h.b16 %v372
      %v1025 = vunpack.c.l.b16 %v373
      %v1026 = vunpack.c.h.b16 %v373
      %v1027 = vunpack.c.l.b16 %v374
      %v1028 = vunpack.c.h.b16 %v374
      %v1029 = vunpack.c.l.b16 %v375
      %v1030 = vunpack.c.h.b16 %v375
      %v1031 = vunpack.c.l.b16 %v376
      %v1032 = vunpack.c.h.b16 %v376
      %v1033 = vunpack.c.l.b16 %v377
      %v1034 = vunpack.c.h.b16 %v377
      %v1035 = vunpack.c.l.b16 %v378
      %v1036 = vunpack.c.h.b16 %v378
      %v1037 = vunpack.c.l.b16 %v379
      %v1038 = vunpack.c.h.b16 %v379
      %v1039 = vunpack.c.l.b16 %v380
      %v1040 = vunpack.c.h.b16 %v380
      %v1041 = vunpack.c.l.b16 %v381
      %v1042 = vunpack.c.h.b16 %v381
      %v1043 = vunpack.c.l.b16 %v382
      %v1044 = vunpack.c.h.b16 %v382
      %v1045 = vunpack.c.l.b16 %v383
      %v1046 = vunpack.c.h.b16 %v383
      %v1047 = vunpack.c.l.b16 %v384
      %v1048 = vunpack.c.h.b16 %v384
      %v1049 = vunpack.c.l.b16 %v385
      %v1050 = vunpack.c.h.b16 %v385
      %v1051 = vunpack.c.l.b16 %v386
      %v1052 = vunpack.c.h.b16 %v386
      %v1053 = vunpack.c.l.b16 %v387
      %v1054 = vunpack.c.h.b16 %v387
      %v1055 = vunpack.c.l.b16 %v388
      %v1056 = vunpack.c.h.b16 %v388
      %v1057 = vunpack.c.l.b16 %v389
      %v1058 = vunpack.c.h.b16 %v389
      %v1059 = vunpack.c.l.b16 %v390
      %v1060 = vunpack.c.h.b16 %v390
      %v1061 = vunpack.c.l.b16 %v391
      %v1062 = vunpack.c.h.b16 %v391
      %v1063 = vunpack.c.l.b16 %v392
      %v1064 = vunpack.c.h.b16 %v392
      %v1065 = vunpack.c.l.b16 %v393
      %v1066 = vunpack.c.h.b16 %v393
      %v1067 = vunpack.c.l.b16 %v394
      %v1068 = vunpack.c.h.b16 %v394
      %v1069 = vunpack.c.l.b16 %v395
      %v1070 = vunpack.c.h.b16 %v395
      %v1071 = vunpack.c.l.b16 %v396
      %v1072 = vunpack.c.h.b16 %v396
      %v1073 = vunpack.c.l.b16 %v397
      %v1074 = vunpack.c.h.b16 %v397
      %v1075 = vunpack.c.l.b16 %v398
      %v1076 = vunpack.c.h.b16 %v398
      %v1077 = vunpack.c.l.b16 %v399
      %v1078 = vunpack.c.h.b16 %v399
      %v1079 = vunpack.c.l.b16 %v400
      %v1080 = vunpack.c.h.b16 %v400
      %v1081 = vunpack.c.l.b16 %v401
      %v1082 = vunpack.c.h.b16 %v401
      %v1083 = vunpack.c.l.b16 %v402
      %v1084 = vunpack.c.h.b16 %v402
      %v1085 = vunpack.c.l.b16 %v403
      %v1086 = vunpack.c.h.b16 %v403
      %v1087 = vunpack.c.l.b16 %v404
      %v1088 = vunpack.c.h.b16 %v404
      %v1089 = vunpack.c.l.b16 %v405
      %v1090 = vunpack.c.h.b16 %v405
      %v1091 = vunpack.c.l.b16 %v406
      %v1092 = vunpack.c.h.b16 %v406
      %v1093 = vunpack.c.l.b16 %v407
      %v1094 = vunpack.c.h.b16 %v407
      %v1095 = vunpack.c.l.b16 %v408
      %v1096 = vunpack.c.h.b16 %v408
      %v1097 = vunpack.c.l.b16 %v409
      %v1098 = vunpack.c.h.b16 %v409
      %v1099 = vunpack.c.l.b16 %v410
      %v1100 = vunpack.c.h.b16 %v410
      %v1101 = vunpack.c.l.b16 %v411
      %v1102 = vunpack.c.h.b16 %v411
      %v1103 = vunpack.c.l.b16 %v412
      %v1104 = vunpack.c.h.b16 %v412
      %v1105 = vunpack.c.l.b16 %v413
      %v1106 = vunpack.c.h.b16 %v413
      %v1107 = vunpack.c.l.b16 %v414
      %v1108 = vunpack.c.h.b16 %v414
      %v1109 = vunpack.c.l.b16 %v415
      %v1110 = vunpack.c.h.b16 %v415
      %v1111 = vunpack.c.l.b16 %v416
      %v1112 = vunpack.c.h.b16 %v416
      %v1113 = vunpack.c.l.b16 %v417
      %v1114 = vunpack.c.h.b16 %v417
      %v1115 = vunpack.c.l.b16 %v418
      %v1116 = vunpack.c.h.b16 %v418
      %v1117 = vunpack.c.l.b16 %v419
      %v1118 = vunpack.c.h.b16 %v419
      %v1119 = vunpack.c.l.b16 %v420
      %v1120 = vunpack.c.h.b16 %v420
      %v1121 = vunpack.c.l.b16 %v421
      %v1122 = vunpack.c.h.b16 %v421
      %v1123 = vunpack.c.l.b16 %v422
      %v1124 = vunpack.c.h.b16 %v422
      %v1125 = vunpack.c.l.b16 %v423
      %v1126 = vunpack.c.h.b16 %v423
      %v1127 = vunpack.c.l.b16 %v424
      %v1128 = vunpack.c.h.b16 %v424
      %v1129 = vunpack.c.l.b16 %v425
      %v1130 = vunpack.c.h.b16 %v425
      %v1131 = vunpack.c.l.b16 %v426
      %v1132 = vunpack.c.h.b16 %v426
      %v1133 = vunpack.c.l.b16 %v427
      %v1134 = vunpack.c.h.b16 %v427
      %v1135 = vunpack.c.l.b16 %v428
      %v1136 = vunpack.c.h.b16 %v428
      %v1137 = vunpack.c.l.b16 %v429
      %v1138 = vunpack.c.h.b16 %v429
      %v1139 = vunpack.c.l.b16 %v430
      %v1140 = vunpack.c.h.b16 %v430
      %v1141 = vunpack.c.l.b16 %v431
      %v1142 = vunpack.c.h.b16 %v431
      %v1143 = vunpack.c.l.b16 %v432
      %v1144 = vunpack.c.h.b16 %v432
      %v1145 = vunpack.c.l.b16 %v433
      %v1146 = vunpack.c.h.b16 %v433
      %v1147 = vunpack.c.l.b16 %v434
      %v1148 = vunpack.c.h.b16 %v434
      %v1149 = vunpack.c.l.b16 %v435
      %v1150 = vunpack.c.h.b16 %v435
      %v1151 = vunpack.c.l.b16 %v436
      %v1152 = vunpack.c.h.b16 %v436
      %v1153 = vunpack.c.l.b16 %v437
      %v1154 = vunpack.c.h.b16 %v437
      %v1155 = vunpack.c.l.b16 %v438
      %v1156 = vunpack.c.h.b16 %v438
      %v1157 = vunpack.c.l.b16 %v439
      %v1158 = vunpack.c.h.b16 %v439
      %v1159 = vunpack.c.l.b16 %v440
      %v1160 = vunpack.c.h.b16 %v440
      %v1161 = vunpack.c.l.b16 %v441
      %v1162 = vunpack.c.h.b16 %v441
      %v1163 = vunpack.c.l.b16 %v442
      %v1164 = vunpack.c.h.b16 %v442
      %v1165 = vunpack.c.l.b16 %v443
      %v1166 = vunpack.c.h.b16 %v443
      %v1167 = vunpack.c.l.b16 %v444
      %v1168 = vunpack.c.h.b16 %v444
      %v1169 = vunpack.c.l.b16 %v445
      %v1170 = vunpack.c.h.b16 %v445
      %v1171 = vunpack.c.l.b16 %v446
      %v1172 = vunpack.c.h.b16 %v446
      %v1173 = vunpack.c.l.b16 %v447
      %v1174 = vunpack.c.h.b16 %v447
      %v1175 = vunpack.c.l.b16 %v448
      %v1176 = vunpack.c.h.b16 %v448
      %v1177 = vunpack.c.l.b16 %v449
      %v1178 = vunpack.c.h.b16 %v449
      %v1179 = vunpack.c.l.b16 %v450
      %v1180 = vunpack.c.h.b16 %v450
      %v1181 = vunpack.c.l.b16 %v451
      %v1182 = vunpack.c.h.b16 %v451
      %v1183 = vunpack.c.l.b16 %v452
      %v1184 = vunpack.c.h.b16 %v452
      %v1185 = vunpack.c.l.b16 %v453
      %v1186 = vunpack.c.h.b16 %v453
      %v1187 = vunpack.c.l.b16 %v454
      %v1188 = vunpack.c.h.b16 %v454
      %v1189 = vunpack.c.l.b16 %v455
      %v1190 = vunpack.c.h.b16 %v455
      %v1191 = vunpack.c.l.b16 %v456
      %v1192 = vunpack.c.h.b16 %v456
      %v1193 = vunpack.c.l.b16 %v457
      %v1194 = vunpack.c.h.b16 %v457
      %v1195 = vunpack.c.l.b16 %v458
      %v1196 = vunpack.c.h.b16 %v458
      %v1197 = vunpack.c.l.b16 %v459
      %v1198 = vunpack.c.h.b16 %v459
      %v1199 = vunpack.c.l.b16 %v460
      %v1200 = vunpack.c.h.b16 %v460
      %v1201 = vunpack.c.l.b16 %v461
      %v1202 = vunpack.c.h.b16 %v461
      %v1203 = vunpack.c.l.b16 %v462
      %v1204 = vunpack.c.h.b16 %v462
      %v1205 = vunpack.c.l.b16 %v463
      %v1206 = vunpack.c.h.b16 %v463
      %v1207 = vunpack.c.l.b16 %v464
      %v1208 = vunpack.c.h.b16 %v464
      %v1209 = vunpack.c.l.b16 %v465
      %v1210 = vunpack.c.h.b16 %v465
      %v1211 = vunpack.c.l.b16 %v466
      %v1212 = vunpack.c.h.b16 %v466
      %v1213 = vunpack.c.l.b16 %v467
      %v1214 = vunpack.c.h.b16 %v467
      %v1215 = vunpack.c.l.b16 %v468
      %v1216 = vunpack.c.h.b16 %v468
      %v1217 = vunpack.c.l.b16 %v469
      %v1218 = vunpack.c.h.b16 %v469
      %v1219 = vunpack.c.l.b16 %v470
      %v1220 = vunpack.c.h.b16 %v470
      %v1221 = vunpack.c.l.b16 %v471
      %v1222 = vunpack.c.h.b16 %v471
      %v1223 = vunpack.c.l.b16 %v472
      %v1224 = vunpack.c.h.b16 %v472
      %v1225 = vunpack.c.l.b16 %v473
      %v1226 = vunpack.c.h.b16 %v473
      %v1227 = vunpack.c.l.b16 %v474
      %v1228 = vunpack.c.h.b16 %v474
      %v1229 = vunpack.c.l.b16 %v475
      %v1230 = vunpack.c.h.b16 %v475
      %v1231 = vunpack.c.l.b16 %v476
      %v1232 = vunpack.c.h.b16 %v476
      %v1233 = vunpack.c.l.b16 %v477
      %v1234 = vunpack.c.h.b16 %v477
      %v1235 = vunpack.c.l.b16 %v478
      %v1236 = vunpack.c.h.b16 %v478
      %v1237 = vunpack.c.l.b16 %v479
      %v1238 = vunpack.c.h.b16 %v479
      %v1239 = vunpack.c.l.b16 %v480
      %v1240 = vunpack.c.h.b16 %v480
      %v1241 = vunpack.c.l.b16 %v481
      %v1242 = vunpack.c.h.b16 %v481
      %v1243 = vunpack.c.l.b16 %v482
      %v1244 = vunpack.c.h.b16 %v482
      %v1245 = vunpack.c.l.b16 %v483
      %v1246 = vunpack.c.h.b16 %v483
      %v1247 = vunpack.c.l.b16 %v484
      %v1248 = vunpack.c.h.b16 %v484
      %v1249 = vunpack.c.l.b16 %v485
      %v1250 = vunpack.c.h.b16 %v485
      %v1251 = vunpack.c.l.b16 %v486
      %v1252 = vunpack.c.h.b16 %v486
      %v1253 = vunpack.c.l.b16 %v487
      %v1254 = vunpack.c.h.b16 %v487
      %v1255 = vunpack.c.l.b16 %v488
      %v1256 = vunpack.c.h.b16 %v488
      %v1257 = vunpack.c.l.b16 %v489
      %v1258 = vunpack.c.h.b16 %v489
      %v1259 = vunpack.c.l.b16 %v490
      %v1260 = vunpack.c.h.b16 %v490
      %v1261 = vunpack.c.l.b16 %v491
      %v1262 = vunpack.c.h.b16 %v491
      %v1263 = vunpack.c.l.b16 %v492
      %v1264 = vunpack.c.h.b16 %v492
      %v1265 = vunpack.c.l.b16 %v493
      %v1266 = vunpack.c.h.b16 %v493
      %v1267 = vunpack.c.l.b16 %v494
      %v1268 = vunpack.c.h.b16 %v494
      %v1269 = vunpack.c.l.b16 %v495
      %v1270 = vunpack.c.h.b16 %v495
      %v1271 = vunpack.c.l.b16 %v496
      %v1272 = vunpack.c.h.b16 %v496
      %v1273 = vunpack.c.l.b16 %v497
      %v1274 = vunpack.c.h.b16 %v497
      %v1275 = vunpack.c.l.b16 %v498
      %v1276 = vunpack.c.h.b16 %v498
      %v1277 = vunpack.c.l.b16 %v499
      %v1278 = vunpack.c.h.b16 %v499
      %v1279 = vunpack.c.l.b16 %v500
      %v1280 = vunpack.c.h.b16 %v500
      %v1281 = vunpack.c.l.b16 %v501
      %v1282 = vunpack.c.h.b16 %v501
      %v1283 = vunpack.c.l.b16 %v502
      %v1284 = vunpack.c.h.b16 %v502
      %v1285 = vunpack.c.l.b16 %v503
      %v1286 = vunpack.c.h.b16 %v503
      %v1287 = vunpack.c.l.b16 %v504
      %v1288 = vunpack.c.h.b16 %v504
      %v1289 = vunpack.c.l.b16 %v505
      %v1290 = vunpack.c.h.b16 %v505
      %v1291 = vunpack.c.l.b16 %v506
      %v1292 = vunpack.c.h.b16 %v506
      %v1293 = vunpack.c.l.b16 %v507
      %v1294 = vunpack.c.h.b16 %v507
      %v1295 = vunpack.c.l.b16 %v508
      %v1296 = vunpack.c.h.b16 %v508
      %v1297 = vunpack.c.l.b16 %v509
      %v1298 = vunpack.c.h.b16 %v509
      %v1299 = vunpack.c.l.b16 %v510
      %v1300 = vunpack.c.h.b16 %v510
      %v1301 = vunpack.c.l.b16 %v511
      %v1302 = vunpack.c.h.b16 %v511
      %v1303 = vunpack.c.l.b16 %v512
      %v1304 = vunpack.c.h.b16 %v512
      %v1305 = vunpack.c.l.b16 %v513
      %v1306 = vunpack.c.h.b16 %v513
      %v1307 = vunpack.c.l.b16 %v514
      %v1308 = vunpack.c.h.b16 %v514
      %v1309 = vunpack.c.l.b16 %v515
      %v1310 = vunpack.c.h.b16 %v515
      %v1311 = vunpack.c.l.b16 %v516
      %v1312 = vunpack.c.h.b16 %v516
      %v1313 = vunpack.c.l.b16 %v517
      %v1314 = vunpack.c.h.b16 %v517
      %v1315 = vunpack.c.l.b16 %v518
      %v1316 = vunpack.c.h.b16 %v518
      %v1317 = vunpack.c.l.b16 %v519
      %v1318 = vunpack.c.h.b16 %v519
      %v1319 = vunpack.c.l.b16 %v520
      %v1320 = vunpack.c.h.b16 %v520
      %v1321 = vunpack.c.l.b16 %v521
      %v1322 = vunpack.c.h.b16 %v521
      %v1323 = vunpack.c.l.b16 %v522
      %v1324 = vunpack.c.h.b16 %v522
      %v1325 = vunpack.c.l.b16 %v523
      %v1326 = vunpack.c.h.b16 %v523
      %v1327 = vunpack.c.l.b16 %v524
      %v1328 = vunpack.c.h.b16 %v524
      %v1329 = vunpack.c.l.b16 %v525
      %v1330 = vunpack.c.h.b16 %v525
      %v1331 = vunpack.c.l.b16 %v526
      %v1332 = vunpack.c.h.b16 %v526
      %v1333 = vunpack.c.l.b16 %v527
      %v1334 = vunpack.c.h.b16 %v527
      %v1335 = vunpack.c.l.b16 %v528
      %v1336 = vunpack.c.h.b16 %v528
      %v1337 = vunpack.c.l.b16 %v529
      %v1338 = vunpack.c.h.b16 %v529
      %v1339 = vunpack.c.l.b16 %v530
      %v1340 = vunpack.c.h.b16 %v530
      %v1341 = vunpack.c.l.b16 %v531
      %v1342 = vunpack.c.h.b16 %v531
      %v1343 = vunpack.c.l.b16 %v532
      %v1344 = vunpack.c.h.b16 %v532
      %v1345 = vunpack.c.l.b16 %v533
      %v1346 = vunpack.c.h.b16 %v533
      %v1347 = vunpack.c.l.b16 %v534
      %v1348 = vunpack.c.h.b16 %v534
      %v1349 = vunpack.c.l.b16 %v535
      %v1350 = vunpack.c.h.b16 %v535
      %v1351 = vunpack.c.l.b16 %v536
      %v1352 = vunpack.c.h.b16 %v536
      %v1353 = vunpack.c.l.b16 %v537
      %v1354 = vunpack.c.h.b16 %v537
      %v1355 = vunpack.c.l.b16 %v538
      %v1356 = vunpack.c.h.b16 %v538
      %v1357 = vunpack.c.l.b16 %v539
      %v1358 = vunpack.c.h.b16 %v539
      %v1359 = vunpack.c.l.b16 %v540
      %v1360 = vunpack.c.h.b16 %v540
      %v1361 = vunpack.c.l.b16 %v541
      %v1362 = vunpack.c.h.b16 %v541
      %v1363 = vunpack.c.l.b16 %v542
      %v1364 = vunpack.c.h.b16 %v542
      %v1365 = vunpack.c.l.b16 %v543
      %v1366 = vunpack.c.h.b16 %v543
      %v1367 = vunpack.c.l.b16 %v544
      %v1368 = vunpack.c.h.b16 %v544
      %v1369 = vunpack.c.l.b16 %v545
      %v1370 = vunpack.c.h.b16 %v545
      %v1371 = vunpack.c.l.b16 %v546
      %v1372 = vunpack.c.h.b16 %v546
      %v1373 = vunpack.c.l.b16 %v547
      %v1374 = vunpack.c.h.b16 %v547
      %v1375 = vunpack.c.l.b16 %v548
      %v1376 = vunpack.c.h.b16 %v548
      %v1377 = vunpack.c.l.b16 %v549
      %v1378 = vunpack.c.h.b16 %v549
      %v1379 = vunpack.c.l.b16 %v550
      %v1380 = vunpack.c.h.b16 %v550
      %v1381 = vunpack.c.l.b16 %v551
      %v1382 = vunpack.c.h.b16 %v551
      %v1383 = vunpack.c.l.b16 %v552
      %v1384 = vunpack.c.h.b16 %v552
      %v1385 = vunpack.c.l.b16 %v553
      %v1386 = vunpack.c.h.b16 %v553
      %v1387 = vunpack.c.l.b16 %v554
      %v1388 = vunpack.c.h.b16 %v554
      %v1389 = vunpack.c.l.b16 %v555
      %v1390 = vunpack.c.h.b16 %v555
      %v1391 = vunpack.c.l.b16 %v556
      %v1392 = vunpack.c.h.b16 %v556
      %v1393 = vunpack.c.l.b16 %v557
      %v1394 = vunpack.c.h.b16 %v557
      %v1395 = vunpack.c.l.b16 %v558
      %v1396 = vunpack.c.h.b16 %v558
      %v1397 = vunpack.c.l.b16 %v559
      %v1398 = vunpack.c.h.b16 %v559
      %v1399 = vunpack.c.l.b16 %v560
      %v1400 = vunpack.c.h.b16 %v560
      %v1401 = vunpack.c.l.b16 %v561
      %v1402 = vunpack.c.h.b16 %v561
      %v1403 = vunpack.c.l.b16 %v562
      %v1404 = vunpack.c.h.b16 %v562
      %v1405 = vunpack.c.l.b16 %v563
      %v1406 = vunpack.c.h.b16 %v563
      %v1407 = vunpack.c.l.b16 %v564
      %v1408 = vunpack.c.h.b16 %v564
      %v1409 = vunpack.c.l.b16 %v565
      %v1410 = vunpack.c.h.b16 %v565
      %v1411 = vunpack.c.l.b16 %v566
      %v1412 = vunpack.c.h.b16 %v566
      %v1413 = vunpack.c.l.b16 %v567
      %v1414 = vunpack.c.h.b16 %v567
      %v1415 = vunpack.c.l.b16 %v568
      %v1416 = vunpack.c.h.b16 %v568
      %v1417 = vunpack.c.l.b16 %v569
      %v1418 = vunpack.c.h.b16 %v569
      %v1419 = vunpack.c.l.b16 %v570
      %v1420 = vunpack.c.h.b16 %v570
      %v1421 = vunpack.c.l.b16 %v571
      %v1422 = vunpack.c.h.b16 %v571
      %v1423 = vunpack.c.l.b16 %v572
      %v1424 = vunpack.c.h.b16 %v572
      %v1425 = vunpack.c.l.b16 %v573
      %v1426 = vunpack.c.h.b16 %v573
      %v1427 = vunpack.c.l.b16 %v574
      %v1428 = vunpack.c.h.b16 %v574
      %v1429 = vunpack.c.l.b16 %v575
      %v1430 = vunpack.c.h.b16 %v575
      %v1431 = vunpack.c.l.b16 %v576
      %v1432 = vunpack.c.h.b16 %v576
      %v1433 = vunpack.c.l.b16 %v577
      %v1434 = vunpack.c.h.b16 %v577
      %v1435 = vunpack.c.l.b16 %v578
      %v1436 = vunpack.c.h.b16 %v578
      %v1437 = vunpack.c.l.b16 %v579
      %v1438 = vunpack.c.h.b16 %v579
      %v1439 = vunpack.c.l.b16 %v580
      %v1440 = vunpack.c.h.b16 %v580
      %v1441 = vunpack.c.l.b16 %v581
      %v1442 = vunpack.c.h.b16 %v581
      %v1443 = vunpack.c.l.b16 %v582
      %v1444 = vunpack.c.h.b16 %v582
      %v1445 = vunpack.c.l.b16 %v583
      %v1446 = vunpack.c.h.b16 %v583
      %v1447 = vunpack.c.l.b16 %v584
      %v1448 = vunpack.c.h.b16 %v584
      %v1449 = vunpack.c.l.b16 %v585
      %v1450 = vunpack.c.h.b16 %v585
      %v1451 = vunpack.c.l.b16 %v586
      %v1452 = vunpack.c.h.b16 %v586
      %v1453 = vunpack.c.l.b16 %v587
      %v1454 = vunpack.c.h.b16 %v587
      %v1455 = vunpack.c.l.b16 %v588
      %v1456 = vunpack.c.h.b16 %v588
      %v1457 = vunpack.c.l.b16 %v589
      %v1458 = vunpack.c.h.b16 %v589
      %v1459 = vunpack.c.l.b16 %v590
      %v1460 = vunpack.c.h.b16 %v590
      %v1461 = vunpack.c.l.b16 %v591
      %v1462 = vunpack.c.h.b16 %v591
      %v1463 = vunpack.c.l.b16 %v592
      %v1464 = vunpack.c.h.b16 %v592
      %v1465 = vunpack.c.l.b16 %v593
      %v1466 = vunpack.c.h.b16 %v593
      %v1467 = vunpack.c.l.b16 %v594
      %v1468 = vunpack.c.h.b16 %v594
      %v1469 = vunpack.c.l.b16 %v595
      %v1470 = vunpack.c.h.b16 %v595
      %v1471 = vunpack.c.l.b16 %v596
      %v1472 = vunpack.c.h.b16 %v596
      %v1473 = vunpack.c.l.b16 %v597
      %v1474 = vunpack.c.h.b16 %v597
      %v1475 = vunpack.c.l.b16 %v598
      %v1476 = vunpack.c.h.b16 %v598
      %v1477 = vunpack.c.l.b16 %v599
      %v1478 = vunpack.c.h.b16 %v599
      %v1479 = vunpack.c.l.b16 %v600
      %v1480 = vunpack.c.h.b16 %v600
      %v1481 = vunpack.c.l.b16 %v601
      %v1482 = vunpack.c.h.b16 %v601
      %v1483 = vunpack.c.l.b16 %v602
      %v1484 = vunpack.c.h.b16 %v602
      %v1485 = vunpack.c.l.b16 %v603
      %v1486 = vunpack.c.h.b16 %v603
      %v1487 = vunpack.c.l.b16 %v604
      %v1488 = vunpack.c.h.b16 %v604
      %v1489 = vunpack.c.l.b16 %v605
      %v1490 = vunpack.c.h.b16 %v605
      %v1491 = vunpack.c.l.b16 %v606
      %v1492 = vunpack.c.h.b16 %v606
      %v1493 = vunpack.c.l.b16 %v607
      %v1494 = vunpack.c.h.b16 %v607
      %v1495 = vunpack.c.l.b16 %v608
      %v1496 = vunpack.c.h.b16 %v608
      %v1497 = vunpack.c.l.b16 %v609
      %v1498 = vunpack.c.h.b16 %v609
      %v1499 = vunpack.c.l.b16 %v610
      %v1500 = vunpack.c.h.b16 %v610
      %v1501 = vunpack.c.l.b16 %v611
      %v1502 = vunpack.c.h.b16 %v611
      %v1503 = vunpack.c.l.b16 %v612
      %v1504 = vunpack.c.h.b16 %v612
      %v1505 = vunpack.c.l.b16 %v613
      %v1506 = vunpack.c.h.b16 %v613
      %v1507 = vunpack.c.l.b16 %v614
      %v1508 = vunpack.c.h.b16 %v614
      %v1509 = vunpack.c.l.b16 %v615
      %v1510 = vunpack.c.h.b16 %v615
      %v1511 = vunpack.c.l.b16 %v616
      %v1512 = vunpack.c.h.b16 %v616
      %v1513 = vpack.c.b16 %v1009, %v1001
      %v1514 = vpack.c.b16 %v1010, %v1002
      %v1515 = vpack.c.b16 %v1011, %v1003
      %v1516 = vpack.c.b16 %v1012, %v1004
      %v1517 = vpack.c.b16 %v1013, %v1005
      %v1518 = vpack.c.b16 %v1014, %v1006
      %v1519 = vpack.c.b16 %v1015, %v1007
      %v1520 = vpack.c.b16 %v1016, %v1008
      %v1521 = vpack.c.b16 %v1025, %v1017
      %v1522 = vpack.c.b16 %v1026, %v1018
      %v1523 = vpack.c.b16 %v1027, %v1019
      %v1524 = vpack.c.b16 %v1028, %v1020
      %v1525 = vpack.c.b16 %v1029, %v1021
      %v1526 = vpack.c.b16 %v1030, %v1022
      %v1527 = vpack.c.b16 %v1031, %v1023
      %v1528 = vpack.c.b16 %v1032, %v1024
      %v1529 = vpack.c.b16 %v1041, %v1033
      %v1530 = vpack.c.b16 %v1042, %v1034
      %v1531 = vpack.c.b16 %v1043, %v1035
      %v1532 = vpack.c.b16 %v1044, %v1036
      %v1533 = vpack.c.b16 %v1045, %v1037
      %v1534 = vpack.c.b16 %v1046, %v1038
      %v1535 = vpack.c.b16 %v1047, %v1039
      %v1536 = vpack.c.b16 %v1048, %v1040
      %v1537 = vpack.c.b16 %v1057, %v1049
      %v1538 = vpack.c.b16 %v1058, %v1050
      %v1539 = vpack.c.b16 %v1059, %v1051
      %v1540 = vpack.c.b16 %v1060, %v1052
      %v1541 = vpack.c.b16 %v1061, %v1053
      %v1542 = vpack.c.b16 %v1062, %v1054
      %v1543 = vpack.c.b16 %v1063, %v1055
      %v1544 = vpack.c.b16 %v1064, %v1056
      %v1545 = vpack.c.b16 %v1073, %v1065
      %v1546 = vpack.c.b16 %v1074, %v1066
      %v1547 = vpack.c.b16 %v1075, %v1067
      %v1548 = vpack.c.b16 %v1076, %v1068
      %v1549 = vpack.c.b16 %v1077, %v1069
      %v1550 = vpack.c.b16 %v1078, %v1070
      %v1551 = vpack.c.b16 %v1079, %v1071
      %v1552 = vpack.c.b16 %v1080, %v1072
      %v1553 = vpack.c.b16 %v1089, %v1081
      %v1554 = vpack.c.b16 %v1090, %v1082
      %v1555 = vpack.c.b16 %v1091, %v1083
      %v1556 = vpack.c.b16 %v1092, %v1084
      %v1557 = vpack.c.b16 %v1093, %v1085
      %v1558 = vpack.c.b16 %v1094, %v1086
      %v1559 = vpack.c.b16 %v1095, %v1087
      %v1560 = vpack.c.b16 %v1096, %v1088
      %v1561 = vpack.c.b16 %v1105, %v1097
      %v1562 = vpack.c.b16 %v1106, %v1098
      %v1563 = vpack.c.b16 %v1107, %v1099
      %v1564 = vpack.c.b16 %v1108, %v1100
      %v1565 = vpack.c.b16 %v1109, %v1101
      %v1566 = vpack.c.b16 %v1110, %v1102
      %v1567 = vpack.c.b16 %v1111, %v1103
      %v1568 = vpack.c.b16 %v1112, %v1104
      %v1569 = vpack.c.b16 %v1121, %v1113
      %v1570 = vpack.c.b16 %v1122, %v1114
      %v1571 = vpack.c.b16 %v1123, %v1115
      %v1572 = vpack.c.b16 %v1124, %v1116
      %v1573 = vpack.c.b16 %v1125, %v1117
      %v1574 = vpack.c.b16 %v1126, %v1118
      %v1575 = vpack.c.b16 %v1127, %v1119
      %v1576 = vpack.c.b16 %v1128, %v1120
      %v1577 = vpack.c.b16 %v1137, %v1129
      %v1578 = vpack.c.b16 %v1138, %v1130
      %v1579 = vpack.c.b16 %v1139, %v1131
      %v1580 = vpack.c.b16 %v1140, %v1132
      %v1581 = vpack.c.b16 %v1141, %v1133
      %v1582 = vpack.c.b16 %v1142, %v1134
      %v1583 = vpack.c.b16 %v1143, %v1135
      %v1584 = vpack.c.b16 %v1144, %v1136
      %v1585 = vpack.c.b16 %v1153, %v1145
      %v1586 = vpack.c.b16 %v1154, %v1146
      %v1587 = vpack.c.b16 %v1155, %v1147
      %v1588 = vpack.c.b16 %v1156, %v1148
      %v1589 = vpack.c.b16 %v1157, %v1149
      %v1590 = vpack.c.b16 %v1158, %v1150
      %v1591 = vpack.c.b16 %v1159, %v1151
      %v1592 = vpack.c.b16 %v1160, %v1152
      %v1593 = vpack.c.b16 %v1169, %v1161
      %v1594 = vpack.c.b16 %v1170, %v1162
      %v1595 = vpack.c.b16 %v1171, %v1163
      %v1596 = vpack.c.b16 %v1172, %v1164
      %v1597 = vpack.c.b16 %v1173, %v1165
      %v1598 = vpack.c.b16 %v1174, %v1166
      %v1599 = vpack.c.b16 %v1175, %v1167
      %v1600 = vpack.c.b16 %v1176, %v1168
      %v1601 = vpack.c.b16 %v1185, %v1177
      %v1602 = vpack.c.b16 %v1186, %v1178
      %v1603 = vpack.c.b16 %v1187, %v1179
      %v1604 = vpack.c.b16 %v1188, %v1180
      %v1605 = vpack.c.b16 %v1189, %v1181
      %v1606 = vpack.c.b16 %v1190, %v1182
      %v1607 = vpack.c.b16 %v1191, %v1183
      %v1608 = vpack.c.b16 %v1192, %v1184
      %v1609 = vpack.c.b16 %v1201, %v1193
      %v1610 = vpack.c.b16 %v1202, %v1194
      %v1611 = vpack.c.b16 %v1203, %v1195
      %v1612 = vpack.c.b16 %v1204, %v1196
      %v1613 = vpack.c.b16 %v1205, %v1197
      %v1614 = vpack.c.b16 %v1206, %v1198
      %v1615 = vpack.c.b16 %v1207, %v1199
      %v1616 = vpack.c.b16 %v1208, %v1200
      %v1617 = vpack.c.b16 %v1217, %v1209
      %v1618 = vpack.c.b16 %v1218, %v1210
      %v1619 = vpack.c.b16 %v1219, %v1211
      %v1620 = vpack.c.b16 %v1220, %v1212
      %v1621 = vpack.c.b16 %v1221, %v1213
      %v1622 = vpack.c.b16 %v1222, %v1214
      %v1623 = vpack.c.b16 %v1223, %v1215
      %v1624 = vpack.c.b16 %v1224, %v1216
      %v1625 = vpack.c.b16 %v1233, %v1225
      %v1626 = vpack.c.b16 %v1234, %v1226
      %v1627 = vpack.c.b16 %v1235, %v1227
      %v1628 = vpack.c.b16 %v1236, %v1228
      %v1629 = vpack.c.b16 %v1237, %v1229
      %v1630 = vpack.c.b16 %v1238, %v1230
      %v1631 = vpack.c.b16 %v1239, %v1231
      %v1632 = vpack.c.b16 %v1240, %v1232
      %v1633 = vpack.c.b16 %v1249, %v1241
      %v1634 = vpack.c.b16 %v1250, %v1242
      %v1635 = vpack.c.b16 %v1251, %v1243
      %v1636 = vpack.c.b16 %v1252, %v1244
      %v1637 = vpack.c.b16 %v1253, %v1245
      %v1638 = vpack.c.b16 %v1254, %v1246
      %v1639 = vpack.c.b16 %v1255, %v1247
      %v1640 = vpack.c.b16 %v1256, %v1248
      %v1641 = vpack.c.b16 %v1265, %v1257
      %v1642 = vpack.c.b16 %v1266, %v1258
      %v1643 = vpack.c.b16 %v1267, %v1259
      %v1644 = vpack.c.b16 %v1268, %v1260
      %v1645 = vpack.c.b16 %v1269, %v1261
      %v1646 = vpack.c.b16 %v1270, %v1262
      %v1647 = vpack.c.b16 %v1271, %v1263
      %v1648 = vpack.c.b16 %v1272, %v1264
      %v1649 = vpack.c.b16 %v1281, %v1273
      %v1650 = vpack.c.b16 %v1282, %v1274
      %v1651 = vpack.c.b16 %v1283, %v1275
      %v1652 = vpack.c.b16 %v1284, %v1276
      %v1653 = vpack.c.b16 %v1285, %v1277
      %v1654 = vpack.c.b16 %v1286, %v1278
      %v1655 = vpack.c.b16 %v1287, %v1279
      %v1656 = vpack.c.b16 %v1288, %v1280
      %v1657 = vpack.c.b16 %v1297, %v1289
      %v1658 = vpack.c.b16 %v1298, %v1290
      %v1659 = vpack.c.b16 %v1299, %v1291
      %v1660 = vpack.c.b16 %v1300, %v1292
      %v1661 = vpack.c.b16 %v1301, %v1293
      %v1662 = vpack.c.b16 %v1302, %v1294
      %v1663 = vpack.c.b16 %v1303, %v1295
      %v1664 = vpack.c.b16 %v1304, %v1296
      %v1665 = vpack.c.b16 %v1313, %v1305
      %v1666 = vpack.c.b16 %v1314, %v1306
      %v1667 = vpack.c.b16 %v1315, %v1307
      %v1668 = vpack.c.b16 %v1316, %v1308
      %v1669 = vpack.c.b16 %v1317, %v1309
      %v1670 = vpack.c.b16 %v1318, %v1310
      %v1671 = vpack.c.b16 %v1319, %v1311
      %v1672 = vpack.c.b16 %v1320, %v1312
      %v1673 = vpack.c.b16 %v1329, %v1321
      %v1674 = vpack.c.b16 %v1330, %v1322
      %v1675 = vpack.c.b16 %v1331, %v1323
      %v1676 = vpack.c.b16 %v1332, %v1324
      %v1677 = vpack.c.b16 %v1333, %v1325
      %v1678 = vpack.c.b16 %v1334, %v1326
      %v1679 = vpack.c.b16 %v1335, %v1327
      %v1680 = vpack.c.b16 %v1336, %v1328
      %v1681 = vpack.c.b16 %v1345, %v1337
      %v1682 = vpack.c.b16 %v1346, %v1338
      %v1683 = vpack.c.b16 %v1347, %v1339
      %v1684 = vpack.c.b16 %v1348, %v1340
      %v1685 = vpack.c.b16 %v1349, %v1341
      %v1686 = vpack.c.b16 %v1350, %v1342
      %v1687 = vpack.c.b16 %v1351, %v1343
      %v1688 = vpack.c.b16 %v1352, %v1344
      %v1689 = vpack.c.b16 %v1361, %v1353
      %v1690 = vpack.c.b16 %v1362, %v1354
      %v1691 = vpack.c.b16 %v1363, %v1355
      %v1692 = vpack.c.b16 %v1364, %v1356
      %v1693 = vpack.c.b16 %v1365, %v1357
      %v1694 = vpack.c.b16 %v1366, %v1358
      %v1695 = vpack.c.b16 %v1367, %v1359
      %v1696 = vpack.c.b16 %v1368, %v1360
      %v1697 = vpack.c.b16 %v1377, %v1369
      %v1698 = vpack.c.b16 %v1378, %v1370
      %v1699 = vpack.c.b16 %v1379, %v1371
      %v1700 = vpack.c.b16 %v1380, %v1372
      %v1701 = vpack.c.b16 %v1381, %v1373
      %v1702 = vpack.c.b16 %v1382, %v1374
      %v1703 = vpack.c.b16 %v1383, %v1375
      %v1704 = vpack.c.b16 %v1384, %v1376
      %v1705 = vpack.c.b16 %v1393, %v1385
      %v1706 = vpack.c.b16 %v1394, %v1386
      %v1707 = vpack.c.b16 %v1395, %v1387
      %v1708 = vpack.c.b16 %v1396, %v1388
      %v1709 = vpack.c.b16 %v1397, %v1389
      %v1710 = vpack.c.b16 %v1398, %v1390
      %v1711 = vpack.c.b16 %v1399, %v1391
      %v1712 = vpack.c.b16 %v1400, %v1392
      %v1713 = vpack.c.b16 %v1409, %v1401
      %v1714 = vpack.c.b16 %v1410, %v1402
      %v1715 = vpack.c.b16 %v1411, %v1403
      %v1716 = vpack.c.b16 %v1412, %v1404
      %v1717 = vpack.c.b16 %v1413, %v1405
      %v1718 = vpack.c.b16 %v1414, %v1406
      %v1719 = vpack.c.b16 %v1415, %v1407
      %v1720 = vpack.c.b16 %v1416, %v1408
      %v1721 = vpack.c.b16 %v1425, %v1417
      %v1722 = vpack.c.b16 %v1426, %v1418
      %v1723 = vpack.c.b16 %v1427, %v1419
      %v1724 = vpack.c.b16 %v1428, %v1420
      %v1725 = vpack.c.b16 %v1429, %v1421
      %v1726 = vpack.c.b16 %v1430, %v1422
      %v1727 = vpack.c.b16 %v1431, %v1423
      %v1728 = vpack.c.b16 %v1432, %v1424
      %v1729 = vpack.c.b16 %v1441, %v1433
      %v1730 = vpack.c.b16 %v1442, %v1434
      %v1731 = vpack.c.b16 %v1443, %v1435
      %v1732 = vpack.c.b16 %v1444, %v1436
      %v1733 = vpack.c.b16 %v1445, %v1437
      %v1734 = vpack.c.b16 %v1446, %v1438
      %v1735 = vpack.c.b16 %v1447, %v1439
      %v1736 = vpack.c.b16 %v1448, %v1440
      %v1737 = vpack.c.b16 %v1457, %v1449
      %v1738 = vpack.c.b16 %v1458, %v1450
      %v1739 = vpack.c.b16 %v1459, %v1451
      %v1740 = vpack.c.b16 %v1460, %v1452
      %v1741 = vpack.c.b16 %v1461, %v1453
      %v1742 = vpack.c.b16 %v1462, %v1454
      %v1743 = vpack.c.b16 %v1463, %v1455
      %v1744 = vpack.c.b16 %v1464, %v1456
      %v1745 = vpack.c.b16 %v1473, %v1465
      %v1746 = vpack.c.b16 %v1474, %v1466
      %v1747 = vpack.c.b16 %v1475, %v1467
      %v1748 = vpack.c.b16 %v1476, %v1468
      %v1749 = vpack.c.b16 %v1477, %v1469
      %v1750 = vpack.c.b16 %v1478, %v1470
      %v1751 = vpack.c.b16 %v1479, %v1471
      %v1752 = vpack.c.b16 %v1480, %v1472
      %v1753 = vpack.c.b16 %v1489, %v1481
      %v1754 = vpack.c.b16 %v1490, %v1482
      %v1755 = vpack.c.b16 %v1491, %v1483
      %v1756 = vpack.c.b16 %v1492, %v1484
      %v1757 = vpack.c.b16 %v1493, %v1485
      %v1758 = vpack.c.b16 %v1494, %v1486
      %v1759 = vpack.c.b16 %v1495, %v1487
      %v1760 = vpack.c.b16 %v1496, %v1488
      %v1761 = vpack.c.b16 %v1505, %v1497
      %v1762 = vpack.c.b16 %v1506, %v1498
      %v1763 = vpack.c.b16 %v1507, %v1499
      %v1764 = vpack.c.b16 %v1508, %v1500
      %v1765 = vpack.c.b16 %v1509, %v1501
      %v1766 = vpack.c.b16 %v1510, %v1502
      %v1767 = vpack.c.b16 %v1511, %v1503
      %v1768 = vpack.c.b16 %v1512, %v1504
      %v2153 = vunpack.c.l.b16 %v617
      %v2154 = vunpack.c.l.b16 %v618
      %v2155 = vunpack.c.l.b16 %v619
      %v2156 = vunpack.c.l.b16 %v620
      %v2157 = vunpack.c.l.b16 %v621
      %v2158 = vunpack.c.l.b16 %v622
      %v2159 = vunpack.c.l.b16 %v623
      %v2160 = vunpack.c.l.b16 %v624
      %v2161 = vunpack.c.l.b16 %v625
      %v2162 = vunpack.c.l.b16 %v626
      %v2163 = vunpack.c.l.b16 %v627
      %v2164 = vunpack.c.l.b16 %v628
      %v2165 = vunpack.c.l.b16 %v629
      %v2166 = vunpack.c.l.b16 %v630
      %v2167 = vunpack.c.l.b16 %v631
      %v2168 = vunpack.c.l.b16 %v632
      %v2169 = vunpack.c.l.b16 %v633
      %v2170 = vunpack.c.l.b16 %v634
      %v2171 = vunpack.c.l.b16 %v635
      %v2172 = vunpack.c.l.b16 %v636
      %v2173 = vunpack.c.l.b16 %v637
      %v2174 = vunpack.c.l.b16 %v638
      %v2175 = vunpack.c.l.b16 %v639
      %v2176 = vunpack.c.l.b16 %v640
      %v2177 = vunpack.c.l.b16 %v641
      %v2178 = vunpack.c.l.b16 %v642
      %v2179 = vunpack.c.l.b16 %v643
      %v2180 = vunpack.c.l.b16 %v644
      %v2181 = vunpack.c.l.b16 %v645
      %v2182 = vunpack.c.l.b16 %v646
      %v2183 = vunpack.c.l.b16 %v647
      %v2184 = vunpack.c.l.b16 %v648
      %v2185 = vunpack.c.l.b16 %v649
      %v2186 = vunpack.c.l.b16 %v650
      %v2187 = vunpack.c.l.b16 %v651
      %v2188 = vunpack.c.l.b16 %v652
      %v2189 = vunpack.c.l.b16 %v653
      %v2190 = vunpack.c.l.b16 %v654
      %v2191 = vunpack.c.l.b16 %v655
      %v2192 = vunpack.c.l.b16 %v656
      %v2193 = vunpack.c.l.b16 %v657
      %v2194 = vunpack.c.l.b16 %v658
      %v2195 = vunpack.c.l.b16 %v659
      %v2196 = vunpack.c.l.b16 %v660
      %v2197 = vunpack.c.l.b16 %v661
      %v2198 = vunpack.c.l.b16 %v662
      %v2199 = vunpack.c.l.b16 %v663
      %v2200 = vunpack.c.l.b16 %v664
      %v2201 = vunpack.c.l.b16 %v665
      %v2202 = vunpack.c.l.b16 %v666
      %v2203 = vunpack.c.l.b16 %v667
      %v2204 = vunpack.c.l.b16 %v668
      %v2205 = vunpack.c.l.b16 %v669
      %v2206 = vunpack.c.l.b16 %v670
      %v2207 = vunpack.c.l.b16 %v671
      %v2208 = vunpack.c.l.b16 %v672
      %v2209 = vunpack.c.l.b16 %v673
      %v2210 = vunpack.c.l.b16 %v674
      %v2211 = vunpack.c.l.b16 %v675
      %v2212 = vunpack.c.l.b16 %v676
      %v2213 = vunpack.c.l.b16 %v677
      %v2214 = vunpack.c.l.b16 %v678
      %v2215 = vunpack.c.l.b16 %v679
      %v2216 = vunpack.c.l.b16 %v680
      %v2217 = vunpack.c.l.b16 %v681
      %v2218 = vunpack.c.l.b16 %v682
      %v2219 = vunpack.c.l.b16 %v683
      %v2220 = vunpack.c.l.b16 %v684
      %v2221 = vunpack.c.l.b16 %v685
      %v2222 = vunpack.c.l.b16 %v686
      %v2223 = vunpack.c.l.b16 %v687
      %v2224 = vunpack.c.l.b16 %v688
      %v2225 = vunpack.c.l.b16 %v689
      %v2226 = vunpack.c.l.b16 %v690
      %v2227 = vunpack.c.l.b16 %v691
      %v2228 = vunpack.c.l.b16 %v692
      %v2229 = vunpack.c.l.b16 %v693
      %v2230 = vunpack.c.l.b16 %v694
      %v2231 = vunpack.c.l.b16 %v695
      %v2232 = vunpack.c.l.b16 %v696
      %v2233 = vunpack.c.l.b16 %v697
      %v2234 = vunpack.c.l.b16 %v698
      %v2235 = vunpack.c.l.b16 %v699
      %v2236 = vunpack.c.l.b16 %v700
      %v2237 = vunpack.c.l.b16 %v701
      %v2238 = vunpack.c.l.b16 %v702
      %v2239 = vunpack.c.l.b16 %v703
      %v2240 = vunpack.c.l.b16 %v704
      %v2241 = vunpack.c.l.b16 %v705
      %v2242 = vunpack.c.l.b16 %v706
      %v2243 = vunpack.c.l.b16 %v707
      %v2244 = vunpack.c.l.b16 %v708
      %v2245 = vunpack.c.l.b16 %v709
      %v2246 = vunpack.c.l.b16 %v710
      %v2247 = vunpack.c.l.b16 %v711
      %v2248 = vunpack.c.l.b16 %v712
      %v2249 = vunpack.c.l.b16 %v713
      %v2250 = vunpack.c.l.b16 %v714
      %v2251 = vunpack.c.l.b16 %v715
      %v2252 = vunpack.c.l.b16 %v716
      %v2253 = vunpack.c.l.b16 %v717
      %v2254 = vunpack.c.l.b16 %v718
      %v2255 = vunpack.c.l.b16 %v719
      %v2256 = vunpack.c.l.b16 %v720
      %v2257 = vunpack.c.l.b16 %v721
      %v2258 = vunpack.c.l.b16 %v722
      %v2259 = vunpack.c.l.b16 %v723
      %v2260 = vunpack.c.l.b16 %v724
      %v2261 = vunpack.c.l.b16 %v725
      %v2262 = vunpack.c.l.b16 %v726
      %v2263 = vunpack.c.l.b16 %v727
      %v2264 = vunpack.c.l.b16 %v728
      %v2265 = vunpack.c.l.b16 %v729
      %v2266 = vunpack.c.l.b16 %v730
      %v2267 = vunpack.c.l.b16 %v731
      %v2268 = vunpack.c.l.b16 %v732
      %v2269 = vunpack.c.l.b16 %v733
      %v2270 = vunpack.c.l.b16 %v734
      %v2271 = vunpack.c.l.b16 %v735
      %v2272 = vunpack.c.l.b16 %v736
      %v2273 = vunpack.c.l.b16 %v737
      %v2274 = vunpack.c.l.b16 %v738
      %v2275 = vunpack.c.l.b16 %v739
      %v2276 = vunpack.c.l.b16 %v740
      %v2277 = vunpack.c.l.b16 %v741
      %v2278 = vunpack.c.l.b16 %v742
      %v2279 = vunpack.c.l.b16 %v743
      %v2280 = vunpack.c.l.b16 %v744
      %v2281 = vpack.c.b16 %v2154, %v2153
      %v2282 = vpack.c.b16 %v2156, %v2155
      %v2283 = vpack.c.b16 %v2158, %v2157
      %v2284 = vpack.c.b16 %v2160, %v2159
      %v2285 = vpack.c.b16 %v2162, %v2161
      %v2286 = vpack.c.b16 %v2164, %v2163
      %v2287 = vpack.c.b16 %v2166, %v2165
      %v2288 = vpack.c.b16 %v2168, %v2167
      %v2289 = vpack.c.b16 %v2170, %v2169
      %v2290 = vpack.c.b16 %v2172, %v2171
      %v2291 = vpack.c.b16 %v2174, %v2173
      %v2292 = vpack.c.b16 %v2176, %v2175
      %v2293 = vpack.c.b16 %v2178, %v2177
      %v2294 = vpack.c.b16 %v2180, %v2179
      %v2295 = vpack.c.b16 %v2182, %v2181
      %v2296 = vpack.c.b16 %v2184, %v2183
      %v2297 = vpack.c.b16 %v2186, %v2185
      %v2298 = vpack.c.b16 %v2188, %v2187
      %v2299 = vpack.c.b16 %v2190, %v2189
      %v2300 = vpack.c.b16 %v2192, %v2191
      %v2301 = vpack.c.b16 %v2194, %v2193
      %v2302 = vpack.c.b16 %v2196, %v2195
      %v2303 = vpack.c.b16 %v2198, %v2197
      %v2304 = vpack.c.b16 %v2200, %v2199
      %v2305 = vpack.c.b16 %v2202, %v2201
      %v2306 = vpack.c.b16 %v2204, %v2203
      %v2307 = vpack.c.b16 %v2206, %v2205
      %v2308 = vpack.c.b16 %v2208, %v2207
      %v2309 = vpack.c.b16 %v2210, %v2209
      %v2310 = vpack.c.b16 %v2212, %v2211
      %v2311 = vpack.c.b16 %v2214, %v2213
      %v2312 = vpack.c.b16 %v2216, %v2215
      %v2313 = vpack.c.b16 %v2218, %v2217
      %v2314 = vpack.c.b16 %v2220, %v2219
      %v2315 = vpack.c.b16 %v2222, %v2221
      %v2316 = vpack.c.b16 %v2224, %v2223
      %v2317 = vpack.c.b16 %v2226, %v2225
      %v2318 = vpack.c.b16 %v2228, %v2227
      %v2319 = vpack.c.b16 %v2230, %v2229
      %v2320 = vpack.c.b16 %v2232, %v2231
      %v2321 = vpack.c.b16 %v2234, %v2233
      %v2322 = vpack.c.b16 %v2236, %v2235
      %v2323 = vpack.c.b16 %v2238, %v2237
      %v2324 = vpack.c.b16 %v2240, %v2239
      %v2325 = vpack.c.b16 %v2242, %v2241
      %v2326 = vpack.c.b16 %v2244, %v2243
      %v2327 = vpack.c.b16 %v2246, %v2245
      %v2328 = vpack.c.b16 %v2248, %v2247
      %v2329 = vpack.c.b16 %v2250, %v2249
      %v2330 = vpack.c.b16 %v2252, %v2251
      %v2331 = vpack.c.b16 %v2254, %v2253
      %v2332 = vpack.c.b16 %v2256, %v2255
      %v2333 = vpack.c.b16 %v2258, %v2257
      %v2334 = vpack.c.b16 %v2260, %v2259
      %v2335 = vpack.c.b16 %v2262, %v2261
      %v2336 = vpack.c.b16 %v2264, %v2263
      %v2337 = vpack.c.b16 %v2266, %v2265
      %v2338 = vpack.c.b16 %v2268, %v2267
      %v2339 = vpack.c.b16 %v2270, %v2269
      %v2340 = vpack.c.b16 %v2272, %v2271
      %v2341 = vpack.c.b16 %v2274, %v2273
      %v2342 = vpack.c.b16 %v2276, %v2275
      %v2343 = vpack.c.b16 %v2278, %v2277
      %v2344 = vpack.c.b16 %v2280, %v2279
      %2409 = vmatpush.bf16.msra.mxu0 %v2288
      %2410 = vmatpush.bf16.msra.mxu0 %v2287
      %2411 = vmatpush.bf16.msra.mxu0 %v2286
      %2412 = vmatpush.bf16.msra.mxu0 %v2285
      %2413 = vmatpush.bf16.msra.mxu0 %v2284
      %2414 = vmatpush.bf16.msra.mxu0 %v2283
      %2415 = vmatpush.bf16.msra.mxu0 %v2282
      %2416 = vmatpush.bf16.msra.mxu0 %v2281
      %2417 = vmatmul.bf16.gmra.mxu0 %v1513
      %v2418 = vpop.f32.mrf.mxu0
      %v2419 = vadd.f32 0.0, %v2418
      %v2420 = vpop.f32.mrf.mxu0
      %v2421 = vadd.f32 0.0, %v2420
      %2422 = vmatmul.bf16.gmra.mxu0 %v1521
      %v2423 = vpop.f32.mrf.mxu0
      %v2424 = vadd.f32 0.0, %v2423
      %v2425 = vpop.f32.mrf.mxu0
      %v2426 = vadd.f32 0.0, %v2425
      %2427 = vmatmul.bf16.gmra.mxu0 %v1529
      %v2428 = vpop.f32.mrf.mxu0
      %v2429 = vadd.f32 0.0, %v2428
      %v2430 = vpop.f32.mrf.mxu0
      %v2431 = vadd.f32 0.0, %v2430
      %2432 = vmatmul.bf16.gmra.mxu0 %v1537
      %v2433 = vpop.f32.mrf.mxu0
      %v2434 = vadd.f32 0.0, %v2433
      %v2435 = vpop.f32.mrf.mxu0
      %v2436 = vadd.f32 0.0, %v2435
      %2437 = vmatmul.bf16.gmra.mxu0 %v1545
      %v2438 = vpop.f32.mrf.mxu0
      %v2439 = vadd.f32 0.0, %v2438
      %v2440 = vpop.f32.mrf.mxu0
      %v2441 = vadd.f32 0.0, %v2440
      %2442 = vmatmul.bf16.gmra.mxu0 %v1553
      %v2443 = vpop.f32.mrf.mxu0
      %v2444 = vadd.f32 0.0, %v2443
      %v2445 = vpop.f32.mrf.mxu0
      %v2446 = vadd.f32 0.0, %v2445
      %2447 = vmatmul.bf16.gmra.mxu0 %v1561
      %v2448 = vpop.f32.mrf.mxu0
      %v2449 = vadd.f32 0.0, %v2448
      %v2450 = vpop.f32.mrf.mxu0
      %v2451 = vadd.f32 0.0, %v2450
      %2452 = vmatmul.bf16.gmra.mxu0 %v1569
      %v2453 = vpop.f32.mrf.mxu0
      %v2454 = vadd.f32 0.0, %v2453
      %v2455 = vpop.f32.mrf.mxu0
      %v2456 = vadd.f32 0.0, %v2455
      %2457 = vmatmul.bf16.gmra.mxu0 %v1577
      %v2458 = vpop.f32.mrf.mxu0
      %v2459 = vadd.f32 0.0, %v2458
      %v2460 = vpop.f32.mrf.mxu0
      %v2461 = vadd.f32 0.0, %v2460
      %2462 = vmatmul.bf16.gmra.mxu0 %v1585
      %v2463 = vpop.f32.mrf.mxu0
      %v2464 = vadd.f32 0.0, %v2463
      %v2465 = vpop.f32.mrf.mxu0
      %v2466 = vadd.f32 0.0, %v2465
      %2467 = vmatmul.bf16.gmra.mxu0 %v1593
      %v2468 = vpop.f32.mrf.mxu0
      %v2469 = vadd.f32 0.0, %v2468
      %v2470 = vpop.f32.mrf.mxu0
      %v2471 = vadd.f32 0.0, %v2470
      %2472 = vmatmul.bf16.gmra.mxu0 %v1601
      %v2473 = vpop.f32.mrf.mxu0
      %v2474 = vadd.f32 0.0, %v2473
      %v2475 = vpop.f32.mrf.mxu0
      %v2476 = vadd.f32 0.0, %v2475
      %2477 = vmatmul.bf16.gmra.mxu0 %v1609
      %v2478 = vpop.f32.mrf.mxu0
      %v2479 = vadd.f32 0.0, %v2478
      %v2480 = vpop.f32.mrf.mxu0
      %v2481 = vadd.f32 0.0, %v2480
      %2482 = vmatmul.bf16.gmra.mxu0 %v1617
      %v2483 = vpop.f32.mrf.mxu0
      %v2484 = vadd.f32 0.0, %v2483
      %v2485 = vpop.f32.mrf.mxu0
      %v2486 = vadd.f32 0.0, %v2485
      %2487 = vmatmul.bf16.gmra.mxu0 %v1625
      %v2488 = vpop.f32.mrf.mxu0
      %v2489 = vadd.f32 0.0, %v2488
      %v2490 = vpop.f32.mrf.mxu0
      %v2491 = vadd.f32 0.0, %v2490
      %2492 = vmatmul.bf16.gmra.mxu0 %v1633
      %v2493 = vpop.f32.mrf.mxu0
      %v2494 = vadd.f32 0.0, %v2493
      %v2495 = vpop.f32.mrf.mxu0
      %v2496 = vadd.f32 0.0, %v2495
      %2497 = vmatmul.bf16.gmra.mxu0 %v1641
      %v2498 = vpop.f32.mrf.mxu0
      %v2499 = vadd.f32 0.0, %v2498
      %v2500 = vpop.f32.mrf.mxu0
      %v2501 = vadd.f32 0.0, %v2500
      %2502 = vmatmul.bf16.gmra.mxu0 %v1649
      %v2503 = vpop.f32.mrf.mxu0
      %v2504 = vadd.f32 0.0, %v2503
      %v2505 = vpop.f32.mrf.mxu0
      %v2506 = vadd.f32 0.0, %v2505
      %2507 = vmatmul.bf16.gmra.mxu0 %v1657
      %v2508 = vpop.f32.mrf.mxu0
      %v2509 = vadd.f32 0.0, %v2508
      %v2510 = vpop.f32.mrf.mxu0
      %v2511 = vadd.f32 0.0, %v2510
      %2512 = vmatmul.bf16.gmra.mxu0 %v1665
      %v2513 = vpop.f32.mrf.mxu0
      %v2514 = vadd.f32 0.0, %v2513
      %v2515 = vpop.f32.mrf.mxu0
      %v2516 = vadd.f32 0.0, %v2515
      %2517 = vmatmul.bf16.gmra.mxu0 %v1673
      %v2518 = vpop.f32.mrf.mxu0
      %v2519 = vadd.f32 0.0, %v2518
      %v2520 = vpop.f32.mrf.mxu0
      %v2521 = vadd.f32 0.0, %v2520
      %2522 = vmatmul.bf16.gmra.mxu0 %v1681
      %v2523 = vpop.f32.mrf.mxu0
      %v2524 = vadd.f32 0.0, %v2523
      %v2525 = vpop.f32.mrf.mxu0
      %v2526 = vadd.f32 0.0, %v2525
      %2527 = vmatmul.bf16.gmra.mxu0 %v1689
      %v2528 = vpop.f32.mrf.mxu0
      %v2529 = vadd.f32 0.0, %v2528
      %v2530 = vpop.f32.mrf.mxu0
      %v2531 = vadd.f32 0.0, %v2530
      %2532 = vmatmul.bf16.gmra.mxu0 %v1697
      %v2533 = vpop.f32.mrf.mxu0
      %v2534 = vadd.f32 0.0, %v2533
      %v2535 = vpop.f32.mrf.mxu0
      %v2536 = vadd.f32 0.0, %v2535
      %2537 = vmatmul.bf16.gmra.mxu0 %v1705
      %v2538 = vpop.f32.mrf.mxu0
      %v2539 = vadd.f32 0.0, %v2538
      %v2540 = vpop.f32.mrf.mxu0
      %v2541 = vadd.f32 0.0, %v2540
      %2542 = vmatmul.bf16.gmra.mxu0 %v1713
      %v2543 = vpop.f32.mrf.mxu0
      %v2544 = vadd.f32 0.0, %v2543
      %v2545 = vpop.f32.mrf.mxu0
      %v2546 = vadd.f32 0.0, %v2545
      %2547 = vmatmul.bf16.gmra.mxu0 %v1721
      %v2548 = vpop.f32.mrf.mxu0
      %v2549 = vadd.f32 0.0, %v2548
      %v2550 = vpop.f32.mrf.mxu0
      %v2551 = vadd.f32 0.0, %v2550
      %2552 = vmatmul.bf16.gmra.mxu0 %v1729
      %v2553 = vpop.f32.mrf.mxu0
      %v2554 = vadd.f32 0.0, %v2553
      %v2555 = vpop.f32.mrf.mxu0
      %v2556 = vadd.f32 0.0, %v2555
      %2557 = vmatmul.bf16.gmra.mxu0 %v1737
      %v2558 = vpop.f32.mrf.mxu0
      %v2559 = vadd.f32 0.0, %v2558
      %v2560 = vpop.f32.mrf.mxu0
      %v2561 = vadd.f32 0.0, %v2560
      %2562 = vmatmul.bf16.gmra.mxu0 %v1745
      %v2563 = vpop.f32.mrf.mxu0
      %v2564 = vadd.f32 0.0, %v2563
      %v2565 = vpop.f32.mrf.mxu0
      %v2566 = vadd.f32 0.0, %v2565
      %2567 = vmatmul.bf16.gmra.mxu0 %v1753
      %v2568 = vpop.f32.mrf.mxu0
      %v2569 = vadd.f32 0.0, %v2568
      %v2570 = vpop.f32.mrf.mxu0
      %v2571 = vadd.f32 0.0, %v2570
      %2572 = vmatmul.bf16.gmra.mxu0 %v1761
      %v2573 = vpop.f32.mrf.mxu0
      %v2574 = vadd.f32 0.0, %v2573
      %v2575 = vpop.f32.mrf.mxu0
      %v2576 = vadd.f32 0.0, %v2575
      %2577 = vdwg.mxu0
      %2578 = vmatpush.bf16.msra.mxu0 %v2296
      %2579 = vmatpush.bf16.msra.mxu0 %v2295
      %2580 = vmatpush.bf16.msra.mxu0 %v2294
      %2581 = vmatpush.bf16.msra.mxu0 %v2293
      %2582 = vmatpush.bf16.msra.mxu0 %v2292
      %2583 = vmatpush.bf16.msra.mxu0 %v2291
      %2584 = vmatpush.bf16.msra.mxu0 %v2290
      %2585 = vmatpush.bf16.msra.mxu0 %v2289
      %2586 = vmatmul.bf16.gmra.mxu0 %v1514
      %v2587 = vpop.f32.mrf.mxu0
      %v2588 = vadd.f32 %v2419, %v2587
      %v2589 = vpop.f32.mrf.mxu0
      %v2590 = vadd.f32 %v2421, %v2589
      %2591 = vmatmul.bf16.gmra.mxu0 %v1522
      %v2592 = vpop.f32.mrf.mxu0
      %v2593 = vadd.f32 %v2424, %v2592
      %v2594 = vpop.f32.mrf.mxu0
      %v2595 = vadd.f32 %v2426, %v2594
      %2596 = vmatmul.bf16.gmra.mxu0 %v1530
      %v2597 = vpop.f32.mrf.mxu0
      %v2598 = vadd.f32 %v2429, %v2597
      %v2599 = vpop.f32.mrf.mxu0
      %v2600 = vadd.f32 %v2431, %v2599
      %2601 = vmatmul.bf16.gmra.mxu0 %v1538
      %v2602 = vpop.f32.mrf.mxu0
      %v2603 = vadd.f32 %v2434, %v2602
      %v2604 = vpop.f32.mrf.mxu0
      %v2605 = vadd.f32 %v2436, %v2604
      %2606 = vmatmul.bf16.gmra.mxu0 %v1546
      %v2607 = vpop.f32.mrf.mxu0
      %v2608 = vadd.f32 %v2439, %v2607
      %v2609 = vpop.f32.mrf.mxu0
      %v2610 = vadd.f32 %v2441, %v2609
      %2611 = vmatmul.bf16.gmra.mxu0 %v1554
      %v2612 = vpop.f32.mrf.mxu0
      %v2613 = vadd.f32 %v2444, %v2612
      %v2614 = vpop.f32.mrf.mxu0
      %v2615 = vadd.f32 %v2446, %v2614
      %2616 = vmatmul.bf16.gmra.mxu0 %v1562
      %v2617 = vpop.f32.mrf.mxu0
      %v2618 = vadd.f32 %v2449, %v2617
      %v2619 = vpop.f32.mrf.mxu0
      %v2620 = vadd.f32 %v2451, %v2619
      %2621 = vmatmul.bf16.gmra.mxu0 %v1570
      %v2622 = vpop.f32.mrf.mxu0
      %v2623 = vadd.f32 %v2454, %v2622
      %v2624 = vpop.f32.mrf.mxu0
      %v2625 = vadd.f32 %v2456, %v2624
      %2626 = vmatmul.bf16.gmra.mxu0 %v1578
      %v2627 = vpop.f32.mrf.mxu0
      %v2628 = vadd.f32 %v2459, %v2627
      %v2629 = vpop.f32.mrf.mxu0
      %v2630 = vadd.f32 %v2461, %v2629
      %2631 = vmatmul.bf16.gmra.mxu0 %v1586
      %v2632 = vpop.f32.mrf.mxu0
      %v2633 = vadd.f32 %v2464, %v2632
      %v2634 = vpop.f32.mrf.mxu0
      %v2635 = vadd.f32 %v2466, %v2634
      %2636 = vmatmul.bf16.gmra.mxu0 %v1594
      %v2637 = vpop.f32.mrf.mxu0
      %v2638 = vadd.f32 %v2469, %v2637
      %v2639 = vpop.f32.mrf.mxu0
      %v2640 = vadd.f32 %v2471, %v2639
      %2641 = vmatmul.bf16.gmra.mxu0 %v1602
      %v2642 = vpop.f32.mrf.mxu0
      %v2643 = vadd.f32 %v2474, %v2642
      %v2644 = vpop.f32.mrf.mxu0
      %v2645 = vadd.f32 %v2476, %v2644
      %2646 = vmatmul.bf16.gmra.mxu0 %v1610
      %v2647 = vpop.f32.mrf.mxu0
      %v2648 = vadd.f32 %v2479, %v2647
      %v2649 = vpop.f32.mrf.mxu0
      %v2650 = vadd.f32 %v2481, %v2649
      %2651 = vmatmul.bf16.gmra.mxu0 %v1618
      %v2652 = vpop.f32.mrf.mxu0
      %v2653 = vadd.f32 %v2484, %v2652
      %v2654 = vpop.f32.mrf.mxu0
      %v2655 = vadd.f32 %v2486, %v2654
      %2656 = vmatmul.bf16.gmra.mxu0 %v1626
      %v2657 = vpop.f32.mrf.mxu0
      %v2658 = vadd.f32 %v2489, %v2657
      %v2659 = vpop.f32.mrf.mxu0
      %v2660 = vadd.f32 %v2491, %v2659
      %2661 = vmatmul.bf16.gmra.mxu0 %v1634
      %v2662 = vpop.f32.mrf.mxu0
      %v2663 = vadd.f32 %v2494, %v2662
      %v2664 = vpop.f32.mrf.mxu0
      %v2665 = vadd.f32 %v2496, %v2664
      %2666 = vmatmul.bf16.gmra.mxu0 %v1642
      %v2667 = vpop.f32.mrf.mxu0
      %v2668 = vadd.f32 %v2499, %v2667
      %v2669 = vpop.f32.mrf.mxu0
      %v2670 = vadd.f32 %v2501, %v2669
      %2671 = vmatmul.bf16.gmra.mxu0 %v1650
      %v2672 = vpop.f32.mrf.mxu0
      %v2673 = vadd.f32 %v2504, %v2672
      %v2674 = vpop.f32.mrf.mxu0
      %v2675 = vadd.f32 %v2506, %v2674
      %2676 = vmatmul.bf16.gmra.mxu0 %v1658
      %v2677 = vpop.f32.mrf.mxu0
      %v2678 = vadd.f32 %v2509, %v2677
      %v2679 = vpop.f32.mrf.mxu0
      %v2680 = vadd.f32 %v2511, %v2679
      %2681 = vmatmul.bf16.gmra.mxu0 %v1666
      %v2682 = vpop.f32.mrf.mxu0
      %v2683 = vadd.f32 %v2514, %v2682
      %v2684 = vpop.f32.mrf.mxu0
      %v2685 = vadd.f32 %v2516, %v2684
      %2686 = vmatmul.bf16.gmra.mxu0 %v1674
      %v2687 = vpop.f32.mrf.mxu0
      %v2688 = vadd.f32 %v2519, %v2687
      %v2689 = vpop.f32.mrf.mxu0
      %v2690 = vadd.f32 %v2521, %v2689
      %2691 = vmatmul.bf16.gmra.mxu0 %v1682
      %v2692 = vpop.f32.mrf.mxu0
      %v2693 = vadd.f32 %v2524, %v2692
      %v2694 = vpop.f32.mrf.mxu0
      %v2695 = vadd.f32 %v2526, %v2694
      %2696 = vmatmul.bf16.gmra.mxu0 %v1690
      %v2697 = vpop.f32.mrf.mxu0
      %v2698 = vadd.f32 %v2529, %v2697
      %v2699 = vpop.f32.mrf.mxu0
      %v2700 = vadd.f32 %v2531, %v2699
      %2701 = vmatmul.bf16.gmra.mxu0 %v1698
      %v2702 = vpop.f32.mrf.mxu0
      %v2703 = vadd.f32 %v2534, %v2702
      %v2704 = vpop.f32.mrf.mxu0
      %v2705 = vadd.f32 %v2536, %v2704
      %2706 = vmatmul.bf16.gmra.mxu0 %v1706
      %v2707 = vpop.f32.mrf.mxu0
      %v2708 = vadd.f32 %v2539, %v2707
      %v2709 = vpop.f32.mrf.mxu0
      %v2710 = vadd.f32 %v2541, %v2709
      %2711 = vmatmul.bf16.gmra.mxu0 %v1714
      %v2712 = vpop.f32.mrf.mxu0
      %v2713 = vadd.f32 %v2544, %v2712
      %v2714 = vpop.f32.mrf.mxu0
      %v2715 = vadd.f32 %v2546, %v2714
      %2716 = vmatmul.bf16.gmra.mxu0 %v1722
      %v2717 = vpop.f32.mrf.mxu0
      %v2718 = vadd.f32 %v2549, %v2717
      %v2719 = vpop.f32.mrf.mxu0
      %v2720 = vadd.f32 %v2551, %v2719
      %2721 = vmatmul.bf16.gmra.mxu0 %v1730
      %v2722 = vpop.f32.mrf.mxu0
      %v2723 = vadd.f32 %v2554, %v2722
      %v2724 = vpop.f32.mrf.mxu0
      %v2725 = vadd.f32 %v2556, %v2724
      %2726 = vmatmul.bf16.gmra.mxu0 %v1738
      %v2727 = vpop.f32.mrf.mxu0
      %v2728 = vadd.f32 %v2559, %v2727
      %v2729 = vpop.f32.mrf.mxu0
      %v2730 = vadd.f32 %v2561, %v2729
      %2731 = vmatmul.bf16.gmra.mxu0 %v1746
      %v2732 = vpop.f32.mrf.mxu0
      %v2733 = vadd.f32 %v2564, %v2732
      %v2734 = vpop.f32.mrf.mxu0
      %v2735 = vadd.f32 %v2566, %v2734
      %2736 = vmatmul.bf16.gmra.mxu0 %v1754
      %v2737 = vpop.f32.mrf.mxu0
      %v2738 = vadd.f32 %v2569, %v2737
      %v2739 = vpop.f32.mrf.mxu0
      %v2740 = vadd.f32 %v2571, %v2739
      %2741 = vmatmul.bf16.gmra.mxu0 %v1762
      %v2742 = vpop.f32.mrf.mxu0
      %v2743 = vadd.f32 %v2574, %v2742
      %v2744 = vpop.f32.mrf.mxu0
      %v2745 = vadd.f32 %v2576, %v2744
      %2746 = vdwg.mxu0
      %2747 = vmatpush.bf16.msra.mxu0 %v2304
      %2748 = vmatpush.bf16.msra.mxu0 %v2303
      %2749 = vmatpush.bf16.msra.mxu0 %v2302
      %2750 = vmatpush.bf16.msra.mxu0 %v2301
      %2751 = vmatpush.bf16.msra.mxu0 %v2300
      %2752 = vmatpush.bf16.msra.mxu0 %v2299
      %2753 = vmatpush.bf16.msra.mxu0 %v2298
      %2754 = vmatpush.bf16.msra.mxu0 %v2297
      %2755 = vmatmul.bf16.gmra.mxu0 %v1515
      %v2756 = vpop.f32.mrf.mxu0
      %v2757 = vadd.f32 %v2588, %v2756
      %v2758 = vpop.f32.mrf.mxu0
      %v2759 = vadd.f32 %v2590, %v2758
      %2760 = vmatmul.bf16.gmra.mxu0 %v1523
      %v2761 = vpop.f32.mrf.mxu0
      %v2762 = vadd.f32 %v2593, %v2761
      %v2763 = vpop.f32.mrf.mxu0
      %v2764 = vadd.f32 %v2595, %v2763
      %2765 = vmatmul.bf16.gmra.mxu0 %v1531
      %v2766 = vpop.f32.mrf.mxu0
      %v2767 = vadd.f32 %v2598, %v2766
      %v2768 = vpop.f32.mrf.mxu0
      %v2769 = vadd.f32 %v2600, %v2768
      %2770 = vmatmul.bf16.gmra.mxu0 %v1539
      %v2771 = vpop.f32.mrf.mxu0
      %v2772 = vadd.f32 %v2603, %v2771
      %v2773 = vpop.f32.mrf.mxu0
      %v2774 = vadd.f32 %v2605, %v2773
      %2775 = vmatmul.bf16.gmra.mxu0 %v1547
      %v2776 = vpop.f32.mrf.mxu0
      %v2777 = vadd.f32 %v2608, %v2776
      %v2778 = vpop.f32.mrf.mxu0
      %v2779 = vadd.f32 %v2610, %v2778
      %2780 = vmatmul.bf16.gmra.mxu0 %v1555
      %v2781 = vpop.f32.mrf.mxu0
      %v2782 = vadd.f32 %v2613, %v2781
      %v2783 = vpop.f32.mrf.mxu0
      %v2784 = vadd.f32 %v2615, %v2783
      %2785 = vmatmul.bf16.gmra.mxu0 %v1563
      %v2786 = vpop.f32.mrf.mxu0
      %v2787 = vadd.f32 %v2618, %v2786
      %v2788 = vpop.f32.mrf.mxu0
      %v2789 = vadd.f32 %v2620, %v2788
      %2790 = vmatmul.bf16.gmra.mxu0 %v1571
      %v2791 = vpop.f32.mrf.mxu0
      %v2792 = vadd.f32 %v2623, %v2791
      %v2793 = vpop.f32.mrf.mxu0
      %v2794 = vadd.f32 %v2625, %v2793
      %2795 = vmatmul.bf16.gmra.mxu0 %v1579
      %v2796 = vpop.f32.mrf.mxu0
      %v2797 = vadd.f32 %v2628, %v2796
      %v2798 = vpop.f32.mrf.mxu0
      %v2799 = vadd.f32 %v2630, %v2798
      %2800 = vmatmul.bf16.gmra.mxu0 %v1587
      %v2801 = vpop.f32.mrf.mxu0
      %v2802 = vadd.f32 %v2633, %v2801
      %v2803 = vpop.f32.mrf.mxu0
      %v2804 = vadd.f32 %v2635, %v2803
      %2805 = vmatmul.bf16.gmra.mxu0 %v1595
      %v2806 = vpop.f32.mrf.mxu0
      %v2807 = vadd.f32 %v2638, %v2806
      %v2808 = vpop.f32.mrf.mxu0
      %v2809 = vadd.f32 %v2640, %v2808
      %2810 = vmatmul.bf16.gmra.mxu0 %v1603
      %v2811 = vpop.f32.mrf.mxu0
      %v2812 = vadd.f32 %v2643, %v2811
      %v2813 = vpop.f32.mrf.mxu0
      %v2814 = vadd.f32 %v2645, %v2813
      %2815 = vmatmul.bf16.gmra.mxu0 %v1611
      %v2816 = vpop.f32.mrf.mxu0
      %v2817 = vadd.f32 %v2648, %v2816
      %v2818 = vpop.f32.mrf.mxu0
      %v2819 = vadd.f32 %v2650, %v2818
      %2820 = vmatmul.bf16.gmra.mxu0 %v1619
      %v2821 = vpop.f32.mrf.mxu0
      %v2822 = vadd.f32 %v2653, %v2821
      %v2823 = vpop.f32.mrf.mxu0
      %v2824 = vadd.f32 %v2655, %v2823
      %2825 = vmatmul.bf16.gmra.mxu0 %v1627
      %v2826 = vpop.f32.mrf.mxu0
      %v2827 = vadd.f32 %v2658, %v2826
      %v2828 = vpop.f32.mrf.mxu0
      %v2829 = vadd.f32 %v2660, %v2828
      %2830 = vmatmul.bf16.gmra.mxu0 %v1635
      %v2831 = vpop.f32.mrf.mxu0
      %v2832 = vadd.f32 %v2663, %v2831
      %v2833 = vpop.f32.mrf.mxu0
      %v2834 = vadd.f32 %v2665, %v2833
      %2835 = vmatmul.bf16.gmra.mxu0 %v1643
      %v2836 = vpop.f32.mrf.mxu0
      %v2837 = vadd.f32 %v2668, %v2836
      %v2838 = vpop.f32.mrf.mxu0
      %v2839 = vadd.f32 %v2670, %v2838
      %2840 = vmatmul.bf16.gmra.mxu0 %v1651
      %v2841 = vpop.f32.mrf.mxu0
      %v2842 = vadd.f32 %v2673, %v2841
      %v2843 = vpop.f32.mrf.mxu0
      %v2844 = vadd.f32 %v2675, %v2843
      %2845 = vmatmul.bf16.gmra.mxu0 %v1659
      %v2846 = vpop.f32.mrf.mxu0
      %v2847 = vadd.f32 %v2678, %v2846
      %v2848 = vpop.f32.mrf.mxu0
      %v2849 = vadd.f32 %v2680, %v2848
      %2850 = vmatmul.bf16.gmra.mxu0 %v1667
      %v2851 = vpop.f32.mrf.mxu0
      %v2852 = vadd.f32 %v2683, %v2851
      %v2853 = vpop.f32.mrf.mxu0
      %v2854 = vadd.f32 %v2685, %v2853
      %2855 = vmatmul.bf16.gmra.mxu0 %v1675
      %v2856 = vpop.f32.mrf.mxu0
      %v2857 = vadd.f32 %v2688, %v2856
      %v2858 = vpop.f32.mrf.mxu0
      %v2859 = vadd.f32 %v2690, %v2858
      %2860 = vmatmul.bf16.gmra.mxu0 %v1683
      %v2861 = vpop.f32.mrf.mxu0
      %v2862 = vadd.f32 %v2693, %v2861
      %v2863 = vpop.f32.mrf.mxu0
      %v2864 = vadd.f32 %v2695, %v2863
      %2865 = vmatmul.bf16.gmra.mxu0 %v1691
      %v2866 = vpop.f32.mrf.mxu0
      %v2867 = vadd.f32 %v2698, %v2866
      %v2868 = vpop.f32.mrf.mxu0
      %v2869 = vadd.f32 %v2700, %v2868
      %2870 = vmatmul.bf16.gmra.mxu0 %v1699
      %v2871 = vpop.f32.mrf.mxu0
      %v2872 = vadd.f32 %v2703, %v2871
      %v2873 = vpop.f32.mrf.mxu0
      %v2874 = vadd.f32 %v2705, %v2873
      %2875 = vmatmul.bf16.gmra.mxu0 %v1707
      %v2876 = vpop.f32.mrf.mxu0
      %v2877 = vadd.f32 %v2708, %v2876
      %v2878 = vpop.f32.mrf.mxu0
      %v2879 = vadd.f32 %v2710, %v2878
      %2880 = vmatmul.bf16.gmra.mxu0 %v1715
      %v2881 = vpop.f32.mrf.mxu0
      %v2882 = vadd.f32 %v2713, %v2881
      %v2883 = vpop.f32.mrf.mxu0
      %v2884 = vadd.f32 %v2715, %v2883
      %2885 = vmatmul.bf16.gmra.mxu0 %v1723
      %v2886 = vpop.f32.mrf.mxu0
      %v2887 = vadd.f32 %v2718, %v2886
      %v2888 = vpop.f32.mrf.mxu0
      %v2889 = vadd.f32 %v2720, %v2888
      %2890 = vmatmul.bf16.gmra.mxu0 %v1731
      %v2891 = vpop.f32.mrf.mxu0
      %v2892 = vadd.f32 %v2723, %v2891
      %v2893 = vpop.f32.mrf.mxu0
      %v2894 = vadd.f32 %v2725, %v2893
      %2895 = vmatmul.bf16.gmra.mxu0 %v1739
      %v2896 = vpop.f32.mrf.mxu0
      %v2897 = vadd.f32 %v2728, %v2896
      %v2898 = vpop.f32.mrf.mxu0
      %v2899 = vadd.f32 %v2730, %v2898
      %2900 = vmatmul.bf16.gmra.mxu0 %v1747
      %v2901 = vpop.f32.mrf.mxu0
      %v2902 = vadd.f32 %v2733, %v2901
      %v2903 = vpop.f32.mrf.mxu0
      %v2904 = vadd.f32 %v2735, %v2903
      %2905 = vmatmul.bf16.gmra.mxu0 %v1755
      %v2906 = vpop.f32.mrf.mxu0
      %v2907 = vadd.f32 %v2738, %v2906
      %v2908 = vpop.f32.mrf.mxu0
      %v2909 = vadd.f32 %v2740, %v2908
      %2910 = vmatmul.bf16.gmra.mxu0 %v1763
      %v2911 = vpop.f32.mrf.mxu0
      %v2912 = vadd.f32 %v2743, %v2911
      %v2913 = vpop.f32.mrf.mxu0
      %v2914 = vadd.f32 %v2745, %v2913
      %2915 = vdwg.mxu0
      %2916 = vmatpush.bf16.msra.mxu0 %v2312
      %2917 = vmatpush.bf16.msra.mxu0 %v2311
      %2918 = vmatpush.bf16.msra.mxu0 %v2310
      %2919 = vmatpush.bf16.msra.mxu0 %v2309
      %2920 = vmatpush.bf16.msra.mxu0 %v2308
      %2921 = vmatpush.bf16.msra.mxu0 %v2307
      %2922 = vmatpush.bf16.msra.mxu0 %v2306
      %2923 = vmatpush.bf16.msra.mxu0 %v2305
      %2924 = vmatmul.bf16.gmra.mxu0 %v1516
      %v2925 = vpop.f32.mrf.mxu0
      %v2926 = vadd.f32 %v2757, %v2925
      %v2927 = vpop.f32.mrf.mxu0
      %v2928 = vadd.f32 %v2759, %v2927
      %2929 = vmatmul.bf16.gmra.mxu0 %v1524
      %v2930 = vpop.f32.mrf.mxu0
      %v2931 = vadd.f32 %v2762, %v2930
      %v2932 = vpop.f32.mrf.mxu0
      %v2933 = vadd.f32 %v2764, %v2932
      %2934 = vmatmul.bf16.gmra.mxu0 %v1532
      %v2935 = vpop.f32.mrf.mxu0
      %v2936 = vadd.f32 %v2767, %v2935
      %v2937 = vpop.f32.mrf.mxu0
      %v2938 = vadd.f32 %v2769, %v2937
      %2939 = vmatmul.bf16.gmra.mxu0 %v1540
      %v2940 = vpop.f32.mrf.mxu0
      %v2941 = vadd.f32 %v2772, %v2940
      %v2942 = vpop.f32.mrf.mxu0
      %v2943 = vadd.f32 %v2774, %v2942
      %2944 = vmatmul.bf16.gmra.mxu0 %v1548
      %v2945 = vpop.f32.mrf.mxu0
      %v2946 = vadd.f32 %v2777, %v2945
      %v2947 = vpop.f32.mrf.mxu0
      %v2948 = vadd.f32 %v2779, %v2947
      %2949 = vmatmul.bf16.gmra.mxu0 %v1556
      %v2950 = vpop.f32.mrf.mxu0
      %v2951 = vadd.f32 %v2782, %v2950
      %v2952 = vpop.f32.mrf.mxu0
      %v2953 = vadd.f32 %v2784, %v2952
      %2954 = vmatmul.bf16.gmra.mxu0 %v1564
      %v2955 = vpop.f32.mrf.mxu0
      %v2956 = vadd.f32 %v2787, %v2955
      %v2957 = vpop.f32.mrf.mxu0
      %v2958 = vadd.f32 %v2789, %v2957
      %2959 = vmatmul.bf16.gmra.mxu0 %v1572
      %v2960 = vpop.f32.mrf.mxu0
      %v2961 = vadd.f32 %v2792, %v2960
      %v2962 = vpop.f32.mrf.mxu0
      %v2963 = vadd.f32 %v2794, %v2962
      %2964 = vmatmul.bf16.gmra.mxu0 %v1580
      %v2965 = vpop.f32.mrf.mxu0
      %v2966 = vadd.f32 %v2797, %v2965
      %v2967 = vpop.f32.mrf.mxu0
      %v2968 = vadd.f32 %v2799, %v2967
      %2969 = vmatmul.bf16.gmra.mxu0 %v1588
      %v2970 = vpop.f32.mrf.mxu0
      %v2971 = vadd.f32 %v2802, %v2970
      %v2972 = vpop.f32.mrf.mxu0
      %v2973 = vadd.f32 %v2804, %v2972
      %2974 = vmatmul.bf16.gmra.mxu0 %v1596
      %v2975 = vpop.f32.mrf.mxu0
      %v2976 = vadd.f32 %v2807, %v2975
      %v2977 = vpop.f32.mrf.mxu0
      %v2978 = vadd.f32 %v2809, %v2977
      %2979 = vmatmul.bf16.gmra.mxu0 %v1604
      %v2980 = vpop.f32.mrf.mxu0
      %v2981 = vadd.f32 %v2812, %v2980
      %v2982 = vpop.f32.mrf.mxu0
      %v2983 = vadd.f32 %v2814, %v2982
      %2984 = vmatmul.bf16.gmra.mxu0 %v1612
      %v2985 = vpop.f32.mrf.mxu0
      %v2986 = vadd.f32 %v2817, %v2985
      %v2987 = vpop.f32.mrf.mxu0
      %v2988 = vadd.f32 %v2819, %v2987
      %2989 = vmatmul.bf16.gmra.mxu0 %v1620
      %v2990 = vpop.f32.mrf.mxu0
      %v2991 = vadd.f32 %v2822, %v2990
      %v2992 = vpop.f32.mrf.mxu0
      %v2993 = vadd.f32 %v2824, %v2992
      %2994 = vmatmul.bf16.gmra.mxu0 %v1628
      %v2995 = vpop.f32.mrf.mxu0
      %v2996 = vadd.f32 %v2827, %v2995
      %v2997 = vpop.f32.mrf.mxu0
      %v2998 = vadd.f32 %v2829, %v2997
      %2999 = vmatmul.bf16.gmra.mxu0 %v1636
      %v3000 = vpop.f32.mrf.mxu0
      %v3001 = vadd.f32 %v2832, %v3000
      %v3002 = vpop.f32.mrf.mxu0
      %v3003 = vadd.f32 %v2834, %v3002
      %3004 = vmatmul.bf16.gmra.mxu0 %v1644
      %v3005 = vpop.f32.mrf.mxu0
      %v3006 = vadd.f32 %v2837, %v3005
      %v3007 = vpop.f32.mrf.mxu0
      %v3008 = vadd.f32 %v2839, %v3007
      %3009 = vmatmul.bf16.gmra.mxu0 %v1652
      %v3010 = vpop.f32.mrf.mxu0
      %v3011 = vadd.f32 %v2842, %v3010
      %v3012 = vpop.f32.mrf.mxu0
      %v3013 = vadd.f32 %v2844, %v3012
      %3014 = vmatmul.bf16.gmra.mxu0 %v1660
      %v3015 = vpop.f32.mrf.mxu0
      %v3016 = vadd.f32 %v2847, %v3015
      %v3017 = vpop.f32.mrf.mxu0
      %v3018 = vadd.f32 %v2849, %v3017
      %3019 = vmatmul.bf16.gmra.mxu0 %v1668
      %v3020 = vpop.f32.mrf.mxu0
      %v3021 = vadd.f32 %v2852, %v3020
      %v3022 = vpop.f32.mrf.mxu0
      %v3023 = vadd.f32 %v2854, %v3022
      %3024 = vmatmul.bf16.gmra.mxu0 %v1676
      %v3025 = vpop.f32.mrf.mxu0
      %v3026 = vadd.f32 %v2857, %v3025
      %v3027 = vpop.f32.mrf.mxu0
      %v3028 = vadd.f32 %v2859, %v3027
      %3029 = vmatmul.bf16.gmra.mxu0 %v1684
      %v3030 = vpop.f32.mrf.mxu0
      %v3031 = vadd.f32 %v2862, %v3030
      %v3032 = vpop.f32.mrf.mxu0
      %v3033 = vadd.f32 %v2864, %v3032
      %3034 = vmatmul.bf16.gmra.mxu0 %v1692
      %v3035 = vpop.f32.mrf.mxu0
      %v3036 = vadd.f32 %v2867, %v3035
      %v3037 = vpop.f32.mrf.mxu0
      %v3038 = vadd.f32 %v2869, %v3037
      %3039 = vmatmul.bf16.gmra.mxu0 %v1700
      %v3040 = vpop.f32.mrf.mxu0
      %v3041 = vadd.f32 %v2872, %v3040
      %v3042 = vpop.f32.mrf.mxu0
      %v3043 = vadd.f32 %v2874, %v3042
      %3044 = vmatmul.bf16.gmra.mxu0 %v1708
      %v3045 = vpop.f32.mrf.mxu0
      %v3046 = vadd.f32 %v2877, %v3045
      %v3047 = vpop.f32.mrf.mxu0
      %v3048 = vadd.f32 %v2879, %v3047
      %3049 = vmatmul.bf16.gmra.mxu0 %v1716
      %v3050 = vpop.f32.mrf.mxu0
      %v3051 = vadd.f32 %v2882, %v3050
      %v3052 = vpop.f32.mrf.mxu0
      %v3053 = vadd.f32 %v2884, %v3052
      %3054 = vmatmul.bf16.gmra.mxu0 %v1724
      %v3055 = vpop.f32.mrf.mxu0
      %v3056 = vadd.f32 %v2887, %v3055
      %v3057 = vpop.f32.mrf.mxu0
      %v3058 = vadd.f32 %v2889, %v3057
      %3059 = vmatmul.bf16.gmra.mxu0 %v1732
      %v3060 = vpop.f32.mrf.mxu0
      %v3061 = vadd.f32 %v2892, %v3060
      %v3062 = vpop.f32.mrf.mxu0
      %v3063 = vadd.f32 %v2894, %v3062
      %3064 = vmatmul.bf16.gmra.mxu0 %v1740
      %v3065 = vpop.f32.mrf.mxu0
      %v3066 = vadd.f32 %v2897, %v3065
      %v3067 = vpop.f32.mrf.mxu0
      %v3068 = vadd.f32 %v2899, %v3067
      %3069 = vmatmul.bf16.gmra.mxu0 %v1748
      %v3070 = vpop.f32.mrf.mxu0
      %v3071 = vadd.f32 %v2902, %v3070
      %v3072 = vpop.f32.mrf.mxu0
      %v3073 = vadd.f32 %v2904, %v3072
      %3074 = vmatmul.bf16.gmra.mxu0 %v1756
      %v3075 = vpop.f32.mrf.mxu0
      %v3076 = vadd.f32 %v2907, %v3075
      %v3077 = vpop.f32.mrf.mxu0
      %v3078 = vadd.f32 %v2909, %v3077
      %3079 = vmatmul.bf16.gmra.mxu0 %v1764
      %v3080 = vpop.f32.mrf.mxu0
      %v3081 = vadd.f32 %v2912, %v3080
      %v3082 = vpop.f32.mrf.mxu0
      %v3083 = vadd.f32 %v2914, %v3082
      %3084 = vdwg.mxu0
      %3085 = vmatpush.bf16.msra.mxu0 %v2320
      %3086 = vmatpush.bf16.msra.mxu0 %v2319
      %3087 = vmatpush.bf16.msra.mxu0 %v2318
      %3088 = vmatpush.bf16.msra.mxu0 %v2317
      %3089 = vmatpush.bf16.msra.mxu0 %v2316
      %3090 = vmatpush.bf16.msra.mxu0 %v2315
      %3091 = vmatpush.bf16.msra.mxu0 %v2314
      %3092 = vmatpush.bf16.msra.mxu0 %v2313
      %3093 = vmatmul.bf16.gmra.mxu0 %v1517
      %v3094 = vpop.f32.mrf.mxu0
      %v3095 = vadd.f32 %v2926, %v3094
      %v3096 = vpop.f32.mrf.mxu0
      %v3097 = vadd.f32 %v2928, %v3096
      %3098 = vmatmul.bf16.gmra.mxu0 %v1525
      %v3099 = vpop.f32.mrf.mxu0
      %v3100 = vadd.f32 %v2931, %v3099
      %v3101 = vpop.f32.mrf.mxu0
      %v3102 = vadd.f32 %v2933, %v3101
      %3103 = vmatmul.bf16.gmra.mxu0 %v1533
      %v3104 = vpop.f32.mrf.mxu0
      %v3105 = vadd.f32 %v2936, %v3104
      %v3106 = vpop.f32.mrf.mxu0
      %v3107 = vadd.f32 %v2938, %v3106
      %3108 = vmatmul.bf16.gmra.mxu0 %v1541
      %v3109 = vpop.f32.mrf.mxu0
      %v3110 = vadd.f32 %v2941, %v3109
      %v3111 = vpop.f32.mrf.mxu0
      %v3112 = vadd.f32 %v2943, %v3111
      %3113 = vmatmul.bf16.gmra.mxu0 %v1549
      %v3114 = vpop.f32.mrf.mxu0
      %v3115 = vadd.f32 %v2946, %v3114
      %v3116 = vpop.f32.mrf.mxu0
      %v3117 = vadd.f32 %v2948, %v3116
      %3118 = vmatmul.bf16.gmra.mxu0 %v1557
      %v3119 = vpop.f32.mrf.mxu0
      %v3120 = vadd.f32 %v2951, %v3119
      %v3121 = vpop.f32.mrf.mxu0
      %v3122 = vadd.f32 %v2953, %v3121
      %3123 = vmatmul.bf16.gmra.mxu0 %v1565
      %v3124 = vpop.f32.mrf.mxu0
      %v3125 = vadd.f32 %v2956, %v3124
      %v3126 = vpop.f32.mrf.mxu0
      %v3127 = vadd.f32 %v2958, %v3126
      %3128 = vmatmul.bf16.gmra.mxu0 %v1573
      %v3129 = vpop.f32.mrf.mxu0
      %v3130 = vadd.f32 %v2961, %v3129
      %v3131 = vpop.f32.mrf.mxu0
      %v3132 = vadd.f32 %v2963, %v3131
      %3133 = vmatmul.bf16.gmra.mxu0 %v1581
      %v3134 = vpop.f32.mrf.mxu0
      %v3135 = vadd.f32 %v2966, %v3134
      %v3136 = vpop.f32.mrf.mxu0
      %v3137 = vadd.f32 %v2968, %v3136
      %3138 = vmatmul.bf16.gmra.mxu0 %v1589
      %v3139 = vpop.f32.mrf.mxu0
      %v3140 = vadd.f32 %v2971, %v3139
      %v3141 = vpop.f32.mrf.mxu0
      %v3142 = vadd.f32 %v2973, %v3141
      %3143 = vmatmul.bf16.gmra.mxu0 %v1597
      %v3144 = vpop.f32.mrf.mxu0
      %v3145 = vadd.f32 %v2976, %v3144
      %v3146 = vpop.f32.mrf.mxu0
      %v3147 = vadd.f32 %v2978, %v3146
      %3148 = vmatmul.bf16.gmra.mxu0 %v1605
      %v3149 = vpop.f32.mrf.mxu0
      %v3150 = vadd.f32 %v2981, %v3149
      %v3151 = vpop.f32.mrf.mxu0
      %v3152 = vadd.f32 %v2983, %v3151
      %3153 = vmatmul.bf16.gmra.mxu0 %v1613
      %v3154 = vpop.f32.mrf.mxu0
      %v3155 = vadd.f32 %v2986, %v3154
      %v3156 = vpop.f32.mrf.mxu0
      %v3157 = vadd.f32 %v2988, %v3156
      %3158 = vmatmul.bf16.gmra.mxu0 %v1621
      %v3159 = vpop.f32.mrf.mxu0
      %v3160 = vadd.f32 %v2991, %v3159
      %v3161 = vpop.f32.mrf.mxu0
      %v3162 = vadd.f32 %v2993, %v3161
      %3163 = vmatmul.bf16.gmra.mxu0 %v1629
      %v3164 = vpop.f32.mrf.mxu0
      %v3165 = vadd.f32 %v2996, %v3164
      %v3166 = vpop.f32.mrf.mxu0
      %v3167 = vadd.f32 %v2998, %v3166
      %3168 = vmatmul.bf16.gmra.mxu0 %v1637
      %v3169 = vpop.f32.mrf.mxu0
      %v3170 = vadd.f32 %v3001, %v3169
      %v3171 = vpop.f32.mrf.mxu0
      %v3172 = vadd.f32 %v3003, %v3171
      %3173 = vmatmul.bf16.gmra.mxu0 %v1645
      %v3174 = vpop.f32.mrf.mxu0
      %v3175 = vadd.f32 %v3006, %v3174
      %v3176 = vpop.f32.mrf.mxu0
      %v3177 = vadd.f32 %v3008, %v3176
      %3178 = vmatmul.bf16.gmra.mxu0 %v1653
      %v3179 = vpop.f32.mrf.mxu0
      %v3180 = vadd.f32 %v3011, %v3179
      %v3181 = vpop.f32.mrf.mxu0
      %v3182 = vadd.f32 %v3013, %v3181
      %3183 = vmatmul.bf16.gmra.mxu0 %v1661
      %v3184 = vpop.f32.mrf.mxu0
      %v3185 = vadd.f32 %v3016, %v3184
      %v3186 = vpop.f32.mrf.mxu0
      %v3187 = vadd.f32 %v3018, %v3186
      %3188 = vmatmul.bf16.gmra.mxu0 %v1669
      %v3189 = vpop.f32.mrf.mxu0
      %v3190 = vadd.f32 %v3021, %v3189
      %v3191 = vpop.f32.mrf.mxu0
      %v3192 = vadd.f32 %v3023, %v3191
      %3193 = vmatmul.bf16.gmra.mxu0 %v1677
      %v3194 = vpop.f32.mrf.mxu0
      %v3195 = vadd.f32 %v3026, %v3194
      %v3196 = vpop.f32.mrf.mxu0
      %v3197 = vadd.f32 %v3028, %v3196
      %3198 = vmatmul.bf16.gmra.mxu0 %v1685
      %v3199 = vpop.f32.mrf.mxu0
      %v3200 = vadd.f32 %v3031, %v3199
      %v3201 = vpop.f32.mrf.mxu0
      %v3202 = vadd.f32 %v3033, %v3201
      %3203 = vmatmul.bf16.gmra.mxu0 %v1693
      %v3204 = vpop.f32.mrf.mxu0
      %v3205 = vadd.f32 %v3036, %v3204
      %v3206 = vpop.f32.mrf.mxu0
      %v3207 = vadd.f32 %v3038, %v3206
      %3208 = vmatmul.bf16.gmra.mxu0 %v1701
      %v3209 = vpop.f32.mrf.mxu0
      %v3210 = vadd.f32 %v3041, %v3209
      %v3211 = vpop.f32.mrf.mxu0
      %v3212 = vadd.f32 %v3043, %v3211
      %3213 = vmatmul.bf16.gmra.mxu0 %v1709
      %v3214 = vpop.f32.mrf.mxu0
      %v3215 = vadd.f32 %v3046, %v3214
      %v3216 = vpop.f32.mrf.mxu0
      %v3217 = vadd.f32 %v3048, %v3216
      %3218 = vmatmul.bf16.gmra.mxu0 %v1717
      %v3219 = vpop.f32.mrf.mxu0
      %v3220 = vadd.f32 %v3051, %v3219
      %v3221 = vpop.f32.mrf.mxu0
      %v3222 = vadd.f32 %v3053, %v3221
      %3223 = vmatmul.bf16.gmra.mxu0 %v1725
      %v3224 = vpop.f32.mrf.mxu0
      %v3225 = vadd.f32 %v3056, %v3224
      %v3226 = vpop.f32.mrf.mxu0
      %v3227 = vadd.f32 %v3058, %v3226
      %3228 = vmatmul.bf16.gmra.mxu0 %v1733
      %v3229 = vpop.f32.mrf.mxu0
      %v3230 = vadd.f32 %v3061, %v3229
      %v3231 = vpop.f32.mrf.mxu0
      %v3232 = vadd.f32 %v3063, %v3231
      %3233 = vmatmul.bf16.gmra.mxu0 %v1741
      %v3234 = vpop.f32.mrf.mxu0
      %v3235 = vadd.f32 %v3066, %v3234
      %v3236 = vpop.f32.mrf.mxu0
      %v3237 = vadd.f32 %v3068, %v3236
      %3238 = vmatmul.bf16.gmra.mxu0 %v1749
      %v3239 = vpop.f32.mrf.mxu0
      %v3240 = vadd.f32 %v3071, %v3239
      %v3241 = vpop.f32.mrf.mxu0
      %v3242 = vadd.f32 %v3073, %v3241
      %3243 = vmatmul.bf16.gmra.mxu0 %v1757
      %v3244 = vpop.f32.mrf.mxu0
      %v3245 = vadd.f32 %v3076, %v3244
      %v3246 = vpop.f32.mrf.mxu0
      %v3247 = vadd.f32 %v3078, %v3246
      %3248 = vmatmul.bf16.gmra.mxu0 %v1765
      %v3249 = vpop.f32.mrf.mxu0
      %v3250 = vadd.f32 %v3081, %v3249
      %v3251 = vpop.f32.mrf.mxu0
      %v3252 = vadd.f32 %v3083, %v3251
      %3253 = vdwg.mxu0
      %3254 = vmatpush.bf16.msra.mxu0 %v2328
      %3255 = vmatpush.bf16.msra.mxu0 %v2327
      %3256 = vmatpush.bf16.msra.mxu0 %v2326
      %3257 = vmatpush.bf16.msra.mxu0 %v2325
      %3258 = vmatpush.bf16.msra.mxu0 %v2324
      %3259 = vmatpush.bf16.msra.mxu0 %v2323
      %3260 = vmatpush.bf16.msra.mxu0 %v2322
      %3261 = vmatpush.bf16.msra.mxu0 %v2321
      %3262 = vmatmul.bf16.gmra.mxu0 %v1518
      %v3263 = vpop.f32.mrf.mxu0
      %v3264 = vadd.f32 %v3095, %v3263
      %v3265 = vpop.f32.mrf.mxu0
      %v3266 = vadd.f32 %v3097, %v3265
      %3267 = vmatmul.bf16.gmra.mxu0 %v1526
      %v3268 = vpop.f32.mrf.mxu0
      %v3269 = vadd.f32 %v3100, %v3268
      %v3270 = vpop.f32.mrf.mxu0
      %v3271 = vadd.f32 %v3102, %v3270
      %3272 = vmatmul.bf16.gmra.mxu0 %v1534
      %v3273 = vpop.f32.mrf.mxu0
      %v3274 = vadd.f32 %v3105, %v3273
      %v3275 = vpop.f32.mrf.mxu0
      %v3276 = vadd.f32 %v3107, %v3275
      %3277 = vmatmul.bf16.gmra.mxu0 %v1542
      %v3278 = vpop.f32.mrf.mxu0
      %v3279 = vadd.f32 %v3110, %v3278
      %v3280 = vpop.f32.mrf.mxu0
      %v3281 = vadd.f32 %v3112, %v3280
      %3282 = vmatmul.bf16.gmra.mxu0 %v1550
      %v3283 = vpop.f32.mrf.mxu0
      %v3284 = vadd.f32 %v3115, %v3283
      %v3285 = vpop.f32.mrf.mxu0
      %v3286 = vadd.f32 %v3117, %v3285
      %3287 = vmatmul.bf16.gmra.mxu0 %v1558
      %v3288 = vpop.f32.mrf.mxu0
      %v3289 = vadd.f32 %v3120, %v3288
      %v3290 = vpop.f32.mrf.mxu0
      %v3291 = vadd.f32 %v3122, %v3290
      %3292 = vmatmul.bf16.gmra.mxu0 %v1566
      %v3293 = vpop.f32.mrf.mxu0
      %v3294 = vadd.f32 %v3125, %v3293
      %v3295 = vpop.f32.mrf.mxu0
      %v3296 = vadd.f32 %v3127, %v3295
      %3297 = vmatmul.bf16.gmra.mxu0 %v1574
      %v3298 = vpop.f32.mrf.mxu0
      %v3299 = vadd.f32 %v3130, %v3298
      %v3300 = vpop.f32.mrf.mxu0
      %v3301 = vadd.f32 %v3132, %v3300
      %3302 = vmatmul.bf16.gmra.mxu0 %v1582
      %v3303 = vpop.f32.mrf.mxu0
      %v3304 = vadd.f32 %v3135, %v3303
      %v3305 = vpop.f32.mrf.mxu0
      %v3306 = vadd.f32 %v3137, %v3305
      %3307 = vmatmul.bf16.gmra.mxu0 %v1590
      %v3308 = vpop.f32.mrf.mxu0
      %v3309 = vadd.f32 %v3140, %v3308
      %v3310 = vpop.f32.mrf.mxu0
      %v3311 = vadd.f32 %v3142, %v3310
      %3312 = vmatmul.bf16.gmra.mxu0 %v1598
      %v3313 = vpop.f32.mrf.mxu0
      %v3314 = vadd.f32 %v3145, %v3313
      %v3315 = vpop.f32.mrf.mxu0
      %v3316 = vadd.f32 %v3147, %v3315
      %3317 = vmatmul.bf16.gmra.mxu0 %v1606
      %v3318 = vpop.f32.mrf.mxu0
      %v3319 = vadd.f32 %v3150, %v3318
      %v3320 = vpop.f32.mrf.mxu0
      %v3321 = vadd.f32 %v3152, %v3320
      %3322 = vmatmul.bf16.gmra.mxu0 %v1614
      %v3323 = vpop.f32.mrf.mxu0
      %v3324 = vadd.f32 %v3155, %v3323
      %v3325 = vpop.f32.mrf.mxu0
      %v3326 = vadd.f32 %v3157, %v3325
      %3327 = vmatmul.bf16.gmra.mxu0 %v1622
      %v3328 = vpop.f32.mrf.mxu0
      %v3329 = vadd.f32 %v3160, %v3328
      %v3330 = vpop.f32.mrf.mxu0
      %v3331 = vadd.f32 %v3162, %v3330
      %3332 = vmatmul.bf16.gmra.mxu0 %v1630
      %v3333 = vpop.f32.mrf.mxu0
      %v3334 = vadd.f32 %v3165, %v3333
      %v3335 = vpop.f32.mrf.mxu0
      %v3336 = vadd.f32 %v3167, %v3335
      %3337 = vmatmul.bf16.gmra.mxu0 %v1638
      %v3338 = vpop.f32.mrf.mxu0
      %v3339 = vadd.f32 %v3170, %v3338
      %v3340 = vpop.f32.mrf.mxu0
      %v3341 = vadd.f32 %v3172, %v3340
      %3342 = vmatmul.bf16.gmra.mxu0 %v1646
      %v3343 = vpop.f32.mrf.mxu0
      %v3344 = vadd.f32 %v3175, %v3343
      %v3345 = vpop.f32.mrf.mxu0
      %v3346 = vadd.f32 %v3177, %v3345
      %3347 = vmatmul.bf16.gmra.mxu0 %v1654
      %v3348 = vpop.f32.mrf.mxu0
      %v3349 = vadd.f32 %v3180, %v3348
      %v3350 = vpop.f32.mrf.mxu0
      %v3351 = vadd.f32 %v3182, %v3350
      %3352 = vmatmul.bf16.gmra.mxu0 %v1662
      %v3353 = vpop.f32.mrf.mxu0
      %v3354 = vadd.f32 %v3185, %v3353
      %v3355 = vpop.f32.mrf.mxu0
      %v3356 = vadd.f32 %v3187, %v3355
      %3357 = vmatmul.bf16.gmra.mxu0 %v1670
      %v3358 = vpop.f32.mrf.mxu0
      %v3359 = vadd.f32 %v3190, %v3358
      %v3360 = vpop.f32.mrf.mxu0
      %v3361 = vadd.f32 %v3192, %v3360
      %3362 = vmatmul.bf16.gmra.mxu0 %v1678
      %v3363 = vpop.f32.mrf.mxu0
      %v3364 = vadd.f32 %v3195, %v3363
      %v3365 = vpop.f32.mrf.mxu0
      %v3366 = vadd.f32 %v3197, %v3365
      %3367 = vmatmul.bf16.gmra.mxu0 %v1686
      %v3368 = vpop.f32.mrf.mxu0
      %v3369 = vadd.f32 %v3200, %v3368
      %v3370 = vpop.f32.mrf.mxu0
      %v3371 = vadd.f32 %v3202, %v3370
      %3372 = vmatmul.bf16.gmra.mxu0 %v1694
      %v3373 = vpop.f32.mrf.mxu0
      %v3374 = vadd.f32 %v3205, %v3373
      %v3375 = vpop.f32.mrf.mxu0
      %v3376 = vadd.f32 %v3207, %v3375
      %3377 = vmatmul.bf16.gmra.mxu0 %v1702
      %v3378 = vpop.f32.mrf.mxu0
      %v3379 = vadd.f32 %v3210, %v3378
      %v3380 = vpop.f32.mrf.mxu0
      %v3381 = vadd.f32 %v3212, %v3380
      %3382 = vmatmul.bf16.gmra.mxu0 %v1710
      %v3383 = vpop.f32.mrf.mxu0
      %v3384 = vadd.f32 %v3215, %v3383
      %v3385 = vpop.f32.mrf.mxu0
      %v3386 = vadd.f32 %v3217, %v3385
      %3387 = vmatmul.bf16.gmra.mxu0 %v1718
      %v3388 = vpop.f32.mrf.mxu0
      %v3389 = vadd.f32 %v3220, %v3388
      %v3390 = vpop.f32.mrf.mxu0
      %v3391 = vadd.f32 %v3222, %v3390
      %3392 = vmatmul.bf16.gmra.mxu0 %v1726
      %v3393 = vpop.f32.mrf.mxu0
      %v3394 = vadd.f32 %v3225, %v3393
      %v3395 = vpop.f32.mrf.mxu0
      %v3396 = vadd.f32 %v3227, %v3395
      %3397 = vmatmul.bf16.gmra.mxu0 %v1734
      %v3398 = vpop.f32.mrf.mxu0
      %v3399 = vadd.f32 %v3230, %v3398
      %v3400 = vpop.f32.mrf.mxu0
      %v3401 = vadd.f32 %v3232, %v3400
      %3402 = vmatmul.bf16.gmra.mxu0 %v1742
      %v3403 = vpop.f32.mrf.mxu0
      %v3404 = vadd.f32 %v3235, %v3403
      %v3405 = vpop.f32.mrf.mxu0
      %v3406 = vadd.f32 %v3237, %v3405
      %3407 = vmatmul.bf16.gmra.mxu0 %v1750
      %v3408 = vpop.f32.mrf.mxu0
      %v3409 = vadd.f32 %v3240, %v3408
      %v3410 = vpop.f32.mrf.mxu0
      %v3411 = vadd.f32 %v3242, %v3410
      %3412 = vmatmul.bf16.gmra.mxu0 %v1758
      %v3413 = vpop.f32.mrf.mxu0
      %v3414 = vadd.f32 %v3245, %v3413
      %v3415 = vpop.f32.mrf.mxu0
      %v3416 = vadd.f32 %v3247, %v3415
      %3417 = vmatmul.bf16.gmra.mxu0 %v1766
      %v3418 = vpop.f32.mrf.mxu0
      %v3419 = vadd.f32 %v3250, %v3418
      %v3420 = vpop.f32.mrf.mxu0
      %v3421 = vadd.f32 %v3252, %v3420
      %3422 = vdwg.mxu0
      %3423 = vmatpush.bf16.msra.mxu0 %v2336
      %3424 = vmatpush.bf16.msra.mxu0 %v2335
      %3425 = vmatpush.bf16.msra.mxu0 %v2334
      %3426 = vmatpush.bf16.msra.mxu0 %v2333
      %3427 = vmatpush.bf16.msra.mxu0 %v2332
      %3428 = vmatpush.bf16.msra.mxu0 %v2331
      %3429 = vmatpush.bf16.msra.mxu0 %v2330
      %3430 = vmatpush.bf16.msra.mxu0 %v2329
      %3431 = vmatmul.bf16.gmra.mxu0 %v1519
      %v3432 = vpop.f32.mrf.mxu0
      %v3433 = vadd.f32 %v3264, %v3432
      %v3434 = vpop.f32.mrf.mxu0
      %v3435 = vadd.f32 %v3266, %v3434
      %3436 = vmatmul.bf16.gmra.mxu0 %v1527
      %v3437 = vpop.f32.mrf.mxu0
      %v3438 = vadd.f32 %v3269, %v3437
      %v3439 = vpop.f32.mrf.mxu0
      %v3440 = vadd.f32 %v3271, %v3439
      %3441 = vmatmul.bf16.gmra.mxu0 %v1535
      %v3442 = vpop.f32.mrf.mxu0
      %v3443 = vadd.f32 %v3274, %v3442
      %v3444 = vpop.f32.mrf.mxu0
      %v3445 = vadd.f32 %v3276, %v3444
      %3446 = vmatmul.bf16.gmra.mxu0 %v1543
      %v3447 = vpop.f32.mrf.mxu0
      %v3448 = vadd.f32 %v3279, %v3447
      %v3449 = vpop.f32.mrf.mxu0
      %v3450 = vadd.f32 %v3281, %v3449
      %3451 = vmatmul.bf16.gmra.mxu0 %v1551
      %v3452 = vpop.f32.mrf.mxu0
      %v3453 = vadd.f32 %v3284, %v3452
      %v3454 = vpop.f32.mrf.mxu0
      %v3455 = vadd.f32 %v3286, %v3454
      %3456 = vmatmul.bf16.gmra.mxu0 %v1559
      %v3457 = vpop.f32.mrf.mxu0
      %v3458 = vadd.f32 %v3289, %v3457
      %v3459 = vpop.f32.mrf.mxu0
      %v3460 = vadd.f32 %v3291, %v3459
      %3461 = vmatmul.bf16.gmra.mxu0 %v1567
      %v3462 = vpop.f32.mrf.mxu0
      %v3463 = vadd.f32 %v3294, %v3462
      %v3464 = vpop.f32.mrf.mxu0
      %v3465 = vadd.f32 %v3296, %v3464
      %3466 = vmatmul.bf16.gmra.mxu0 %v1575
      %v3467 = vpop.f32.mrf.mxu0
      %v3468 = vadd.f32 %v3299, %v3467
      %v3469 = vpop.f32.mrf.mxu0
      %v3470 = vadd.f32 %v3301, %v3469
      %3471 = vmatmul.bf16.gmra.mxu0 %v1583
      %v3472 = vpop.f32.mrf.mxu0
      %v3473 = vadd.f32 %v3304, %v3472
      %v3474 = vpop.f32.mrf.mxu0
      %v3475 = vadd.f32 %v3306, %v3474
      %3476 = vmatmul.bf16.gmra.mxu0 %v1591
      %v3477 = vpop.f32.mrf.mxu0
      %v3478 = vadd.f32 %v3309, %v3477
      %v3479 = vpop.f32.mrf.mxu0
      %v3480 = vadd.f32 %v3311, %v3479
      %3481 = vmatmul.bf16.gmra.mxu0 %v1599
      %v3482 = vpop.f32.mrf.mxu0
      %v3483 = vadd.f32 %v3314, %v3482
      %v3484 = vpop.f32.mrf.mxu0
      %v3485 = vadd.f32 %v3316, %v3484
      %3486 = vmatmul.bf16.gmra.mxu0 %v1607
      %v3487 = vpop.f32.mrf.mxu0
      %v3488 = vadd.f32 %v3319, %v3487
      %v3489 = vpop.f32.mrf.mxu0
      %v3490 = vadd.f32 %v3321, %v3489
      %3491 = vmatmul.bf16.gmra.mxu0 %v1615
      %v3492 = vpop.f32.mrf.mxu0
      %v3493 = vadd.f32 %v3324, %v3492
      %v3494 = vpop.f32.mrf.mxu0
      %v3495 = vadd.f32 %v3326, %v3494
      %3496 = vmatmul.bf16.gmra.mxu0 %v1623
      %v3497 = vpop.f32.mrf.mxu0
      %v3498 = vadd.f32 %v3329, %v3497
      %v3499 = vpop.f32.mrf.mxu0
      %v3500 = vadd.f32 %v3331, %v3499
      %3501 = vmatmul.bf16.gmra.mxu0 %v1631
      %v3502 = vpop.f32.mrf.mxu0
      %v3503 = vadd.f32 %v3334, %v3502
      %v3504 = vpop.f32.mrf.mxu0
      %v3505 = vadd.f32 %v3336, %v3504
      %3506 = vmatmul.bf16.gmra.mxu0 %v1639
      %v3507 = vpop.f32.mrf.mxu0
      %v3508 = vadd.f32 %v3339, %v3507
      %v3509 = vpop.f32.mrf.mxu0
      %v3510 = vadd.f32 %v3341, %v3509
      %3511 = vmatmul.bf16.gmra.mxu0 %v1647
      %v3512 = vpop.f32.mrf.mxu0
      %v3513 = vadd.f32 %v3344, %v3512
      %v3514 = vpop.f32.mrf.mxu0
      %v3515 = vadd.f32 %v3346, %v3514
      %3516 = vmatmul.bf16.gmra.mxu0 %v1655
      %v3517 = vpop.f32.mrf.mxu0
      %v3518 = vadd.f32 %v3349, %v3517
      %v3519 = vpop.f32.mrf.mxu0
      %v3520 = vadd.f32 %v3351, %v3519
      %3521 = vmatmul.bf16.gmra.mxu0 %v1663
      %v3522 = vpop.f32.mrf.mxu0
      %v3523 = vadd.f32 %v3354, %v3522
      %v3524 = vpop.f32.mrf.mxu0
      %v3525 = vadd.f32 %v3356, %v3524
      %3526 = vmatmul.bf16.gmra.mxu0 %v1671
      %v3527 = vpop.f32.mrf.mxu0
      %v3528 = vadd.f32 %v3359, %v3527
      %v3529 = vpop.f32.mrf.mxu0
      %v3530 = vadd.f32 %v3361, %v3529
      %3531 = vmatmul.bf16.gmra.mxu0 %v1679
      %v3532 = vpop.f32.mrf.mxu0
      %v3533 = vadd.f32 %v3364, %v3532
      %v3534 = vpop.f32.mrf.mxu0
      %v3535 = vadd.f32 %v3366, %v3534
      %3536 = vmatmul.bf16.gmra.mxu0 %v1687
      %v3537 = vpop.f32.mrf.mxu0
      %v3538 = vadd.f32 %v3369, %v3537
      %v3539 = vpop.f32.mrf.mxu0
      %v3540 = vadd.f32 %v3371, %v3539
      %3541 = vmatmul.bf16.gmra.mxu0 %v1695
      %v3542 = vpop.f32.mrf.mxu0
      %v3543 = vadd.f32 %v3374, %v3542
      %v3544 = vpop.f32.mrf.mxu0
      %v3545 = vadd.f32 %v3376, %v3544
      %3546 = vmatmul.bf16.gmra.mxu0 %v1703
      %v3547 = vpop.f32.mrf.mxu0
      %v3548 = vadd.f32 %v3379, %v3547
      %v3549 = vpop.f32.mrf.mxu0
      %v3550 = vadd.f32 %v3381, %v3549
      %3551 = vmatmul.bf16.gmra.mxu0 %v1711
      %v3552 = vpop.f32.mrf.mxu0
      %v3553 = vadd.f32 %v3384, %v3552
      %v3554 = vpop.f32.mrf.mxu0
      %v3555 = vadd.f32 %v3386, %v3554
      %3556 = vmatmul.bf16.gmra.mxu0 %v1719
      %v3557 = vpop.f32.mrf.mxu0
      %v3558 = vadd.f32 %v3389, %v3557
      %v3559 = vpop.f32.mrf.mxu0
      %v3560 = vadd.f32 %v3391, %v3559
      %3561 = vmatmul.bf16.gmra.mxu0 %v1727
      %v3562 = vpop.f32.mrf.mxu0
      %v3563 = vadd.f32 %v3394, %v3562
      %v3564 = vpop.f32.mrf.mxu0
      %v3565 = vadd.f32 %v3396, %v3564
      %3566 = vmatmul.bf16.gmra.mxu0 %v1735
      %v3567 = vpop.f32.mrf.mxu0
      %v3568 = vadd.f32 %v3399, %v3567
      %v3569 = vpop.f32.mrf.mxu0
      %v3570 = vadd.f32 %v3401, %v3569
      %3571 = vmatmul.bf16.gmra.mxu0 %v1743
      %v3572 = vpop.f32.mrf.mxu0
      %v3573 = vadd.f32 %v3404, %v3572
      %v3574 = vpop.f32.mrf.mxu0
      %v3575 = vadd.f32 %v3406, %v3574
      %3576 = vmatmul.bf16.gmra.mxu0 %v1751
      %v3577 = vpop.f32.mrf.mxu0
      %v3578 = vadd.f32 %v3409, %v3577
      %v3579 = vpop.f32.mrf.mxu0
      %v3580 = vadd.f32 %v3411, %v3579
      %3581 = vmatmul.bf16.gmra.mxu0 %v1759
      %v3582 = vpop.f32.mrf.mxu0
      %v3583 = vadd.f32 %v3414, %v3582
      %v3584 = vpop.f32.mrf.mxu0
      %v3585 = vadd.f32 %v3416, %v3584
      %3586 = vmatmul.bf16.gmra.mxu0 %v1767
      %v3587 = vpop.f32.mrf.mxu0
      %v3588 = vadd.f32 %v3419, %v3587
      %v3589 = vpop.f32.mrf.mxu0
      %v3590 = vadd.f32 %v3421, %v3589
      %3591 = vdwg.mxu0
      %3592 = vmatpush.bf16.msra.mxu0 %v2344
      %3593 = vmatpush.bf16.msra.mxu0 %v2343
      %3594 = vmatpush.bf16.msra.mxu0 %v2342
      %3595 = vmatpush.bf16.msra.mxu0 %v2341
      %3596 = vmatpush.bf16.msra.mxu0 %v2340
      %3597 = vmatpush.bf16.msra.mxu0 %v2339
      %3598 = vmatpush.bf16.msra.mxu0 %v2338
      %3599 = vmatpush.bf16.msra.mxu0 %v2337
      %3600 = vmatmul.bf16.gmra.mxu0 %v1520
      %v3601 = vpop.f32.mrf.mxu0
      %v3602 = vadd.f32 %v3433, %v3601
      %v3603 = vpop.f32.mrf.mxu0
      %v3604 = vadd.f32 %v3435, %v3603
      %3605 = vmatmul.bf16.gmra.mxu0 %v1528
      %v3606 = vpop.f32.mrf.mxu0
      %v3607 = vadd.f32 %v3438, %v3606
      %v3608 = vpop.f32.mrf.mxu0
      %v3609 = vadd.f32 %v3440, %v3608
      %3610 = vmatmul.bf16.gmra.mxu0 %v1536
      %v3611 = vpop.f32.mrf.mxu0
      %v3612 = vadd.f32 %v3443, %v3611
      %v3613 = vpop.f32.mrf.mxu0
      %v3614 = vadd.f32 %v3445, %v3613
      %3615 = vmatmul.bf16.gmra.mxu0 %v1544
      %v3616 = vpop.f32.mrf.mxu0
      %v3617 = vadd.f32 %v3448, %v3616
      %v3618 = vpop.f32.mrf.mxu0
      %v3619 = vadd.f32 %v3450, %v3618
      %3620 = vmatmul.bf16.gmra.mxu0 %v1552
      %v3621 = vpop.f32.mrf.mxu0
      %v3622 = vadd.f32 %v3453, %v3621
      %v3623 = vpop.f32.mrf.mxu0
      %v3624 = vadd.f32 %v3455, %v3623
      %3625 = vmatmul.bf16.gmra.mxu0 %v1560
      %v3626 = vpop.f32.mrf.mxu0
      %v3627 = vadd.f32 %v3458, %v3626
      %v3628 = vpop.f32.mrf.mxu0
      %v3629 = vadd.f32 %v3460, %v3628
      %3630 = vmatmul.bf16.gmra.mxu0 %v1568
      %v3631 = vpop.f32.mrf.mxu0
      %v3632 = vadd.f32 %v3463, %v3631
      %v3633 = vpop.f32.mrf.mxu0
      %v3634 = vadd.f32 %v3465, %v3633
      %3635 = vmatmul.bf16.gmra.mxu0 %v1576
      %v3636 = vpop.f32.mrf.mxu0
      %v3637 = vadd.f32 %v3468, %v3636
      %v3638 = vpop.f32.mrf.mxu0
      %v3639 = vadd.f32 %v3470, %v3638
      %3640 = vmatmul.bf16.gmra.mxu0 %v1584
      %v3641 = vpop.f32.mrf.mxu0
      %v3642 = vadd.f32 %v3473, %v3641
      %v3643 = vpop.f32.mrf.mxu0
      %v3644 = vadd.f32 %v3475, %v3643
      %3645 = vmatmul.bf16.gmra.mxu0 %v1592
      %v3646 = vpop.f32.mrf.mxu0
      %v3647 = vadd.f32 %v3478, %v3646
      %v3648 = vpop.f32.mrf.mxu0
      %v3649 = vadd.f32 %v3480, %v3648
      %3650 = vmatmul.bf16.gmra.mxu0 %v1600
      %v3651 = vpop.f32.mrf.mxu0
      %v3652 = vadd.f32 %v3483, %v3651
      %v3653 = vpop.f32.mrf.mxu0
      %v3654 = vadd.f32 %v3485, %v3653
      %3655 = vmatmul.bf16.gmra.mxu0 %v1608
      %v3656 = vpop.f32.mrf.mxu0
      %v3657 = vadd.f32 %v3488, %v3656
      %v3658 = vpop.f32.mrf.mxu0
      %v3659 = vadd.f32 %v3490, %v3658
      %3660 = vmatmul.bf16.gmra.mxu0 %v1616
      %v3661 = vpop.f32.mrf.mxu0
      %v3662 = vadd.f32 %v3493, %v3661
      %v3663 = vpop.f32.mrf.mxu0
      %v3664 = vadd.f32 %v3495, %v3663
      %3665 = vmatmul.bf16.gmra.mxu0 %v1624
      %v3666 = vpop.f32.mrf.mxu0
      %v3667 = vadd.f32 %v3498, %v3666
      %v3668 = vpop.f32.mrf.mxu0
      %v3669 = vadd.f32 %v3500, %v3668
      %3670 = vmatmul.bf16.gmra.mxu0 %v1632
      %v3671 = vpop.f32.mrf.mxu0
      %v3672 = vadd.f32 %v3503, %v3671
      %v3673 = vpop.f32.mrf.mxu0
      %v3674 = vadd.f32 %v3505, %v3673
      %3675 = vmatmul.bf16.gmra.mxu0 %v1640
      %v3676 = vpop.f32.mrf.mxu0
      %v3677 = vadd.f32 %v3508, %v3676
      %v3678 = vpop.f32.mrf.mxu0
      %v3679 = vadd.f32 %v3510, %v3678
      %3680 = vmatmul.bf16.gmra.mxu0 %v1648
      %v3681 = vpop.f32.mrf.mxu0
      %v3682 = vadd.f32 %v3513, %v3681
      %v3683 = vpop.f32.mrf.mxu0
      %v3684 = vadd.f32 %v3515, %v3683
      %3685 = vmatmul.bf16.gmra.mxu0 %v1656
      %v3686 = vpop.f32.mrf.mxu0
      %v3687 = vadd.f32 %v3518, %v3686
      %v3688 = vpop.f32.mrf.mxu0
      %v3689 = vadd.f32 %v3520, %v3688
      %3690 = vmatmul.bf16.gmra.mxu0 %v1664
      %v3691 = vpop.f32.mrf.mxu0
      %v3692 = vadd.f32 %v3523, %v3691
      %v3693 = vpop.f32.mrf.mxu0
      %v3694 = vadd.f32 %v3525, %v3693
      %3695 = vmatmul.bf16.gmra.mxu0 %v1672
      %v3696 = vpop.f32.mrf.mxu0
      %v3697 = vadd.f32 %v3528, %v3696
      %v3698 = vpop.f32.mrf.mxu0
      %v3699 = vadd.f32 %v3530, %v3698
      %3700 = vmatmul.bf16.gmra.mxu0 %v1680
      %v3701 = vpop.f32.mrf.mxu0
      %v3702 = vadd.f32 %v3533, %v3701
      %v3703 = vpop.f32.mrf.mxu0
      %v3704 = vadd.f32 %v3535, %v3703
      %3705 = vmatmul.bf16.gmra.mxu0 %v1688
      %v3706 = vpop.f32.mrf.mxu0
      %v3707 = vadd.f32 %v3538, %v3706
      %v3708 = vpop.f32.mrf.mxu0
      %v3709 = vadd.f32 %v3540, %v3708
      %3710 = vmatmul.bf16.gmra.mxu0 %v1696
      %v3711 = vpop.f32.mrf.mxu0
      %v3712 = vadd.f32 %v3543, %v3711
      %v3713 = vpop.f32.mrf.mxu0
      %v3714 = vadd.f32 %v3545, %v3713
      %3715 = vmatmul.bf16.gmra.mxu0 %v1704
      %v3716 = vpop.f32.mrf.mxu0
      %v3717 = vadd.f32 %v3548, %v3716
      %v3718 = vpop.f32.mrf.mxu0
      %v3719 = vadd.f32 %v3550, %v3718
      %3720 = vmatmul.bf16.gmra.mxu0 %v1712
      %v3721 = vpop.f32.mrf.mxu0
      %v3722 = vadd.f32 %v3553, %v3721
      %v3723 = vpop.f32.mrf.mxu0
      %v3724 = vadd.f32 %v3555, %v3723
      %3725 = vmatmul.bf16.gmra.mxu0 %v1720
      %v3726 = vpop.f32.mrf.mxu0
      %v3727 = vadd.f32 %v3558, %v3726
      %v3728 = vpop.f32.mrf.mxu0
      %v3729 = vadd.f32 %v3560, %v3728
      %3730 = vmatmul.bf16.gmra.mxu0 %v1728
      %v3731 = vpop.f32.mrf.mxu0
      %v3732 = vadd.f32 %v3563, %v3731
      %v3733 = vpop.f32.mrf.mxu0
      %v3734 = vadd.f32 %v3565, %v3733
      %3735 = vmatmul.bf16.gmra.mxu0 %v1736
      %v3736 = vpop.f32.mrf.mxu0
      %v3737 = vadd.f32 %v3568, %v3736
      %v3738 = vpop.f32.mrf.mxu0
      %v3739 = vadd.f32 %v3570, %v3738
      %3740 = vmatmul.bf16.gmra.mxu0 %v1744
      %v3741 = vpop.f32.mrf.mxu0
      %v3742 = vadd.f32 %v3573, %v3741
      %v3743 = vpop.f32.mrf.mxu0
      %v3744 = vadd.f32 %v3575, %v3743
      %3745 = vmatmul.bf16.gmra.mxu0 %v1752
      %v3746 = vpop.f32.mrf.mxu0
      %v3747 = vadd.f32 %v3578, %v3746
      %v3748 = vpop.f32.mrf.mxu0
      %v3749 = vadd.f32 %v3580, %v3748
      %3750 = vmatmul.bf16.gmra.mxu0 %v1760
      %v3751 = vpop.f32.mrf.mxu0
      %v3752 = vadd.f32 %v3583, %v3751
      %v3753 = vpop.f32.mrf.mxu0
      %v3754 = vadd.f32 %v3585, %v3753
      %3755 = vmatmul.bf16.gmra.mxu0 %v1768
      %v3756 = vpop.f32.mrf.mxu0
      %v3757 = vadd.f32 %v3588, %v3756
      %v3758 = vpop.f32.mrf.mxu0
      %v3759 = vadd.f32 %v3590, %v3758
      %3760 = vdwg.mxu0
      %v3761 = vadd.f32 %v297, %v3602
      %v3762 = vadd.f32 %v298, %v3604
      %v3763 = vadd.f32 %v299, %v3607
      %v3764 = vadd.f32 %v300, %v3609
      %v3765 = vadd.f32 %v301, %v3612
      %v3766 = vadd.f32 %v302, %v3614
      %v3767 = vadd.f32 %v303, %v3617
      %v3768 = vadd.f32 %v304, %v3619
      %v3769 = vadd.f32 %v305, %v3622
      %v3770 = vadd.f32 %v306, %v3624
      %v3771 = vadd.f32 %v307, %v3627
      %v3772 = vadd.f32 %v308, %v3629
      %v3773 = vadd.f32 %v309, %v3632
      %v3774 = vadd.f32 %v310, %v3634
      %v3775 = vadd.f32 %v311, %v3637
      %v3776 = vadd.f32 %v312, %v3639
      %v3777 = vadd.f32 %v313, %v3642
      %v3778 = vadd.f32 %v314, %v3644
      %v3779 = vadd.f32 %v315, %v3647
      %v3780 = vadd.f32 %v316, %v3649
      %v3781 = vadd.f32 %v317, %v3652
      %v3782 = vadd.f32 %v318, %v3654
      %v3783 = vadd.f32 %v319, %v3657
      %v3784 = vadd.f32 %v320, %v3659
      %v3785 = vadd.f32 %v321, %v3662
      %v3786 = vadd.f32 %v322, %v3664
      %v3787 = vadd.f32 %v323, %v3667
      %v3788 = vadd.f32 %v324, %v3669
      %v3789 = vadd.f32 %v325, %v3672
      %v3790 = vadd.f32 %v326, %v3674
      %v3791 = vadd.f32 %v327, %v3677
      %v3792 = vadd.f32 %v328, %v3679
      %v3793 = vadd.f32 %v329, %v3682
      %v3794 = vadd.f32 %v330, %v3684
      %v3795 = vadd.f32 %v331, %v3687
      %v3796 = vadd.f32 %v332, %v3689
      %v3797 = vadd.f32 %v333, %v3692
      %v3798 = vadd.f32 %v334, %v3694
      %v3799 = vadd.f32 %v335, %v3697
      %v3800 = vadd.f32 %v336, %v3699
      %v3801 = vadd.f32 %v337, %v3702
      %v3802 = vadd.f32 %v338, %v3704
      %v3803 = vadd.f32 %v339, %v3707
      %v3804 = vadd.f32 %v340, %v3709
      %v3805 = vadd.f32 %v341, %v3712
      %v3806 = vadd.f32 %v342, %v3714
      %v3807 = vadd.f32 %v343, %v3717
      %v3808 = vadd.f32 %v344, %v3719
      %v3809 = vadd.f32 %v345, %v3722
      %v3810 = vadd.f32 %v346, %v3724
      %v3811 = vadd.f32 %v347, %v3727
      %v3812 = vadd.f32 %v348, %v3729
      %v3813 = vadd.f32 %v349, %v3732
      %v3814 = vadd.f32 %v350, %v3734
      %v3815 = vadd.f32 %v351, %v3737
      %v3816 = vadd.f32 %v352, %v3739
      %v3817 = vadd.f32 %v353, %v3742
      %v3818 = vadd.f32 %v354, %v3744
      %v3819 = vadd.f32 %v355, %v3747
      %v3820 = vadd.f32 %v356, %v3749
      %v3821 = vadd.f32 %v357, %v3752
      %v3822 = vadd.f32 %v358, %v3754
      %v3823 = vadd.f32 %v359, %v3757
      %v3824 = vadd.f32 %v360, %v3759
      %vm3825 = vcmask 7168
      %3826 = vst.msk [vmem:[#allocation2] sm:$0xff] %vm3825, %v3761
      %3827 = vst.msk [vmem:[#allocation2 + $0x8] sm:$0xff] %vm3825, %v3762
      %3828 = vst.msk [vmem:[#allocation2 + $0x10] sm:$0xff] %vm3825, %v3763
      %3829 = vst.msk [vmem:[#allocation2 + $0x18] sm:$0xff] %vm3825, %v3764
      %3830 = vst.msk [vmem:[#allocation2 + $0x20] sm:$0xff] %vm3825, %v3765
      %3831 = vst.msk [vmem:[#allocation2 + $0x28] sm:$0xff] %vm3825, %v3766
      %3832 = vst.msk [vmem:[#allocation2 + $0x30] sm:$0xff] %vm3825, %v3767
      %3833 = vst.msk [vmem:[#allocation2 + $0x38] sm:$0xff] %vm3825, %v3768
      %3834 = vst.msk [vmem:[#allocation2 + $0x40] sm:$0xff] %vm3825, %v3769
      %3835 = vst.msk [vmem:[#allocation2 + $0x48] sm:$0xff] %vm3825, %v3770
      %3836 = vst.msk [vmem:[#allocation2 + $0x50] sm:$0xff] %vm3825, %v3771
      %3837 = vst.msk [vmem:[#allocation2 + $0x58] sm:$0xff] %vm3825, %v3772
      %3838 = vst.msk [vmem:[#allocation2 + $0x60] sm:$0xff] %vm3825, %v3773
      %3839 = vst.msk [vmem:[#allocation2 + $0x68] sm:$0xff] %vm3825, %v3774
      %3840 = vst.msk [vmem:[#allocation2 + $0x70] sm:$0xff] %vm3825, %v3775
      %3841 = vst.msk [vmem:[#allocation2 + $0x78] sm:$0xff] %vm3825, %v3776
      %3842 = vst.msk [vmem:[#allocation2 + $0x80] sm:$0xff] %vm3825, %v3777
      %3843 = vst.msk [vmem:[#allocation2 + $0x88] sm:$0xff] %vm3825, %v3778
      %3844 = vst.msk [vmem:[#allocation2 + $0x90] sm:$0xff] %vm3825, %v3779
      %3845 = vst.msk [vmem:[#allocation2 + $0x98] sm:$0xff] %vm3825, %v3780
      %3846 = vst.msk [vmem:[#allocation2 + $0xa0] sm:$0xff] %vm3825, %v3781
      %3847 = vst.msk [vmem:[#allocation2 + $0xa8] sm:$0xff] %vm3825, %v3782
      %3848 = vst.msk [vmem:[#allocation2 + $0xb0] sm:$0xff] %vm3825, %v3783
      %3849 = vst.msk [vmem:[#allocation2 + $0xb8] sm:$0xff] %vm3825, %v3784
      %3850 = vst.msk [vmem:[#allocation2 + $0xc0] sm:$0xff] %vm3825, %v3785
      %3851 = vst.msk [vmem:[#allocation2 + $0xc8] sm:$0xff] %vm3825, %v3786
      %3852 = vst.msk [vmem:[#allocation2 + $0xd0] sm:$0xff] %vm3825, %v3787
      %3853 = vst.msk [vmem:[#allocation2 + $0xd8] sm:$0xff] %vm3825, %v3788
      %3854 = vst.msk [vmem:[#allocation2 + $0xe0] sm:$0xff] %vm3825, %v3789
      %3855 = vst.msk [vmem:[#allocation2 + $0xe8] sm:$0xff] %vm3825, %v3790
      %3856 = vst.msk [vmem:[#allocation2 + $0xf0] sm:$0xff] %vm3825, %v3791
      %3857 = vst.msk [vmem:[#allocation2 + $0xf8] sm:$0xff] %vm3825, %v3792
      %3858 = vst.msk [vmem:[#allocation2 + $0x100] sm:$0xff] %vm3825, %v3793
      %3859 = vst.msk [vmem:[#allocation2 + $0x108] sm:$0xff] %vm3825, %v3794
      %3860 = vst.msk [vmem:[#allocation2 + $0x110] sm:$0xff] %vm3825, %v3795
      %3861 = vst.msk [vmem:[#allocation2 + $0x118] sm:$0xff] %vm3825, %v3796
      %3862 = vst.msk [vmem:[#allocation2 + $0x120] sm:$0xff] %vm3825, %v3797
      %3863 = vst.msk [vmem:[#allocation2 + $0x128] sm:$0xff] %vm3825, %v3798
      %3864 = vst.msk [vmem:[#allocation2 + $0x130] sm:$0xff] %vm3825, %v3799
      %3865 = vst.msk [vmem:[#allocation2 + $0x138] sm:$0xff] %vm3825, %v3800
      %3866 = vst.msk [vmem:[#allocation2 + $0x140] sm:$0xff] %vm3825, %v3801
      %3867 = vst.msk [vmem:[#allocation2 + $0x148] sm:$0xff] %vm3825, %v3802
      %3868 = vst.msk [vmem:[#allocation2 + $0x150] sm:$0xff] %vm3825, %v3803
      %3869 = vst.msk [vmem:[#allocation2 + $0x158] sm:$0xff] %vm3825, %v3804
      %3870 = vst.msk [vmem:[#allocation2 + $0x160] sm:$0xff] %vm3825, %v3805
      %3871 = vst.msk [vmem:[#allocation2 + $0x168] sm:$0xff] %vm3825, %v3806
      %3872 = vst.msk [vmem:[#allocation2 + $0x170] sm:$0xff] %vm3825, %v3807
      %3873 = vst.msk [vmem:[#allocation2 + $0x178] sm:$0xff] %vm3825, %v3808
      %3874 = vst.msk [vmem:[#allocation2 + $0x180] sm:$0xff] %vm3825, %v3809
      %3875 = vst.msk [vmem:[#allocation2 + $0x188] sm:$0xff] %vm3825, %v3810
      %3876 = vst.msk [vmem:[#allocation2 + $0x190] sm:$0xff] %vm3825, %v3811
      %3877 = vst.msk [vmem:[#allocation2 + $0x198] sm:$0xff] %vm3825, %v3812
      %3878 = vst.msk [vmem:[#allocation2 + $0x1a0] sm:$0xff] %vm3825, %v3813
      %3879 = vst.msk [vmem:[#allocation2 + $0x1a8] sm:$0xff] %vm3825, %v3814
      %3880 = vst.msk [vmem:[#allocation2 + $0x1b0] sm:$0xff] %vm3825, %v3815
      %3881 = vst.msk [vmem:[#allocation2 + $0x1b8] sm:$0xff] %vm3825, %v3816
      %3882 = vst.msk [vmem:[#allocation2 + $0x1c0] sm:$0xff] %vm3825, %v3817
      %3883 = vst.msk [vmem:[#allocation2 + $0x1c8] sm:$0xff] %vm3825, %v3818
      %3884 = vst.msk [vmem:[#allocation2 + $0x1d0] sm:$0xff] %vm3825, %v3819
      %3885 = vst.msk [vmem:[#allocation2 + $0x1d8] sm:$0xff] %vm3825, %v3820
      %3886 = vst.msk [vmem:[#allocation2 + $0x1e0] sm:$0xff] %vm3825, %v3821
      %3887 = vst.msk [vmem:[#allocation2 + $0x1e8] sm:$0xff] %vm3825, %v3822
      %3888 = vst.msk [vmem:[#allocation2 + $0x1f0] sm:$0xff] %vm3825, %v3823
      %3889 = vst.msk [vmem:[#allocation2 + $0x1f8] sm:$0xff] %vm3825, %v3824
      // Predicated region
      $region37: #{gnn_model_forward.3} parent=31 // pred_check
        %p3890 = pneg %p228
      $region38: #{gnn_model_forward.3} parent=31 // pred_check_branch
        %3892 = sbr.rel (%p3890) target = $region40
      $region39: #{gnn_model_forward.3} parent=31 // pred_region
        %v3893 = vld [vmem:[#allocation2] sm:$0xff]
        %v3894 = vld [vmem:[#allocation2 + $0x8] sm:$0xff]
        %v3895 = vld [vmem:[#allocation2 + $0x10] sm:$0xff]
        %v3896 = vld [vmem:[#allocation2 + $0x18] sm:$0xff]
        %v3897 = vld [vmem:[#allocation2 + $0x20] sm:$0xff]
        %v3898 = vld [vmem:[#allocation2 + $0x28] sm:$0xff]
        %v3899 = vld [vmem:[#allocation2 + $0x30] sm:$0xff]
        %v3900 = vld [vmem:[#allocation2 + $0x38] sm:$0xff]
        %v3901 = vld [vmem:[#allocation2 + $0x40] sm:$0xff]
        %v3902 = vld [vmem:[#allocation2 + $0x48] sm:$0xff]
        %v3903 = vld [vmem:[#allocation2 + $0x50] sm:$0xff]
        %v3904 = vld [vmem:[#allocation2 + $0x58] sm:$0xff]
        %v3905 = vld [vmem:[#allocation2 + $0x60] sm:$0xff]
        %v3906 = vld [vmem:[#allocation2 + $0x68] sm:$0xff]
        %v3907 = vld [vmem:[#allocation2 + $0x70] sm:$0xff]
        %v3908 = vld [vmem:[#allocation2 + $0x78] sm:$0xff]
        %v3909 = vld [vmem:[#allocation2 + $0x80] sm:$0xff]
        %v3910 = vld [vmem:[#allocation2 + $0x88] sm:$0xff]
        %v3911 = vld [vmem:[#allocation2 + $0x90] sm:$0xff]
        %v3912 = vld [vmem:[#allocation2 + $0x98] sm:$0xff]
        %v3913 = vld [vmem:[#allocation2 + $0xa0] sm:$0xff]
        %v3914 = vld [vmem:[#allocation2 + $0xa8] sm:$0xff]
        %v3915 = vld [vmem:[#allocation2 + $0xb0] sm:$0xff]
        %v3916 = vld [vmem:[#allocation2 + $0xb8] sm:$0xff]
        %v3917 = vld [vmem:[#allocation2 + $0xc0] sm:$0xff]
        %v3918 = vld [vmem:[#allocation2 + $0xc8] sm:$0xff]
        %v3919 = vld [vmem:[#allocation2 + $0xd0] sm:$0xff]
        %v3920 = vld [vmem:[#allocation2 + $0xd8] sm:$0xff]
        %v3921 = vld [vmem:[#allocation2 + $0xe0] sm:$0xff]
        %v3922 = vld [vmem:[#allocation2 + $0xe8] sm:$0xff]
        %v3923 = vld [vmem:[#allocation2 + $0xf0] sm:$0xff]
        %v3924 = vld [vmem:[#allocation2 + $0xf8] sm:$0xff]
        %v3925 = vld [vmem:[#allocation2 + $0x100] sm:$0xff]
        %v3926 = vld [vmem:[#allocation2 + $0x108] sm:$0xff]
        %v3927 = vld [vmem:[#allocation2 + $0x110] sm:$0xff]
        %v3928 = vld [vmem:[#allocation2 + $0x118] sm:$0xff]
        %v3929 = vld [vmem:[#allocation2 + $0x120] sm:$0xff]
        %v3930 = vld [vmem:[#allocation2 + $0x128] sm:$0xff]
        %v3931 = vld [vmem:[#allocation2 + $0x130] sm:$0xff]
        %v3932 = vld [vmem:[#allocation2 + $0x138] sm:$0xff]
        %v3933 = vld [vmem:[#allocation2 + $0x140] sm:$0xff]
        %v3934 = vld [vmem:[#allocation2 + $0x148] sm:$0xff]
        %v3935 = vld [vmem:[#allocation2 + $0x150] sm:$0xff]
        %v3936 = vld [vmem:[#allocation2 + $0x158] sm:$0xff]
        %v3937 = vld [vmem:[#allocation2 + $0x160] sm:$0xff]
        %v3938 = vld [vmem:[#allocation2 + $0x168] sm:$0xff]
        %v3939 = vld [vmem:[#allocation2 + $0x170] sm:$0xff]
        %v3940 = vld [vmem:[#allocation2 + $0x178] sm:$0xff]
        %v3941 = vld [vmem:[#allocation2 + $0x180] sm:$0xff]
        %v3942 = vld [vmem:[#allocation2 + $0x188] sm:$0xff]
        %v3943 = vld [vmem:[#allocation2 + $0x190] sm:$0xff]
        %v3944 = vld [vmem:[#allocation2 + $0x198] sm:$0xff]
        %v3945 = vld [vmem:[#allocation2 + $0x1a0] sm:$0xff]
        %v3946 = vld [vmem:[#allocation2 + $0x1a8] sm:$0xff]
        %v3947 = vld [vmem:[#allocation2 + $0x1b0] sm:$0xff]
        %v3948 = vld [vmem:[#allocation2 + $0x1b8] sm:$0xff]
        %v3949 = vld [vmem:[#allocation2 + $0x1c0] sm:$0xff]
        %v3950 = vld [vmem:[#allocation2 + $0x1c8] sm:$0xff]
        %v3951 = vld [vmem:[#allocation2 + $0x1d0] sm:$0xff]
        %v3952 = vld [vmem:[#allocation2 + $0x1d8] sm:$0xff]
        %v3953 = vld [vmem:[#allocation2 + $0x1e0] sm:$0xff]
        %v3954 = vld [vmem:[#allocation2 + $0x1e8] sm:$0xff]
        %v3955 = vld [vmem:[#allocation2 + $0x1f0] sm:$0xff]
        %v3956 = vld [vmem:[#allocation2 + $0x1f8] sm:$0xff]
        %s3957 = sld [smem:[#allocation3]]
        %v3958 = vstv %s3957
        %v3959 = vadd.f32 %v3893, %v3958
        %v3960 = vadd.f32 %v3894, %v3958
        %v3961 = vadd.f32 %v3895, %v3958
        %v3962 = vadd.f32 %v3896, %v3958
        %v3963 = vadd.f32 %v3897, %v3958
        %v3964 = vadd.f32 %v3898, %v3958
        %v3965 = vadd.f32 %v3899, %v3958
        %v3966 = vadd.f32 %v3900, %v3958
        %v3967 = vadd.f32 %v3901, %v3958
        %v3968 = vadd.f32 %v3902, %v3958
        %v3969 = vadd.f32 %v3903, %v3958
        %v3970 = vadd.f32 %v3904, %v3958
        %v3971 = vadd.f32 %v3905, %v3958
        %v3972 = vadd.f32 %v3906, %v3958
        %v3973 = vadd.f32 %v3907, %v3958
        %v3974 = vadd.f32 %v3908, %v3958
        %v3975 = vadd.f32 %v3909, %v3958
        %v3976 = vadd.f32 %v3910, %v3958
        %v3977 = vadd.f32 %v3911, %v3958
        %v3978 = vadd.f32 %v3912, %v3958
        %v3979 = vadd.f32 %v3913, %v3958
        %v3980 = vadd.f32 %v3914, %v3958
        %v3981 = vadd.f32 %v3915, %v3958
        %v3982 = vadd.f32 %v3916, %v3958
        %v3983 = vadd.f32 %v3917, %v3958
        %v3984 = vadd.f32 %v3918, %v3958
        %v3985 = vadd.f32 %v3919, %v3958
        %v3986 = vadd.f32 %v3920, %v3958
        %v3987 = vadd.f32 %v3921, %v3958
        %v3988 = vadd.f32 %v3922, %v3958
        %v3989 = vadd.f32 %v3923, %v3958
        %v3990 = vadd.f32 %v3924, %v3958
        %v3991 = vadd.f32 %v3925, %v3958
        %v3992 = vadd.f32 %v3926, %v3958
        %v3993 = vadd.f32 %v3927, %v3958
        %v3994 = vadd.f32 %v3928, %v3958
        %v3995 = vadd.f32 %v3929, %v3958
        %v3996 = vadd.f32 %v3930, %v3958
        %v3997 = vadd.f32 %v3931, %v3958
        %v3998 = vadd.f32 %v3932, %v3958
        %v3999 = vadd.f32 %v3933, %v3958
        %v4000 = vadd.f32 %v3934, %v3958
        %v4001 = vadd.f32 %v3935, %v3958
        %v4002 = vadd.f32 %v3936, %v3958
        %v4003 = vadd.f32 %v3937, %v3958
        %v4004 = vadd.f32 %v3938, %v3958
        %v4005 = vadd.f32 %v3939, %v3958
        %v4006 = vadd.f32 %v3940, %v3958
        %v4007 = vadd.f32 %v3941, %v3958
        %v4008 = vadd.f32 %v3942, %v3958
        %v4009 = vadd.f32 %v3943, %v3958
        %v4010 = vadd.f32 %v3944, %v3958
        %v4011 = vadd.f32 %v3945, %v3958
        %v4012 = vadd.f32 %v3946, %v3958
        %v4013 = vadd.f32 %v3947, %v3958
        %v4014 = vadd.f32 %v3948, %v3958
        %v4015 = vadd.f32 %v3949, %v3958
        %v4016 = vadd.f32 %v3950, %v3958
        %v4017 = vadd.f32 %v3951, %v3958
        %v4018 = vadd.f32 %v3952, %v3958
        %v4019 = vadd.f32 %v3953, %v3958
        %v4020 = vadd.f32 %v3954, %v3958
        %v4021 = vadd.f32 %v3955, %v3958
        %v4022 = vadd.f32 %v3956, %v3958
        %4023 = vst.msk [vmem:[%s226] sm:$0xff] %vm3825, %v3959
        %4024 = vst.msk [vmem:[%s226 + $0x8] sm:$0xff] %vm3825, %v3960
        %4025 = vst.msk [vmem:[%s226 + $0x10] sm:$0xff] %vm3825, %v3961
        %4026 = vst.msk [vmem:[%s226 + $0x18] sm:$0xff] %vm3825, %v3962
        %4027 = vst.msk [vmem:[%s226 + $0x20] sm:$0xff] %vm3825, %v3963
        %4028 = vst.msk [vmem:[%s226 + $0x28] sm:$0xff] %vm3825, %v3964
        %4029 = vst.msk [vmem:[%s226 + $0x30] sm:$0xff] %vm3825, %v3965
        %4030 = vst.msk [vmem:[%s226 + $0x38] sm:$0xff] %vm3825, %v3966
        %4031 = vst.msk [vmem:[%s226 + $0x40] sm:$0xff] %vm3825, %v3967
        %4032 = vst.msk [vmem:[%s226 + $0x48] sm:$0xff] %vm3825, %v3968
        %4033 = vst.msk [vmem:[%s226 + $0x50] sm:$0xff] %vm3825, %v3969
        %4034 = vst.msk [vmem:[%s226 + $0x58] sm:$0xff] %vm3825, %v3970
        %4035 = vst.msk [vmem:[%s226 + $0x60] sm:$0xff] %vm3825, %v3971
        %4036 = vst.msk [vmem:[%s226 + $0x68] sm:$0xff] %vm3825, %v3972
        %4037 = vst.msk [vmem:[%s226 + $0x70] sm:$0xff] %vm3825, %v3973
        %4038 = vst.msk [vmem:[%s226 + $0x78] sm:$0xff] %vm3825, %v3974
        %4039 = vst.msk [vmem:[%s226 + $0x80] sm:$0xff] %vm3825, %v3975
        %4040 = vst.msk [vmem:[%s226 + $0x88] sm:$0xff] %vm3825, %v3976
        %4041 = vst.msk [vmem:[%s226 + $0x90] sm:$0xff] %vm3825, %v3977
        %4042 = vst.msk [vmem:[%s226 + $0x98] sm:$0xff] %vm3825, %v3978
        %4043 = vst.msk [vmem:[%s226 + $0xa0] sm:$0xff] %vm3825, %v3979
        %4044 = vst.msk [vmem:[%s226 + $0xa8] sm:$0xff] %vm3825, %v3980
        %4045 = vst.msk [vmem:[%s226 + $0xb0] sm:$0xff] %vm3825, %v3981
        %4046 = vst.msk [vmem:[%s226 + $0xb8] sm:$0xff] %vm3825, %v3982
        %4047 = vst.msk [vmem:[%s226 + $0xc0] sm:$0xff] %vm3825, %v3983
        %4048 = vst.msk [vmem:[%s226 + $0xc8] sm:$0xff] %vm3825, %v3984
        %4049 = vst.msk [vmem:[%s226 + $0xd0] sm:$0xff] %vm3825, %v3985
        %4050 = vst.msk [vmem:[%s226 + $0xd8] sm:$0xff] %vm3825, %v3986
        %4051 = vst.msk [vmem:[%s226 + $0xe0] sm:$0xff] %vm3825, %v3987
        %4052 = vst.msk [vmem:[%s226 + $0xe8] sm:$0xff] %vm3825, %v3988
        %4053 = vst.msk [vmem:[%s226 + $0xf0] sm:$0xff] %vm3825, %v3989
        %4054 = vst.msk [vmem:[%s226 + $0xf8] sm:$0xff] %vm3825, %v3990
        %4055 = vst.msk [vmem:[%s226 + $0x100] sm:$0xff] %vm3825, %v3991
        %4056 = vst.msk [vmem:[%s226 + $0x108] sm:$0xff] %vm3825, %v3992
        %4057 = vst.msk [vmem:[%s226 + $0x110] sm:$0xff] %vm3825, %v3993
        %4058 = vst.msk [vmem:[%s226 + $0x118] sm:$0xff] %vm3825, %v3994
        %4059 = vst.msk [vmem:[%s226 + $0x120] sm:$0xff] %vm3825, %v3995
        %4060 = vst.msk [vmem:[%s226 + $0x128] sm:$0xff] %vm3825, %v3996
        %4061 = vst.msk [vmem:[%s226 + $0x130] sm:$0xff] %vm3825, %v3997
        %4062 = vst.msk [vmem:[%s226 + $0x138] sm:$0xff] %vm3825, %v3998
        %4063 = vst.msk [vmem:[%s226 + $0x140] sm:$0xff] %vm3825, %v3999
        %4064 = vst.msk [vmem:[%s226 + $0x148] sm:$0xff] %vm3825, %v4000
        %4065 = vst.msk [vmem:[%s226 + $0x150] sm:$0xff] %vm3825, %v4001
        %4066 = vst.msk [vmem:[%s226 + $0x158] sm:$0xff] %vm3825, %v4002
        %4067 = vst.msk [vmem:[%s226 + $0x160] sm:$0xff] %vm3825, %v4003
        %4068 = vst.msk [vmem:[%s226 + $0x168] sm:$0xff] %vm3825, %v4004
        %4069 = vst.msk [vmem:[%s226 + $0x170] sm:$0xff] %vm3825, %v4005
        %4070 = vst.msk [vmem:[%s226 + $0x178] sm:$0xff] %vm3825, %v4006
        %4071 = vst.msk [vmem:[%s226 + $0x180] sm:$0xff] %vm3825, %v4007
        %4072 = vst.msk [vmem:[%s226 + $0x188] sm:$0xff] %vm3825, %v4008
        %4073 = vst.msk [vmem:[%s226 + $0x190] sm:$0xff] %vm3825, %v4009
        %4074 = vst.msk [vmem:[%s226 + $0x198] sm:$0xff] %vm3825, %v4010
        %4075 = vst.msk [vmem:[%s226 + $0x1a0] sm:$0xff] %vm3825, %v4011
        %4076 = vst.msk [vmem:[%s226 + $0x1a8] sm:$0xff] %vm3825, %v4012
        %4077 = vst.msk [vmem:[%s226 + $0x1b0] sm:$0xff] %vm3825, %v4013
        %4078 = vst.msk [vmem:[%s226 + $0x1b8] sm:$0xff] %vm3825, %v4014
        %4079 = vst.msk [vmem:[%s226 + $0x1c0] sm:$0xff] %vm3825, %v4015
        %4080 = vst.msk [vmem:[%s226 + $0x1c8] sm:$0xff] %vm3825, %v4016
        %4081 = vst.msk [vmem:[%s226 + $0x1d0] sm:$0xff] %vm3825, %v4017
        %4082 = vst.msk [vmem:[%s226 + $0x1d8] sm:$0xff] %vm3825, %v4018
        %4083 = vst.msk [vmem:[%s226 + $0x1e0] sm:$0xff] %vm3825, %v4019
        %4084 = vst.msk [vmem:[%s226 + $0x1e8] sm:$0xff] %vm3825, %v4020
        %4085 = vst.msk [vmem:[%s226 + $0x1f0] sm:$0xff] %vm3825, %v4021
        %4086 = vst.msk [vmem:[%s226 + $0x1f8] sm:$0xff] %vm3825, %v4022
      $region40: #{gnn_model_forward.3} parent=31 // pred_fallthru
        _
      %s4087 = smul.u32 64, %s19
      %p4088 = scmp.lt.s32.totalorder %s4087, 127
      %s4089 = scalar_select %p4088, %s4087, 127
      %s4090 = smul.addr %s4089, 8
      %s4091 = scalar_lea.vmem %s3, %s4090
      // Predicated region
      $region41: #{gnn_model_forward.3} parent=31 // pred_check
        %p4092 = pneg %p120
      $region42: #{gnn_model_forward.3} parent=31 // pred_check_branch
        %4094 = sbr.rel (%p4092) target = $region44
      $region43: #{gnn_model_forward.3} parent=31 // pred_region
        %s4095 = smul.u32 64, %s19
      $region44: #{gnn_model_forward.3} parent=31 // pred_fallthru
        _
    $region32: #{gnn_model_forward.3} parent=5 // pred_fallthru
      _
    %p4096 = scmp.le.s32.totalorder 2, %s10
    // Predicated region
    $region45: #{gnn_model_forward.3} parent=5 // pred_check
      %p4097 = pneg %p4096
    $region46: #{gnn_model_forward.3} parent=5 // pred_check_branch
      %4099 = sbr.rel (%p4097) target = $region48
    $region47: #{gnn_model_forward.3} parent=5 // pred_region
      %s4100 = ssub.s32 %s10, 2
      // Predicated region
      $region49: #{gnn_model_forward.3} parent=47 // pred_check
        %p4101 = pneg %p126
      $region50: #{gnn_model_forward.3} parent=47 // pred_check_branch
        %4103 = sbr.rel (%p4101) target = $region52
      $region51: #{gnn_model_forward.3} parent=47 // pred_region
        %s4104 = smul.u32 64, %s21
        %p4105 = scmp.lt.s32.totalorder %s4104, 127
        %s4106 = scalar_select %p4105, %s4104, 127
        %s4107 = smul.addr %s4106, 8
        %s4108 = scalar_lea.vmem %s3, %s4107
      $region52: #{gnn_model_forward.3} parent=47 // pred_fallthru
        _
    $region48: #{gnn_model_forward.3} parent=5 // pred_fallthru
      _
  $region6: #{gnn_model_forward.3} parent=0 // loop_footer
    %s14 = sadd.s32 1, %s10
  $region7: #{gnn_model_forward.3} parent=0 // loop_footer_branch
    %9 = sbr.rel target = $region3
  $region8: #{gnn_model_forward.3} parent=0 // loop_exit
    _

</llo_original>
